<compile_context>
chip_gen: v7x
topology: tpu7x:2x2x1
jax: 0.10.0
libtpu: 0.0.40
codegen_flags: <defaults>
</compile_context>

<pallas_src>
import functools

import jax
import jax.numpy as jnp
from jax import lax
from jax.experimental import pallas as pl
from jax.experimental.pallas import tpu as pltpu

EPS = 1e-5


def _block_kernel(xpad_ref, t_ref,
                  w1_ref, b1_ref,
                  wm_ref, bm_ref,
                  g1_ref, be1_ref,
                  w2_ref, b2_ref,
                  g2_ref, be2_ref,
                  wt_ref, bt_ref,
                  out_ref,
                  pad_ref):
    B, Hp2, Wp2, Cin = xpad_ref.shape
    H, W = Hp2 - 2, Wp2 - 2
    Ho, Wo = H // 2, W // 2
    Cout = out_ref.shape[-1]
    N = B * H * W

    def bn(x2d, g_ref, b_ref, n):
        # one-pass batch stats: var = E[x^2] - E[x]^2; biased variance, eps=1e-5
        s = jnp.sum(x2d, axis=0, keepdims=True)
        ss = jnp.sum(x2d * x2d, axis=0, keepdims=True)
        mean = s * (1.0 / float(n))
        var = ss * (1.0 / float(n)) - mean * mean
        scale = lax.rsqrt(var + EPS) * g_ref[...]
        shift = b_ref[...] - mean * scale
        return x2d * scale + shift                              # single FMA pass

    # ----- conv1 (3x3, pad 1) as ONE im2col matmul -> relu -> BN1 -------------
    p1 = jnp.concatenate(
        [xpad_ref[:, kh:kh + H, kw:kw + W, :] for kh in range(3) for kw in range(3)],
        axis=-1).reshape(N, 9 * Cin)
    h = jnp.dot(p1, w1_ref[...], preferred_element_type=jnp.float32)
    h = jnp.maximum(h + b1_ref[...], 0.0)
    h = bn(h, g1_ref, be1_ref, N)                               # [N, Cout]

    # ----- time embedding: relu(Linear(t)), broadcast over (H, W) -------------
    te = jnp.dot(t_ref[...], wm_ref[...], preferred_element_type=jnp.float32)
    te = jnp.maximum(te + bm_ref[...], 0.0)                     # [B, Cout]
    h = (h.reshape(B, H * W, Cout) + te[:, None, :]).reshape(B, H, W, Cout)

    # ----- zero only the border strips of the padded scratch once -------------
    # pad_ref layout: interior h at [1:H+1, 1:W+1]; zeros at row 0, rows H+1..H+3,
    # col 0, cols W+1..W+3 (covers both the 3x3 pad-1 conv and the 4x4 pad-1 conv).
    pad_ref[:, 0:1, :, :] = jnp.zeros((B, 1, W + 4, Cout), jnp.float32)
    pad_ref[:, H + 1:H + 4, :, :] = jnp.zeros((B, 3, W + 4, Cout), jnp.float32)
    pad_ref[:, :, 0:1, :] = jnp.zeros((B, H + 4, 1, Cout), jnp.float32)
    pad_ref[:, :, W + 1:W + 4, :] = jnp.zeros((B, H + 4, 3, Cout), jnp.float32)

    # ----- conv2 (3x3, pad 1) as ONE im2col matmul -> relu -> BN2 -------------
    pad_ref[:, 1:H + 1, 1:W + 1, :] = h
    p2 = jnp.concatenate(
        [pad_ref[:, kh:kh + H, kw:kw + W, :] for kh in range(3) for kw in range(3)],
        axis=-1).reshape(N, 9 * Cout)
    h = jnp.dot(p2, w2_ref[...], preferred_element_type=jnp.float32)
    h = jnp.maximum(h + b2_ref[...], 0.0)
    h = bn(h, g2_ref, be2_ref, N)                               # [N, Cout]

    # ----- transform: Conv2d(Cout, Cout, 4, stride=2, pad=1), stride FUSED ----
    # Only the (Ho, Wo) kept outputs are computed. Parity-split strided reads:
    #   sub[r][s][b, i, j, :] == pad[b, 2*i + r, 2*j + s, :]
    # so patch element (kh, kw) of output (oh, ow) is sub[kh%2][kw%2][oh+kh//2, ow+kw//2].
    pad_ref[:, 1:H + 1, 1:W + 1, :] = h.reshape(B, H, W, Cout)
    sub = [[pad_ref[:, pl.ds(r, Ho + 2, stride=2), pl.ds(s, Wo + 2, stride=2), :]
            for s in range(2)] for r in range(2)]
    pt = jnp.concatenate(
        [sub[kh % 2][kw % 2][:, kh // 2:kh // 2 + Ho, kw // 2:kw // 2 + Wo, :]
         for kh in range(4) for kw in range(4)],
        axis=-1).reshape(B * Ho * Wo, 16 * Cout)
    o = jnp.dot(pt, wt_ref[...], preferred_element_type=jnp.float32) + bt_ref[...]
    out_ref[...] = o.reshape(B, Ho, Wo, Cout).astype(out_ref.dtype)


@jax.jit
def block_forward(x_nchw, t, p):
    B, Cin, H, W = x_nchw.shape
    assert H % 2 == 0 and W % 2 == 0, "stride-2 transform assumes even H, W"
    Cout = p['w1'].shape[-1]

    x = jnp.transpose(x_nchw, (0, 2, 3, 1))                 # NCHW -> NHWC (glue)
    xpad = jnp.pad(x, ((0, 0), (1, 1), (1, 1), (0, 0)))     # pad for 3x3 conv1

    # im2col weight flattening (tap-major, channel-minor) done once, outside.
    w1_2d = p['w1'].reshape(9 * Cin, Cout)
    w2_2d = p['w2'].reshape(9 * Cout, Cout)
    wt_2d = p['wt'].reshape(16 * Cout, Cout)

    n_in = 14
    out_nhwc = pl.pallas_call(
        _block_kernel,
        out_shape=jax.ShapeDtypeStruct((B, H // 2, W // 2, Cout), jnp.float32),
        in_specs=[pl.BlockSpec(memory_space=pltpu.MemorySpace.VMEM)] * n_in,
        out_specs=pl.BlockSpec(memory_space=pltpu.MemorySpace.VMEM),
        scratch_shapes=[pltpu.VMEM((B, H + 4, W + 4, Cout), jnp.float32)],
        compiler_params=pltpu.CompilerParams(vmem_limit_bytes=32 * 1024 * 1024),
    )(xpad, t,
      w1_2d, p['b1'], p['wm'], p['bm'], p['g1'], p['be1'],
      w2_2d, p['b2'], p['g2'], p['be2'], wt_2d, p['bt'])

    # transpose acts on the already stride-2 (4x smaller) output
    return jnp.transpose(out_nhwc, (0, 3, 1, 2))            # NHWC -> NCHW


# --------------------------- parameters & reference ---------------------------
def make_params(key, in_ch, out_ch, t_dim):
    ks = jax.random.split(key, 12)

    def nrm(k, shape, scale):
        return (scale * jax.random.normal(k, shape)).astype(jnp.float32)

    return dict(
        w1=nrm(ks[0], (3, 3, in_ch, out_ch), 1.0 / (3.0 * in_ch ** 0.5)),
        b1=nrm(ks[1], (1, out_ch), 0.1),
        wm=nrm(ks[2], (t_dim, out_ch), 1.0 / t_dim ** 0.5),
        bm=nrm(ks[3], (1, out_ch), 0.1),
        g1=1.0 + nrm(ks[4], (1, out_ch), 0.1),
        be1=nrm(ks[5], (1, out_ch), 0.1),
        w2=nrm(ks[6], (3, 3, out_ch, out_ch), 1.0 / (3.0 * out_ch ** 0.5)),
        b2=nrm(ks[7], (1, out_ch), 0.1),
        g2=1.0 + nrm(ks[8], (1, out_ch), 0.1),
        be2=nrm(ks[9], (1, out_ch), 0.1),
        wt=nrm(ks[10], (4, 4, out_ch, out_ch), 1.0 / (4.0 * out_ch ** 0.5)),
        bt=nrm(ks[11], (1, out_ch), 0.1),
    )


def _ref_bn(x, g, b):
    mean = jnp.mean(x, axis=(0, 1, 2), keepdims=True)
    var = jnp.mean((x - mean) ** 2, axis=(0, 1, 2), keepdims=True)
    return ((x - mean) * lax.rsqrt(var + EPS) * g.reshape(1, 1, 1, -1)
            + b.reshape(1, 1, 1, -1))


def ref_forward(x_nchw, t, p):
    dn = ('NHWC', 'HWIO', 'NHWC')
    conv = functools.partial(lax.conv_general_dilated, dimension_numbers=dn,
                             precision=lax.Precision.HIGHEST)
    x = jnp.transpose(x_nchw, (0, 2, 3, 1))
    h = conv(x, p['w1'], (1, 1), ((1, 1), (1, 1))) + p['b1'].reshape(1, 1, 1, -1)
    h = _ref_bn(jax.nn.relu(h), p['g1'], p['be1'])
    te = jax.nn.relu(t @ p['wm'] + p['bm'])
    h = h + te[:, None, None, :]
    h = conv(h, p['w2'], (1, 1), ((1, 1), (1, 1))) + p['b2'].reshape(1, 1, 1, -1)
    h = _ref_bn(jax.nn.relu(h), p['g2'], p['be2'])
    out = conv(h, p['wt'], (2, 2), ((1, 1), (1, 1))) + p['bt'].reshape(1, 1, 1, -1)
    return jnp.transpose(out, (0, 3, 1, 2))


if __name__ == "__main__":
    B, Cin, Cout, H, W, T = 2, 4, 8, 16, 16, 32
    key = jax.random.PRNGKey(0)
    kx, kt, kp = jax.random.split(key, 3)
    x = jax.random.normal(kx, (B, Cin, H, W), dtype=jnp.float32)   # NCHW, like PyTorch
    t = jax.random.normal(kt, (B, T), dtype=jnp.float32)
    params = make_params(kp, Cin, Cout, T)

    out = jax.block_until_ready(block_forward(x, t, params))
    ref = jax.block_until_ready(ref_forward(x, t, params))

    assert out.shape == (B, Cout, H // 2, W // 2), out.shape
    assert jnp.allclose(out, ref, atol=5e-3, rtol=5e-3), \
        f"max abs err = {float(jnp.max(jnp.abs(out - ref)))}"
    print("KERNEL_OK")
</pallas_src>

<mosaic_0001>
module attributes {stable_mosaic.version = 11 : i64} {
  func.func @_block_kernel(%arg0: memref<2x18x18x4xf32, #tpu.memory_space<vmem>>, %arg1: memref<2x32xf32, #tpu.memory_space<vmem>>, %arg2: memref<36x8xf32, #tpu.memory_space<vmem>>, %arg3: memref<1x8xf32, #tpu.memory_space<vmem>>, %arg4: memref<32x8xf32, #tpu.memory_space<vmem>>, %arg5: memref<1x8xf32, #tpu.memory_space<vmem>>, %arg6: memref<1x8xf32, #tpu.memory_space<vmem>>, %arg7: memref<1x8xf32, #tpu.memory_space<vmem>>, %arg8: memref<72x8xf32, #tpu.memory_space<vmem>>, %arg9: memref<1x8xf32, #tpu.memory_space<vmem>>, %arg10: memref<1x8xf32, #tpu.memory_space<vmem>>, %arg11: memref<1x8xf32, #tpu.memory_space<vmem>>, %arg12: memref<128x8xf32, #tpu.memory_space<vmem>>, %arg13: memref<1x8xf32, #tpu.memory_space<vmem>>, %arg14: memref<2x8x8x8xf32, #tpu.memory_space<vmem>>, %arg15: memref<2x20x20x8xf32, #tpu.memory_space<vmem>>) attributes {dimension_semantics = [], scalar_prefetch = 0 : i64, scratch_operands = 1 : i64, tpu.core_type = #tpu.core_type<tc>} {
    %c0 = arith.constant 0 : index
    %c0_0 = arith.constant 0 : index
    %c0_1 = arith.constant 0 : index
    %c0_2 = arith.constant 0 : index
    %0 = vector.load %arg0[%c0, %c0_0, %c0_1, %c0_2] : memref<2x18x18x4xf32, #tpu.memory_space<vmem>>, vector<2x16x16x4xf32>
    %c0_3 = arith.constant 0 : index
    %c0_4 = arith.constant 0 : index
    %c1 = arith.constant 1 : index
    %c0_5 = arith.constant 0 : index
    %1 = vector.load %arg0[%c0_3, %c0_4, %c1, %c0_5] : memref<2x18x18x4xf32, #tpu.memory_space<vmem>>, vector<2x16x16x4xf32>
    %c0_6 = arith.constant 0 : index
    %c0_7 = arith.constant 0 : index
    %c2 = arith.constant 2 : index
    %c0_8 = arith.constant 0 : index
    %2 = vector.load %arg0[%c0_6, %c0_7, %c2, %c0_8] : memref<2x18x18x4xf32, #tpu.memory_space<vmem>>, vector<2x16x16x4xf32>
    %c0_9 = arith.constant 0 : index
    %c1_10 = arith.constant 1 : index
    %c0_11 = arith.constant 0 : index
    %c0_12 = arith.constant 0 : index
    %3 = vector.load %arg0[%c0_9, %c1_10, %c0_11, %c0_12] : memref<2x18x18x4xf32, #tpu.memory_space<vmem>>, vector<2x16x16x4xf32>
    %c0_13 = arith.constant 0 : index
    %c1_14 = arith.constant 1 : index
    %c1_15 = arith.constant 1 : index
    %c0_16 = arith.constant 0 : index
    %4 = vector.load %arg0[%c0_13, %c1_14, %c1_15, %c0_16] : memref<2x18x18x4xf32, #tpu.memory_space<vmem>>, vector<2x16x16x4xf32>
    %c0_17 = arith.constant 0 : index
    %c1_18 = arith.constant 1 : index
    %c2_19 = arith.constant 2 : index
    %c0_20 = arith.constant 0 : index
    %5 = vector.load %arg0[%c0_17, %c1_18, %c2_19, %c0_20] : memref<2x18x18x4xf32, #tpu.memory_space<vmem>>, vector<2x16x16x4xf32>
    %c0_21 = arith.constant 0 : index
    %c2_22 = arith.constant 2 : index
    %c0_23 = arith.constant 0 : index
    %c0_24 = arith.constant 0 : index
    %6 = vector.load %arg0[%c0_21, %c2_22, %c0_23, %c0_24] : memref<2x18x18x4xf32, #tpu.memory_space<vmem>>, vector<2x16x16x4xf32>
    %c0_25 = arith.constant 0 : index
    %c2_26 = arith.constant 2 : index
    %c1_27 = arith.constant 1 : index
    %c0_28 = arith.constant 0 : index
    %7 = vector.load %arg0[%c0_25, %c2_26, %c1_27, %c0_28] : memref<2x18x18x4xf32, #tpu.memory_space<vmem>>, vector<2x16x16x4xf32>
    %c0_29 = arith.constant 0 : index
    %c2_30 = arith.constant 2 : index
    %c2_31 = arith.constant 2 : index
    %c0_32 = arith.constant 0 : index
    %8 = vector.load %arg0[%c0_29, %c2_30, %c2_31, %c0_32] : memref<2x18x18x4xf32, #tpu.memory_space<vmem>>, vector<2x16x16x4xf32>
    %9 = tpu.concatenate %0, %1, %2, %3, %4, %5, %6, %7, %8 in 3 : vector<2x16x16x4xf32>, vector<2x16x16x4xf32>, vector<2x16x16x4xf32>, vector<2x16x16x4xf32>, vector<2x16x16x4xf32>, vector<2x16x16x4xf32>, vector<2x16x16x4xf32>, vector<2x16x16x4xf32>, vector<2x16x16x4xf32> -> vector<2x16x16x36xf32>
    %10 = vector.shape_cast %9 : vector<2x16x16x36xf32> to vector<512x36xf32>
    %c0_33 = arith.constant 0 : index
    %c0_34 = arith.constant 0 : index
    %11 = vector.load %arg2[%c0_33, %c0_34] : memref<36x8xf32, #tpu.memory_space<vmem>>, vector<36x8xf32>
    %cst = arith.constant dense<0.000000e+00> : vector<512x8xf32>
    %12 = tpu.matmul %10, %11, %cst {dimension_numbers = #tpu.dot_dimension_numbers<[1], [0], [0], [1], [0, 0, 1, 1], [], []>} : vector<512x36xf32>, vector<36x8xf32>, vector<512x8xf32> -> vector<512x8xf32>
    %c0_35 = arith.constant 0 : index
    %c0_36 = arith.constant 0 : index
    %13 = vector.load %arg3[%c0_35, %c0_36] : memref<1x8xf32, #tpu.memory_space<vmem>>, vector<1x8xf32>
    %14 = vector.broadcast %13 : vector<1x8xf32> to vector<512x8xf32>
    %15 = arith.addf %12, %14 : vector<512x8xf32>
    %cst_37 = arith.constant 0.000000e+00 : f32
    %16 = vector.broadcast %cst_37 : f32 to vector<512x8xf32>
    %17 = arith.maximumf %15, %16 : vector<512x8xf32>
    %cst_38 = arith.constant dense<0.000000e+00> : vector<8xf32>
    %18 = vector.multi_reduction <add>, %17, %cst_38 [0] : vector<512x8xf32> to vector<8xf32>
    %19 = vector.shape_cast %18 : vector<8xf32> to vector<1x8xf32>
    %20 = arith.mulf %17, %17 : vector<512x8xf32>
    %cst_39 = arith.constant dense<0.000000e+00> : vector<8xf32>
    %21 = vector.multi_reduction <add>, %20, %cst_39 [0] : vector<512x8xf32> to vector<8xf32>
    %22 = vector.shape_cast %21 : vector<8xf32> to vector<1x8xf32>
    %cst_40 = arith.constant 0.001953125 : f32
    %23 = vector.broadcast %cst_40 : f32 to vector<1x8xf32>
    %24 = arith.mulf %19, %23 : vector<1x8xf32>
    %cst_41 = arith.constant 0.001953125 : f32
    %25 = vector.broadcast %cst_41 : f32 to vector<1x8xf32>
    %26 = arith.mulf %22, %25 : vector<1x8xf32>
    %27 = arith.mulf %24, %24 : vector<1x8xf32>
    %28 = arith.subf %26, %27 : vector<1x8xf32>
    %cst_42 = arith.constant 9.99999974E-6 : f32
    %29 = vector.broadcast %cst_42 : f32 to vector<1x8xf32>
    %30 = arith.addf %28, %29 : vector<1x8xf32>
    %31 = math.rsqrt %30 : vector<1x8xf32>
    %c0_43 = arith.constant 0 : index
    %c0_44 = arith.constant 0 : index
    %32 = vector.load %arg6[%c0_43, %c0_44] : memref<1x8xf32, #tpu.memory_space<vmem>>, vector<1x8xf32>
    %33 = arith.mulf %31, %32 : vector<1x8xf32>
    %c0_45 = arith.constant 0 : index
    %c0_46 = arith.constant 0 : index
    %34 = vector.load %arg7[%c0_45, %c0_46] : memref<1x8xf32, #tpu.memory_space<vmem>>, vector<1x8xf32>
    %35 = arith.mulf %24, %33 : vector<1x8xf32>
    %36 = arith.subf %34, %35 : vector<1x8xf32>
    %37 = vector.broadcast %33 : vector<1x8xf32> to vector<512x8xf32>
    %38 = arith.mulf %17, %37 : vector<512x8xf32>
    %39 = vector.broadcast %36 : vector<1x8xf32> to vector<512x8xf32>
    %40 = arith.addf %38, %39 : vector<512x8xf32>
    %c0_47 = arith.constant 0 : index
    %c0_48 = arith.constant 0 : index
    %41 = vector.load %arg1[%c0_47, %c0_48] : memref<2x32xf32, #tpu.memory_space<vmem>>, vector<2x32xf32>
    %c0_49 = arith.constant 0 : index
    %c0_50 = arith.constant 0 : index
    %42 = vector.load %arg4[%c0_49, %c0_50] : memref<32x8xf32, #tpu.memory_space<vmem>>, vector<32x8xf32>
    %cst_51 = arith.constant dense<0.000000e+00> : vector<2x8xf32>
    %43 = tpu.matmul %41, %42, %cst_51 {dimension_numbers = #tpu.dot_dimension_numbers<[1], [0], [0], [1], [0, 0, 1, 1], [], []>} : vector<2x32xf32>, vector<32x8xf32>, vector<2x8xf32> -> vector<2x8xf32>
    %c0_52 = arith.constant 0 : index
    %c0_53 = arith.constant 0 : index
    %44 = vector.load %arg5[%c0_52, %c0_53] : memref<1x8xf32, #tpu.memory_space<vmem>>, vector<1x8xf32>
    %45 = vector.broadcast %44 : vector<1x8xf32> to vector<2x8xf32>
    %46 = arith.addf %43, %45 : vector<2x8xf32>
    %cst_54 = arith.constant 0.000000e+00 : f32
    %47 = vector.broadcast %cst_54 : f32 to vector<2x8xf32>
    %48 = arith.maximumf %46, %47 : vector<2x8xf32>
    %49 = vector.shape_cast %40 : vector<512x8xf32> to vector<2x256x8xf32>
    %50 = vector.shape_cast %48 : vector<2x8xf32> to vector<2x1x8xf32>
    %51 = vector.broadcast %50 : vector<2x1x8xf32> to vector<2x256x8xf32>
    %52 = arith.addf %49, %51 : vector<2x256x8xf32>
    %53 = vector.shape_cast %52 : vector<2x256x8xf32> to vector<2x16x16x8xf32>
    %cst_55 = arith.constant 0.000000e+00 : f32
    %54 = vector.broadcast %cst_55 : f32 to vector<2x1x20x8xf32>
    %c0_56 = arith.constant 0 : index
    %c0_57 = arith.constant 0 : index
    %c0_58 = arith.constant 0 : index
    %c0_59 = arith.constant 0 : index
    %55 = vector.load %arg15[%c0_56, %c0_57, %c0_58, %c0_59] : memref<2x20x20x8xf32, #tpu.memory_space<vmem>>, vector<2x1x20x8xf32>
    tpu.vector_store %arg15[%c0_56, %c0_57, %c0_58, %c0_59], %54 {strides = array<i32>} : memref<2x20x20x8xf32, #tpu.memory_space<vmem>>, vector<2x1x20x8xf32>,
    %cst_60 = arith.constant 0.000000e+00 : f32
    %56 = vector.broadcast %cst_60 : f32 to vector<2x3x20x8xf32>
    %c0_61 = arith.constant 0 : index
    %c17 = arith.constant 17 : index
    %c0_62 = arith.constant 0 : index
    %c0_63 = arith.constant 0 : index
    %57 = vector.load %arg15[%c0_61, %c17, %c0_62, %c0_63] : memref<2x20x20x8xf32, #tpu.memory_space<vmem>>, vector<2x3x20x8xf32>
    tpu.vector_store %arg15[%c0_61, %c17, %c0_62, %c0_63], %56 {strides = array<i32>} : memref<2x20x20x8xf32, #tpu.memory_space<vmem>>, vector<2x3x20x8xf32>,
    %cst_64 = arith.constant 0.000000e+00 : f32
    %58 = vector.broadcast %cst_64 : f32 to vector<2x20x1x8xf32>
    %c0_65 = arith.constant 0 : index
    %c0_66 = arith.constant 0 : index
    %c0_67 = arith.constant 0 : index
    %c0_68 = arith.constant 0 : index
    %59 = vector.load %arg15[%c0_65, %c0_66, %c0_67, %c0_68] : memref<2x20x20x8xf32, #tpu.memory_space<vmem>>, vector<2x20x1x8xf32>
    tpu.vector_store %arg15[%c0_65, %c0_66, %c0_67, %c0_68], %58 {strides = array<i32>} : memref<2x20x20x8xf32, #tpu.memory_space<vmem>>, vector<2x20x1x8xf32>,
    %cst_69 = arith.constant 0.000000e+00 : f32
    %60 = vector.broadcast %cst_69 : f32 to vector<2x20x3x8xf32>
    %c0_70 = arith.constant 0 : index
    %c0_71 = arith.constant 0 : index
    %c17_72 = arith.constant 17 : index
    %c0_73 = arith.constant 0 : index
    %61 = vector.load %arg15[%c0_70, %c0_71, %c17_72, %c0_73] : memref<2x20x20x8xf32, #tpu.memory_space<vmem>>, vector<2x20x3x8xf32>
    tpu.vector_store %arg15[%c0_70, %c0_71, %c17_72, %c0_73], %60 {strides = array<i32>} : memref<2x20x20x8xf32, #tpu.memory_space<vmem>>, vector<2x20x3x8xf32>,
    %c0_74 = arith.constant 0 : index
    %c1_75 = arith.constant 1 : index
    %c1_76 = arith.constant 1 : index
    %c0_77 = arith.constant 0 : index
    %62 = vector.load %arg15[%c0_74, %c1_75, %c1_76, %c0_77] : memref<2x20x20x8xf32, #tpu.memory_space<vmem>>, vector<2x16x16x8xf32>
    tpu.vector_store %arg15[%c0_74, %c1_75, %c1_76, %c0_77], %53 {strides = array<i32>} : memref<2x20x20x8xf32, #tpu.memory_space<vmem>>, vector<2x16x16x8xf32>,
    %c0_78 = arith.constant 0 : index
    %c0_79 = arith.constant 0 : index
    %c0_80 = arith.constant 0 : index
    %c0_81 = arith.constant 0 : index
    %63 = vector.load %arg15[%c0_78, %c0_79, %c0_80, %c0_81] : memref<2x20x20x8xf32, #tpu.memory_space<vmem>>, vector<2x16x16x8xf32>
    %c0_82 = arith.constant 0 : index
    %c0_83 = arith.constant 0 : index
    %c1_84 = arith.constant 1 : index
    %c0_85 = arith.constant 0 : index
    %64 = vector.load %arg15[%c0_82, %c0_83, %c1_84, %c0_85] : memref<2x20x20x8xf32, #tpu.memory_space<vmem>>, vector<2x16x16x8xf32>
    %c0_86 = arith.constant 0 : index
    %c0_87 = arith.constant 0 : index
    %c2_88 = arith.constant 2 : index
    %c0_89 = arith.constant 0 : index
    %65 = vector.load %arg15[%c0_86, %c0_87, %c2_88, %c0_89] : memref<2x20x20x8xf32, #tpu.memory_space<vmem>>, vector<2x16x16x8xf32>
    %c0_90 = arith.constant 0 : index
    %c1_91 = arith.constant 1 : index
    %c0_92 = arith.constant 0 : index
    %c0_93 = arith.constant 0 : index
    %66 = vector.load %arg15[%c0_90, %c1_91, %c0_92, %c0_93] : memref<2x20x20x8xf32, #tpu.memory_space<vmem>>, vector<2x16x16x8xf32>
    %c0_94 = arith.constant 0 : index
    %c1_95 = arith.constant 1 : index
    %c1_96 = arith.constant 1 : index
    %c0_97 = arith.constant 0 : index
    %67 = vector.load %arg15[%c0_94, %c1_95, %c1_96, %c0_97] : memref<2x20x20x8xf32, #tpu.memory_space<vmem>>, vector<2x16x16x8xf32>
    %c0_98 = arith.constant 0 : index
    %c1_99 = arith.constant 1 : index
    %c2_100 = arith.constant 2 : index
    %c0_101 = arith.constant 0 : index
    %68 = vector.load %arg15[%c0_98, %c1_99, %c2_100, %c0_101] : memref<2x20x20x8xf32, #tpu.memory_space<vmem>>, vector<2x16x16x8xf32>
    %c0_102 = arith.constant 0 : index
    %c2_103 = arith.constant 2 : index
    %c0_104 = arith.constant 0 : index
    %c0_105 = arith.constant 0 : index
    %69 = vector.load %arg15[%c0_102, %c2_103, %c0_104, %c0_105] : memref<2x20x20x8xf32, #tpu.memory_space<vmem>>, vector<2x16x16x8xf32>
    %c0_106 = arith.constant 0 : index
    %c2_107 = arith.constant 2 : index
    %c1_108 = arith.constant 1 : index
    %c0_109 = arith.constant 0 : index
    %70 = vector.load %arg15[%c0_106, %c2_107, %c1_108, %c0_109] : memref<2x20x20x8xf32, #tpu.memory_space<vmem>>, vector<2x16x16x8xf32>
    %c0_110 = arith.constant 0 : index
    %c2_111 = arith.constant 2 : index
    %c2_112 = arith.constant 2 : index
    %c0_113 = arith.constant 0 : index
    %71 = vector.load %arg15[%c0_110, %c2_111, %c2_112, %c0_113] : memref<2x20x20x8xf32, #tpu.memory_space<vmem>>, vector<2x16x16x8xf32>
    %72 = tpu.concatenate %63, %64, %65, %66, %67, %68, %69, %70, %71 in 3 : vector<2x16x16x8xf32>, vector<2x16x16x8xf32>, vector<2x16x16x8xf32>, vector<2x16x16x8xf32>, vector<2x16x16x8xf32>, vector<2x16x16x8xf32>, vector<2x16x16x8xf32>, vector<2x16x16x8xf32>, vector<2x16x16x8xf32> -> vector<2x16x16x72xf32>
    %73 = vector.shape_cast %72 : vector<2x16x16x72xf32> to vector<512x72xf32>
    %c0_114 = arith.constant 0 : index
    %c0_115 = arith.constant 0 : index
    %74 = vector.load %arg8[%c0_114, %c0_115] : memref<72x8xf32, #tpu.memory_space<vmem>>, vector<72x8xf32>
    %cst_116 = arith.constant dense<0.000000e+00> : vector<512x8xf32>
    %75 = tpu.matmul %73, %74, %cst_116 {dimension_numbers = #tpu.dot_dimension_numbers<[1], [0], [0], [1], [0, 0, 1, 1], [], []>} : vector<512x72xf32>, vector<72x8xf32>, vector<512x8xf32> -> vector<512x8xf32>
    %c0_117 = arith.constant 0 : index
    %c0_118 = arith.constant 0 : index
    %76 = vector.load %arg9[%c0_117, %c0_118] : memref<1x8xf32, #tpu.memory_space<vmem>>, vector<1x8xf32>
    %77 = vector.broadcast %76 : vector<1x8xf32> to vector<512x8xf32>
    %78 = arith.addf %75, %77 : vector<512x8xf32>
    %cst_119 = arith.constant 0.000000e+00 : f32
    %79 = vector.broadcast %cst_119 : f32 to vector<512x8xf32>
    %80 = arith.maximumf %78, %79 : vector<512x8xf32>
    %cst_120 = arith.constant dense<0.000000e+00> : vector<8xf32>
    %81 = vector.multi_reduction <add>, %80, %cst_120 [0] : vector<512x8xf32> to vector<8xf32>
    %82 = vector.shape_cast %81 : vector<8xf32> to vector<1x8xf32>
    %83 = arith.mulf %80, %80 : vector<512x8xf32>
    %cst_121 = arith.constant dense<0.000000e+00> : vector<8xf32>
    %84 = vector.multi_reduction <add>, %83, %cst_121 [0] : vector<512x8xf32> to vector<8xf32>
    %85 = vector.shape_cast %84 : vector<8xf32> to vector<1x8xf32>
    %cst_122 = arith.constant 0.001953125 : f32
    %86 = vector.broadcast %cst_122 : f32 to vector<1x8xf32>
    %87 = arith.mulf %82, %86 : vector<1x8xf32>
    %cst_123 = arith.constant 0.001953125 : f32
    %88 = vector.broadcast %cst_123 : f32 to vector<1x8xf32>
    %89 = arith.mulf %85, %88 : vector<1x8xf32>
    %90 = arith.mulf %87, %87 : vector<1x8xf32>
    %91 = arith.subf %89, %90 : vector<1x8xf32>
    %cst_124 = arith.constant 9.99999974E-6 : f32
    %92 = vector.broadcast %cst_124 : f32 to vector<1x8xf32>
    %93 = arith.addf %91, %92 : vector<1x8xf32>
    %94 = math.rsqrt %93 : vector<1x8xf32>
    %c0_125 = arith.constant 0 : index
    %c0_126 = arith.constant 0 : index
    %95 = vector.load %arg10[%c0_125, %c0_126] : memref<1x8xf32, #tpu.memory_space<vmem>>, vector<1x8xf32>
    %96 = arith.mulf %94, %95 : vector<1x8xf32>
    %c0_127 = arith.constant 0 : index
    %c0_128 = arith.constant 0 : index
    %97 = vector.load %arg11[%c0_127, %c0_128] : memref<1x8xf32, #tpu.memory_space<vmem>>, vector<1x8xf32>
    %98 = arith.mulf %87, %96 : vector<1x8xf32>
    %99 = arith.subf %97, %98 : vector<1x8xf32>
    %100 = vector.broadcast %96 : vector<1x8xf32> to vector<512x8xf32>
    %101 = arith.mulf %80, %100 : vector<512x8xf32>
    %102 = vector.broadcast %99 : vector<1x8xf32> to vector<512x8xf32>
    %103 = arith.addf %101, %102 : vector<512x8xf32>
    %104 = vector.shape_cast %103 : vector<512x8xf32> to vector<2x16x16x8xf32>
    %c0_129 = arith.constant 0 : index
    %c1_130 = arith.constant 1 : index
    %c1_131 = arith.constant 1 : index
    %c0_132 = arith.constant 0 : index
    %105 = vector.load %arg15[%c0_129, %c1_130, %c1_131, %c0_132] : memref<2x20x20x8xf32, #tpu.memory_space<vmem>>, vector<2x16x16x8xf32>
    tpu.vector_store %arg15[%c0_129, %c1_130, %c1_131, %c0_132], %104 {strides = array<i32>} : memref<2x20x20x8xf32, #tpu.memory_space<vmem>>, vector<2x16x16x8xf32>,
    %c0_133 = arith.constant 0 : index
    %c0_134 = arith.constant 0 : index
    %c0_135 = arith.constant 0 : index
    %c0_136 = arith.constant 0 : index
    %106 = tpu.strided_load %arg15[%c0_133, %c0_134, %c0_135, %c0_136] {strides = array<i32: 1, 2, 2, 1>} : memref<2x20x20x8xf32, #tpu.memory_space<vmem>>, vector<2x10x10x8xf32>
    %c0_137 = arith.constant 0 : index
    %c0_138 = arith.constant 0 : index
    %c1_139 = arith.constant 1 : index
    %c0_140 = arith.constant 0 : index
    %107 = tpu.strided_load %arg15[%c0_137, %c0_138, %c1_139, %c0_140] {strides = array<i32: 1, 2, 2, 1>} : memref<2x20x20x8xf32, #tpu.memory_space<vmem>>, vector<2x10x10x8xf32>
    %c0_141 = arith.constant 0 : index
    %c1_142 = arith.constant 1 : index
    %c0_143 = arith.constant 0 : index
    %c0_144 = arith.constant 0 : index
    %108 = tpu.strided_load %arg15[%c0_141, %c1_142, %c0_143, %c0_144] {strides = array<i32: 1, 2, 2, 1>} : memref<2x20x20x8xf32, #tpu.memory_space<vmem>>, vector<2x10x10x8xf32>
    %c0_145 = arith.constant 0 : index
    %c1_146 = arith.constant 1 : index
    %c1_147 = arith.constant 1 : index
    %c0_148 = arith.constant 0 : index
    %109 = tpu.strided_load %arg15[%c0_145, %c1_146, %c1_147, %c0_148] {strides = array<i32: 1, 2, 2, 1>} : memref<2x20x20x8xf32, #tpu.memory_space<vmem>>, vector<2x10x10x8xf32>
    %110 = vector.extract_strided_slice %106 {offsets = [0, 0, 0, 0], sizes = [2, 8, 8, 8], strides = [1, 1, 1, 1]} : vector<2x10x10x8xf32> to vector<2x8x8x8xf32>
    %111 = vector.extract_strided_slice %107 {offsets = [0, 0, 0, 0], sizes = [2, 8, 8, 8], strides = [1, 1, 1, 1]} : vector<2x10x10x8xf32> to vector<2x8x8x8xf32>
    %112 = vector.extract_strided_slice %106 {offsets = [0, 0, 1, 0], sizes = [2, 8, 8, 8], strides = [1, 1, 1, 1]} : vector<2x10x10x8xf32> to vector<2x8x8x8xf32>
    %113 = vector.extract_strided_slice %107 {offsets = [0, 0, 1, 0], sizes = [2, 8, 8, 8], strides = [1, 1, 1, 1]} : vector<2x10x10x8xf32> to vector<2x8x8x8xf32>
    %114 = vector.extract_strided_slice %108 {offsets = [0, 0, 0, 0], sizes = [2, 8, 8, 8], strides = [1, 1, 1, 1]} : vector<2x10x10x8xf32> to vector<2x8x8x8xf32>
    %115 = vector.extract_strided_slice %109 {offsets = [0, 0, 0, 0], sizes = [2, 8, 8, 8], strides = [1, 1, 1, 1]} : vector<2x10x10x8xf32> to vector<2x8x8x8xf32>
    %116 = vector.extract_strided_slice %108 {offsets = [0, 0, 1, 0], sizes = [2, 8, 8, 8], strides = [1, 1, 1, 1]} : vector<2x10x10x8xf32> to vector<2x8x8x8xf32>
    %117 = vector.extract_strided_slice %109 {offsets = [0, 0, 1, 0], sizes = [2, 8, 8, 8], strides = [1, 1, 1, 1]} : vector<2x10x10x8xf32> to vector<2x8x8x8xf32>
    %118 = vector.extract_strided_slice %106 {offsets = [0, 1, 0, 0], sizes = [2, 8, 8, 8], strides = [1, 1, 1, 1]} : vector<2x10x10x8xf32> to vector<2x8x8x8xf32>
    %119 = vector.extract_strided_slice %107 {offsets = [0, 1, 0, 0], sizes = [2, 8, 8, 8], strides = [1, 1, 1, 1]} : vector<2x10x10x8xf32> to vector<2x8x8x8xf32>
    %120 = vector.extract_strided_slice %106 {offsets = [0, 1, 1, 0], sizes = [2, 8, 8, 8], strides = [1, 1, 1, 1]} : vector<2x10x10x8xf32> to vector<2x8x8x8xf32>
    %121 = vector.extract_strided_slice %107 {offsets = [0, 1, 1, 0], sizes = [2, 8, 8, 8], strides = [1, 1, 1, 1]} : vector<2x10x10x8xf32> to vector<2x8x8x8xf32>
    %122 = vector.extract_strided_slice %108 {offsets = [0, 1, 0, 0], sizes = [2, 8, 8, 8], strides = [1, 1, 1, 1]} : vector<2x10x10x8xf32> to vector<2x8x8x8xf32>
    %123 = vector.extract_strided_slice %109 {offsets = [0, 1, 0, 0], sizes = [2, 8, 8, 8], strides = [1, 1, 1, 1]} : vector<2x10x10x8xf32> to vector<2x8x8x8xf32>
    %124 = vector.extract_strided_slice %108 {offsets = [0, 1, 1, 0], sizes = [2, 8, 8, 8], strides = [1, 1, 1, 1]} : vector<2x10x10x8xf32> to vector<2x8x8x8xf32>
    %125 = vector.extract_strided_slice %109 {offsets = [0, 1, 1, 0], sizes = [2, 8, 8, 8], strides = [1, 1, 1, 1]} : vector<2x10x10x8xf32> to vector<2x8x8x8xf32>
    %126 = tpu.concatenate %110, %111, %112, %113, %114, %115, %116, %117, %118, %119, %120, %121, %122, %123, %124, %125 in 3 : vector<2x8x8x8xf32>, vector<2x8x8x8xf32>, vector<2x8x8x8xf32>, vector<2x8x8x8xf32>, vector<2x8x8x8xf32>, vector<2x8x8x8xf32>, vector<2x8x8x8xf32>, vector<2x8x8x8xf32>, vector<2x8x8x8xf32>, vector<2x8x8x8xf32>, vector<2x8x8x8xf32>, vector<2x8x8x8xf32>, vector<2x8x8x8xf32>, vector<2x8x8x8xf32>, vector<2x8x8x8xf32>, vector<2x8x8x8xf32> -> vector<2x8x8x128xf32>
    %127 = vector.shape_cast %126 : vector<2x8x8x128xf32> to vector<128x128xf32>
    %c0_149 = arith.constant 0 : index
    %c0_150 = arith.constant 0 : index
    %128 = vector.load %arg12[%c0_149, %c0_150] : memref<128x8xf32, #tpu.memory_space<vmem>>, vector<128x8xf32>
    %cst_151 = arith.constant dense<0.000000e+00> : vector<128x8xf32>
    %129 = tpu.matmul %127, %128, %cst_151 {dimension_numbers = #tpu.dot_dimension_numbers<[1], [0], [0], [1], [0, 0, 1, 1], [], []>} : vector<128x128xf32>, vector<128x8xf32>, vector<128x8xf32> -> vector<128x8xf32>
    %c0_152 = arith.constant 0 : index
    %c0_153 = arith.constant 0 : index
    %130 = vector.load %arg13[%c0_152, %c0_153] : memref<1x8xf32, #tpu.memory_space<vmem>>, vector<1x8xf32>
    %131 = vector.broadcast %130 : vector<1x8xf32> to vector<128x8xf32>
    %132 = arith.addf %129, %131 : vector<128x8xf32>
    %133 = vector.shape_cast %132 : vector<128x8xf32> to vector<2x8x8x8xf32>
    %c0_154 = arith.constant 0 : index
    %c0_155 = arith.constant 0 : index
    %c0_156 = arith.constant 0 : index
    %c0_157 = arith.constant 0 : index
    %134 = vector.load %arg14[%c0_154, %c0_155, %c0_156, %c0_157] : memref<2x8x8x8xf32, #tpu.memory_space<vmem>>, vector<2x8x8x8xf32>
    tpu.vector_store %arg14[%c0_154, %c0_155, %c0_156, %c0_157], %133 {strides = array<i32>} : memref<2x8x8x8xf32, #tpu.memory_space<vmem>>, vector<2x8x8x8xf32>,
    return
  }
}

</mosaic_0001>

<llo_original>
// kernel: block_forward.1
$region0: #{block_forward.1}
  #allocation0 [shape = 'u32[]', space=smem, size = 0x4, offset = 0x4, fixed_abs, tag = 'smem constant byte address 0x4 - core index']
  #allocation1 [shape = 'u32[144,128]{1,0:T(1,128)}', space=vmem, size = 0x12000, scoped, tag = 'internal scratch']
  #allocation2 [shape = 'f32[2,20,20,8]{3,2,1,0:T(8,128)}', space=vmem, size = 0x78000, scoped, tag = 'scratch operand']
  %s0 = inlined_call_operand.vmem [shape: f32[2,18,18,4], index: 0, kind: input, shape index: {}]
  %s1 = inlined_call_operand.vmem [shape: f32[2,32], index: 1, kind: input, shape index: {}]
  %s2 = inlined_call_operand.vmem [shape: f32[36,8], index: 2, kind: input, shape index: {}]
  %s3 = inlined_call_operand.vmem [shape: f32[1,8], index: 3, kind: input, shape index: {}]
  %s4 = inlined_call_operand.vmem [shape: f32[32,8], index: 4, kind: input, shape index: {}]
  %s5 = inlined_call_operand.vmem [shape: f32[1,8], index: 5, kind: input, shape index: {}]
  %s6 = inlined_call_operand.vmem [shape: f32[1,8], index: 6, kind: input, shape index: {}]
  %s7 = inlined_call_operand.vmem [shape: f32[1,8], index: 7, kind: input, shape index: {}]
  %s8 = inlined_call_operand.vmem [shape: f32[72,8], index: 8, kind: input, shape index: {}]
  %s9 = inlined_call_operand.vmem [shape: f32[1,8], index: 9, kind: input, shape index: {}]
  %s10 = inlined_call_operand.vmem [shape: f32[1,8], index: 10, kind: input, shape index: {}]
  %s11 = inlined_call_operand.vmem [shape: f32[1,8], index: 11, kind: input, shape index: {}]
  %s12 = inlined_call_operand.vmem [shape: f32[128,8], index: 12, kind: input, shape index: {}]
  %s13 = inlined_call_operand.vmem [shape: f32[1,8], index: 13, kind: input, shape index: {}]
  %s14 = inlined_call_operand.vmem [shape: f32[2,8,8,8], index: 14, kind: output, shape index: {}]
  %s15 = sld [smem:[#allocation0]]
  $region66: #{block_forward.1} parent=0
    _
  %s17 = ssub.s32 1, %s15
  %s18 = scalar_select 0, %s17, %s15
  // Predicated region
  $region2: #{block_forward.1} parent=0 // pred_check
    _
  $region3: #{block_forward.1} parent=0 // pred_check_branch
    %20 = sbr.rel (0) target = $region5
  $region4: #{block_forward.1} parent=0 // pred_region
    _
  $region5: #{block_forward.1} parent=0 // pred_fallthru
    _
  // Predicated region
  $region6: #{block_forward.1} parent=0 // pred_check
    _
  $region7: #{block_forward.1} parent=0 // pred_check_branch
    %22 = sbr.rel (0) target = $region9
  $region8: #{block_forward.1} parent=0 // pred_region
    _
  $region9: #{block_forward.1} parent=0 // pred_fallthru
    _
  // Predicated region
  $region10: #{block_forward.1} parent=0 // pred_check
    _
  $region11: #{block_forward.1} parent=0 // pred_check_branch
    %24 = sbr.rel (0) target = $region13
  $region12: #{block_forward.1} parent=0 // pred_region
    _
  $region13: #{block_forward.1} parent=0 // pred_fallthru
    _
  // Predicated region
  $region14: #{block_forward.1} parent=0 // pred_check
    _
  $region15: #{block_forward.1} parent=0 // pred_check_branch
    %26 = sbr.rel (0) target = $region17
  $region16: #{block_forward.1} parent=0 // pred_region
    _
  $region17: #{block_forward.1} parent=0 // pred_fallthru
    _
  // Predicated region
  $region18: #{block_forward.1} parent=0 // pred_check
    _
  $region19: #{block_forward.1} parent=0 // pred_check_branch
    %28 = sbr.rel (0) target = $region21
  $region20: #{block_forward.1} parent=0 // pred_region
    _
  $region21: #{block_forward.1} parent=0 // pred_fallthru
    _
  // Predicated region
  $region22: #{block_forward.1} parent=0 // pred_check
    _
  $region23: #{block_forward.1} parent=0 // pred_check_branch
    %30 = sbr.rel (0) target = $region25
  $region24: #{block_forward.1} parent=0 // pred_region
    _
  $region25: #{block_forward.1} parent=0 // pred_fallthru
    _
  // Predicated region
  $region26: #{block_forward.1} parent=0 // pred_check
    _
  $region27: #{block_forward.1} parent=0 // pred_check_branch
    %32 = sbr.rel (0) target = $region29
  $region28: #{block_forward.1} parent=0 // pred_region
    _
  $region29: #{block_forward.1} parent=0 // pred_fallthru
    _
  // Predicated region
  $region30: #{block_forward.1} parent=0 // pred_check
    _
  $region31: #{block_forward.1} parent=0 // pred_check_branch
    %34 = sbr.rel (0) target = $region33
  $region32: #{block_forward.1} parent=0 // pred_region
    _
  $region33: #{block_forward.1} parent=0 // pred_fallthru
    _
  // Predicated region
  $region34: #{block_forward.1} parent=0 // pred_check
    _
  $region35: #{block_forward.1} parent=0 // pred_check_branch
    %36 = sbr.rel (0) target = $region37
  $region36: #{block_forward.1} parent=0 // pred_region
    _
  $region37: #{block_forward.1} parent=0 // pred_fallthru
    _
  // Predicated region
  $region38: #{block_forward.1} parent=0 // pred_check
    _
  $region39: #{block_forward.1} parent=0 // pred_check_branch
    %38 = sbr.rel (0) target = $region41
  $region40: #{block_forward.1} parent=0 // pred_region
    _
  $region41: #{block_forward.1} parent=0 // pred_fallthru
    _
  // Predicated region
  $region42: #{block_forward.1} parent=0 // pred_check
    _
  $region43: #{block_forward.1} parent=0 // pred_check_branch
    %40 = sbr.rel (0) target = $region45
  $region44: #{block_forward.1} parent=0 // pred_region
    _
  $region45: #{block_forward.1} parent=0 // pred_fallthru
    _
  // Predicated region
  $region46: #{block_forward.1} parent=0 // pred_check
    _
  $region47: #{block_forward.1} parent=0 // pred_check_branch
    %42 = sbr.rel (0) target = $region49
  $region48: #{block_forward.1} parent=0 // pred_region
    _
  $region49: #{block_forward.1} parent=0 // pred_fallthru
    _
  // Predicated region
  $region50: #{block_forward.1} parent=0 // pred_check
    _
  $region51: #{block_forward.1} parent=0 // pred_check_branch
    %44 = sbr.rel (0) target = $region53
  $region52: #{block_forward.1} parent=0 // pred_region
    _
  $region53: #{block_forward.1} parent=0 // pred_fallthru
    _
  // Predicated region
  $region54: #{block_forward.1} parent=0 // pred_check
    _
  $region55: #{block_forward.1} parent=0 // pred_check_branch
    %46 = sbr.rel (0) target = $region57
  $region56: #{block_forward.1} parent=0 // pred_region
    _
  $region57: #{block_forward.1} parent=0 // pred_fallthru
    _
  %v47 = vld [vmem:[%s0] sm:$0xff]
  %v48 = vld [vmem:[%s0 + $0x8] sm:$0xff]
  %v49 = vld [vmem:[%s0 + $0x18] sm:$0xff]
  %v50 = vld [vmem:[%s0 + $0x20] sm:$0xff]
  %v51 = vld [vmem:[%s0 + $0x30] sm:$0xff]
  %v52 = vld [vmem:[%s0 + $0x38] sm:$0xff]
  %v53 = vld [vmem:[%s0 + $0x48] sm:$0xff]
  %v54 = vld [vmem:[%s0 + $0x50] sm:$0xff]
  %v55 = vld [vmem:[%s0 + $0x60] sm:$0xff]
  %v56 = vld [vmem:[%s0 + $0x68] sm:$0xff]
  %v57 = vld [vmem:[%s0 + $0x78] sm:$0xff]
  %v58 = vld [vmem:[%s0 + $0x80] sm:$0xff]
  %v59 = vld [vmem:[%s0 + $0x90] sm:$0xff]
  %v60 = vld [vmem:[%s0 + $0x98] sm:$0xff]
  %v61 = vld [vmem:[%s0 + $0xa8] sm:$0xff]
  %v62 = vld [vmem:[%s0 + $0xb0] sm:$0xff]
  %v63 = vld [vmem:[%s0 + $0xc0] sm:$0xff]
  %v64 = vld [vmem:[%s0 + $0xc8] sm:$0xff]
  %v65 = vld [vmem:[%s0 + $0xd8] sm:$0xff]
  %v66 = vld [vmem:[%s0 + $0xe0] sm:$0xff]
  %v67 = vld [vmem:[%s0 + $0xf0] sm:$0xff]
  %v68 = vld [vmem:[%s0 + $0xf8] sm:$0xff]
  %v69 = vld [vmem:[%s0 + $0x108] sm:$0xff]
  %v70 = vld [vmem:[%s0 + $0x110] sm:$0xff]
  %v71 = vld [vmem:[%s0 + $0x120] sm:$0xff]
  %v72 = vld [vmem:[%s0 + $0x128] sm:$0xff]
  %v73 = vld [vmem:[%s0 + $0x138] sm:$0xff]
  %v74 = vld [vmem:[%s0 + $0x140] sm:$0xff]
  %v75 = vld [vmem:[%s0 + $0x150] sm:$0xff]
  %v76 = vld [vmem:[%s0 + $0x158] sm:$0xff]
  %v77 = vld [vmem:[%s0 + $0x168] sm:$0xff]
  %v78 = vld [vmem:[%s0 + $0x170] sm:$0xff]
  %v79 = vld [vmem:[%s0 + $0x1b0] sm:$0xff]
  %v80 = vld [vmem:[%s0 + $0x1b8] sm:$0xff]
  %v81 = vld [vmem:[%s0 + $0x1c8] sm:$0xff]
  %v82 = vld [vmem:[%s0 + $0x1d0] sm:$0xff]
  %v83 = vld [vmem:[%s0 + $0x1e0] sm:$0xff]
  %v84 = vld [vmem:[%s0 + $0x1e8] sm:$0xff]
  %v85 = vld [vmem:[%s0 + $0x1f8] sm:$0xff]
  %v86 = vld [vmem:[%s0 + $0x200] sm:$0xff]
  %v87 = vld [vmem:[%s0 + $0x210] sm:$0xff]
  %v88 = vld [vmem:[%s0 + $0x218] sm:$0xff]
  %v89 = vld [vmem:[%s0 + $0x228] sm:$0xff]
  %v90 = vld [vmem:[%s0 + $0x230] sm:$0xff]
  %v91 = vld [vmem:[%s0 + $0x240] sm:$0xff]
  %v92 = vld [vmem:[%s0 + $0x248] sm:$0xff]
  %v93 = vld [vmem:[%s0 + $0x258] sm:$0xff]
  %v94 = vld [vmem:[%s0 + $0x260] sm:$0xff]
  %v95 = vld [vmem:[%s0 + $0x270] sm:$0xff]
  %v96 = vld [vmem:[%s0 + $0x278] sm:$0xff]
  %v97 = vld [vmem:[%s0 + $0x288] sm:$0xff]
  %v98 = vld [vmem:[%s0 + $0x290] sm:$0xff]
  %v99 = vld [vmem:[%s0 + $0x2a0] sm:$0xff]
  %v100 = vld [vmem:[%s0 + $0x2a8] sm:$0xff]
  %v101 = vld [vmem:[%s0 + $0x2b8] sm:$0xff]
  %v102 = vld [vmem:[%s0 + $0x2c0] sm:$0xff]
  %v103 = vld [vmem:[%s0 + $0x2d0] sm:$0xff]
  %v104 = vld [vmem:[%s0 + $0x2d8] sm:$0xff]
  %v105 = vld [vmem:[%s0 + $0x2e8] sm:$0xff]
  %v106 = vld [vmem:[%s0 + $0x2f0] sm:$0xff]
  %v107 = vld [vmem:[%s0 + $0x300] sm:$0xff]
  %v108 = vld [vmem:[%s0 + $0x308] sm:$0xff]
  %v109 = vld [vmem:[%s0 + $0x318] sm:$0xff]
  %v110 = vld [vmem:[%s0 + $0x320] sm:$0xff]
  %v111 = vld [vmem:[%s0 + $0x1] sm:$0xff]
  %v112 = vld [vmem:[%s0 + $0x9] sm:$0xff]
  %v113 = vld [vmem:[%s0 + $0x19] sm:$0xff]
  %v114 = vld [vmem:[%s0 + $0x21] sm:$0xff]
  %v115 = vld [vmem:[%s0 + $0x31] sm:$0xff]
  %v116 = vld [vmem:[%s0 + $0x39] sm:$0xff]
  %v117 = vld [vmem:[%s0 + $0x49] sm:$0xff]
  %v118 = vld [vmem:[%s0 + $0x51] sm:$0xff]
  %v119 = vld [vmem:[%s0 + $0x61] sm:$0xff]
  %v120 = vld [vmem:[%s0 + $0x69] sm:$0xff]
  %v121 = vld [vmem:[%s0 + $0x79] sm:$0xff]
  %v122 = vld [vmem:[%s0 + $0x81] sm:$0xff]
  %v123 = vld [vmem:[%s0 + $0x91] sm:$0xff]
  %v124 = vld [vmem:[%s0 + $0x99] sm:$0xff]
  %v125 = vld [vmem:[%s0 + $0xa9] sm:$0xff]
  %v126 = vld [vmem:[%s0 + $0xb1] sm:$0xff]
  %v127 = vld [vmem:[%s0 + $0xc1] sm:$0xff]
  %v128 = vld [vmem:[%s0 + $0xc9] sm:$0xff]
  %v129 = vld [vmem:[%s0 + $0xd9] sm:$0xff]
  %v130 = vld [vmem:[%s0 + $0xe1] sm:$0xff]
  %v131 = vld [vmem:[%s0 + $0xf1] sm:$0xff]
  %v132 = vld [vmem:[%s0 + $0xf9] sm:$0xff]
  %v133 = vld [vmem:[%s0 + $0x109] sm:$0xff]
  %v134 = vld [vmem:[%s0 + $0x111] sm:$0xff]
  %v135 = vld [vmem:[%s0 + $0x121] sm:$0xff]
  %v136 = vld [vmem:[%s0 + $0x129] sm:$0xff]
  %v137 = vld [vmem:[%s0 + $0x139] sm:$0xff]
  %v138 = vld [vmem:[%s0 + $0x141] sm:$0xff]
  %v139 = vld [vmem:[%s0 + $0x151] sm:$0xff]
  %v140 = vld [vmem:[%s0 + $0x159] sm:$0xff]
  %v141 = vld [vmem:[%s0 + $0x169] sm:$0xff]
  %v142 = vld [vmem:[%s0 + $0x171] sm:$0xff]
  %v143 = vld [vmem:[%s0 + $0x1b1] sm:$0xff]
  %v144 = vld [vmem:[%s0 + $0x1b9] sm:$0xff]
  %v145 = vld [vmem:[%s0 + $0x1c9] sm:$0xff]
  %v146 = vld [vmem:[%s0 + $0x1d1] sm:$0xff]
  %v147 = vld [vmem:[%s0 + $0x1e1] sm:$0xff]
  %v148 = vld [vmem:[%s0 + $0x1e9] sm:$0xff]
  %v149 = vld [vmem:[%s0 + $0x1f9] sm:$0xff]
  %v150 = vld [vmem:[%s0 + $0x201] sm:$0xff]
  %v151 = vld [vmem:[%s0 + $0x211] sm:$0xff]
  %v152 = vld [vmem:[%s0 + $0x219] sm:$0xff]
  %v153 = vld [vmem:[%s0 + $0x229] sm:$0xff]
  %v154 = vld [vmem:[%s0 + $0x231] sm:$0xff]
  %v155 = vld [vmem:[%s0 + $0x241] sm:$0xff]
  %v156 = vld [vmem:[%s0 + $0x249] sm:$0xff]
  %v157 = vld [vmem:[%s0 + $0x259] sm:$0xff]
  %v158 = vld [vmem:[%s0 + $0x261] sm:$0xff]
  %v159 = vld [vmem:[%s0 + $0x271] sm:$0xff]
  %v160 = vld [vmem:[%s0 + $0x279] sm:$0xff]
  %v161 = vld [vmem:[%s0 + $0x289] sm:$0xff]
  %v162 = vld [vmem:[%s0 + $0x291] sm:$0xff]
  %v163 = vld [vmem:[%s0 + $0x2a1] sm:$0xff]
  %v164 = vld [vmem:[%s0 + $0x2a9] sm:$0xff]
  %v165 = vld [vmem:[%s0 + $0x2b9] sm:$0xff]
  %v166 = vld [vmem:[%s0 + $0x2c1] sm:$0xff]
  %v167 = vld [vmem:[%s0 + $0x2d1] sm:$0xff]
  %v168 = vld [vmem:[%s0 + $0x2d9] sm:$0xff]
  %v169 = vld [vmem:[%s0 + $0x2e9] sm:$0xff]
  %v170 = vld [vmem:[%s0 + $0x2f1] sm:$0xff]
  %v171 = vld [vmem:[%s0 + $0x301] sm:$0xff]
  %v172 = vld [vmem:[%s0 + $0x309] sm:$0xff]
  %v173 = vld [vmem:[%s0 + $0x319] sm:$0xff]
  %v174 = vld [vmem:[%s0 + $0x321] sm:$0xff]
  %v175 = vld [vmem:[%s0 + $0x2] sm:$0xff]
  %v176 = vld [vmem:[%s0 + $0xa] sm:$0xff]
  %v177 = vld [vmem:[%s0 + $0x1a] sm:$0xff]
  %v178 = vld [vmem:[%s0 + $0x22] sm:$0xff]
  %v179 = vld [vmem:[%s0 + $0x32] sm:$0xff]
  %v180 = vld [vmem:[%s0 + $0x3a] sm:$0xff]
  %v181 = vld [vmem:[%s0 + $0x4a] sm:$0xff]
  %v182 = vld [vmem:[%s0 + $0x52] sm:$0xff]
  %v183 = vld [vmem:[%s0 + $0x62] sm:$0xff]
  %v184 = vld [vmem:[%s0 + $0x6a] sm:$0xff]
  %v185 = vld [vmem:[%s0 + $0x7a] sm:$0xff]
  %v186 = vld [vmem:[%s0 + $0x82] sm:$0xff]
  %v187 = vld [vmem:[%s0 + $0x92] sm:$0xff]
  %v188 = vld [vmem:[%s0 + $0x9a] sm:$0xff]
  %v189 = vld [vmem:[%s0 + $0xaa] sm:$0xff]
  %v190 = vld [vmem:[%s0 + $0xb2] sm:$0xff]
  %v191 = vld [vmem:[%s0 + $0xc2] sm:$0xff]
  %v192 = vld [vmem:[%s0 + $0xca] sm:$0xff]
  %v193 = vld [vmem:[%s0 + $0xda] sm:$0xff]
  %v194 = vld [vmem:[%s0 + $0xe2] sm:$0xff]
  %v195 = vld [vmem:[%s0 + $0xf2] sm:$0xff]
  %v196 = vld [vmem:[%s0 + $0xfa] sm:$0xff]
  %v197 = vld [vmem:[%s0 + $0x10a] sm:$0xff]
  %v198 = vld [vmem:[%s0 + $0x112] sm:$0xff]
  %v199 = vld [vmem:[%s0 + $0x122] sm:$0xff]
  %v200 = vld [vmem:[%s0 + $0x12a] sm:$0xff]
  %v201 = vld [vmem:[%s0 + $0x13a] sm:$0xff]
  %v202 = vld [vmem:[%s0 + $0x142] sm:$0xff]
  %v203 = vld [vmem:[%s0 + $0x152] sm:$0xff]
  %v204 = vld [vmem:[%s0 + $0x15a] sm:$0xff]
  %v205 = vld [vmem:[%s0 + $0x16a] sm:$0xff]
  %v206 = vld [vmem:[%s0 + $0x172] sm:$0xff]
  %v207 = vld [vmem:[%s0 + $0x1b2] sm:$0xff]
  %v208 = vld [vmem:[%s0 + $0x1ba] sm:$0xff]
  %v209 = vld [vmem:[%s0 + $0x1ca] sm:$0xff]
  %v210 = vld [vmem:[%s0 + $0x1d2] sm:$0xff]
  %v211 = vld [vmem:[%s0 + $0x1e2] sm:$0xff]
  %v212 = vld [vmem:[%s0 + $0x1ea] sm:$0xff]
  %v213 = vld [vmem:[%s0 + $0x1fa] sm:$0xff]
  %v214 = vld [vmem:[%s0 + $0x202] sm:$0xff]
  %v215 = vld [vmem:[%s0 + $0x212] sm:$0xff]
  %v216 = vld [vmem:[%s0 + $0x21a] sm:$0xff]
  %v217 = vld [vmem:[%s0 + $0x22a] sm:$0xff]
  %v218 = vld [vmem:[%s0 + $0x232] sm:$0xff]
  %v219 = vld [vmem:[%s0 + $0x242] sm:$0xff]
  %v220 = vld [vmem:[%s0 + $0x24a] sm:$0xff]
  %v221 = vld [vmem:[%s0 + $0x25a] sm:$0xff]
  %v222 = vld [vmem:[%s0 + $0x262] sm:$0xff]
  %v223 = vld [vmem:[%s0 + $0x272] sm:$0xff]
  %v224 = vld [vmem:[%s0 + $0x27a] sm:$0xff]
  %v225 = vld [vmem:[%s0 + $0x28a] sm:$0xff]
  %v226 = vld [vmem:[%s0 + $0x292] sm:$0xff]
  %v227 = vld [vmem:[%s0 + $0x2a2] sm:$0xff]
  %v228 = vld [vmem:[%s0 + $0x2aa] sm:$0xff]
  %v229 = vld [vmem:[%s0 + $0x2ba] sm:$0xff]
  %v230 = vld [vmem:[%s0 + $0x2c2] sm:$0xff]
  %v231 = vld [vmem:[%s0 + $0x2d2] sm:$0xff]
  %v232 = vld [vmem:[%s0 + $0x2da] sm:$0xff]
  %v233 = vld [vmem:[%s0 + $0x2ea] sm:$0xff]
  %v234 = vld [vmem:[%s0 + $0x2f2] sm:$0xff]
  %v235 = vld [vmem:[%s0 + $0x302] sm:$0xff]
  %v236 = vld [vmem:[%s0 + $0x30a] sm:$0xff]
  %v237 = vld [vmem:[%s0 + $0x31a] sm:$0xff]
  %v238 = vld [vmem:[%s0 + $0x322] sm:$0xff]
  %s239 = scalar_lea.vmem %s0, 24
  %v240 = vld [vmem:[%s239] sm:$0xff]
  %v241 = vld [vmem:[%s239 + $0x8] sm:$0xff]
  %v242 = vld [vmem:[%s239 + $0x18] sm:$0xff]
  %v243 = vld [vmem:[%s239 + $0x20] sm:$0xff]
  %v244 = vld [vmem:[%s239 + $0x30] sm:$0xff]
  %v245 = vld [vmem:[%s239 + $0x38] sm:$0xff]
  %v246 = vld [vmem:[%s239 + $0x48] sm:$0xff]
  %v247 = vld [vmem:[%s239 + $0x50] sm:$0xff]
  %v248 = vld [vmem:[%s239 + $0x60] sm:$0xff]
  %v249 = vld [vmem:[%s239 + $0x68] sm:$0xff]
  %v250 = vld [vmem:[%s239 + $0x78] sm:$0xff]
  %v251 = vld [vmem:[%s239 + $0x80] sm:$0xff]
  %v252 = vld [vmem:[%s239 + $0x90] sm:$0xff]
  %v253 = vld [vmem:[%s239 + $0x98] sm:$0xff]
  %v254 = vld [vmem:[%s239 + $0xa8] sm:$0xff]
  %v255 = vld [vmem:[%s239 + $0xb0] sm:$0xff]
  %v256 = vld [vmem:[%s239 + $0xc0] sm:$0xff]
  %v257 = vld [vmem:[%s239 + $0xc8] sm:$0xff]
  %v258 = vld [vmem:[%s239 + $0xd8] sm:$0xff]
  %v259 = vld [vmem:[%s239 + $0xe0] sm:$0xff]
  %v260 = vld [vmem:[%s239 + $0xf0] sm:$0xff]
  %v261 = vld [vmem:[%s239 + $0xf8] sm:$0xff]
  %v262 = vld [vmem:[%s239 + $0x108] sm:$0xff]
  %v263 = vld [vmem:[%s239 + $0x110] sm:$0xff]
  %v264 = vld [vmem:[%s239 + $0x120] sm:$0xff]
  %v265 = vld [vmem:[%s239 + $0x128] sm:$0xff]
  %v266 = vld [vmem:[%s239 + $0x138] sm:$0xff]
  %v267 = vld [vmem:[%s239 + $0x140] sm:$0xff]
  %v268 = vld [vmem:[%s239 + $0x150] sm:$0xff]
  %v269 = vld [vmem:[%s239 + $0x158] sm:$0xff]
  %v270 = vld [vmem:[%s239 + $0x168] sm:$0xff]
  %v271 = vld [vmem:[%s239 + $0x170] sm:$0xff]
  %v272 = vld [vmem:[%s239 + $0x1b0] sm:$0xff]
  %v273 = vld [vmem:[%s239 + $0x1b8] sm:$0xff]
  %v274 = vld [vmem:[%s239 + $0x1c8] sm:$0xff]
  %v275 = vld [vmem:[%s239 + $0x1d0] sm:$0xff]
  %v276 = vld [vmem:[%s239 + $0x1e0] sm:$0xff]
  %v277 = vld [vmem:[%s239 + $0x1e8] sm:$0xff]
  %v278 = vld [vmem:[%s239 + $0x1f8] sm:$0xff]
  %v279 = vld [vmem:[%s239 + $0x200] sm:$0xff]
  %v280 = vld [vmem:[%s239 + $0x210] sm:$0xff]
  %v281 = vld [vmem:[%s239 + $0x218] sm:$0xff]
  %v282 = vld [vmem:[%s239 + $0x228] sm:$0xff]
  %v283 = vld [vmem:[%s239 + $0x230] sm:$0xff]
  %v284 = vld [vmem:[%s239 + $0x240] sm:$0xff]
  %v285 = vld [vmem:[%s239 + $0x248] sm:$0xff]
  %v286 = vld [vmem:[%s239 + $0x258] sm:$0xff]
  %v287 = vld [vmem:[%s239 + $0x260] sm:$0xff]
  %v288 = vld [vmem:[%s239 + $0x270] sm:$0xff]
  %v289 = vld [vmem:[%s239 + $0x278] sm:$0xff]
  %v290 = vld [vmem:[%s239 + $0x288] sm:$0xff]
  %v291 = vld [vmem:[%s239 + $0x290] sm:$0xff]
  %v292 = vld [vmem:[%s239 + $0x2a0] sm:$0xff]
  %v293 = vld [vmem:[%s239 + $0x2a8] sm:$0xff]
  %v294 = vld [vmem:[%s239 + $0x2b8] sm:$0xff]
  %v295 = vld [vmem:[%s239 + $0x2c0] sm:$0xff]
  %v296 = vld [vmem:[%s239 + $0x2d0] sm:$0xff]
  %v297 = vld [vmem:[%s239 + $0x2d8] sm:$0xff]
  %v298 = vld [vmem:[%s239 + $0x2e8] sm:$0xff]
  %v299 = vld [vmem:[%s239 + $0x2f0] sm:$0xff]
  %v300 = vld [vmem:[%s239 + $0x300] sm:$0xff]
  %v301 = vld [vmem:[%s239 + $0x308] sm:$0xff]
  %v302 = vld [vmem:[%s239 + $0x318] sm:$0xff]
  %v303 = vld [vmem:[%s239 + $0x320] sm:$0xff]
  %v304 = vld [vmem:[%s239 + $0x1] sm:$0xff]
  %v305 = vld [vmem:[%s239 + $0x9] sm:$0xff]
  %v306 = vld [vmem:[%s239 + $0x19] sm:$0xff]
  %v307 = vld [vmem:[%s239 + $0x21] sm:$0xff]
  %v308 = vld [vmem:[%s239 + $0x31] sm:$0xff]
  %v309 = vld [vmem:[%s239 + $0x39] sm:$0xff]
  %v310 = vld [vmem:[%s239 + $0x49] sm:$0xff]
  %v311 = vld [vmem:[%s239 + $0x51] sm:$0xff]
  %v312 = vld [vmem:[%s239 + $0x61] sm:$0xff]
  %v313 = vld [vmem:[%s239 + $0x69] sm:$0xff]
  %v314 = vld [vmem:[%s239 + $0x79] sm:$0xff]
  %v315 = vld [vmem:[%s239 + $0x81] sm:$0xff]
  %v316 = vld [vmem:[%s239 + $0x91] sm:$0xff]
  %v317 = vld [vmem:[%s239 + $0x99] sm:$0xff]
  %v318 = vld [vmem:[%s239 + $0xa9] sm:$0xff]
  %v319 = vld [vmem:[%s239 + $0xb1] sm:$0xff]
  %v320 = vld [vmem:[%s239 + $0xc1] sm:$0xff]
  %v321 = vld [vmem:[%s239 + $0xc9] sm:$0xff]
  %v322 = vld [vmem:[%s239 + $0xd9] sm:$0xff]
  %v323 = vld [vmem:[%s239 + $0xe1] sm:$0xff]
  %v324 = vld [vmem:[%s239 + $0xf1] sm:$0xff]
  %v325 = vld [vmem:[%s239 + $0xf9] sm:$0xff]
  %v326 = vld [vmem:[%s239 + $0x109] sm:$0xff]
  %v327 = vld [vmem:[%s239 + $0x111] sm:$0xff]
  %v328 = vld [vmem:[%s239 + $0x121] sm:$0xff]
  %v329 = vld [vmem:[%s239 + $0x129] sm:$0xff]
  %v330 = vld [vmem:[%s239 + $0x139] sm:$0xff]
  %v331 = vld [vmem:[%s239 + $0x141] sm:$0xff]
  %v332 = vld [vmem:[%s239 + $0x151] sm:$0xff]
  %v333 = vld [vmem:[%s239 + $0x159] sm:$0xff]
  %v334 = vld [vmem:[%s239 + $0x169] sm:$0xff]
  %v335 = vld [vmem:[%s239 + $0x171] sm:$0xff]
  %v336 = vld [vmem:[%s239 + $0x1b1] sm:$0xff]
  %v337 = vld [vmem:[%s239 + $0x1b9] sm:$0xff]
  %v338 = vld [vmem:[%s239 + $0x1c9] sm:$0xff]
  %v339 = vld [vmem:[%s239 + $0x1d1] sm:$0xff]
  %v340 = vld [vmem:[%s239 + $0x1e1] sm:$0xff]
  %v341 = vld [vmem:[%s239 + $0x1e9] sm:$0xff]
  %v342 = vld [vmem:[%s239 + $0x1f9] sm:$0xff]
  %v343 = vld [vmem:[%s239 + $0x201] sm:$0xff]
  %v344 = vld [vmem:[%s239 + $0x211] sm:$0xff]
  %v345 = vld [vmem:[%s239 + $0x219] sm:$0xff]
  %v346 = vld [vmem:[%s239 + $0x229] sm:$0xff]
  %v347 = vld [vmem:[%s239 + $0x231] sm:$0xff]
  %v348 = vld [vmem:[%s239 + $0x241] sm:$0xff]
  %v349 = vld [vmem:[%s239 + $0x249] sm:$0xff]
  %v350 = vld [vmem:[%s239 + $0x259] sm:$0xff]
  %v351 = vld [vmem:[%s239 + $0x261] sm:$0xff]
  %v352 = vld [vmem:[%s239 + $0x271] sm:$0xff]
  %v353 = vld [vmem:[%s239 + $0x279] sm:$0xff]
  %v354 = vld [vmem:[%s239 + $0x289] sm:$0xff]
  %v355 = vld [vmem:[%s239 + $0x291] sm:$0xff]
  %v356 = vld [vmem:[%s239 + $0x2a1] sm:$0xff]
  %v357 = vld [vmem:[%s239 + $0x2a9] sm:$0xff]
  %v358 = vld [vmem:[%s239 + $0x2b9] sm:$0xff]
  %v359 = vld [vmem:[%s239 + $0x2c1] sm:$0xff]
  %v360 = vld [vmem:[%s239 + $0x2d1] sm:$0xff]
  %v361 = vld [vmem:[%s239 + $0x2d9] sm:$0xff]
  %v362 = vld [vmem:[%s239 + $0x2e9] sm:$0xff]
  %v363 = vld [vmem:[%s239 + $0x2f1] sm:$0xff]
  %v364 = vld [vmem:[%s239 + $0x301] sm:$0xff]
  %v365 = vld [vmem:[%s239 + $0x309] sm:$0xff]
  %v366 = vld [vmem:[%s239 + $0x319] sm:$0xff]
  %v367 = vld [vmem:[%s239 + $0x321] sm:$0xff]
  %v368 = vld [vmem:[%s239 + $0x2] sm:$0xff]
  %v369 = vld [vmem:[%s239 + $0xa] sm:$0xff]
  %v370 = vld [vmem:[%s239 + $0x1a] sm:$0xff]
  %v371 = vld [vmem:[%s239 + $0x22] sm:$0xff]
  %v372 = vld [vmem:[%s239 + $0x32] sm:$0xff]
  %v373 = vld [vmem:[%s239 + $0x3a] sm:$0xff]
  %v374 = vld [vmem:[%s239 + $0x4a] sm:$0xff]
  %v375 = vld [vmem:[%s239 + $0x52] sm:$0xff]
  %v376 = vld [vmem:[%s239 + $0x62] sm:$0xff]
  %v377 = vld [vmem:[%s239 + $0x6a] sm:$0xff]
  %v378 = vld [vmem:[%s239 + $0x7a] sm:$0xff]
  %v379 = vld [vmem:[%s239 + $0x82] sm:$0xff]
  %v380 = vld [vmem:[%s239 + $0x92] sm:$0xff]
  %v381 = vld [vmem:[%s239 + $0x9a] sm:$0xff]
  %v382 = vld [vmem:[%s239 + $0xaa] sm:$0xff]
  %v383 = vld [vmem:[%s239 + $0xb2] sm:$0xff]
  %v384 = vld [vmem:[%s239 + $0xc2] sm:$0xff]
  %v385 = vld [vmem:[%s239 + $0xca] sm:$0xff]
  %v386 = vld [vmem:[%s239 + $0xda] sm:$0xff]
  %v387 = vld [vmem:[%s239 + $0xe2] sm:$0xff]
  %v388 = vld [vmem:[%s239 + $0xf2] sm:$0xff]
  %v389 = vld [vmem:[%s239 + $0xfa] sm:$0xff]
  %v390 = vld [vmem:[%s239 + $0x10a] sm:$0xff]
  %v391 = vld [vmem:[%s239 + $0x112] sm:$0xff]
  %v392 = vld [vmem:[%s239 + $0x122] sm:$0xff]
  %v393 = vld [vmem:[%s239 + $0x12a] sm:$0xff]
  %v394 = vld [vmem:[%s239 + $0x13a] sm:$0xff]
  %v395 = vld [vmem:[%s239 + $0x142] sm:$0xff]
  %v396 = vld [vmem:[%s239 + $0x152] sm:$0xff]
  %v397 = vld [vmem:[%s239 + $0x15a] sm:$0xff]
  %v398 = vld [vmem:[%s239 + $0x16a] sm:$0xff]
  %v399 = vld [vmem:[%s239 + $0x172] sm:$0xff]
  %v400 = vld [vmem:[%s239 + $0x1b2] sm:$0xff]
  %v401 = vld [vmem:[%s239 + $0x1ba] sm:$0xff]
  %v402 = vld [vmem:[%s239 + $0x1ca] sm:$0xff]
  %v403 = vld [vmem:[%s239 + $0x1d2] sm:$0xff]
  %v404 = vld [vmem:[%s239 + $0x1e2] sm:$0xff]
  %v405 = vld [vmem:[%s239 + $0x1ea] sm:$0xff]
  %v406 = vld [vmem:[%s239 + $0x1fa] sm:$0xff]
  %v407 = vld [vmem:[%s239 + $0x202] sm:$0xff]
  %v408 = vld [vmem:[%s239 + $0x212] sm:$0xff]
  %v409 = vld [vmem:[%s239 + $0x21a] sm:$0xff]
  %v410 = vld [vmem:[%s239 + $0x22a] sm:$0xff]
  %v411 = vld [vmem:[%s239 + $0x232] sm:$0xff]
  %v412 = vld [vmem:[%s239 + $0x242] sm:$0xff]
  %v413 = vld [vmem:[%s239 + $0x24a] sm:$0xff]
  %v414 = vld [vmem:[%s239 + $0x25a] sm:$0xff]
  %v415 = vld [vmem:[%s239 + $0x262] sm:$0xff]
  %v416 = vld [vmem:[%s239 + $0x272] sm:$0xff]
  %v417 = vld [vmem:[%s239 + $0x27a] sm:$0xff]
  %v418 = vld [vmem:[%s239 + $0x28a] sm:$0xff]
  %v419 = vld [vmem:[%s239 + $0x292] sm:$0xff]
  %v420 = vld [vmem:[%s239 + $0x2a2] sm:$0xff]
  %v421 = vld [vmem:[%s239 + $0x2aa] sm:$0xff]
  %v422 = vld [vmem:[%s239 + $0x2ba] sm:$0xff]
  %v423 = vld [vmem:[%s239 + $0x2c2] sm:$0xff]
  %v424 = vld [vmem:[%s239 + $0x2d2] sm:$0xff]
  %v425 = vld [vmem:[%s239 + $0x2da] sm:$0xff]
  %v426 = vld [vmem:[%s239 + $0x2ea] sm:$0xff]
  %v427 = vld [vmem:[%s239 + $0x2f2] sm:$0xff]
  %v428 = vld [vmem:[%s239 + $0x302] sm:$0xff]
  %v429 = vld [vmem:[%s239 + $0x30a] sm:$0xff]
  %v430 = vld [vmem:[%s239 + $0x31a] sm:$0xff]
  %v431 = vld [vmem:[%s239 + $0x322] sm:$0xff]
  %s432 = scalar_lea.vmem %s0, 48
  %v433 = vld [vmem:[%s432] sm:$0xff]
  %v434 = vld [vmem:[%s432 + $0x8] sm:$0xff]
  %v435 = vld [vmem:[%s432 + $0x18] sm:$0xff]
  %v436 = vld [vmem:[%s432 + $0x20] sm:$0xff]
  %v437 = vld [vmem:[%s432 + $0x30] sm:$0xff]
  %v438 = vld [vmem:[%s432 + $0x38] sm:$0xff]
  %v439 = vld [vmem:[%s432 + $0x48] sm:$0xff]
  %v440 = vld [vmem:[%s432 + $0x50] sm:$0xff]
  %v441 = vld [vmem:[%s432 + $0x60] sm:$0xff]
  %v442 = vld [vmem:[%s432 + $0x68] sm:$0xff]
  %v443 = vld [vmem:[%s432 + $0x78] sm:$0xff]
  %v444 = vld [vmem:[%s432 + $0x80] sm:$0xff]
  %v445 = vld [vmem:[%s432 + $0x90] sm:$0xff]
  %v446 = vld [vmem:[%s432 + $0x98] sm:$0xff]
  %v447 = vld [vmem:[%s432 + $0xa8] sm:$0xff]
  %v448 = vld [vmem:[%s432 + $0xb0] sm:$0xff]
  %v449 = vld [vmem:[%s432 + $0xc0] sm:$0xff]
  %v450 = vld [vmem:[%s432 + $0xc8] sm:$0xff]
  %v451 = vld [vmem:[%s432 + $0xd8] sm:$0xff]
  %v452 = vld [vmem:[%s432 + $0xe0] sm:$0xff]
  %v453 = vld [vmem:[%s432 + $0xf0] sm:$0xff]
  %v454 = vld [vmem:[%s432 + $0xf8] sm:$0xff]
  %v455 = vld [vmem:[%s432 + $0x108] sm:$0xff]
  %v456 = vld [vmem:[%s432 + $0x110] sm:$0xff]
  %v457 = vld [vmem:[%s432 + $0x120] sm:$0xff]
  %v458 = vld [vmem:[%s432 + $0x128] sm:$0xff]
  %v459 = vld [vmem:[%s432 + $0x138] sm:$0xff]
  %v460 = vld [vmem:[%s432 + $0x140] sm:$0xff]
  %v461 = vld [vmem:[%s432 + $0x150] sm:$0xff]
  %v462 = vld [vmem:[%s432 + $0x158] sm:$0xff]
  %v463 = vld [vmem:[%s432 + $0x168] sm:$0xff]
  %v464 = vld [vmem:[%s432 + $0x170] sm:$0xff]
  %v465 = vld [vmem:[%s432 + $0x1b0] sm:$0xff]
  %v466 = vld [vmem:[%s432 + $0x1b8] sm:$0xff]
  %v467 = vld [vmem:[%s432 + $0x1c8] sm:$0xff]
  %v468 = vld [vmem:[%s432 + $0x1d0] sm:$0xff]
  %v469 = vld [vmem:[%s432 + $0x1e0] sm:$0xff]
  %v470 = vld [vmem:[%s432 + $0x1e8] sm:$0xff]
  %v471 = vld [vmem:[%s432 + $0x1f8] sm:$0xff]
  %v472 = vld [vmem:[%s432 + $0x200] sm:$0xff]
  %v473 = vld [vmem:[%s432 + $0x210] sm:$0xff]
  %v474 = vld [vmem:[%s432 + $0x218] sm:$0xff]
  %v475 = vld [vmem:[%s432 + $0x228] sm:$0xff]
  %v476 = vld [vmem:[%s432 + $0x230] sm:$0xff]
  %v477 = vld [vmem:[%s432 + $0x240] sm:$0xff]
  %v478 = vld [vmem:[%s432 + $0x248] sm:$0xff]
  %v479 = vld [vmem:[%s432 + $0x258] sm:$0xff]
  %v480 = vld [vmem:[%s432 + $0x260] sm:$0xff]
  %v481 = vld [vmem:[%s432 + $0x270] sm:$0xff]
  %v482 = vld [vmem:[%s432 + $0x278] sm:$0xff]
  %v483 = vld [vmem:[%s432 + $0x288] sm:$0xff]
  %v484 = vld [vmem:[%s432 + $0x290] sm:$0xff]
  %v485 = vld [vmem:[%s432 + $0x2a0] sm:$0xff]
  %v486 = vld [vmem:[%s432 + $0x2a8] sm:$0xff]
  %v487 = vld [vmem:[%s432 + $0x2b8] sm:$0xff]
  %v488 = vld [vmem:[%s432 + $0x2c0] sm:$0xff]
  %v489 = vld [vmem:[%s432 + $0x2d0] sm:$0xff]
  %v490 = vld [vmem:[%s432 + $0x2d8] sm:$0xff]
  %v491 = vld [vmem:[%s432 + $0x2e8] sm:$0xff]
  %v492 = vld [vmem:[%s432 + $0x2f0] sm:$0xff]
  %v493 = vld [vmem:[%s432 + $0x300] sm:$0xff]
  %v494 = vld [vmem:[%s432 + $0x308] sm:$0xff]
  %v495 = vld [vmem:[%s432 + $0x318] sm:$0xff]
  %v496 = vld [vmem:[%s432 + $0x320] sm:$0xff]
  %v497 = vld [vmem:[%s432 + $0x1] sm:$0xff]
  %v498 = vld [vmem:[%s432 + $0x9] sm:$0xff]
  %v499 = vld [vmem:[%s432 + $0x19] sm:$0xff]
  %v500 = vld [vmem:[%s432 + $0x21] sm:$0xff]
  %v501 = vld [vmem:[%s432 + $0x31] sm:$0xff]
  %v502 = vld [vmem:[%s432 + $0x39] sm:$0xff]
  %v503 = vld [vmem:[%s432 + $0x49] sm:$0xff]
  %v504 = vld [vmem:[%s432 + $0x51] sm:$0xff]
  %v505 = vld [vmem:[%s432 + $0x61] sm:$0xff]
  %v506 = vld [vmem:[%s432 + $0x69] sm:$0xff]
  %v507 = vld [vmem:[%s432 + $0x79] sm:$0xff]
  %v508 = vld [vmem:[%s432 + $0x81] sm:$0xff]
  %v509 = vld [vmem:[%s432 + $0x91] sm:$0xff]
  %v510 = vld [vmem:[%s432 + $0x99] sm:$0xff]
  %v511 = vld [vmem:[%s432 + $0xa9] sm:$0xff]
  %v512 = vld [vmem:[%s432 + $0xb1] sm:$0xff]
  %v513 = vld [vmem:[%s432 + $0xc1] sm:$0xff]
  %v514 = vld [vmem:[%s432 + $0xc9] sm:$0xff]
  %v515 = vld [vmem:[%s432 + $0xd9] sm:$0xff]
  %v516 = vld [vmem:[%s432 + $0xe1] sm:$0xff]
  %v517 = vld [vmem:[%s432 + $0xf1] sm:$0xff]
  %v518 = vld [vmem:[%s432 + $0xf9] sm:$0xff]
  %v519 = vld [vmem:[%s432 + $0x109] sm:$0xff]
  %v520 = vld [vmem:[%s432 + $0x111] sm:$0xff]
  %v521 = vld [vmem:[%s432 + $0x121] sm:$0xff]
  %v522 = vld [vmem:[%s432 + $0x129] sm:$0xff]
  %v523 = vld [vmem:[%s432 + $0x139] sm:$0xff]
  %v524 = vld [vmem:[%s432 + $0x141] sm:$0xff]
  %v525 = vld [vmem:[%s432 + $0x151] sm:$0xff]
  %v526 = vld [vmem:[%s432 + $0x159] sm:$0xff]
  %v527 = vld [vmem:[%s432 + $0x169] sm:$0xff]
  %v528 = vld [vmem:[%s432 + $0x171] sm:$0xff]
  %v529 = vld [vmem:[%s432 + $0x1b1] sm:$0xff]
  %v530 = vld [vmem:[%s432 + $0x1b9] sm:$0xff]
  %v531 = vld [vmem:[%s432 + $0x1c9] sm:$0xff]
  %v532 = vld [vmem:[%s432 + $0x1d1] sm:$0xff]
  %v533 = vld [vmem:[%s432 + $0x1e1] sm:$0xff]
  %v534 = vld [vmem:[%s432 + $0x1e9] sm:$0xff]
  %v535 = vld [vmem:[%s432 + $0x1f9] sm:$0xff]
  %v536 = vld [vmem:[%s432 + $0x201] sm:$0xff]
  %v537 = vld [vmem:[%s432 + $0x211] sm:$0xff]
  %v538 = vld [vmem:[%s432 + $0x219] sm:$0xff]
  %v539 = vld [vmem:[%s432 + $0x229] sm:$0xff]
  %v540 = vld [vmem:[%s432 + $0x231] sm:$0xff]
  %v541 = vld [vmem:[%s432 + $0x241] sm:$0xff]
  %v542 = vld [vmem:[%s432 + $0x249] sm:$0xff]
  %v543 = vld [vmem:[%s432 + $0x259] sm:$0xff]
  %v544 = vld [vmem:[%s432 + $0x261] sm:$0xff]
  %v545 = vld [vmem:[%s432 + $0x271] sm:$0xff]
  %v546 = vld [vmem:[%s432 + $0x279] sm:$0xff]
  %v547 = vld [vmem:[%s432 + $0x289] sm:$0xff]
  %v548 = vld [vmem:[%s432 + $0x291] sm:$0xff]
  %v549 = vld [vmem:[%s432 + $0x2a1] sm:$0xff]
  %v550 = vld [vmem:[%s432 + $0x2a9] sm:$0xff]
  %v551 = vld [vmem:[%s432 + $0x2b9] sm:$0xff]
  %v552 = vld [vmem:[%s432 + $0x2c1] sm:$0xff]
  %v553 = vld [vmem:[%s432 + $0x2d1] sm:$0xff]
  %v554 = vld [vmem:[%s432 + $0x2d9] sm:$0xff]
  %v555 = vld [vmem:[%s432 + $0x2e9] sm:$0xff]
  %v556 = vld [vmem:[%s432 + $0x2f1] sm:$0xff]
  %v557 = vld [vmem:[%s432 + $0x301] sm:$0xff]
  %v558 = vld [vmem:[%s432 + $0x309] sm:$0xff]
  %v559 = vld [vmem:[%s432 + $0x319] sm:$0xff]
  %v560 = vld [vmem:[%s432 + $0x321] sm:$0xff]
  %v561 = vld [vmem:[%s432 + $0x2] sm:$0xff]
  %v562 = vld [vmem:[%s432 + $0xa] sm:$0xff]
  %v563 = vld [vmem:[%s432 + $0x1a] sm:$0xff]
  %v564 = vld [vmem:[%s432 + $0x22] sm:$0xff]
  %v565 = vld [vmem:[%s432 + $0x32] sm:$0xff]
  %v566 = vld [vmem:[%s432 + $0x3a] sm:$0xff]
  %v567 = vld [vmem:[%s432 + $0x4a] sm:$0xff]
  %v568 = vld [vmem:[%s432 + $0x52] sm:$0xff]
  %v569 = vld [vmem:[%s432 + $0x62] sm:$0xff]
  %v570 = vld [vmem:[%s432 + $0x6a] sm:$0xff]
  %v571 = vld [vmem:[%s432 + $0x7a] sm:$0xff]
  %v572 = vld [vmem:[%s432 + $0x82] sm:$0xff]
  %v573 = vld [vmem:[%s432 + $0x92] sm:$0xff]
  %v574 = vld [vmem:[%s432 + $0x9a] sm:$0xff]
  %v575 = vld [vmem:[%s432 + $0xaa] sm:$0xff]
  %v576 = vld [vmem:[%s432 + $0xb2] sm:$0xff]
  %v577 = vld [vmem:[%s432 + $0xc2] sm:$0xff]
  %v578 = vld [vmem:[%s432 + $0xca] sm:$0xff]
  %v579 = vld [vmem:[%s432 + $0xda] sm:$0xff]
  %v580 = vld [vmem:[%s432 + $0xe2] sm:$0xff]
  %v581 = vld [vmem:[%s432 + $0xf2] sm:$0xff]
  %v582 = vld [vmem:[%s432 + $0xfa] sm:$0xff]
  %v583 = vld [vmem:[%s432 + $0x10a] sm:$0xff]
  %v584 = vld [vmem:[%s432 + $0x112] sm:$0xff]
  %v585 = vld [vmem:[%s432 + $0x122] sm:$0xff]
  %v586 = vld [vmem:[%s432 + $0x12a] sm:$0xff]
  %v587 = vld [vmem:[%s432 + $0x13a] sm:$0xff]
  %v588 = vld [vmem:[%s432 + $0x142] sm:$0xff]
  %v589 = vld [vmem:[%s432 + $0x152] sm:$0xff]
  %v590 = vld [vmem:[%s432 + $0x15a] sm:$0xff]
  %v591 = vld [vmem:[%s432 + $0x16a] sm:$0xff]
  %v592 = vld [vmem:[%s432 + $0x172] sm:$0xff]
  %v593 = vld [vmem:[%s432 + $0x1b2] sm:$0xff]
  %v594 = vld [vmem:[%s432 + $0x1ba] sm:$0xff]
  %v595 = vld [vmem:[%s432 + $0x1ca] sm:$0xff]
  %v596 = vld [vmem:[%s432 + $0x1d2] sm:$0xff]
  %v597 = vld [vmem:[%s432 + $0x1e2] sm:$0xff]
  %v598 = vld [vmem:[%s432 + $0x1ea] sm:$0xff]
  %v599 = vld [vmem:[%s432 + $0x1fa] sm:$0xff]
  %v600 = vld [vmem:[%s432 + $0x202] sm:$0xff]
  %v601 = vld [vmem:[%s432 + $0x212] sm:$0xff]
  %v602 = vld [vmem:[%s432 + $0x21a] sm:$0xff]
  %v603 = vld [vmem:[%s432 + $0x22a] sm:$0xff]
  %v604 = vld [vmem:[%s432 + $0x232] sm:$0xff]
  %v605 = vld [vmem:[%s432 + $0x242] sm:$0xff]
  %v606 = vld [vmem:[%s432 + $0x24a] sm:$0xff]
  %v607 = vld [vmem:[%s432 + $0x25a] sm:$0xff]
  %v608 = vld [vmem:[%s432 + $0x262] sm:$0xff]
  %v609 = vld [vmem:[%s432 + $0x272] sm:$0xff]
  %v610 = vld [vmem:[%s432 + $0x27a] sm:$0xff]
  %v611 = vld [vmem:[%s432 + $0x28a] sm:$0xff]
  %v612 = vld [vmem:[%s432 + $0x292] sm:$0xff]
  %v613 = vld [vmem:[%s432 + $0x2a2] sm:$0xff]
  %v614 = vld [vmem:[%s432 + $0x2aa] sm:$0xff]
  %v615 = vld [vmem:[%s432 + $0x2ba] sm:$0xff]
  %v616 = vld [vmem:[%s432 + $0x2c2] sm:$0xff]
  %v617 = vld [vmem:[%s432 + $0x2d2] sm:$0xff]
  %v618 = vld [vmem:[%s432 + $0x2da] sm:$0xff]
  %v619 = vld [vmem:[%s432 + $0x2ea] sm:$0xff]
  %v620 = vld [vmem:[%s432 + $0x2f2] sm:$0xff]
  %v621 = vld [vmem:[%s432 + $0x302] sm:$0xff]
  %v622 = vld [vmem:[%s432 + $0x30a] sm:$0xff]
  %v623 = vld [vmem:[%s432 + $0x31a] sm:$0xff]
  %v624 = vld [vmem:[%s432 + $0x322] sm:$0xff]
  %689 = vrot.lane.b32.xlu0 %v111, 4
  %v690 = vpop.permute.xlu0 %689
  %691 = vrot.lane.b32.xlu0 %v112, 4
  %v692 = vpop.permute.xlu0 %691
  %693 = vrot.lane.b32.xlu0 %v113, 4
  %v694 = vpop.permute.xlu0 %693
  %695 = vrot.lane.b32.xlu0 %v114, 4
  %v696 = vpop.permute.xlu0 %695
  %697 = vrot.lane.b32.xlu0 %v115, 4
  %v698 = vpop.permute.xlu0 %697
  %699 = vrot.lane.b32.xlu0 %v116, 4
  %v700 = vpop.permute.xlu0 %699
  %701 = vrot.lane.b32.xlu0 %v117, 4
  %v702 = vpop.permute.xlu0 %701
  %703 = vrot.lane.b32.xlu0 %v118, 4
  %v704 = vpop.permute.xlu0 %703
  %705 = vrot.lane.b32.xlu0 %v119, 4
  %v706 = vpop.permute.xlu0 %705
  %707 = vrot.lane.b32.xlu0 %v120, 4
  %v708 = vpop.permute.xlu0 %707
  %709 = vrot.lane.b32.xlu0 %v121, 4
  %v710 = vpop.permute.xlu0 %709
  %711 = vrot.lane.b32.xlu0 %v122, 4
  %v712 = vpop.permute.xlu0 %711
  %713 = vrot.lane.b32.xlu0 %v123, 4
  %v714 = vpop.permute.xlu0 %713
  %715 = vrot.lane.b32.xlu0 %v124, 4
  %v716 = vpop.permute.xlu0 %715
  %717 = vrot.lane.b32.xlu0 %v125, 4
  %v718 = vpop.permute.xlu0 %717
  %719 = vrot.lane.b32.xlu0 %v126, 4
  %v720 = vpop.permute.xlu0 %719
  %721 = vrot.lane.b32.xlu0 %v127, 4
  %v722 = vpop.permute.xlu0 %721
  %723 = vrot.lane.b32.xlu0 %v128, 4
  %v724 = vpop.permute.xlu0 %723
  %725 = vrot.lane.b32.xlu0 %v129, 4
  %v726 = vpop.permute.xlu0 %725
  %727 = vrot.lane.b32.xlu0 %v130, 4
  %v728 = vpop.permute.xlu0 %727
  %729 = vrot.lane.b32.xlu0 %v131, 4
  %v730 = vpop.permute.xlu0 %729
  %731 = vrot.lane.b32.xlu0 %v132, 4
  %v732 = vpop.permute.xlu0 %731
  %733 = vrot.lane.b32.xlu0 %v133, 4
  %v734 = vpop.permute.xlu0 %733
  %735 = vrot.lane.b32.xlu0 %v134, 4
  %v736 = vpop.permute.xlu0 %735
  %737 = vrot.lane.b32.xlu0 %v135, 4
  %v738 = vpop.permute.xlu0 %737
  %739 = vrot.lane.b32.xlu0 %v136, 4
  %v740 = vpop.permute.xlu0 %739
  %741 = vrot.lane.b32.xlu0 %v137, 4
  %v742 = vpop.permute.xlu0 %741
  %743 = vrot.lane.b32.xlu0 %v138, 4
  %v744 = vpop.permute.xlu0 %743
  %745 = vrot.lane.b32.xlu0 %v139, 4
  %v746 = vpop.permute.xlu0 %745
  %747 = vrot.lane.b32.xlu0 %v140, 4
  %v748 = vpop.permute.xlu0 %747
  %749 = vrot.lane.b32.xlu0 %v141, 4
  %v750 = vpop.permute.xlu0 %749
  %751 = vrot.lane.b32.xlu0 %v142, 4
  %v752 = vpop.permute.xlu0 %751
  %753 = vrot.lane.b32.xlu0 %v143, 4
  %v754 = vpop.permute.xlu0 %753
  %755 = vrot.lane.b32.xlu0 %v144, 4
  %v756 = vpop.permute.xlu0 %755
  %757 = vrot.lane.b32.xlu0 %v145, 4
  %v758 = vpop.permute.xlu0 %757
  %759 = vrot.lane.b32.xlu0 %v146, 4
  %v760 = vpop.permute.xlu0 %759
  %761 = vrot.lane.b32.xlu0 %v147, 4
  %v762 = vpop.permute.xlu0 %761
  %763 = vrot.lane.b32.xlu0 %v148, 4
  %v764 = vpop.permute.xlu0 %763
  %765 = vrot.lane.b32.xlu0 %v149, 4
  %v766 = vpop.permute.xlu0 %765
  %767 = vrot.lane.b32.xlu0 %v150, 4
  %v768 = vpop.permute.xlu0 %767
  %769 = vrot.lane.b32.xlu0 %v151, 4
  %v770 = vpop.permute.xlu0 %769
  %771 = vrot.lane.b32.xlu0 %v152, 4
  %v772 = vpop.permute.xlu0 %771
  %773 = vrot.lane.b32.xlu0 %v153, 4
  %v774 = vpop.permute.xlu0 %773
  %775 = vrot.lane.b32.xlu0 %v154, 4
  %v776 = vpop.permute.xlu0 %775
  %777 = vrot.lane.b32.xlu0 %v155, 4
  %v778 = vpop.permute.xlu0 %777
  %779 = vrot.lane.b32.xlu0 %v156, 4
  %v780 = vpop.permute.xlu0 %779
  %781 = vrot.lane.b32.xlu0 %v157, 4
  %v782 = vpop.permute.xlu0 %781
  %783 = vrot.lane.b32.xlu0 %v158, 4
  %v784 = vpop.permute.xlu0 %783
  %785 = vrot.lane.b32.xlu0 %v159, 4
  %v786 = vpop.permute.xlu0 %785
  %787 = vrot.lane.b32.xlu0 %v160, 4
  %v788 = vpop.permute.xlu0 %787
  %789 = vrot.lane.b32.xlu0 %v161, 4
  %v790 = vpop.permute.xlu0 %789
  %791 = vrot.lane.b32.xlu0 %v162, 4
  %v792 = vpop.permute.xlu0 %791
  %793 = vrot.lane.b32.xlu0 %v163, 4
  %v794 = vpop.permute.xlu0 %793
  %795 = vrot.lane.b32.xlu0 %v164, 4
  %v796 = vpop.permute.xlu0 %795
  %797 = vrot.lane.b32.xlu0 %v165, 4
  %v798 = vpop.permute.xlu0 %797
  %799 = vrot.lane.b32.xlu0 %v166, 4
  %v800 = vpop.permute.xlu0 %799
  %801 = vrot.lane.b32.xlu0 %v167, 4
  %v802 = vpop.permute.xlu0 %801
  %803 = vrot.lane.b32.xlu0 %v168, 4
  %v804 = vpop.permute.xlu0 %803
  %805 = vrot.lane.b32.xlu0 %v169, 4
  %v806 = vpop.permute.xlu0 %805
  %807 = vrot.lane.b32.xlu0 %v170, 4
  %v808 = vpop.permute.xlu0 %807
  %809 = vrot.lane.b32.xlu0 %v171, 4
  %v810 = vpop.permute.xlu0 %809
  %811 = vrot.lane.b32.xlu0 %v172, 4
  %v812 = vpop.permute.xlu0 %811
  %813 = vrot.lane.b32.xlu0 %v173, 4
  %v814 = vpop.permute.xlu0 %813
  %815 = vrot.lane.b32.xlu0 %v174, 4
  %v816 = vpop.permute.xlu0 %815
  %945 = vrot.lane.b32.xlu0 %v175, 8
  %v946 = vpop.permute.xlu0 %945
  %947 = vrot.lane.b32.xlu0 %v176, 8
  %v948 = vpop.permute.xlu0 %947
  %949 = vrot.lane.b32.xlu0 %v177, 8
  %v950 = vpop.permute.xlu0 %949
  %951 = vrot.lane.b32.xlu0 %v178, 8
  %v952 = vpop.permute.xlu0 %951
  %953 = vrot.lane.b32.xlu0 %v179, 8
  %v954 = vpop.permute.xlu0 %953
  %955 = vrot.lane.b32.xlu0 %v180, 8
  %v956 = vpop.permute.xlu0 %955
  %957 = vrot.lane.b32.xlu0 %v181, 8
  %v958 = vpop.permute.xlu0 %957
  %959 = vrot.lane.b32.xlu0 %v182, 8
  %v960 = vpop.permute.xlu0 %959
  %961 = vrot.lane.b32.xlu0 %v183, 8
  %v962 = vpop.permute.xlu0 %961
  %963 = vrot.lane.b32.xlu0 %v184, 8
  %v964 = vpop.permute.xlu0 %963
  %965 = vrot.lane.b32.xlu0 %v185, 8
  %v966 = vpop.permute.xlu0 %965
  %967 = vrot.lane.b32.xlu0 %v186, 8
  %v968 = vpop.permute.xlu0 %967
  %969 = vrot.lane.b32.xlu0 %v187, 8
  %v970 = vpop.permute.xlu0 %969
  %971 = vrot.lane.b32.xlu0 %v188, 8
  %v972 = vpop.permute.xlu0 %971
  %973 = vrot.lane.b32.xlu0 %v189, 8
  %v974 = vpop.permute.xlu0 %973
  %975 = vrot.lane.b32.xlu0 %v190, 8
  %v976 = vpop.permute.xlu0 %975
  %977 = vrot.lane.b32.xlu0 %v191, 8
  %v978 = vpop.permute.xlu0 %977
  %979 = vrot.lane.b32.xlu0 %v192, 8
  %v980 = vpop.permute.xlu0 %979
  %981 = vrot.lane.b32.xlu0 %v193, 8
  %v982 = vpop.permute.xlu0 %981
  %983 = vrot.lane.b32.xlu0 %v194, 8
  %v984 = vpop.permute.xlu0 %983
  %985 = vrot.lane.b32.xlu0 %v195, 8
  %v986 = vpop.permute.xlu0 %985
  %987 = vrot.lane.b32.xlu0 %v196, 8
  %v988 = vpop.permute.xlu0 %987
  %989 = vrot.lane.b32.xlu0 %v197, 8
  %v990 = vpop.permute.xlu0 %989
  %991 = vrot.lane.b32.xlu0 %v198, 8
  %v992 = vpop.permute.xlu0 %991
  %993 = vrot.lane.b32.xlu0 %v199, 8
  %v994 = vpop.permute.xlu0 %993
  %995 = vrot.lane.b32.xlu0 %v200, 8
  %v996 = vpop.permute.xlu0 %995
  %997 = vrot.lane.b32.xlu0 %v201, 8
  %v998 = vpop.permute.xlu0 %997
  %999 = vrot.lane.b32.xlu0 %v202, 8
  %v1000 = vpop.permute.xlu0 %999
  %1001 = vrot.lane.b32.xlu0 %v203, 8
  %v1002 = vpop.permute.xlu0 %1001
  %1003 = vrot.lane.b32.xlu0 %v204, 8
  %v1004 = vpop.permute.xlu0 %1003
  %1005 = vrot.lane.b32.xlu0 %v205, 8
  %v1006 = vpop.permute.xlu0 %1005
  %1007 = vrot.lane.b32.xlu0 %v206, 8
  %v1008 = vpop.permute.xlu0 %1007
  %1009 = vrot.lane.b32.xlu0 %v207, 8
  %v1010 = vpop.permute.xlu0 %1009
  %1011 = vrot.lane.b32.xlu0 %v208, 8
  %v1012 = vpop.permute.xlu0 %1011
  %1013 = vrot.lane.b32.xlu0 %v209, 8
  %v1014 = vpop.permute.xlu0 %1013
  %1015 = vrot.lane.b32.xlu0 %v210, 8
  %v1016 = vpop.permute.xlu0 %1015
  %1017 = vrot.lane.b32.xlu0 %v211, 8
  %v1018 = vpop.permute.xlu0 %1017
  %1019 = vrot.lane.b32.xlu0 %v212, 8
  %v1020 = vpop.permute.xlu0 %1019
  %1021 = vrot.lane.b32.xlu0 %v213, 8
  %v1022 = vpop.permute.xlu0 %1021
  %1023 = vrot.lane.b32.xlu0 %v214, 8
  %v1024 = vpop.permute.xlu0 %1023
  %1025 = vrot.lane.b32.xlu0 %v215, 8
  %v1026 = vpop.permute.xlu0 %1025
  %1027 = vrot.lane.b32.xlu0 %v216, 8
  %v1028 = vpop.permute.xlu0 %1027
  %1029 = vrot.lane.b32.xlu0 %v217, 8
  %v1030 = vpop.permute.xlu0 %1029
  %1031 = vrot.lane.b32.xlu0 %v218, 8
  %v1032 = vpop.permute.xlu0 %1031
  %1033 = vrot.lane.b32.xlu0 %v219, 8
  %v1034 = vpop.permute.xlu0 %1033
  %1035 = vrot.lane.b32.xlu0 %v220, 8
  %v1036 = vpop.permute.xlu0 %1035
  %1037 = vrot.lane.b32.xlu0 %v221, 8
  %v1038 = vpop.permute.xlu0 %1037
  %1039 = vrot.lane.b32.xlu0 %v222, 8
  %v1040 = vpop.permute.xlu0 %1039
  %1041 = vrot.lane.b32.xlu0 %v223, 8
  %v1042 = vpop.permute.xlu0 %1041
  %1043 = vrot.lane.b32.xlu0 %v224, 8
  %v1044 = vpop.permute.xlu0 %1043
  %1045 = vrot.lane.b32.xlu0 %v225, 8
  %v1046 = vpop.permute.xlu0 %1045
  %1047 = vrot.lane.b32.xlu0 %v226, 8
  %v1048 = vpop.permute.xlu0 %1047
  %1049 = vrot.lane.b32.xlu0 %v227, 8
  %v1050 = vpop.permute.xlu0 %1049
  %1051 = vrot.lane.b32.xlu0 %v228, 8
  %v1052 = vpop.permute.xlu0 %1051
  %1053 = vrot.lane.b32.xlu0 %v229, 8
  %v1054 = vpop.permute.xlu0 %1053
  %1055 = vrot.lane.b32.xlu0 %v230, 8
  %v1056 = vpop.permute.xlu0 %1055
  %1057 = vrot.lane.b32.xlu0 %v231, 8
  %v1058 = vpop.permute.xlu0 %1057
  %1059 = vrot.lane.b32.xlu0 %v232, 8
  %v1060 = vpop.permute.xlu0 %1059
  %1061 = vrot.lane.b32.xlu0 %v233, 8
  %v1062 = vpop.permute.xlu0 %1061
  %1063 = vrot.lane.b32.xlu0 %v234, 8
  %v1064 = vpop.permute.xlu0 %1063
  %1065 = vrot.lane.b32.xlu0 %v235, 8
  %v1066 = vpop.permute.xlu0 %1065
  %1067 = vrot.lane.b32.xlu0 %v236, 8
  %v1068 = vpop.permute.xlu0 %1067
  %1069 = vrot.lane.b32.xlu0 %v237, 8
  %v1070 = vpop.permute.xlu0 %1069
  %1071 = vrot.lane.b32.xlu0 %v238, 8
  %v1072 = vpop.permute.xlu0 %1071
  %1201 = vrot.lane.b32.xlu0 %v240, 12
  %v1202 = vpop.permute.xlu0 %1201
  %1203 = vrot.lane.b32.xlu0 %v241, 12
  %v1204 = vpop.permute.xlu0 %1203
  %1205 = vrot.lane.b32.xlu0 %v242, 12
  %v1206 = vpop.permute.xlu0 %1205
  %1207 = vrot.lane.b32.xlu0 %v243, 12
  %v1208 = vpop.permute.xlu0 %1207
  %1209 = vrot.lane.b32.xlu0 %v244, 12
  %v1210 = vpop.permute.xlu0 %1209
  %1211 = vrot.lane.b32.xlu0 %v245, 12
  %v1212 = vpop.permute.xlu0 %1211
  %1213 = vrot.lane.b32.xlu0 %v246, 12
  %v1214 = vpop.permute.xlu0 %1213
  %1215 = vrot.lane.b32.xlu0 %v247, 12
  %v1216 = vpop.permute.xlu0 %1215
  %1217 = vrot.lane.b32.xlu0 %v248, 12
  %v1218 = vpop.permute.xlu0 %1217
  %1219 = vrot.lane.b32.xlu0 %v249, 12
  %v1220 = vpop.permute.xlu0 %1219
  %1221 = vrot.lane.b32.xlu0 %v250, 12
  %v1222 = vpop.permute.xlu0 %1221
  %1223 = vrot.lane.b32.xlu0 %v251, 12
  %v1224 = vpop.permute.xlu0 %1223
  %1225 = vrot.lane.b32.xlu0 %v252, 12
  %v1226 = vpop.permute.xlu0 %1225
  %1227 = vrot.lane.b32.xlu0 %v253, 12
  %v1228 = vpop.permute.xlu0 %1227
  %1229 = vrot.lane.b32.xlu0 %v254, 12
  %v1230 = vpop.permute.xlu0 %1229
  %1231 = vrot.lane.b32.xlu0 %v255, 12
  %v1232 = vpop.permute.xlu0 %1231
  %1233 = vrot.lane.b32.xlu0 %v256, 12
  %v1234 = vpop.permute.xlu0 %1233
  %1235 = vrot.lane.b32.xlu0 %v257, 12
  %v1236 = vpop.permute.xlu0 %1235
  %1237 = vrot.lane.b32.xlu0 %v258, 12
  %v1238 = vpop.permute.xlu0 %1237
  %1239 = vrot.lane.b32.xlu0 %v259, 12
  %v1240 = vpop.permute.xlu0 %1239
  %1241 = vrot.lane.b32.xlu0 %v260, 12
  %v1242 = vpop.permute.xlu0 %1241
  %1243 = vrot.lane.b32.xlu0 %v261, 12
  %v1244 = vpop.permute.xlu0 %1243
  %1245 = vrot.lane.b32.xlu0 %v262, 12
  %v1246 = vpop.permute.xlu0 %1245
  %1247 = vrot.lane.b32.xlu0 %v263, 12
  %v1248 = vpop.permute.xlu0 %1247
  %1249 = vrot.lane.b32.xlu0 %v264, 12
  %v1250 = vpop.permute.xlu0 %1249
  %1251 = vrot.lane.b32.xlu0 %v265, 12
  %v1252 = vpop.permute.xlu0 %1251
  %1253 = vrot.lane.b32.xlu0 %v266, 12
  %v1254 = vpop.permute.xlu0 %1253
  %1255 = vrot.lane.b32.xlu0 %v267, 12
  %v1256 = vpop.permute.xlu0 %1255
  %1257 = vrot.lane.b32.xlu0 %v268, 12
  %v1258 = vpop.permute.xlu0 %1257
  %1259 = vrot.lane.b32.xlu0 %v269, 12
  %v1260 = vpop.permute.xlu0 %1259
  %1261 = vrot.lane.b32.xlu0 %v270, 12
  %v1262 = vpop.permute.xlu0 %1261
  %1263 = vrot.lane.b32.xlu0 %v271, 12
  %v1264 = vpop.permute.xlu0 %1263
  %1265 = vrot.lane.b32.xlu0 %v272, 12
  %v1266 = vpop.permute.xlu0 %1265
  %1267 = vrot.lane.b32.xlu0 %v273, 12
  %v1268 = vpop.permute.xlu0 %1267
  %1269 = vrot.lane.b32.xlu0 %v274, 12
  %v1270 = vpop.permute.xlu0 %1269
  %1271 = vrot.lane.b32.xlu0 %v275, 12
  %v1272 = vpop.permute.xlu0 %1271
  %1273 = vrot.lane.b32.xlu0 %v276, 12
  %v1274 = vpop.permute.xlu0 %1273
  %1275 = vrot.lane.b32.xlu0 %v277, 12
  %v1276 = vpop.permute.xlu0 %1275
  %1277 = vrot.lane.b32.xlu0 %v278, 12
  %v1278 = vpop.permute.xlu0 %1277
  %1279 = vrot.lane.b32.xlu0 %v279, 12
  %v1280 = vpop.permute.xlu0 %1279
  %1281 = vrot.lane.b32.xlu0 %v280, 12
  %v1282 = vpop.permute.xlu0 %1281
  %1283 = vrot.lane.b32.xlu0 %v281, 12
  %v1284 = vpop.permute.xlu0 %1283
  %1285 = vrot.lane.b32.xlu0 %v282, 12
  %v1286 = vpop.permute.xlu0 %1285
  %1287 = vrot.lane.b32.xlu0 %v283, 12
  %v1288 = vpop.permute.xlu0 %1287
  %1289 = vrot.lane.b32.xlu0 %v284, 12
  %v1290 = vpop.permute.xlu0 %1289
  %1291 = vrot.lane.b32.xlu0 %v285, 12
  %v1292 = vpop.permute.xlu0 %1291
  %1293 = vrot.lane.b32.xlu0 %v286, 12
  %v1294 = vpop.permute.xlu0 %1293
  %1295 = vrot.lane.b32.xlu0 %v287, 12
  %v1296 = vpop.permute.xlu0 %1295
  %1297 = vrot.lane.b32.xlu0 %v288, 12
  %v1298 = vpop.permute.xlu0 %1297
  %1299 = vrot.lane.b32.xlu0 %v289, 12
  %v1300 = vpop.permute.xlu0 %1299
  %1301 = vrot.lane.b32.xlu0 %v290, 12
  %v1302 = vpop.permute.xlu0 %1301
  %1303 = vrot.lane.b32.xlu0 %v291, 12
  %v1304 = vpop.permute.xlu0 %1303
  %1305 = vrot.lane.b32.xlu0 %v292, 12
  %v1306 = vpop.permute.xlu0 %1305
  %1307 = vrot.lane.b32.xlu0 %v293, 12
  %v1308 = vpop.permute.xlu0 %1307
  %1309 = vrot.lane.b32.xlu0 %v294, 12
  %v1310 = vpop.permute.xlu0 %1309
  %1311 = vrot.lane.b32.xlu0 %v295, 12
  %v1312 = vpop.permute.xlu0 %1311
  %1313 = vrot.lane.b32.xlu0 %v296, 12
  %v1314 = vpop.permute.xlu0 %1313
  %1315 = vrot.lane.b32.xlu0 %v297, 12
  %v1316 = vpop.permute.xlu0 %1315
  %1317 = vrot.lane.b32.xlu0 %v298, 12
  %v1318 = vpop.permute.xlu0 %1317
  %1319 = vrot.lane.b32.xlu0 %v299, 12
  %v1320 = vpop.permute.xlu0 %1319
  %1321 = vrot.lane.b32.xlu0 %v300, 12
  %v1322 = vpop.permute.xlu0 %1321
  %1323 = vrot.lane.b32.xlu0 %v301, 12
  %v1324 = vpop.permute.xlu0 %1323
  %1325 = vrot.lane.b32.xlu0 %v302, 12
  %v1326 = vpop.permute.xlu0 %1325
  %1327 = vrot.lane.b32.xlu0 %v303, 12
  %v1328 = vpop.permute.xlu0 %1327
  %1457 = vrot.lane.b32.xlu0 %v304, 16
  %v1458 = vpop.permute.xlu0 %1457
  %1459 = vrot.lane.b32.xlu0 %v305, 16
  %v1460 = vpop.permute.xlu0 %1459
  %1461 = vrot.lane.b32.xlu0 %v306, 16
  %v1462 = vpop.permute.xlu0 %1461
  %1463 = vrot.lane.b32.xlu0 %v307, 16
  %v1464 = vpop.permute.xlu0 %1463
  %1465 = vrot.lane.b32.xlu0 %v308, 16
  %v1466 = vpop.permute.xlu0 %1465
  %1467 = vrot.lane.b32.xlu0 %v309, 16
  %v1468 = vpop.permute.xlu0 %1467
  %1469 = vrot.lane.b32.xlu0 %v310, 16
  %v1470 = vpop.permute.xlu0 %1469
  %1471 = vrot.lane.b32.xlu0 %v311, 16
  %v1472 = vpop.permute.xlu0 %1471
  %1473 = vrot.lane.b32.xlu0 %v312, 16
  %v1474 = vpop.permute.xlu0 %1473
  %1475 = vrot.lane.b32.xlu0 %v313, 16
  %v1476 = vpop.permute.xlu0 %1475
  %1477 = vrot.lane.b32.xlu0 %v314, 16
  %v1478 = vpop.permute.xlu0 %1477
  %1479 = vrot.lane.b32.xlu0 %v315, 16
  %v1480 = vpop.permute.xlu0 %1479
  %1481 = vrot.lane.b32.xlu0 %v316, 16
  %v1482 = vpop.permute.xlu0 %1481
  %1483 = vrot.lane.b32.xlu0 %v317, 16
  %v1484 = vpop.permute.xlu0 %1483
  %1485 = vrot.lane.b32.xlu0 %v318, 16
  %v1486 = vpop.permute.xlu0 %1485
  %1487 = vrot.lane.b32.xlu0 %v319, 16
  %v1488 = vpop.permute.xlu0 %1487
  %1489 = vrot.lane.b32.xlu0 %v320, 16
  %v1490 = vpop.permute.xlu0 %1489
  %1491 = vrot.lane.b32.xlu0 %v321, 16
  %v1492 = vpop.permute.xlu0 %1491
  %1493 = vrot.lane.b32.xlu0 %v322, 16
  %v1494 = vpop.permute.xlu0 %1493
  %1495 = vrot.lane.b32.xlu0 %v323, 16
  %v1496 = vpop.permute.xlu0 %1495
  %1497 = vrot.lane.b32.xlu0 %v324, 16
  %v1498 = vpop.permute.xlu0 %1497
  %1499 = vrot.lane.b32.xlu0 %v325, 16
  %v1500 = vpop.permute.xlu0 %1499
  %1501 = vrot.lane.b32.xlu0 %v326, 16
  %v1502 = vpop.permute.xlu0 %1501
  %1503 = vrot.lane.b32.xlu0 %v327, 16
  %v1504 = vpop.permute.xlu0 %1503
  %1505 = vrot.lane.b32.xlu0 %v328, 16
  %v1506 = vpop.permute.xlu0 %1505
  %1507 = vrot.lane.b32.xlu0 %v329, 16
  %v1508 = vpop.permute.xlu0 %1507
  %1509 = vrot.lane.b32.xlu0 %v330, 16
  %v1510 = vpop.permute.xlu0 %1509
  %1511 = vrot.lane.b32.xlu0 %v331, 16
  %v1512 = vpop.permute.xlu0 %1511
  %1513 = vrot.lane.b32.xlu0 %v332, 16
  %v1514 = vpop.permute.xlu0 %1513
  %1515 = vrot.lane.b32.xlu0 %v333, 16
  %v1516 = vpop.permute.xlu0 %1515
  %1517 = vrot.lane.b32.xlu0 %v334, 16
  %v1518 = vpop.permute.xlu0 %1517
  %1519 = vrot.lane.b32.xlu0 %v335, 16
  %v1520 = vpop.permute.xlu0 %1519
  %1521 = vrot.lane.b32.xlu0 %v336, 16
  %v1522 = vpop.permute.xlu0 %1521
  %1523 = vrot.lane.b32.xlu0 %v337, 16
  %v1524 = vpop.permute.xlu0 %1523
  %1525 = vrot.lane.b32.xlu0 %v338, 16
  %v1526 = vpop.permute.xlu0 %1525
  %1527 = vrot.lane.b32.xlu0 %v339, 16
  %v1528 = vpop.permute.xlu0 %1527
  %1529 = vrot.lane.b32.xlu0 %v340, 16
  %v1530 = vpop.permute.xlu0 %1529
  %1531 = vrot.lane.b32.xlu0 %v341, 16
  %v1532 = vpop.permute.xlu0 %1531
  %1533 = vrot.lane.b32.xlu0 %v342, 16
  %v1534 = vpop.permute.xlu0 %1533
  %1535 = vrot.lane.b32.xlu0 %v343, 16
  %v1536 = vpop.permute.xlu0 %1535
  %1537 = vrot.lane.b32.xlu0 %v344, 16
  %v1538 = vpop.permute.xlu0 %1537
  %1539 = vrot.lane.b32.xlu0 %v345, 16
  %v1540 = vpop.permute.xlu0 %1539
  %1541 = vrot.lane.b32.xlu0 %v346, 16
  %v1542 = vpop.permute.xlu0 %1541
  %1543 = vrot.lane.b32.xlu0 %v347, 16
  %v1544 = vpop.permute.xlu0 %1543
  %1545 = vrot.lane.b32.xlu0 %v348, 16
  %v1546 = vpop.permute.xlu0 %1545
  %1547 = vrot.lane.b32.xlu0 %v349, 16
  %v1548 = vpop.permute.xlu0 %1547
  %1549 = vrot.lane.b32.xlu0 %v350, 16
  %v1550 = vpop.permute.xlu0 %1549
  %1551 = vrot.lane.b32.xlu0 %v351, 16
  %v1552 = vpop.permute.xlu0 %1551
  %1553 = vrot.lane.b32.xlu0 %v352, 16
  %v1554 = vpop.permute.xlu0 %1553
  %1555 = vrot.lane.b32.xlu0 %v353, 16
  %v1556 = vpop.permute.xlu0 %1555
  %1557 = vrot.lane.b32.xlu0 %v354, 16
  %v1558 = vpop.permute.xlu0 %1557
  %1559 = vrot.lane.b32.xlu0 %v355, 16
  %v1560 = vpop.permute.xlu0 %1559
  %1561 = vrot.lane.b32.xlu0 %v356, 16
  %v1562 = vpop.permute.xlu0 %1561
  %1563 = vrot.lane.b32.xlu0 %v357, 16
  %v1564 = vpop.permute.xlu0 %1563
  %1565 = vrot.lane.b32.xlu0 %v358, 16
  %v1566 = vpop.permute.xlu0 %1565
  %1567 = vrot.lane.b32.xlu0 %v359, 16
  %v1568 = vpop.permute.xlu0 %1567
  %1569 = vrot.lane.b32.xlu0 %v360, 16
  %v1570 = vpop.permute.xlu0 %1569
  %1571 = vrot.lane.b32.xlu0 %v361, 16
  %v1572 = vpop.permute.xlu0 %1571
  %1573 = vrot.lane.b32.xlu0 %v362, 16
  %v1574 = vpop.permute.xlu0 %1573
  %1575 = vrot.lane.b32.xlu0 %v363, 16
  %v1576 = vpop.permute.xlu0 %1575
  %1577 = vrot.lane.b32.xlu0 %v364, 16
  %v1578 = vpop.permute.xlu0 %1577
  %1579 = vrot.lane.b32.xlu0 %v365, 16
  %v1580 = vpop.permute.xlu0 %1579
  %1581 = vrot.lane.b32.xlu0 %v366, 16
  %v1582 = vpop.permute.xlu0 %1581
  %1583 = vrot.lane.b32.xlu0 %v367, 16
  %v1584 = vpop.permute.xlu0 %1583
  %1713 = vrot.lane.b32.xlu0 %v368, 20
  %v1714 = vpop.permute.xlu0 %1713
  %1715 = vrot.lane.b32.xlu0 %v369, 20
  %v1716 = vpop.permute.xlu0 %1715
  %1717 = vrot.lane.b32.xlu0 %v370, 20
  %v1718 = vpop.permute.xlu0 %1717
  %1719 = vrot.lane.b32.xlu0 %v371, 20
  %v1720 = vpop.permute.xlu0 %1719
  %1721 = vrot.lane.b32.xlu0 %v372, 20
  %v1722 = vpop.permute.xlu0 %1721
  %1723 = vrot.lane.b32.xlu0 %v373, 20
  %v1724 = vpop.permute.xlu0 %1723
  %1725 = vrot.lane.b32.xlu0 %v374, 20
  %v1726 = vpop.permute.xlu0 %1725
  %1727 = vrot.lane.b32.xlu0 %v375, 20
  %v1728 = vpop.permute.xlu0 %1727
  %1729 = vrot.lane.b32.xlu0 %v376, 20
  %v1730 = vpop.permute.xlu0 %1729
  %1731 = vrot.lane.b32.xlu0 %v377, 20
  %v1732 = vpop.permute.xlu0 %1731
  %1733 = vrot.lane.b32.xlu0 %v378, 20
  %v1734 = vpop.permute.xlu0 %1733
  %1735 = vrot.lane.b32.xlu0 %v379, 20
  %v1736 = vpop.permute.xlu0 %1735
  %1737 = vrot.lane.b32.xlu0 %v380, 20
  %v1738 = vpop.permute.xlu0 %1737
  %1739 = vrot.lane.b32.xlu0 %v381, 20
  %v1740 = vpop.permute.xlu0 %1739
  %1741 = vrot.lane.b32.xlu0 %v382, 20
  %v1742 = vpop.permute.xlu0 %1741
  %1743 = vrot.lane.b32.xlu0 %v383, 20
  %v1744 = vpop.permute.xlu0 %1743
  %1745 = vrot.lane.b32.xlu0 %v384, 20
  %v1746 = vpop.permute.xlu0 %1745
  %1747 = vrot.lane.b32.xlu0 %v385, 20
  %v1748 = vpop.permute.xlu0 %1747
  %1749 = vrot.lane.b32.xlu0 %v386, 20
  %v1750 = vpop.permute.xlu0 %1749
  %1751 = vrot.lane.b32.xlu0 %v387, 20
  %v1752 = vpop.permute.xlu0 %1751
  %1753 = vrot.lane.b32.xlu0 %v388, 20
  %v1754 = vpop.permute.xlu0 %1753
  %1755 = vrot.lane.b32.xlu0 %v389, 20
  %v1756 = vpop.permute.xlu0 %1755
  %1757 = vrot.lane.b32.xlu0 %v390, 20
  %v1758 = vpop.permute.xlu0 %1757
  %1759 = vrot.lane.b32.xlu0 %v391, 20
  %v1760 = vpop.permute.xlu0 %1759
  %1761 = vrot.lane.b32.xlu0 %v392, 20
  %v1762 = vpop.permute.xlu0 %1761
  %1763 = vrot.lane.b32.xlu0 %v393, 20
  %v1764 = vpop.permute.xlu0 %1763
  %1765 = vrot.lane.b32.xlu0 %v394, 20
  %v1766 = vpop.permute.xlu0 %1765
  %1767 = vrot.lane.b32.xlu0 %v395, 20
  %v1768 = vpop.permute.xlu0 %1767
  %1769 = vrot.lane.b32.xlu0 %v396, 20
  %v1770 = vpop.permute.xlu0 %1769
  %1771 = vrot.lane.b32.xlu0 %v397, 20
  %v1772 = vpop.permute.xlu0 %1771
  %1773 = vrot.lane.b32.xlu0 %v398, 20
  %v1774 = vpop.permute.xlu0 %1773
  %1775 = vrot.lane.b32.xlu0 %v399, 20
  %v1776 = vpop.permute.xlu0 %1775
  %1777 = vrot.lane.b32.xlu0 %v400, 20
  %v1778 = vpop.permute.xlu0 %1777
  %1779 = vrot.lane.b32.xlu0 %v401, 20
  %v1780 = vpop.permute.xlu0 %1779
  %1781 = vrot.lane.b32.xlu0 %v402, 20
  %v1782 = vpop.permute.xlu0 %1781
  %1783 = vrot.lane.b32.xlu0 %v403, 20
  %v1784 = vpop.permute.xlu0 %1783
  %1785 = vrot.lane.b32.xlu0 %v404, 20
  %v1786 = vpop.permute.xlu0 %1785
  %1787 = vrot.lane.b32.xlu0 %v405, 20
  %v1788 = vpop.permute.xlu0 %1787
  %1789 = vrot.lane.b32.xlu0 %v406, 20
  %v1790 = vpop.permute.xlu0 %1789
  %1791 = vrot.lane.b32.xlu0 %v407, 20
  %v1792 = vpop.permute.xlu0 %1791
  %1793 = vrot.lane.b32.xlu0 %v408, 20
  %v1794 = vpop.permute.xlu0 %1793
  %1795 = vrot.lane.b32.xlu0 %v409, 20
  %v1796 = vpop.permute.xlu0 %1795
  %1797 = vrot.lane.b32.xlu0 %v410, 20
  %v1798 = vpop.permute.xlu0 %1797
  %1799 = vrot.lane.b32.xlu0 %v411, 20
  %v1800 = vpop.permute.xlu0 %1799
  %1801 = vrot.lane.b32.xlu0 %v412, 20
  %v1802 = vpop.permute.xlu0 %1801
  %1803 = vrot.lane.b32.xlu0 %v413, 20
  %v1804 = vpop.permute.xlu0 %1803
  %1805 = vrot.lane.b32.xlu0 %v414, 20
  %v1806 = vpop.permute.xlu0 %1805
  %1807 = vrot.lane.b32.xlu0 %v415, 20
  %v1808 = vpop.permute.xlu0 %1807
  %1809 = vrot.lane.b32.xlu0 %v416, 20
  %v1810 = vpop.permute.xlu0 %1809
  %1811 = vrot.lane.b32.xlu0 %v417, 20
  %v1812 = vpop.permute.xlu0 %1811
  %1813 = vrot.lane.b32.xlu0 %v418, 20
  %v1814 = vpop.permute.xlu0 %1813
  %1815 = vrot.lane.b32.xlu0 %v419, 20
  %v1816 = vpop.permute.xlu0 %1815
  %1817 = vrot.lane.b32.xlu0 %v420, 20
  %v1818 = vpop.permute.xlu0 %1817
  %1819 = vrot.lane.b32.xlu0 %v421, 20
  %v1820 = vpop.permute.xlu0 %1819
  %1821 = vrot.lane.b32.xlu0 %v422, 20
  %v1822 = vpop.permute.xlu0 %1821
  %1823 = vrot.lane.b32.xlu0 %v423, 20
  %v1824 = vpop.permute.xlu0 %1823
  %1825 = vrot.lane.b32.xlu0 %v424, 20
  %v1826 = vpop.permute.xlu0 %1825
  %1827 = vrot.lane.b32.xlu0 %v425, 20
  %v1828 = vpop.permute.xlu0 %1827
  %1829 = vrot.lane.b32.xlu0 %v426, 20
  %v1830 = vpop.permute.xlu0 %1829
  %1831 = vrot.lane.b32.xlu0 %v427, 20
  %v1832 = vpop.permute.xlu0 %1831
  %1833 = vrot.lane.b32.xlu0 %v428, 20
  %v1834 = vpop.permute.xlu0 %1833
  %1835 = vrot.lane.b32.xlu0 %v429, 20
  %v1836 = vpop.permute.xlu0 %1835
  %1837 = vrot.lane.b32.xlu0 %v430, 20
  %v1838 = vpop.permute.xlu0 %1837
  %1839 = vrot.lane.b32.xlu0 %v431, 20
  %v1840 = vpop.permute.xlu0 %1839
  %1969 = vrot.lane.b32.xlu0 %v433, 24
  %v1970 = vpop.permute.xlu0 %1969
  %1971 = vrot.lane.b32.xlu0 %v434, 24
  %v1972 = vpop.permute.xlu0 %1971
  %1973 = vrot.lane.b32.xlu0 %v435, 24
  %v1974 = vpop.permute.xlu0 %1973
  %1975 = vrot.lane.b32.xlu0 %v436, 24
  %v1976 = vpop.permute.xlu0 %1975
  %1977 = vrot.lane.b32.xlu0 %v437, 24
  %v1978 = vpop.permute.xlu0 %1977
  %1979 = vrot.lane.b32.xlu0 %v438, 24
  %v1980 = vpop.permute.xlu0 %1979
  %1981 = vrot.lane.b32.xlu0 %v439, 24
  %v1982 = vpop.permute.xlu0 %1981
  %1983 = vrot.lane.b32.xlu0 %v440, 24
  %v1984 = vpop.permute.xlu0 %1983
  %1985 = vrot.lane.b32.xlu0 %v441, 24
  %v1986 = vpop.permute.xlu0 %1985
  %1987 = vrot.lane.b32.xlu0 %v442, 24
  %v1988 = vpop.permute.xlu0 %1987
  %1989 = vrot.lane.b32.xlu0 %v443, 24
  %v1990 = vpop.permute.xlu0 %1989
  %1991 = vrot.lane.b32.xlu0 %v444, 24
  %v1992 = vpop.permute.xlu0 %1991
  %1993 = vrot.lane.b32.xlu0 %v445, 24
  %v1994 = vpop.permute.xlu0 %1993
  %1995 = vrot.lane.b32.xlu0 %v446, 24
  %v1996 = vpop.permute.xlu0 %1995
  %1997 = vrot.lane.b32.xlu0 %v447, 24
  %v1998 = vpop.permute.xlu0 %1997
  %1999 = vrot.lane.b32.xlu0 %v448, 24
  %v2000 = vpop.permute.xlu0 %1999
  %2001 = vrot.lane.b32.xlu0 %v449, 24
  %v2002 = vpop.permute.xlu0 %2001
  %2003 = vrot.lane.b32.xlu0 %v450, 24
  %v2004 = vpop.permute.xlu0 %2003
  %2005 = vrot.lane.b32.xlu0 %v451, 24
  %v2006 = vpop.permute.xlu0 %2005
  %2007 = vrot.lane.b32.xlu0 %v452, 24
  %v2008 = vpop.permute.xlu0 %2007
  %2009 = vrot.lane.b32.xlu0 %v453, 24
  %v2010 = vpop.permute.xlu0 %2009
  %2011 = vrot.lane.b32.xlu0 %v454, 24
  %v2012 = vpop.permute.xlu0 %2011
  %2013 = vrot.lane.b32.xlu0 %v455, 24
  %v2014 = vpop.permute.xlu0 %2013
  %2015 = vrot.lane.b32.xlu0 %v456, 24
  %v2016 = vpop.permute.xlu0 %2015
  %2017 = vrot.lane.b32.xlu0 %v457, 24
  %v2018 = vpop.permute.xlu0 %2017
  %2019 = vrot.lane.b32.xlu0 %v458, 24
  %v2020 = vpop.permute.xlu0 %2019
  %2021 = vrot.lane.b32.xlu0 %v459, 24
  %v2022 = vpop.permute.xlu0 %2021
  %2023 = vrot.lane.b32.xlu0 %v460, 24
  %v2024 = vpop.permute.xlu0 %2023
  %2025 = vrot.lane.b32.xlu0 %v461, 24
  %v2026 = vpop.permute.xlu0 %2025
  %2027 = vrot.lane.b32.xlu0 %v462, 24
  %v2028 = vpop.permute.xlu0 %2027
  %2029 = vrot.lane.b32.xlu0 %v463, 24
  %v2030 = vpop.permute.xlu0 %2029
  %2031 = vrot.lane.b32.xlu0 %v464, 24
  %v2032 = vpop.permute.xlu0 %2031
  %2033 = vrot.lane.b32.xlu0 %v465, 24
  %v2034 = vpop.permute.xlu0 %2033
  %2035 = vrot.lane.b32.xlu0 %v466, 24
  %v2036 = vpop.permute.xlu0 %2035
  %2037 = vrot.lane.b32.xlu0 %v467, 24
  %v2038 = vpop.permute.xlu0 %2037
  %2039 = vrot.lane.b32.xlu0 %v468, 24
  %v2040 = vpop.permute.xlu0 %2039
  %2041 = vrot.lane.b32.xlu0 %v469, 24
  %v2042 = vpop.permute.xlu0 %2041
  %2043 = vrot.lane.b32.xlu0 %v470, 24
  %v2044 = vpop.permute.xlu0 %2043
  %2045 = vrot.lane.b32.xlu0 %v471, 24
  %v2046 = vpop.permute.xlu0 %2045
  %2047 = vrot.lane.b32.xlu0 %v472, 24
  %v2048 = vpop.permute.xlu0 %2047
  %2049 = vrot.lane.b32.xlu0 %v473, 24
  %v2050 = vpop.permute.xlu0 %2049
  %2051 = vrot.lane.b32.xlu0 %v474, 24
  %v2052 = vpop.permute.xlu0 %2051
  %2053 = vrot.lane.b32.xlu0 %v475, 24
  %v2054 = vpop.permute.xlu0 %2053
  %2055 = vrot.lane.b32.xlu0 %v476, 24
  %v2056 = vpop.permute.xlu0 %2055
  %2057 = vrot.lane.b32.xlu0 %v477, 24
  %v2058 = vpop.permute.xlu0 %2057
  %2059 = vrot.lane.b32.xlu0 %v478, 24
  %v2060 = vpop.permute.xlu0 %2059
  %2061 = vrot.lane.b32.xlu0 %v479, 24
  %v2062 = vpop.permute.xlu0 %2061
  %2063 = vrot.lane.b32.xlu0 %v480, 24
  %v2064 = vpop.permute.xlu0 %2063
  %2065 = vrot.lane.b32.xlu0 %v481, 24
  %v2066 = vpop.permute.xlu0 %2065
  %2067 = vrot.lane.b32.xlu0 %v482, 24
  %v2068 = vpop.permute.xlu0 %2067
  %2069 = vrot.lane.b32.xlu0 %v483, 24
  %v2070 = vpop.permute.xlu0 %2069
  %2071 = vrot.lane.b32.xlu0 %v484, 24
  %v2072 = vpop.permute.xlu0 %2071
  %2073 = vrot.lane.b32.xlu0 %v485, 24
  %v2074 = vpop.permute.xlu0 %2073
  %2075 = vrot.lane.b32.xlu0 %v486, 24
  %v2076 = vpop.permute.xlu0 %2075
  %2077 = vrot.lane.b32.xlu0 %v487, 24
  %v2078 = vpop.permute.xlu0 %2077
  %2079 = vrot.lane.b32.xlu0 %v488, 24
  %v2080 = vpop.permute.xlu0 %2079
  %2081 = vrot.lane.b32.xlu0 %v489, 24
  %v2082 = vpop.permute.xlu0 %2081
  %2083 = vrot.lane.b32.xlu0 %v490, 24
  %v2084 = vpop.permute.xlu0 %2083
  %2085 = vrot.lane.b32.xlu0 %v491, 24
  %v2086 = vpop.permute.xlu0 %2085
  %2087 = vrot.lane.b32.xlu0 %v492, 24
  %v2088 = vpop.permute.xlu0 %2087
  %2089 = vrot.lane.b32.xlu0 %v493, 24
  %v2090 = vpop.permute.xlu0 %2089
  %2091 = vrot.lane.b32.xlu0 %v494, 24
  %v2092 = vpop.permute.xlu0 %2091
  %2093 = vrot.lane.b32.xlu0 %v495, 24
  %v2094 = vpop.permute.xlu0 %2093
  %2095 = vrot.lane.b32.xlu0 %v496, 24
  %v2096 = vpop.permute.xlu0 %2095
  %2225 = vrot.lane.b32.xlu0 %v497, 28
  %v2226 = vpop.permute.xlu0 %2225
  %2227 = vrot.lane.b32.xlu0 %v498, 28
  %v2228 = vpop.permute.xlu0 %2227
  %2229 = vrot.lane.b32.xlu0 %v499, 28
  %v2230 = vpop.permute.xlu0 %2229
  %2231 = vrot.lane.b32.xlu0 %v500, 28
  %v2232 = vpop.permute.xlu0 %2231
  %2233 = vrot.lane.b32.xlu0 %v501, 28
  %v2234 = vpop.permute.xlu0 %2233
  %2235 = vrot.lane.b32.xlu0 %v502, 28
  %v2236 = vpop.permute.xlu0 %2235
  %2237 = vrot.lane.b32.xlu0 %v503, 28
  %v2238 = vpop.permute.xlu0 %2237
  %2239 = vrot.lane.b32.xlu0 %v504, 28
  %v2240 = vpop.permute.xlu0 %2239
  %2241 = vrot.lane.b32.xlu0 %v505, 28
  %v2242 = vpop.permute.xlu0 %2241
  %2243 = vrot.lane.b32.xlu0 %v506, 28
  %v2244 = vpop.permute.xlu0 %2243
  %2245 = vrot.lane.b32.xlu0 %v507, 28
  %v2246 = vpop.permute.xlu0 %2245
  %2247 = vrot.lane.b32.xlu0 %v508, 28
  %v2248 = vpop.permute.xlu0 %2247
  %2249 = vrot.lane.b32.xlu0 %v509, 28
  %v2250 = vpop.permute.xlu0 %2249
  %2251 = vrot.lane.b32.xlu0 %v510, 28
  %v2252 = vpop.permute.xlu0 %2251
  %2253 = vrot.lane.b32.xlu0 %v511, 28
  %v2254 = vpop.permute.xlu0 %2253
  %2255 = vrot.lane.b32.xlu0 %v512, 28
  %v2256 = vpop.permute.xlu0 %2255
  %2257 = vrot.lane.b32.xlu0 %v513, 28
  %v2258 = vpop.permute.xlu0 %2257
  %2259 = vrot.lane.b32.xlu0 %v514, 28
  %v2260 = vpop.permute.xlu0 %2259
  %2261 = vrot.lane.b32.xlu0 %v515, 28
  %v2262 = vpop.permute.xlu0 %2261
  %2263 = vrot.lane.b32.xlu0 %v516, 28
  %v2264 = vpop.permute.xlu0 %2263
  %2265 = vrot.lane.b32.xlu0 %v517, 28
  %v2266 = vpop.permute.xlu0 %2265
  %2267 = vrot.lane.b32.xlu0 %v518, 28
  %v2268 = vpop.permute.xlu0 %2267
  %2269 = vrot.lane.b32.xlu0 %v519, 28
  %v2270 = vpop.permute.xlu0 %2269
  %2271 = vrot.lane.b32.xlu0 %v520, 28
  %v2272 = vpop.permute.xlu0 %2271
  %2273 = vrot.lane.b32.xlu0 %v521, 28
  %v2274 = vpop.permute.xlu0 %2273
  %2275 = vrot.lane.b32.xlu0 %v522, 28
  %v2276 = vpop.permute.xlu0 %2275
  %2277 = vrot.lane.b32.xlu0 %v523, 28
  %v2278 = vpop.permute.xlu0 %2277
  %2279 = vrot.lane.b32.xlu0 %v524, 28
  %v2280 = vpop.permute.xlu0 %2279
  %2281 = vrot.lane.b32.xlu0 %v525, 28
  %v2282 = vpop.permute.xlu0 %2281
  %2283 = vrot.lane.b32.xlu0 %v526, 28
  %v2284 = vpop.permute.xlu0 %2283
  %2285 = vrot.lane.b32.xlu0 %v527, 28
  %v2286 = vpop.permute.xlu0 %2285
  %2287 = vrot.lane.b32.xlu0 %v528, 28
  %v2288 = vpop.permute.xlu0 %2287
  %2289 = vrot.lane.b32.xlu0 %v529, 28
  %v2290 = vpop.permute.xlu0 %2289
  %2291 = vrot.lane.b32.xlu0 %v530, 28
  %v2292 = vpop.permute.xlu0 %2291
  %2293 = vrot.lane.b32.xlu0 %v531, 28
  %v2294 = vpop.permute.xlu0 %2293
  %2295 = vrot.lane.b32.xlu0 %v532, 28
  %v2296 = vpop.permute.xlu0 %2295
  %2297 = vrot.lane.b32.xlu0 %v533, 28
  %v2298 = vpop.permute.xlu0 %2297
  %2299 = vrot.lane.b32.xlu0 %v534, 28
  %v2300 = vpop.permute.xlu0 %2299
  %2301 = vrot.lane.b32.xlu0 %v535, 28
  %v2302 = vpop.permute.xlu0 %2301
  %2303 = vrot.lane.b32.xlu0 %v536, 28
  %v2304 = vpop.permute.xlu0 %2303
  %2305 = vrot.lane.b32.xlu0 %v537, 28
  %v2306 = vpop.permute.xlu0 %2305
  %2307 = vrot.lane.b32.xlu0 %v538, 28
  %v2308 = vpop.permute.xlu0 %2307
  %2309 = vrot.lane.b32.xlu0 %v539, 28
  %v2310 = vpop.permute.xlu0 %2309
  %2311 = vrot.lane.b32.xlu0 %v540, 28
  %v2312 = vpop.permute.xlu0 %2311
  %2313 = vrot.lane.b32.xlu0 %v541, 28
  %v2314 = vpop.permute.xlu0 %2313
  %2315 = vrot.lane.b32.xlu0 %v542, 28
  %v2316 = vpop.permute.xlu0 %2315
  %2317 = vrot.lane.b32.xlu0 %v543, 28
  %v2318 = vpop.permute.xlu0 %2317
  %2319 = vrot.lane.b32.xlu0 %v544, 28
  %v2320 = vpop.permute.xlu0 %2319
  %2321 = vrot.lane.b32.xlu0 %v545, 28
  %v2322 = vpop.permute.xlu0 %2321
  %2323 = vrot.lane.b32.xlu0 %v546, 28
  %v2324 = vpop.permute.xlu0 %2323
  %2325 = vrot.lane.b32.xlu0 %v547, 28
  %v2326 = vpop.permute.xlu0 %2325
  %2327 = vrot.lane.b32.xlu0 %v548, 28
  %v2328 = vpop.permute.xlu0 %2327
  %2329 = vrot.lane.b32.xlu0 %v549, 28
  %v2330 = vpop.permute.xlu0 %2329
  %2331 = vrot.lane.b32.xlu0 %v550, 28
  %v2332 = vpop.permute.xlu0 %2331
  %2333 = vrot.lane.b32.xlu0 %v551, 28
  %v2334 = vpop.permute.xlu0 %2333
  %2335 = vrot.lane.b32.xlu0 %v552, 28
  %v2336 = vpop.permute.xlu0 %2335
  %2337 = vrot.lane.b32.xlu0 %v553, 28
  %v2338 = vpop.permute.xlu0 %2337
  %2339 = vrot.lane.b32.xlu0 %v554, 28
  %v2340 = vpop.permute.xlu0 %2339
  %2341 = vrot.lane.b32.xlu0 %v555, 28
  %v2342 = vpop.permute.xlu0 %2341
  %2343 = vrot.lane.b32.xlu0 %v556, 28
  %v2344 = vpop.permute.xlu0 %2343
  %2345 = vrot.lane.b32.xlu0 %v557, 28
  %v2346 = vpop.permute.xlu0 %2345
  %2347 = vrot.lane.b32.xlu0 %v558, 28
  %v2348 = vpop.permute.xlu0 %2347
  %2349 = vrot.lane.b32.xlu0 %v559, 28
  %v2350 = vpop.permute.xlu0 %2349
  %2351 = vrot.lane.b32.xlu0 %v560, 28
  %v2352 = vpop.permute.xlu0 %2351
  %2481 = vrot.lane.b32.xlu0 %v561, 32
  %v2482 = vpop.permute.xlu0 %2481
  %2483 = vrot.lane.b32.xlu0 %v562, 32
  %v2484 = vpop.permute.xlu0 %2483
  %2485 = vrot.lane.b32.xlu0 %v563, 32
  %v2486 = vpop.permute.xlu0 %2485
  %2487 = vrot.lane.b32.xlu0 %v564, 32
  %v2488 = vpop.permute.xlu0 %2487
  %2489 = vrot.lane.b32.xlu0 %v565, 32
  %v2490 = vpop.permute.xlu0 %2489
  %2491 = vrot.lane.b32.xlu0 %v566, 32
  %v2492 = vpop.permute.xlu0 %2491
  %2493 = vrot.lane.b32.xlu0 %v567, 32
  %v2494 = vpop.permute.xlu0 %2493
  %2495 = vrot.lane.b32.xlu0 %v568, 32
  %v2496 = vpop.permute.xlu0 %2495
  %2497 = vrot.lane.b32.xlu0 %v569, 32
  %v2498 = vpop.permute.xlu0 %2497
  %2499 = vrot.lane.b32.xlu0 %v570, 32
  %v2500 = vpop.permute.xlu0 %2499
  %2501 = vrot.lane.b32.xlu0 %v571, 32
  %v2502 = vpop.permute.xlu0 %2501
  %2503 = vrot.lane.b32.xlu0 %v572, 32
  %v2504 = vpop.permute.xlu0 %2503
  %2505 = vrot.lane.b32.xlu0 %v573, 32
  %v2506 = vpop.permute.xlu0 %2505
  %2507 = vrot.lane.b32.xlu0 %v574, 32
  %v2508 = vpop.permute.xlu0 %2507
  %2509 = vrot.lane.b32.xlu0 %v575, 32
  %v2510 = vpop.permute.xlu0 %2509
  %2511 = vrot.lane.b32.xlu0 %v576, 32
  %v2512 = vpop.permute.xlu0 %2511
  %2513 = vrot.lane.b32.xlu0 %v577, 32
  %v2514 = vpop.permute.xlu0 %2513
  %2515 = vrot.lane.b32.xlu0 %v578, 32
  %v2516 = vpop.permute.xlu0 %2515
  %2517 = vrot.lane.b32.xlu0 %v579, 32
  %v2518 = vpop.permute.xlu0 %2517
  %2519 = vrot.lane.b32.xlu0 %v580, 32
  %v2520 = vpop.permute.xlu0 %2519
  %2521 = vrot.lane.b32.xlu0 %v581, 32
  %v2522 = vpop.permute.xlu0 %2521
  %2523 = vrot.lane.b32.xlu0 %v582, 32
  %v2524 = vpop.permute.xlu0 %2523
  %2525 = vrot.lane.b32.xlu0 %v583, 32
  %v2526 = vpop.permute.xlu0 %2525
  %2527 = vrot.lane.b32.xlu0 %v584, 32
  %v2528 = vpop.permute.xlu0 %2527
  %2529 = vrot.lane.b32.xlu0 %v585, 32
  %v2530 = vpop.permute.xlu0 %2529
  %2531 = vrot.lane.b32.xlu0 %v586, 32
  %v2532 = vpop.permute.xlu0 %2531
  %2533 = vrot.lane.b32.xlu0 %v587, 32
  %v2534 = vpop.permute.xlu0 %2533
  %2535 = vrot.lane.b32.xlu0 %v588, 32
  %v2536 = vpop.permute.xlu0 %2535
  %2537 = vrot.lane.b32.xlu0 %v589, 32
  %v2538 = vpop.permute.xlu0 %2537
  %2539 = vrot.lane.b32.xlu0 %v590, 32
  %v2540 = vpop.permute.xlu0 %2539
  %2541 = vrot.lane.b32.xlu0 %v591, 32
  %v2542 = vpop.permute.xlu0 %2541
  %2543 = vrot.lane.b32.xlu0 %v592, 32
  %v2544 = vpop.permute.xlu0 %2543
  %2545 = vrot.lane.b32.xlu0 %v593, 32
  %v2546 = vpop.permute.xlu0 %2545
  %2547 = vrot.lane.b32.xlu0 %v594, 32
  %v2548 = vpop.permute.xlu0 %2547
  %2549 = vrot.lane.b32.xlu0 %v595, 32
  %v2550 = vpop.permute.xlu0 %2549
  %2551 = vrot.lane.b32.xlu0 %v596, 32
  %v2552 = vpop.permute.xlu0 %2551
  %2553 = vrot.lane.b32.xlu0 %v597, 32
  %v2554 = vpop.permute.xlu0 %2553
  %2555 = vrot.lane.b32.xlu0 %v598, 32
  %v2556 = vpop.permute.xlu0 %2555
  %2557 = vrot.lane.b32.xlu0 %v599, 32
  %v2558 = vpop.permute.xlu0 %2557
  %2559 = vrot.lane.b32.xlu0 %v600, 32
  %v2560 = vpop.permute.xlu0 %2559
  %2561 = vrot.lane.b32.xlu0 %v601, 32
  %v2562 = vpop.permute.xlu0 %2561
  %2563 = vrot.lane.b32.xlu0 %v602, 32
  %v2564 = vpop.permute.xlu0 %2563
  %2565 = vrot.lane.b32.xlu0 %v603, 32
  %v2566 = vpop.permute.xlu0 %2565
  %2567 = vrot.lane.b32.xlu0 %v604, 32
  %v2568 = vpop.permute.xlu0 %2567
  %2569 = vrot.lane.b32.xlu0 %v605, 32
  %v2570 = vpop.permute.xlu0 %2569
  %2571 = vrot.lane.b32.xlu0 %v606, 32
  %v2572 = vpop.permute.xlu0 %2571
  %2573 = vrot.lane.b32.xlu0 %v607, 32
  %v2574 = vpop.permute.xlu0 %2573
  %2575 = vrot.lane.b32.xlu0 %v608, 32
  %v2576 = vpop.permute.xlu0 %2575
  %2577 = vrot.lane.b32.xlu0 %v609, 32
  %v2578 = vpop.permute.xlu0 %2577
  %2579 = vrot.lane.b32.xlu0 %v610, 32
  %v2580 = vpop.permute.xlu0 %2579
  %2581 = vrot.lane.b32.xlu0 %v611, 32
  %v2582 = vpop.permute.xlu0 %2581
  %2583 = vrot.lane.b32.xlu0 %v612, 32
  %v2584 = vpop.permute.xlu0 %2583
  %2585 = vrot.lane.b32.xlu0 %v613, 32
  %v2586 = vpop.permute.xlu0 %2585
  %2587 = vrot.lane.b32.xlu0 %v614, 32
  %v2588 = vpop.permute.xlu0 %2587
  %2589 = vrot.lane.b32.xlu0 %v615, 32
  %v2590 = vpop.permute.xlu0 %2589
  %2591 = vrot.lane.b32.xlu0 %v616, 32
  %v2592 = vpop.permute.xlu0 %2591
  %2593 = vrot.lane.b32.xlu0 %v617, 32
  %v2594 = vpop.permute.xlu0 %2593
  %2595 = vrot.lane.b32.xlu0 %v618, 32
  %v2596 = vpop.permute.xlu0 %2595
  %2597 = vrot.lane.b32.xlu0 %v619, 32
  %v2598 = vpop.permute.xlu0 %2597
  %2599 = vrot.lane.b32.xlu0 %v620, 32
  %v2600 = vpop.permute.xlu0 %2599
  %2601 = vrot.lane.b32.xlu0 %v621, 32
  %v2602 = vpop.permute.xlu0 %2601
  %2603 = vrot.lane.b32.xlu0 %v622, 32
  %v2604 = vpop.permute.xlu0 %2603
  %2605 = vrot.lane.b32.xlu0 %v623, 32
  %v2606 = vpop.permute.xlu0 %2605
  %2607 = vrot.lane.b32.xlu0 %v624, 32
  %v2608 = vpop.permute.xlu0 %2607
  %vm2673 = vcmask 31744
  %v2674 = vsel %vm2673, %v47, %v690
  %v2675 = vsel %vm2673, %v48, %v692
  %v2676 = vsel %vm2673, %v49, %v694
  %v2677 = vsel %vm2673, %v50, %v696
  %v2678 = vsel %vm2673, %v51, %v698
  %v2679 = vsel %vm2673, %v52, %v700
  %v2680 = vsel %vm2673, %v53, %v702
  %v2681 = vsel %vm2673, %v54, %v704
  %v2682 = vsel %vm2673, %v55, %v706
  %v2683 = vsel %vm2673, %v56, %v708
  %v2684 = vsel %vm2673, %v57, %v710
  %v2685 = vsel %vm2673, %v58, %v712
  %v2686 = vsel %vm2673, %v59, %v714
  %v2687 = vsel %vm2673, %v60, %v716
  %v2688 = vsel %vm2673, %v61, %v718
  %v2689 = vsel %vm2673, %v62, %v720
  %v2690 = vsel %vm2673, %v63, %v722
  %v2691 = vsel %vm2673, %v64, %v724
  %v2692 = vsel %vm2673, %v65, %v726
  %v2693 = vsel %vm2673, %v66, %v728
  %v2694 = vsel %vm2673, %v67, %v730
  %v2695 = vsel %vm2673, %v68, %v732
  %v2696 = vsel %vm2673, %v69, %v734
  %v2697 = vsel %vm2673, %v70, %v736
  %v2698 = vsel %vm2673, %v71, %v738
  %v2699 = vsel %vm2673, %v72, %v740
  %v2700 = vsel %vm2673, %v73, %v742
  %v2701 = vsel %vm2673, %v74, %v744
  %v2702 = vsel %vm2673, %v75, %v746
  %v2703 = vsel %vm2673, %v76, %v748
  %v2704 = vsel %vm2673, %v77, %v750
  %v2705 = vsel %vm2673, %v78, %v752
  %v2706 = vsel %vm2673, %v79, %v754
  %v2707 = vsel %vm2673, %v80, %v756
  %v2708 = vsel %vm2673, %v81, %v758
  %v2709 = vsel %vm2673, %v82, %v760
  %v2710 = vsel %vm2673, %v83, %v762
  %v2711 = vsel %vm2673, %v84, %v764
  %v2712 = vsel %vm2673, %v85, %v766
  %v2713 = vsel %vm2673, %v86, %v768
  %v2714 = vsel %vm2673, %v87, %v770
  %v2715 = vsel %vm2673, %v88, %v772
  %v2716 = vsel %vm2673, %v89, %v774
  %v2717 = vsel %vm2673, %v90, %v776
  %v2718 = vsel %vm2673, %v91, %v778
  %v2719 = vsel %vm2673, %v92, %v780
  %v2720 = vsel %vm2673, %v93, %v782
  %v2721 = vsel %vm2673, %v94, %v784
  %v2722 = vsel %vm2673, %v95, %v786
  %v2723 = vsel %vm2673, %v96, %v788
  %v2724 = vsel %vm2673, %v97, %v790
  %v2725 = vsel %vm2673, %v98, %v792
  %v2726 = vsel %vm2673, %v99, %v794
  %v2727 = vsel %vm2673, %v100, %v796
  %v2728 = vsel %vm2673, %v101, %v798
  %v2729 = vsel %vm2673, %v102, %v800
  %v2730 = vsel %vm2673, %v103, %v802
  %v2731 = vsel %vm2673, %v104, %v804
  %v2732 = vsel %vm2673, %v105, %v806
  %v2733 = vsel %vm2673, %v106, %v808
  %v2734 = vsel %vm2673, %v107, %v810
  %v2735 = vsel %vm2673, %v108, %v812
  %v2736 = vsel %vm2673, %v109, %v814
  %v2737 = vsel %vm2673, %v110, %v816
  %vm2738 = vcmask 64512
  %v2739 = vsel %vm2738, %v2674, %v946
  %v2740 = vsel %vm2738, %v2675, %v948
  %v2741 = vsel %vm2738, %v2676, %v950
  %v2742 = vsel %vm2738, %v2677, %v952
  %v2743 = vsel %vm2738, %v2678, %v954
  %v2744 = vsel %vm2738, %v2679, %v956
  %v2745 = vsel %vm2738, %v2680, %v958
  %v2746 = vsel %vm2738, %v2681, %v960
  %v2747 = vsel %vm2738, %v2682, %v962
  %v2748 = vsel %vm2738, %v2683, %v964
  %v2749 = vsel %vm2738, %v2684, %v966
  %v2750 = vsel %vm2738, %v2685, %v968
  %v2751 = vsel %vm2738, %v2686, %v970
  %v2752 = vsel %vm2738, %v2687, %v972
  %v2753 = vsel %vm2738, %v2688, %v974
  %v2754 = vsel %vm2738, %v2689, %v976
  %v2755 = vsel %vm2738, %v2690, %v978
  %v2756 = vsel %vm2738, %v2691, %v980
  %v2757 = vsel %vm2738, %v2692, %v982
  %v2758 = vsel %vm2738, %v2693, %v984
  %v2759 = vsel %vm2738, %v2694, %v986
  %v2760 = vsel %vm2738, %v2695, %v988
  %v2761 = vsel %vm2738, %v2696, %v990
  %v2762 = vsel %vm2738, %v2697, %v992
  %v2763 = vsel %vm2738, %v2698, %v994
  %v2764 = vsel %vm2738, %v2699, %v996
  %v2765 = vsel %vm2738, %v2700, %v998
  %v2766 = vsel %vm2738, %v2701, %v1000
  %v2767 = vsel %vm2738, %v2702, %v1002
  %v2768 = vsel %vm2738, %v2703, %v1004
  %v2769 = vsel %vm2738, %v2704, %v1006
  %v2770 = vsel %vm2738, %v2705, %v1008
  %v2771 = vsel %vm2738, %v2706, %v1010
  %v2772 = vsel %vm2738, %v2707, %v1012
  %v2773 = vsel %vm2738, %v2708, %v1014
  %v2774 = vsel %vm2738, %v2709, %v1016
  %v2775 = vsel %vm2738, %v2710, %v1018
  %v2776 = vsel %vm2738, %v2711, %v1020
  %v2777 = vsel %vm2738, %v2712, %v1022
  %v2778 = vsel %vm2738, %v2713, %v1024
  %v2779 = vsel %vm2738, %v2714, %v1026
  %v2780 = vsel %vm2738, %v2715, %v1028
  %v2781 = vsel %vm2738, %v2716, %v1030
  %v2782 = vsel %vm2738, %v2717, %v1032
  %v2783 = vsel %vm2738, %v2718, %v1034
  %v2784 = vsel %vm2738, %v2719, %v1036
  %v2785 = vsel %vm2738, %v2720, %v1038
  %v2786 = vsel %vm2738, %v2721, %v1040
  %v2787 = vsel %vm2738, %v2722, %v1042
  %v2788 = vsel %vm2738, %v2723, %v1044
  %v2789 = vsel %vm2738, %v2724, %v1046
  %v2790 = vsel %vm2738, %v2725, %v1048
  %v2791 = vsel %vm2738, %v2726, %v1050
  %v2792 = vsel %vm2738, %v2727, %v1052
  %v2793 = vsel %vm2738, %v2728, %v1054
  %v2794 = vsel %vm2738, %v2729, %v1056
  %v2795 = vsel %vm2738, %v2730, %v1058
  %v2796 = vsel %vm2738, %v2731, %v1060
  %v2797 = vsel %vm2738, %v2732, %v1062
  %v2798 = vsel %vm2738, %v2733, %v1064
  %v2799 = vsel %vm2738, %v2734, %v1066
  %v2800 = vsel %vm2738, %v2735, %v1068
  %v2801 = vsel %vm2738, %v2736, %v1070
  %v2802 = vsel %vm2738, %v2737, %v1072
  %vm2803 = vcmask 97280
  %v2804 = vsel %vm2803, %v2739, %v1202
  %v2805 = vsel %vm2803, %v2740, %v1204
  %v2806 = vsel %vm2803, %v2741, %v1206
  %v2807 = vsel %vm2803, %v2742, %v1208
  %v2808 = vsel %vm2803, %v2743, %v1210
  %v2809 = vsel %vm2803, %v2744, %v1212
  %v2810 = vsel %vm2803, %v2745, %v1214
  %v2811 = vsel %vm2803, %v2746, %v1216
  %v2812 = vsel %vm2803, %v2747, %v1218
  %v2813 = vsel %vm2803, %v2748, %v1220
  %v2814 = vsel %vm2803, %v2749, %v1222
  %v2815 = vsel %vm2803, %v2750, %v1224
  %v2816 = vsel %vm2803, %v2751, %v1226
  %v2817 = vsel %vm2803, %v2752, %v1228
  %v2818 = vsel %vm2803, %v2753, %v1230
  %v2819 = vsel %vm2803, %v2754, %v1232
  %v2820 = vsel %vm2803, %v2755, %v1234
  %v2821 = vsel %vm2803, %v2756, %v1236
  %v2822 = vsel %vm2803, %v2757, %v1238
  %v2823 = vsel %vm2803, %v2758, %v1240
  %v2824 = vsel %vm2803, %v2759, %v1242
  %v2825 = vsel %vm2803, %v2760, %v1244
  %v2826 = vsel %vm2803, %v2761, %v1246
  %v2827 = vsel %vm2803, %v2762, %v1248
  %v2828 = vsel %vm2803, %v2763, %v1250
  %v2829 = vsel %vm2803, %v2764, %v1252
  %v2830 = vsel %vm2803, %v2765, %v1254
  %v2831 = vsel %vm2803, %v2766, %v1256
  %v2832 = vsel %vm2803, %v2767, %v1258
  %v2833 = vsel %vm2803, %v2768, %v1260
  %v2834 = vsel %vm2803, %v2769, %v1262
  %v2835 = vsel %vm2803, %v2770, %v1264
  %v2836 = vsel %vm2803, %v2771, %v1266
  %v2837 = vsel %vm2803, %v2772, %v1268
  %v2838 = vsel %vm2803, %v2773, %v1270
  %v2839 = vsel %vm2803, %v2774, %v1272
  %v2840 = vsel %vm2803, %v2775, %v1274
  %v2841 = vsel %vm2803, %v2776, %v1276
  %v2842 = vsel %vm2803, %v2777, %v1278
  %v2843 = vsel %vm2803, %v2778, %v1280
  %v2844 = vsel %vm2803, %v2779, %v1282
  %v2845 = vsel %vm2803, %v2780, %v1284
  %v2846 = vsel %vm2803, %v2781, %v1286
  %v2847 = vsel %vm2803, %v2782, %v1288
  %v2848 = vsel %vm2803, %v2783, %v1290
  %v2849 = vsel %vm2803, %v2784, %v1292
  %v2850 = vsel %vm2803, %v2785, %v1294
  %v2851 = vsel %vm2803, %v2786, %v1296
  %v2852 = vsel %vm2803, %v2787, %v1298
  %v2853 = vsel %vm2803, %v2788, %v1300
  %v2854 = vsel %vm2803, %v2789, %v1302
  %v2855 = vsel %vm2803, %v2790, %v1304
  %v2856 = vsel %vm2803, %v2791, %v1306
  %v2857 = vsel %vm2803, %v2792, %v1308
  %v2858 = vsel %vm2803, %v2793, %v1310
  %v2859 = vsel %vm2803, %v2794, %v1312
  %v2860 = vsel %vm2803, %v2795, %v1314
  %v2861 = vsel %vm2803, %v2796, %v1316
  %v2862 = vsel %vm2803, %v2797, %v1318
  %v2863 = vsel %vm2803, %v2798, %v1320
  %v2864 = vsel %vm2803, %v2799, %v1322
  %v2865 = vsel %vm2803, %v2800, %v1324
  %v2866 = vsel %vm2803, %v2801, %v1326
  %v2867 = vsel %vm2803, %v2802, %v1328
  %vm2868 = vcmask 130048
  %v2869 = vsel %vm2868, %v2804, %v1458
  %v2870 = vsel %vm2868, %v2805, %v1460
  %v2871 = vsel %vm2868, %v2806, %v1462
  %v2872 = vsel %vm2868, %v2807, %v1464
  %v2873 = vsel %vm2868, %v2808, %v1466
  %v2874 = vsel %vm2868, %v2809, %v1468
  %v2875 = vsel %vm2868, %v2810, %v1470
  %v2876 = vsel %vm2868, %v2811, %v1472
  %v2877 = vsel %vm2868, %v2812, %v1474
  %v2878 = vsel %vm2868, %v2813, %v1476
  %v2879 = vsel %vm2868, %v2814, %v1478
  %v2880 = vsel %vm2868, %v2815, %v1480
  %v2881 = vsel %vm2868, %v2816, %v1482
  %v2882 = vsel %vm2868, %v2817, %v1484
  %v2883 = vsel %vm2868, %v2818, %v1486
  %v2884 = vsel %vm2868, %v2819, %v1488
  %v2885 = vsel %vm2868, %v2820, %v1490
  %v2886 = vsel %vm2868, %v2821, %v1492
  %v2887 = vsel %vm2868, %v2822, %v1494
  %v2888 = vsel %vm2868, %v2823, %v1496
  %v2889 = vsel %vm2868, %v2824, %v1498
  %v2890 = vsel %vm2868, %v2825, %v1500
  %v2891 = vsel %vm2868, %v2826, %v1502
  %v2892 = vsel %vm2868, %v2827, %v1504
  %v2893 = vsel %vm2868, %v2828, %v1506
  %v2894 = vsel %vm2868, %v2829, %v1508
  %v2895 = vsel %vm2868, %v2830, %v1510
  %v2896 = vsel %vm2868, %v2831, %v1512
  %v2897 = vsel %vm2868, %v2832, %v1514
  %v2898 = vsel %vm2868, %v2833, %v1516
  %v2899 = vsel %vm2868, %v2834, %v1518
  %v2900 = vsel %vm2868, %v2835, %v1520
  %v2901 = vsel %vm2868, %v2836, %v1522
  %v2902 = vsel %vm2868, %v2837, %v1524
  %v2903 = vsel %vm2868, %v2838, %v1526
  %v2904 = vsel %vm2868, %v2839, %v1528
  %v2905 = vsel %vm2868, %v2840, %v1530
  %v2906 = vsel %vm2868, %v2841, %v1532
  %v2907 = vsel %vm2868, %v2842, %v1534
  %v2908 = vsel %vm2868, %v2843, %v1536
  %v2909 = vsel %vm2868, %v2844, %v1538
  %v2910 = vsel %vm2868, %v2845, %v1540
  %v2911 = vsel %vm2868, %v2846, %v1542
  %v2912 = vsel %vm2868, %v2847, %v1544
  %v2913 = vsel %vm2868, %v2848, %v1546
  %v2914 = vsel %vm2868, %v2849, %v1548
  %v2915 = vsel %vm2868, %v2850, %v1550
  %v2916 = vsel %vm2868, %v2851, %v1552
  %v2917 = vsel %vm2868, %v2852, %v1554
  %v2918 = vsel %vm2868, %v2853, %v1556
  %v2919 = vsel %vm2868, %v2854, %v1558
  %v2920 = vsel %vm2868, %v2855, %v1560
  %v2921 = vsel %vm2868, %v2856, %v1562
  %v2922 = vsel %vm2868, %v2857, %v1564
  %v2923 = vsel %vm2868, %v2858, %v1566
  %v2924 = vsel %vm2868, %v2859, %v1568
  %v2925 = vsel %vm2868, %v2860, %v1570
  %v2926 = vsel %vm2868, %v2861, %v1572
  %v2927 = vsel %vm2868, %v2862, %v1574
  %v2928 = vsel %vm2868, %v2863, %v1576
  %v2929 = vsel %vm2868, %v2864, %v1578
  %v2930 = vsel %vm2868, %v2865, %v1580
  %v2931 = vsel %vm2868, %v2866, %v1582
  %v2932 = vsel %vm2868, %v2867, %v1584
  %vm2933 = vcmask 162816
  %v2934 = vsel %vm2933, %v2869, %v1714
  %v2935 = vsel %vm2933, %v2870, %v1716
  %v2936 = vsel %vm2933, %v2871, %v1718
  %v2937 = vsel %vm2933, %v2872, %v1720
  %v2938 = vsel %vm2933, %v2873, %v1722
  %v2939 = vsel %vm2933, %v2874, %v1724
  %v2940 = vsel %vm2933, %v2875, %v1726
  %v2941 = vsel %vm2933, %v2876, %v1728
  %v2942 = vsel %vm2933, %v2877, %v1730
  %v2943 = vsel %vm2933, %v2878, %v1732
  %v2944 = vsel %vm2933, %v2879, %v1734
  %v2945 = vsel %vm2933, %v2880, %v1736
  %v2946 = vsel %vm2933, %v2881, %v1738
  %v2947 = vsel %vm2933, %v2882, %v1740
  %v2948 = vsel %vm2933, %v2883, %v1742
  %v2949 = vsel %vm2933, %v2884, %v1744
  %v2950 = vsel %vm2933, %v2885, %v1746
  %v2951 = vsel %vm2933, %v2886, %v1748
  %v2952 = vsel %vm2933, %v2887, %v1750
  %v2953 = vsel %vm2933, %v2888, %v1752
  %v2954 = vsel %vm2933, %v2889, %v1754
  %v2955 = vsel %vm2933, %v2890, %v1756
  %v2956 = vsel %vm2933, %v2891, %v1758
  %v2957 = vsel %vm2933, %v2892, %v1760
  %v2958 = vsel %vm2933, %v2893, %v1762
  %v2959 = vsel %vm2933, %v2894, %v1764
  %v2960 = vsel %vm2933, %v2895, %v1766
  %v2961 = vsel %vm2933, %v2896, %v1768
  %v2962 = vsel %vm2933, %v2897, %v1770
  %v2963 = vsel %vm2933, %v2898, %v1772
  %v2964 = vsel %vm2933, %v2899, %v1774
  %v2965 = vsel %vm2933, %v2900, %v1776
  %v2966 = vsel %vm2933, %v2901, %v1778
  %v2967 = vsel %vm2933, %v2902, %v1780
  %v2968 = vsel %vm2933, %v2903, %v1782
  %v2969 = vsel %vm2933, %v2904, %v1784
  %v2970 = vsel %vm2933, %v2905, %v1786
  %v2971 = vsel %vm2933, %v2906, %v1788
  %v2972 = vsel %vm2933, %v2907, %v1790
  %v2973 = vsel %vm2933, %v2908, %v1792
  %v2974 = vsel %vm2933, %v2909, %v1794
  %v2975 = vsel %vm2933, %v2910, %v1796
  %v2976 = vsel %vm2933, %v2911, %v1798
  %v2977 = vsel %vm2933, %v2912, %v1800
  %v2978 = vsel %vm2933, %v2913, %v1802
  %v2979 = vsel %vm2933, %v2914, %v1804
  %v2980 = vsel %vm2933, %v2915, %v1806
  %v2981 = vsel %vm2933, %v2916, %v1808
  %v2982 = vsel %vm2933, %v2917, %v1810
  %v2983 = vsel %vm2933, %v2918, %v1812
  %v2984 = vsel %vm2933, %v2919, %v1814
  %v2985 = vsel %vm2933, %v2920, %v1816
  %v2986 = vsel %vm2933, %v2921, %v1818
  %v2987 = vsel %vm2933, %v2922, %v1820
  %v2988 = vsel %vm2933, %v2923, %v1822
  %v2989 = vsel %vm2933, %v2924, %v1824
  %v2990 = vsel %vm2933, %v2925, %v1826
  %v2991 = vsel %vm2933, %v2926, %v1828
  %v2992 = vsel %vm2933, %v2927, %v1830
  %v2993 = vsel %vm2933, %v2928, %v1832
  %v2994 = vsel %vm2933, %v2929, %v1834
  %v2995 = vsel %vm2933, %v2930, %v1836
  %v2996 = vsel %vm2933, %v2931, %v1838
  %v2997 = vsel %vm2933, %v2932, %v1840
  %vm2998 = vcmask 195584
  %v2999 = vsel %vm2998, %v2934, %v1970
  %v3000 = vsel %vm2998, %v2935, %v1972
  %v3001 = vsel %vm2998, %v2936, %v1974
  %v3002 = vsel %vm2998, %v2937, %v1976
  %v3003 = vsel %vm2998, %v2938, %v1978
  %v3004 = vsel %vm2998, %v2939, %v1980
  %v3005 = vsel %vm2998, %v2940, %v1982
  %v3006 = vsel %vm2998, %v2941, %v1984
  %v3007 = vsel %vm2998, %v2942, %v1986
  %v3008 = vsel %vm2998, %v2943, %v1988
  %v3009 = vsel %vm2998, %v2944, %v1990
  %v3010 = vsel %vm2998, %v2945, %v1992
  %v3011 = vsel %vm2998, %v2946, %v1994
  %v3012 = vsel %vm2998, %v2947, %v1996
  %v3013 = vsel %vm2998, %v2948, %v1998
  %v3014 = vsel %vm2998, %v2949, %v2000
  %v3015 = vsel %vm2998, %v2950, %v2002
  %v3016 = vsel %vm2998, %v2951, %v2004
  %v3017 = vsel %vm2998, %v2952, %v2006
  %v3018 = vsel %vm2998, %v2953, %v2008
  %v3019 = vsel %vm2998, %v2954, %v2010
  %v3020 = vsel %vm2998, %v2955, %v2012
  %v3021 = vsel %vm2998, %v2956, %v2014
  %v3022 = vsel %vm2998, %v2957, %v2016
  %v3023 = vsel %vm2998, %v2958, %v2018
  %v3024 = vsel %vm2998, %v2959, %v2020
  %v3025 = vsel %vm2998, %v2960, %v2022
  %v3026 = vsel %vm2998, %v2961, %v2024
  %v3027 = vsel %vm2998, %v2962, %v2026
  %v3028 = vsel %vm2998, %v2963, %v2028
  %v3029 = vsel %vm2998, %v2964, %v2030
  %v3030 = vsel %vm2998, %v2965, %v2032
  %v3031 = vsel %vm2998, %v2966, %v2034
  %v3032 = vsel %vm2998, %v2967, %v2036
  %v3033 = vsel %vm2998, %v2968, %v2038
  %v3034 = vsel %vm2998, %v2969, %v2040
  %v3035 = vsel %vm2998, %v2970, %v2042
  %v3036 = vsel %vm2998, %v2971, %v2044
  %v3037 = vsel %vm2998, %v2972, %v2046
  %v3038 = vsel %vm2998, %v2973, %v2048
  %v3039 = vsel %vm2998, %v2974, %v2050
  %v3040 = vsel %vm2998, %v2975, %v2052
  %v3041 = vsel %vm2998, %v2976, %v2054
  %v3042 = vsel %vm2998, %v2977, %v2056
  %v3043 = vsel %vm2998, %v2978, %v2058
  %v3044 = vsel %vm2998, %v2979, %v2060
  %v3045 = vsel %vm2998, %v2980, %v2062
  %v3046 = vsel %vm2998, %v2981, %v2064
  %v3047 = vsel %vm2998, %v2982, %v2066
  %v3048 = vsel %vm2998, %v2983, %v2068
  %v3049 = vsel %vm2998, %v2984, %v2070
  %v3050 = vsel %vm2998, %v2985, %v2072
  %v3051 = vsel %vm2998, %v2986, %v2074
  %v3052 = vsel %vm2998, %v2987, %v2076
  %v3053 = vsel %vm2998, %v2988, %v2078
  %v3054 = vsel %vm2998, %v2989, %v2080
  %v3055 = vsel %vm2998, %v2990, %v2082
  %v3056 = vsel %vm2998, %v2991, %v2084
  %v3057 = vsel %vm2998, %v2992, %v2086
  %v3058 = vsel %vm2998, %v2993, %v2088
  %v3059 = vsel %vm2998, %v2994, %v2090
  %v3060 = vsel %vm2998, %v2995, %v2092
  %v3061 = vsel %vm2998, %v2996, %v2094
  %v3062 = vsel %vm2998, %v2997, %v2096
  %vm3063 = vcmask 228352
  %v3064 = vsel %vm3063, %v2999, %v2226
  %v3065 = vsel %vm3063, %v3000, %v2228
  %v3066 = vsel %vm3063, %v3001, %v2230
  %v3067 = vsel %vm3063, %v3002, %v2232
  %v3068 = vsel %vm3063, %v3003, %v2234
  %v3069 = vsel %vm3063, %v3004, %v2236
  %v3070 = vsel %vm3063, %v3005, %v2238
  %v3071 = vsel %vm3063, %v3006, %v2240
  %v3072 = vsel %vm3063, %v3007, %v2242
  %v3073 = vsel %vm3063, %v3008, %v2244
  %v3074 = vsel %vm3063, %v3009, %v2246
  %v3075 = vsel %vm3063, %v3010, %v2248
  %v3076 = vsel %vm3063, %v3011, %v2250
  %v3077 = vsel %vm3063, %v3012, %v2252
  %v3078 = vsel %vm3063, %v3013, %v2254
  %v3079 = vsel %vm3063, %v3014, %v2256
  %v3080 = vsel %vm3063, %v3015, %v2258
  %v3081 = vsel %vm3063, %v3016, %v2260
  %v3082 = vsel %vm3063, %v3017, %v2262
  %v3083 = vsel %vm3063, %v3018, %v2264
  %v3084 = vsel %vm3063, %v3019, %v2266
  %v3085 = vsel %vm3063, %v3020, %v2268
  %v3086 = vsel %vm3063, %v3021, %v2270
  %v3087 = vsel %vm3063, %v3022, %v2272
  %v3088 = vsel %vm3063, %v3023, %v2274
  %v3089 = vsel %vm3063, %v3024, %v2276
  %v3090 = vsel %vm3063, %v3025, %v2278
  %v3091 = vsel %vm3063, %v3026, %v2280
  %v3092 = vsel %vm3063, %v3027, %v2282
  %v3093 = vsel %vm3063, %v3028, %v2284
  %v3094 = vsel %vm3063, %v3029, %v2286
  %v3095 = vsel %vm3063, %v3030, %v2288
  %v3096 = vsel %vm3063, %v3031, %v2290
  %v3097 = vsel %vm3063, %v3032, %v2292
  %v3098 = vsel %vm3063, %v3033, %v2294
  %v3099 = vsel %vm3063, %v3034, %v2296
  %v3100 = vsel %vm3063, %v3035, %v2298
  %v3101 = vsel %vm3063, %v3036, %v2300
  %v3102 = vsel %vm3063, %v3037, %v2302
  %v3103 = vsel %vm3063, %v3038, %v2304
  %v3104 = vsel %vm3063, %v3039, %v2306
  %v3105 = vsel %vm3063, %v3040, %v2308
  %v3106 = vsel %vm3063, %v3041, %v2310
  %v3107 = vsel %vm3063, %v3042, %v2312
  %v3108 = vsel %vm3063, %v3043, %v2314
  %v3109 = vsel %vm3063, %v3044, %v2316
  %v3110 = vsel %vm3063, %v3045, %v2318
  %v3111 = vsel %vm3063, %v3046, %v2320
  %v3112 = vsel %vm3063, %v3047, %v2322
  %v3113 = vsel %vm3063, %v3048, %v2324
  %v3114 = vsel %vm3063, %v3049, %v2326
  %v3115 = vsel %vm3063, %v3050, %v2328
  %v3116 = vsel %vm3063, %v3051, %v2330
  %v3117 = vsel %vm3063, %v3052, %v2332
  %v3118 = vsel %vm3063, %v3053, %v2334
  %v3119 = vsel %vm3063, %v3054, %v2336
  %v3120 = vsel %vm3063, %v3055, %v2338
  %v3121 = vsel %vm3063, %v3056, %v2340
  %v3122 = vsel %vm3063, %v3057, %v2342
  %v3123 = vsel %vm3063, %v3058, %v2344
  %v3124 = vsel %vm3063, %v3059, %v2346
  %v3125 = vsel %vm3063, %v3060, %v2348
  %v3126 = vsel %vm3063, %v3061, %v2350
  %v3127 = vsel %vm3063, %v3062, %v2352
  %vm3128 = vcmask 261120
  %v3129 = vsel %vm3128, %v3064, %v2482
  %v3130 = vsel %vm3128, %v3065, %v2484
  %v3131 = vsel %vm3128, %v3066, %v2486
  %v3132 = vsel %vm3128, %v3067, %v2488
  %v3133 = vsel %vm3128, %v3068, %v2490
  %v3134 = vsel %vm3128, %v3069, %v2492
  %v3135 = vsel %vm3128, %v3070, %v2494
  %v3136 = vsel %vm3128, %v3071, %v2496
  %v3137 = vsel %vm3128, %v3072, %v2498
  %v3138 = vsel %vm3128, %v3073, %v2500
  %v3139 = vsel %vm3128, %v3074, %v2502
  %v3140 = vsel %vm3128, %v3075, %v2504
  %v3141 = vsel %vm3128, %v3076, %v2506
  %v3142 = vsel %vm3128, %v3077, %v2508
  %v3143 = vsel %vm3128, %v3078, %v2510
  %v3144 = vsel %vm3128, %v3079, %v2512
  %v3145 = vsel %vm3128, %v3080, %v2514
  %v3146 = vsel %vm3128, %v3081, %v2516
  %v3147 = vsel %vm3128, %v3082, %v2518
  %v3148 = vsel %vm3128, %v3083, %v2520
  %v3149 = vsel %vm3128, %v3084, %v2522
  %v3150 = vsel %vm3128, %v3085, %v2524
  %v3151 = vsel %vm3128, %v3086, %v2526
  %v3152 = vsel %vm3128, %v3087, %v2528
  %v3153 = vsel %vm3128, %v3088, %v2530
  %v3154 = vsel %vm3128, %v3089, %v2532
  %v3155 = vsel %vm3128, %v3090, %v2534
  %v3156 = vsel %vm3128, %v3091, %v2536
  %v3157 = vsel %vm3128, %v3092, %v2538
  %v3158 = vsel %vm3128, %v3093, %v2540
  %v3159 = vsel %vm3128, %v3094, %v2542
  %v3160 = vsel %vm3128, %v3095, %v2544
  %v3161 = vsel %vm3128, %v3096, %v2546
  %v3162 = vsel %vm3128, %v3097, %v2548
  %v3163 = vsel %vm3128, %v3098, %v2550
  %v3164 = vsel %vm3128, %v3099, %v2552
  %v3165 = vsel %vm3128, %v3100, %v2554
  %v3166 = vsel %vm3128, %v3101, %v2556
  %v3167 = vsel %vm3128, %v3102, %v2558
  %v3168 = vsel %vm3128, %v3103, %v2560
  %v3169 = vsel %vm3128, %v3104, %v2562
  %v3170 = vsel %vm3128, %v3105, %v2564
  %v3171 = vsel %vm3128, %v3106, %v2566
  %v3172 = vsel %vm3128, %v3107, %v2568
  %v3173 = vsel %vm3128, %v3108, %v2570
  %v3174 = vsel %vm3128, %v3109, %v2572
  %v3175 = vsel %vm3128, %v3110, %v2574
  %v3176 = vsel %vm3128, %v3111, %v2576
  %v3177 = vsel %vm3128, %v3112, %v2578
  %v3178 = vsel %vm3128, %v3113, %v2580
  %v3179 = vsel %vm3128, %v3114, %v2582
  %v3180 = vsel %vm3128, %v3115, %v2584
  %v3181 = vsel %vm3128, %v3116, %v2586
  %v3182 = vsel %vm3128, %v3117, %v2588
  %v3183 = vsel %vm3128, %v3118, %v2590
  %v3184 = vsel %vm3128, %v3119, %v2592
  %v3185 = vsel %vm3128, %v3120, %v2594
  %v3186 = vsel %vm3128, %v3121, %v2596
  %v3187 = vsel %vm3128, %v3122, %v2598
  %v3188 = vsel %vm3128, %v3123, %v2600
  %v3189 = vsel %vm3128, %v3124, %v2602
  %v3190 = vsel %vm3128, %v3125, %v2604
  %v3191 = vsel %vm3128, %v3126, %v2606
  %v3192 = vsel %vm3128, %v3127, %v2608
  %v3193 = vld [vmem:[%s2] sm:$0xff]
  %v3194 = vld [vmem:[%s2 + $0x8] sm:$0xff]
  %v3195 = vld [vmem:[%s2 + $0x10] sm:$0xff]
  %v3196 = vld [vmem:[%s2 + $0x18] sm:$0xff]
  %v3197 = vld [vmem:[%s2 + $0x20] sm:$0xf]
  %v3198 = vld [vmem:[%s3] sm:$0x1]
  %v3200 = vlaneseq
  %v3201 = vshrl.u32 %v3200, 7
  %v3202 = vsub.s32 0, %v3201
  %v3203 = vrot.slane %v3198, %v3202
  %vm3205 = vcmask 293888
  %v3207 = vsel %vm3205, %v3129, 0
  %v3210 = vsel %vm3205, %v3130, 0
  %v3213 = vsel %vm3205, %v3131, 0
  %v3216 = vsel %vm3205, %v3132, 0
  %v3219 = vsel %vm3205, %v3133, 0
  %v3222 = vsel %vm3205, %v3134, 0
  %v3225 = vsel %vm3205, %v3135, 0
  %v3228 = vsel %vm3205, %v3136, 0
  %v3231 = vsel %vm3205, %v3137, 0
  %v3234 = vsel %vm3205, %v3138, 0
  %v3237 = vsel %vm3205, %v3139, 0
  %v3240 = vsel %vm3205, %v3140, 0
  %v3243 = vsel %vm3205, %v3141, 0
  %v3246 = vsel %vm3205, %v3142, 0
  %v3249 = vsel %vm3205, %v3143, 0
  %v3252 = vsel %vm3205, %v3144, 0
  %v3255 = vsel %vm3205, %v3145, 0
  %v3258 = vsel %vm3205, %v3146, 0
  %v3261 = vsel %vm3205, %v3147, 0
  %v3264 = vsel %vm3205, %v3148, 0
  %v3267 = vsel %vm3205, %v3149, 0
  %v3270 = vsel %vm3205, %v3150, 0
  %v3273 = vsel %vm3205, %v3151, 0
  %v3276 = vsel %vm3205, %v3152, 0
  %v3279 = vsel %vm3205, %v3153, 0
  %v3282 = vsel %vm3205, %v3154, 0
  %v3285 = vsel %vm3205, %v3155, 0
  %v3288 = vsel %vm3205, %v3156, 0
  %v3291 = vsel %vm3205, %v3157, 0
  %v3294 = vsel %vm3205, %v3158, 0
  %v3297 = vsel %vm3205, %v3159, 0
  %v3300 = vsel %vm3205, %v3160, 0
  %v3303 = vsel %vm3205, %v3161, 0
  %v3306 = vsel %vm3205, %v3162, 0
  %v3309 = vsel %vm3205, %v3163, 0
  %v3312 = vsel %vm3205, %v3164, 0
  %v3315 = vsel %vm3205, %v3165, 0
  %v3318 = vsel %vm3205, %v3166, 0
  %v3321 = vsel %vm3205, %v3167, 0
  %v3324 = vsel %vm3205, %v3168, 0
  %v3327 = vsel %vm3205, %v3169, 0
  %v3330 = vsel %vm3205, %v3170, 0
  %v3333 = vsel %vm3205, %v3171, 0
  %v3336 = vsel %vm3205, %v3172, 0
  %v3339 = vsel %vm3205, %v3173, 0
  %v3342 = vsel %vm3205, %v3174, 0
  %v3345 = vsel %vm3205, %v3175, 0
  %v3348 = vsel %vm3205, %v3176, 0
  %v3351 = vsel %vm3205, %v3177, 0
  %v3354 = vsel %vm3205, %v3178, 0
  %v3357 = vsel %vm3205, %v3179, 0
  %v3360 = vsel %vm3205, %v3180, 0
  %v3363 = vsel %vm3205, %v3181, 0
  %v3366 = vsel %vm3205, %v3182, 0
  %v3369 = vsel %vm3205, %v3183, 0
  %v3372 = vsel %vm3205, %v3184, 0
  %v3375 = vsel %vm3205, %v3185, 0
  %v3378 = vsel %vm3205, %v3186, 0
  %v3381 = vsel %vm3205, %v3187, 0
  %v3384 = vsel %vm3205, %v3188, 0
  %v3387 = vsel %vm3205, %v3189, 0
  %v3390 = vsel %vm3205, %v3190, 0
  %v3393 = vsel %vm3205, %v3191, 0
  %v3396 = vsel %vm3205, %v3192, 0
  %vm3398 = vcmask 1043456
  %v3400 = vsel %vm3398, %v3197, 0
  %3402 = vmatprep.subr.mxu0 0.0
  %3403 = vmatpush1.msra.mxu0 %v3193
  %3404 = vmatprep.subr.mxu0 0.0
  %3405 = vmatpush1.msra.mxu0 %v3194
  %3406 = vmatprep.subr.mxu0 0.0
  %3407 = vmatpush1.msra.mxu0 %v3195
  %3408 = vmatprep.subr.mxu0 0.0
  %3409 = vmatpush1.msra.mxu0 %v3196
  %3410 = vmatprep.subr.mxu0 0.0
  %3411 = vmatpush1.msra.mxu0 %v3400
  %3412 = vmatprep.subr.mxu0 0.0
  %3413 = vmatpush1.msra.mxu0 0.0
  %3414 = vmatprep.subr.mxu0 0.0
  %3415 = vmatpush1.msra.mxu0 0.0
  %3416 = vmatprep.subr.mxu0 0.0
  %3417 = vmatpush1.msra.mxu0 0.0
  %3418 = vmatprep.subr.mxu0 0.0
  %3419 = vmatpush1.msra.mxu0 0.0
  %3420 = vmatprep.subr.mxu0 0.0
  %3421 = vmatpush1.msra.mxu0 0.0
  %3422 = vmatprep.subr.mxu0 0.0
  %3423 = vmatpush1.msra.mxu0 0.0
  %3424 = vmatprep.subr.mxu0 0.0
  %3425 = vmatpush1.msra.mxu0 0.0
  %3426 = vmatprep.subr.mxu0 0.0
  %3427 = vmatpush1.msra.mxu0 0.0
  %3428 = vmatprep.subr.mxu0 0.0
  %3429 = vmatpush1.msra.mxu0 0.0
  %3430 = vmatprep.subr.mxu0 0.0
  %3431 = vmatpush1.msra.mxu0 0.0
  %3432 = vmatprep.subr.mxu0 0.0
  %3433 = vmatpush1.msra.mxu0 0.0
  %3434 = vmatprep.subr.mxu0 0.0
  %3435 = vmatpush1.msra.mxu0 0.0
  %3436 = vmatprep.subr.mxu0 0.0
  %3437 = vmatpush1.msra.mxu0 0.0
  %3438 = vmatprep.subr.mxu0 0.0
  %3439 = vmatpush1.msra.mxu0 0.0
  %3440 = vmatprep.subr.mxu0 0.0
  %3441 = vmatpush1.msra.mxu0 0.0
  %3442 = vmatprep.subr.mxu0 0.0
  %3443 = vmatpush1.msra.mxu0 0.0
  %3444 = vmatprep.subr.mxu0 0.0
  %3445 = vmatpush1.msra.mxu0 0.0
  %3446 = vmatprep.subr.mxu0 0.0
  %3447 = vmatpush1.msra.mxu0 0.0
  %3448 = vmatprep.subr.mxu0 0.0
  %3449 = vmatpush1.msra.mxu0 0.0
  %3450 = vmatprep.subr.mxu0 0.0
  %3451 = vmatpush1.msra.mxu0 0.0
  %3452 = vmatprep.subr.mxu0 0.0
  %3453 = vmatpush1.msra.mxu0 0.0
  %3454 = vmatprep.subr.mxu0 0.0
  %3455 = vmatpush1.msra.mxu0 0.0
  %3456 = vmatprep.subr.mxu0 0.0
  %3457 = vmatpush1.msra.mxu0 0.0
  %3458 = vmatprep.subr.mxu0 0.0
  %3459 = vmatpush1.msra.mxu0 0.0
  %3460 = vmatprep.subr.mxu0 0.0
  %3461 = vmatpush1.msra.mxu0 0.0
  %3462 = vmatprep.subr.mxu0 0.0
  %3463 = vmatpush1.msra.mxu0 0.0
  %3464 = vmatprep.subr.mxu0 0.0
  %3465 = vmatpush1.msra.mxu0 0.0
  %3466 = vmatprep.mubr.f32.mxu0 0.0
  %3467 = vmatmul.mubr.f32.gmra.mrb[0].mxu0 %v3207
  %v3468 = vpop.f32.mrb[0].mxu0
  %v3469 = vadd.f32 %v3203, %v3468
  %v3470 = vpop.f32.mrb[0].mxu0
  %3471 = vmatprep.mubr.f32.mxu0 0.0
  %3472 = vmatmul.mubr.f32.gmra.mrb[0].mxu0 %v3210
  %v3473 = vpop.f32.mrb[0].mxu0
  %v3474 = vadd.f32 %v3203, %v3473
  %v3475 = vpop.f32.mrb[0].mxu0
  %3476 = vmatprep.mubr.f32.mxu0 0.0
  %3477 = vmatmul.mubr.f32.gmra.mrb[0].mxu0 %v3213
  %v3478 = vpop.f32.mrb[0].mxu0
  %v3479 = vadd.f32 %v3203, %v3478
  %v3480 = vpop.f32.mrb[0].mxu0
  %3481 = vmatprep.mubr.f32.mxu0 0.0
  %3482 = vmatmul.mubr.f32.gmra.mrb[0].mxu0 %v3216
  %v3483 = vpop.f32.mrb[0].mxu0
  %v3484 = vadd.f32 %v3203, %v3483
  %v3485 = vpop.f32.mrb[0].mxu0
  %3486 = vmatprep.mubr.f32.mxu0 0.0
  %3487 = vmatmul.mubr.f32.gmra.mrb[0].mxu0 %v3219
  %v3488 = vpop.f32.mrb[0].mxu0
  %v3489 = vadd.f32 %v3203, %v3488
  %v3490 = vpop.f32.mrb[0].mxu0
  %3491 = vmatprep.mubr.f32.mxu0 0.0
  %3492 = vmatmul.mubr.f32.gmra.mrb[0].mxu0 %v3222
  %v3493 = vpop.f32.mrb[0].mxu0
  %v3494 = vadd.f32 %v3203, %v3493
  %v3495 = vpop.f32.mrb[0].mxu0
  %3496 = vmatprep.mubr.f32.mxu0 0.0
  %3497 = vmatmul.mubr.f32.gmra.mrb[0].mxu0 %v3225
  %v3498 = vpop.f32.mrb[0].mxu0
  %v3499 = vadd.f32 %v3203, %v3498
  %v3500 = vpop.f32.mrb[0].mxu0
  %3501 = vmatprep.mubr.f32.mxu0 0.0
  %3502 = vmatmul.mubr.f32.gmra.mrb[0].mxu0 %v3228
  %v3503 = vpop.f32.mrb[0].mxu0
  %v3504 = vadd.f32 %v3203, %v3503
  %v3505 = vpop.f32.mrb[0].mxu0
  %3506 = vmatprep.mubr.f32.mxu0 0.0
  %3507 = vmatmul.mubr.f32.gmra.mrb[0].mxu0 %v3231
  %v3508 = vpop.f32.mrb[0].mxu0
  %v3509 = vadd.f32 %v3203, %v3508
  %v3510 = vpop.f32.mrb[0].mxu0
  %3511 = vmatprep.mubr.f32.mxu0 0.0
  %3512 = vmatmul.mubr.f32.gmra.mrb[0].mxu0 %v3234
  %v3513 = vpop.f32.mrb[0].mxu0
  %v3514 = vadd.f32 %v3203, %v3513
  %v3515 = vpop.f32.mrb[0].mxu0
  %3516 = vmatprep.mubr.f32.mxu0 0.0
  %3517 = vmatmul.mubr.f32.gmra.mrb[0].mxu0 %v3237
  %v3518 = vpop.f32.mrb[0].mxu0
  %v3519 = vadd.f32 %v3203, %v3518
  %v3520 = vpop.f32.mrb[0].mxu0
  %3521 = vmatprep.mubr.f32.mxu0 0.0
  %3522 = vmatmul.mubr.f32.gmra.mrb[0].mxu0 %v3240
  %v3523 = vpop.f32.mrb[0].mxu0
  %v3524 = vadd.f32 %v3203, %v3523
  %v3525 = vpop.f32.mrb[0].mxu0
  %3526 = vmatprep.mubr.f32.mxu0 0.0
  %3527 = vmatmul.mubr.f32.gmra.mrb[0].mxu0 %v3243
  %v3528 = vpop.f32.mrb[0].mxu0
  %v3529 = vadd.f32 %v3203, %v3528
  %v3530 = vpop.f32.mrb[0].mxu0
  %3531 = vmatprep.mubr.f32.mxu0 0.0
  %3532 = vmatmul.mubr.f32.gmra.mrb[0].mxu0 %v3246
  %v3533 = vpop.f32.mrb[0].mxu0
  %v3534 = vadd.f32 %v3203, %v3533
  %v3535 = vpop.f32.mrb[0].mxu0
  %3536 = vmatprep.mubr.f32.mxu0 0.0
  %3537 = vmatmul.mubr.f32.gmra.mrb[0].mxu0 %v3249
  %v3538 = vpop.f32.mrb[0].mxu0
  %v3539 = vadd.f32 %v3203, %v3538
  %v3540 = vpop.f32.mrb[0].mxu0
  %3541 = vmatprep.mubr.f32.mxu0 0.0
  %3542 = vmatmul.mubr.f32.gmra.mrb[0].mxu0 %v3252
  %v3543 = vpop.f32.mrb[0].mxu0
  %v3544 = vadd.f32 %v3203, %v3543
  %v3545 = vpop.f32.mrb[0].mxu0
  %3546 = vmatprep.mubr.f32.mxu0 0.0
  %3547 = vmatmul.mubr.f32.gmra.mrb[0].mxu0 %v3255
  %v3548 = vpop.f32.mrb[0].mxu0
  %v3549 = vadd.f32 %v3203, %v3548
  %v3550 = vpop.f32.mrb[0].mxu0
  %3551 = vmatprep.mubr.f32.mxu0 0.0
  %3552 = vmatmul.mubr.f32.gmra.mrb[0].mxu0 %v3258
  %v3553 = vpop.f32.mrb[0].mxu0
  %v3554 = vadd.f32 %v3203, %v3553
  %v3555 = vpop.f32.mrb[0].mxu0
  %3556 = vmatprep.mubr.f32.mxu0 0.0
  %3557 = vmatmul.mubr.f32.gmra.mrb[0].mxu0 %v3261
  %v3558 = vpop.f32.mrb[0].mxu0
  %v3559 = vadd.f32 %v3203, %v3558
  %v3560 = vpop.f32.mrb[0].mxu0
  %3561 = vmatprep.mubr.f32.mxu0 0.0
  %3562 = vmatmul.mubr.f32.gmra.mrb[0].mxu0 %v3264
  %v3563 = vpop.f32.mrb[0].mxu0
  %v3564 = vadd.f32 %v3203, %v3563
  %v3565 = vpop.f32.mrb[0].mxu0
  %3566 = vmatprep.mubr.f32.mxu0 0.0
  %3567 = vmatmul.mubr.f32.gmra.mrb[0].mxu0 %v3267
  %v3568 = vpop.f32.mrb[0].mxu0
  %v3569 = vadd.f32 %v3203, %v3568
  %v3570 = vpop.f32.mrb[0].mxu0
  %3571 = vmatprep.mubr.f32.mxu0 0.0
  %3572 = vmatmul.mubr.f32.gmra.mrb[0].mxu0 %v3270
  %v3573 = vpop.f32.mrb[0].mxu0
  %v3574 = vadd.f32 %v3203, %v3573
  %v3575 = vpop.f32.mrb[0].mxu0
  %3576 = vmatprep.mubr.f32.mxu0 0.0
  %3577 = vmatmul.mubr.f32.gmra.mrb[0].mxu0 %v3273
  %v3578 = vpop.f32.mrb[0].mxu0
  %v3579 = vadd.f32 %v3203, %v3578
  %v3580 = vpop.f32.mrb[0].mxu0
  %3581 = vmatprep.mubr.f32.mxu0 0.0
  %3582 = vmatmul.mubr.f32.gmra.mrb[0].mxu0 %v3276
  %v3583 = vpop.f32.mrb[0].mxu0
  %v3584 = vadd.f32 %v3203, %v3583
  %v3585 = vpop.f32.mrb[0].mxu0
  %3586 = vmatprep.mubr.f32.mxu0 0.0
  %3587 = vmatmul.mubr.f32.gmra.mrb[0].mxu0 %v3279
  %v3588 = vpop.f32.mrb[0].mxu0
  %v3589 = vadd.f32 %v3203, %v3588
  %v3590 = vpop.f32.mrb[0].mxu0
  %3591 = vmatprep.mubr.f32.mxu0 0.0
  %3592 = vmatmul.mubr.f32.gmra.mrb[0].mxu0 %v3282
  %v3593 = vpop.f32.mrb[0].mxu0
  %v3594 = vadd.f32 %v3203, %v3593
  %v3595 = vpop.f32.mrb[0].mxu0
  %3596 = vmatprep.mubr.f32.mxu0 0.0
  %3597 = vmatmul.mubr.f32.gmra.mrb[0].mxu0 %v3285
  %v3598 = vpop.f32.mrb[0].mxu0
  %v3599 = vadd.f32 %v3203, %v3598
  %v3600 = vpop.f32.mrb[0].mxu0
  %3601 = vmatprep.mubr.f32.mxu0 0.0
  %3602 = vmatmul.mubr.f32.gmra.mrb[0].mxu0 %v3288
  %v3603 = vpop.f32.mrb[0].mxu0
  %v3604 = vadd.f32 %v3203, %v3603
  %v3605 = vpop.f32.mrb[0].mxu0
  %3606 = vmatprep.mubr.f32.mxu0 0.0
  %3607 = vmatmul.mubr.f32.gmra.mrb[0].mxu0 %v3291
  %v3608 = vpop.f32.mrb[0].mxu0
  %v3609 = vadd.f32 %v3203, %v3608
  %v3610 = vpop.f32.mrb[0].mxu0
  %3611 = vmatprep.mubr.f32.mxu0 0.0
  %3612 = vmatmul.mubr.f32.gmra.mrb[0].mxu0 %v3294
  %v3613 = vpop.f32.mrb[0].mxu0
  %v3614 = vadd.f32 %v3203, %v3613
  %v3615 = vpop.f32.mrb[0].mxu0
  %3616 = vmatprep.mubr.f32.mxu0 0.0
  %3617 = vmatmul.mubr.f32.gmra.mrb[0].mxu0 %v3297
  %v3618 = vpop.f32.mrb[0].mxu0
  %v3619 = vadd.f32 %v3203, %v3618
  %v3620 = vpop.f32.mrb[0].mxu0
  %3621 = vmatprep.mubr.f32.mxu0 0.0
  %3622 = vmatmul.mubr.f32.gmra.mrb[0].mxu0 %v3300
  %v3623 = vpop.f32.mrb[0].mxu0
  %v3624 = vadd.f32 %v3203, %v3623
  %v3625 = vpop.f32.mrb[0].mxu0
  %3626 = vmatprep.mubr.f32.mxu0 0.0
  %3627 = vmatmul.mubr.f32.gmra.mrb[0].mxu0 %v3303
  %v3628 = vpop.f32.mrb[0].mxu0
  %v3629 = vadd.f32 %v3203, %v3628
  %v3630 = vpop.f32.mrb[0].mxu0
  %3631 = vmatprep.mubr.f32.mxu0 0.0
  %3632 = vmatmul.mubr.f32.gmra.mrb[0].mxu0 %v3306
  %v3633 = vpop.f32.mrb[0].mxu0
  %v3634 = vadd.f32 %v3203, %v3633
  %v3635 = vpop.f32.mrb[0].mxu0
  %3636 = vmatprep.mubr.f32.mxu0 0.0
  %3637 = vmatmul.mubr.f32.gmra.mrb[0].mxu0 %v3309
  %v3638 = vpop.f32.mrb[0].mxu0
  %v3639 = vadd.f32 %v3203, %v3638
  %v3640 = vpop.f32.mrb[0].mxu0
  %3641 = vmatprep.mubr.f32.mxu0 0.0
  %3642 = vmatmul.mubr.f32.gmra.mrb[0].mxu0 %v3312
  %v3643 = vpop.f32.mrb[0].mxu0
  %v3644 = vadd.f32 %v3203, %v3643
  %v3645 = vpop.f32.mrb[0].mxu0
  %3646 = vmatprep.mubr.f32.mxu0 0.0
  %3647 = vmatmul.mubr.f32.gmra.mrb[0].mxu0 %v3315
  %v3648 = vpop.f32.mrb[0].mxu0
  %v3649 = vadd.f32 %v3203, %v3648
  %v3650 = vpop.f32.mrb[0].mxu0
  %3651 = vmatprep.mubr.f32.mxu0 0.0
  %3652 = vmatmul.mubr.f32.gmra.mrb[0].mxu0 %v3318
  %v3653 = vpop.f32.mrb[0].mxu0
  %v3654 = vadd.f32 %v3203, %v3653
  %v3655 = vpop.f32.mrb[0].mxu0
  %3656 = vmatprep.mubr.f32.mxu0 0.0
  %3657 = vmatmul.mubr.f32.gmra.mrb[0].mxu0 %v3321
  %v3658 = vpop.f32.mrb[0].mxu0
  %v3659 = vadd.f32 %v3203, %v3658
  %v3660 = vpop.f32.mrb[0].mxu0
  %3661 = vmatprep.mubr.f32.mxu0 0.0
  %3662 = vmatmul.mubr.f32.gmra.mrb[0].mxu0 %v3324
  %v3663 = vpop.f32.mrb[0].mxu0
  %v3664 = vadd.f32 %v3203, %v3663
  %v3665 = vpop.f32.mrb[0].mxu0
  %3666 = vmatprep.mubr.f32.mxu0 0.0
  %3667 = vmatmul.mubr.f32.gmra.mrb[0].mxu0 %v3327
  %v3668 = vpop.f32.mrb[0].mxu0
  %v3669 = vadd.f32 %v3203, %v3668
  %v3670 = vpop.f32.mrb[0].mxu0
  %3671 = vmatprep.mubr.f32.mxu0 0.0
  %3672 = vmatmul.mubr.f32.gmra.mrb[0].mxu0 %v3330
  %v3673 = vpop.f32.mrb[0].mxu0
  %v3674 = vadd.f32 %v3203, %v3673
  %v3675 = vpop.f32.mrb[0].mxu0
  %3676 = vmatprep.mubr.f32.mxu0 0.0
  %3677 = vmatmul.mubr.f32.gmra.mrb[0].mxu0 %v3333
  %v3678 = vpop.f32.mrb[0].mxu0
  %v3679 = vadd.f32 %v3203, %v3678
  %v3680 = vpop.f32.mrb[0].mxu0
  %3681 = vmatprep.mubr.f32.mxu0 0.0
  %3682 = vmatmul.mubr.f32.gmra.mrb[0].mxu0 %v3336
  %v3683 = vpop.f32.mrb[0].mxu0
  %v3684 = vadd.f32 %v3203, %v3683
  %v3685 = vpop.f32.mrb[0].mxu0
  %3686 = vmatprep.mubr.f32.mxu0 0.0
  %3687 = vmatmul.mubr.f32.gmra.mrb[0].mxu0 %v3339
  %v3688 = vpop.f32.mrb[0].mxu0
  %v3689 = vadd.f32 %v3203, %v3688
  %v3690 = vpop.f32.mrb[0].mxu0
  %3691 = vmatprep.mubr.f32.mxu0 0.0
  %3692 = vmatmul.mubr.f32.gmra.mrb[0].mxu0 %v3342
  %v3693 = vpop.f32.mrb[0].mxu0
  %v3694 = vadd.f32 %v3203, %v3693
  %v3695 = vpop.f32.mrb[0].mxu0
  %3696 = vmatprep.mubr.f32.mxu0 0.0
  %3697 = vmatmul.mubr.f32.gmra.mrb[0].mxu0 %v3345
  %v3698 = vpop.f32.mrb[0].mxu0
  %v3699 = vadd.f32 %v3203, %v3698
  %v3700 = vpop.f32.mrb[0].mxu0
  %3701 = vmatprep.mubr.f32.mxu0 0.0
  %3702 = vmatmul.mubr.f32.gmra.mrb[0].mxu0 %v3348
  %v3703 = vpop.f32.mrb[0].mxu0
  %v3704 = vadd.f32 %v3203, %v3703
  %v3705 = vpop.f32.mrb[0].mxu0
  %3706 = vmatprep.mubr.f32.mxu0 0.0
  %3707 = vmatmul.mubr.f32.gmra.mrb[0].mxu0 %v3351
  %v3708 = vpop.f32.mrb[0].mxu0
  %v3709 = vadd.f32 %v3203, %v3708
  %v3710 = vpop.f32.mrb[0].mxu0
  %3711 = vmatprep.mubr.f32.mxu0 0.0
  %3712 = vmatmul.mubr.f32.gmra.mrb[0].mxu0 %v3354
  %v3713 = vpop.f32.mrb[0].mxu0
  %v3714 = vadd.f32 %v3203, %v3713
  %v3715 = vpop.f32.mrb[0].mxu0
  %3716 = vmatprep.mubr.f32.mxu0 0.0
  %3717 = vmatmul.mubr.f32.gmra.mrb[0].mxu0 %v3357
  %v3718 = vpop.f32.mrb[0].mxu0
  %v3719 = vadd.f32 %v3203, %v3718
  %v3720 = vpop.f32.mrb[0].mxu0
  %3721 = vmatprep.mubr.f32.mxu0 0.0
  %3722 = vmatmul.mubr.f32.gmra.mrb[0].mxu0 %v3360
  %v3723 = vpop.f32.mrb[0].mxu0
  %v3724 = vadd.f32 %v3203, %v3723
  %v3725 = vpop.f32.mrb[0].mxu0
  %3726 = vmatprep.mubr.f32.mxu0 0.0
  %3727 = vmatmul.mubr.f32.gmra.mrb[0].mxu0 %v3363
  %v3728 = vpop.f32.mrb[0].mxu0
  %v3729 = vadd.f32 %v3203, %v3728
  %v3730 = vpop.f32.mrb[0].mxu0
  %3731 = vmatprep.mubr.f32.mxu0 0.0
  %3732 = vmatmul.mubr.f32.gmra.mrb[0].mxu0 %v3366
  %v3733 = vpop.f32.mrb[0].mxu0
  %v3734 = vadd.f32 %v3203, %v3733
  %v3735 = vpop.f32.mrb[0].mxu0
  %3736 = vmatprep.mubr.f32.mxu0 0.0
  %3737 = vmatmul.mubr.f32.gmra.mrb[0].mxu0 %v3369
  %v3738 = vpop.f32.mrb[0].mxu0
  %v3739 = vadd.f32 %v3203, %v3738
  %v3740 = vpop.f32.mrb[0].mxu0
  %3741 = vmatprep.mubr.f32.mxu0 0.0
  %3742 = vmatmul.mubr.f32.gmra.mrb[0].mxu0 %v3372
  %v3743 = vpop.f32.mrb[0].mxu0
  %v3744 = vadd.f32 %v3203, %v3743
  %v3745 = vpop.f32.mrb[0].mxu0
  %3746 = vmatprep.mubr.f32.mxu0 0.0
  %3747 = vmatmul.mubr.f32.gmra.mrb[0].mxu0 %v3375
  %v3748 = vpop.f32.mrb[0].mxu0
  %v3749 = vadd.f32 %v3203, %v3748
  %v3750 = vpop.f32.mrb[0].mxu0
  %3751 = vmatprep.mubr.f32.mxu0 0.0
  %3752 = vmatmul.mubr.f32.gmra.mrb[0].mxu0 %v3378
  %v3753 = vpop.f32.mrb[0].mxu0
  %v3754 = vadd.f32 %v3203, %v3753
  %v3755 = vpop.f32.mrb[0].mxu0
  %3756 = vmatprep.mubr.f32.mxu0 0.0
  %3757 = vmatmul.mubr.f32.gmra.mrb[0].mxu0 %v3381
  %v3758 = vpop.f32.mrb[0].mxu0
  %v3759 = vadd.f32 %v3203, %v3758
  %v3760 = vpop.f32.mrb[0].mxu0
  %3761 = vmatprep.mubr.f32.mxu0 0.0
  %3762 = vmatmul.mubr.f32.gmra.mrb[0].mxu0 %v3384
  %v3763 = vpop.f32.mrb[0].mxu0
  %v3764 = vadd.f32 %v3203, %v3763
  %v3765 = vpop.f32.mrb[0].mxu0
  %3766 = vmatprep.mubr.f32.mxu0 0.0
  %3767 = vmatmul.mubr.f32.gmra.mrb[0].mxu0 %v3387
  %v3768 = vpop.f32.mrb[0].mxu0
  %v3769 = vadd.f32 %v3203, %v3768
  %v3770 = vpop.f32.mrb[0].mxu0
  %3771 = vmatprep.mubr.f32.mxu0 0.0
  %3772 = vmatmul.mubr.f32.gmra.mrb[0].mxu0 %v3390
  %v3773 = vpop.f32.mrb[0].mxu0
  %v3774 = vadd.f32 %v3203, %v3773
  %v3775 = vpop.f32.mrb[0].mxu0
  %3776 = vmatprep.mubr.f32.mxu0 0.0
  %3777 = vmatmul.mubr.f32.gmra.mrb[0].mxu0 %v3393
  %v3778 = vpop.f32.mrb[0].mxu0
  %v3779 = vadd.f32 %v3203, %v3778
  %v3780 = vpop.f32.mrb[0].mxu0
  %3781 = vmatprep.mubr.f32.mxu0 0.0
  %3782 = vmatmul.mubr.f32.gmra.mrb[0].mxu0 %v3396
  %v3783 = vpop.f32.mrb[0].mxu0
  %v3784 = vadd.f32 %v3203, %v3783
  %v3785 = vpop.f32.mrb[0].mxu0
  %3786 = vdwg.mxu0
  %v3787 = vmax.f32 %v3469, 0.0
  %v3788 = vmax.f32 %v3474, 0.0
  %v3789 = vmax.f32 %v3479, 0.0
  %v3790 = vmax.f32 %v3484, 0.0
  %v3791 = vmax.f32 %v3489, 0.0
  %v3792 = vmax.f32 %v3494, 0.0
  %v3793 = vmax.f32 %v3499, 0.0
  %v3794 = vmax.f32 %v3504, 0.0
  %v3795 = vmax.f32 %v3509, 0.0
  %v3796 = vmax.f32 %v3514, 0.0
  %v3797 = vmax.f32 %v3519, 0.0
  %v3798 = vmax.f32 %v3524, 0.0
  %v3799 = vmax.f32 %v3529, 0.0
  %v3800 = vmax.f32 %v3534, 0.0
  %v3801 = vmax.f32 %v3539, 0.0
  %v3802 = vmax.f32 %v3544, 0.0
  %v3803 = vmax.f32 %v3549, 0.0
  %v3804 = vmax.f32 %v3554, 0.0
  %v3805 = vmax.f32 %v3559, 0.0
  %v3806 = vmax.f32 %v3564, 0.0
  %v3807 = vmax.f32 %v3569, 0.0
  %v3808 = vmax.f32 %v3574, 0.0
  %v3809 = vmax.f32 %v3579, 0.0
  %v3810 = vmax.f32 %v3584, 0.0
  %v3811 = vmax.f32 %v3589, 0.0
  %v3812 = vmax.f32 %v3594, 0.0
  %v3813 = vmax.f32 %v3599, 0.0
  %v3814 = vmax.f32 %v3604, 0.0
  %v3815 = vmax.f32 %v3609, 0.0
  %v3816 = vmax.f32 %v3614, 0.0
  %v3817 = vmax.f32 %v3619, 0.0
  %v3818 = vmax.f32 %v3624, 0.0
  %v3819 = vmax.f32 %v3629, 0.0
  %v3820 = vmax.f32 %v3634, 0.0
  %v3821 = vmax.f32 %v3639, 0.0
  %v3822 = vmax.f32 %v3644, 0.0
  %v3823 = vmax.f32 %v3649, 0.0
  %v3824 = vmax.f32 %v3654, 0.0
  %v3825 = vmax.f32 %v3659, 0.0
  %v3826 = vmax.f32 %v3664, 0.0
  %v3827 = vmax.f32 %v3669, 0.0
  %v3828 = vmax.f32 %v3674, 0.0
  %v3829 = vmax.f32 %v3679, 0.0
  %v3830 = vmax.f32 %v3684, 0.0
  %v3831 = vmax.f32 %v3689, 0.0
  %v3832 = vmax.f32 %v3694, 0.0
  %v3833 = vmax.f32 %v3699, 0.0
  %v3834 = vmax.f32 %v3704, 0.0
  %v3835 = vmax.f32 %v3709, 0.0
  %v3836 = vmax.f32 %v3714, 0.0
  %v3837 = vmax.f32 %v3719, 0.0
  %v3838 = vmax.f32 %v3724, 0.0
  %v3839 = vmax.f32 %v3729, 0.0
  %v3840 = vmax.f32 %v3734, 0.0
  %v3841 = vmax.f32 %v3739, 0.0
  %v3842 = vmax.f32 %v3744, 0.0
  %v3843 = vmax.f32 %v3749, 0.0
  %v3844 = vmax.f32 %v3754, 0.0
  %v3845 = vmax.f32 %v3759, 0.0
  %v3846 = vmax.f32 %v3764, 0.0
  %v3847 = vmax.f32 %v3769, 0.0
  %v3848 = vmax.f32 %v3774, 0.0
  %v3849 = vmax.f32 %v3779, 0.0
  %v3850 = vmax.f32 %v3784, 0.0
  %v3851 = vsel %vm2738, %v3787, 0.0
  %v3852 = vsel %vm2738, %v3788, 0.0
  %v3853 = vadd.f32 %v3851, %v3852
  %v3854 = vsel %vm2738, %v3789, 0.0
  %v3855 = vadd.f32 %v3853, %v3854
  %v3856 = vsel %vm2738, %v3790, 0.0
  %v3857 = vadd.f32 %v3855, %v3856
  %v3858 = vsel %vm2738, %v3791, 0.0
  %v3859 = vadd.f32 %v3857, %v3858
  %v3860 = vsel %vm2738, %v3792, 0.0
  %v3861 = vadd.f32 %v3859, %v3860
  %v3862 = vsel %vm2738, %v3793, 0.0
  %v3863 = vadd.f32 %v3861, %v3862
  %v3864 = vsel %vm2738, %v3794, 0.0
  %v3865 = vadd.f32 %v3863, %v3864
  %v3866 = vsel %vm2738, %v3795, 0.0
  %v3867 = vadd.f32 %v3865, %v3866
  %v3868 = vsel %vm2738, %v3796, 0.0
  %v3869 = vadd.f32 %v3867, %v3868
  %v3870 = vsel %vm2738, %v3797, 0.0
  %v3871 = vadd.f32 %v3869, %v3870
  %v3872 = vsel %vm2738, %v3798, 0.0
  %v3873 = vadd.f32 %v3871, %v3872
  %v3874 = vsel %vm2738, %v3799, 0.0
  %v3875 = vadd.f32 %v3873, %v3874
  %v3876 = vsel %vm2738, %v3800, 0.0
  %v3877 = vadd.f32 %v3875, %v3876
  %v3878 = vsel %vm2738, %v3801, 0.0
  %v3879 = vadd.f32 %v3877, %v3878
  %v3880 = vsel %vm2738, %v3802, 0.0
  %v3881 = vadd.f32 %v3879, %v3880
  %v3882 = vsel %vm2738, %v3803, 0.0
  %v3883 = vadd.f32 %v3881, %v3882
  %v3884 = vsel %vm2738, %v3804, 0.0
  %v3885 = vadd.f32 %v3883, %v3884
  %v3886 = vsel %vm2738, %v3805, 0.0
  %v3887 = vadd.f32 %v3885, %v3886
  %v3888 = vsel %vm2738, %v3806, 0.0
  %v3889 = vadd.f32 %v3887, %v3888
  %v3890 = vsel %vm2738, %v3807, 0.0
  %v3891 = vadd.f32 %v3889, %v3890
  %v3892 = vsel %vm2738, %v3808, 0.0
  %v3893 = vadd.f32 %v3891, %v3892
  %v3894 = vsel %vm2738, %v3809, 0.0
  %v3895 = vadd.f32 %v3893, %v3894
  %v3896 = vsel %vm2738, %v3810, 0.0
  %v3897 = vadd.f32 %v3895, %v3896
  %v3898 = vsel %vm2738, %v3811, 0.0
  %v3899 = vadd.f32 %v3897, %v3898
  %v3900 = vsel %vm2738, %v3812, 0.0
  %v3901 = vadd.f32 %v3899, %v3900
  %v3902 = vsel %vm2738, %v3813, 0.0
  %v3903 = vadd.f32 %v3901, %v3902
  %v3904 = vsel %vm2738, %v3814, 0.0
  %v3905 = vadd.f32 %v3903, %v3904
  %v3906 = vsel %vm2738, %v3815, 0.0
  %v3907 = vadd.f32 %v3905, %v3906
  %v3908 = vsel %vm2738, %v3816, 0.0
  %v3909 = vadd.f32 %v3907, %v3908
  %v3910 = vsel %vm2738, %v3817, 0.0
  %v3911 = vadd.f32 %v3909, %v3910
  %v3912 = vsel %vm2738, %v3818, 0.0
  %v3913 = vadd.f32 %v3911, %v3912
  %v3914 = vsel %vm2738, %v3819, 0.0
  %v3915 = vadd.f32 %v3913, %v3914
  %v3916 = vsel %vm2738, %v3820, 0.0
  %v3917 = vadd.f32 %v3915, %v3916
  %v3918 = vsel %vm2738, %v3821, 0.0
  %v3919 = vadd.f32 %v3917, %v3918
  %v3920 = vsel %vm2738, %v3822, 0.0
  %v3921 = vadd.f32 %v3919, %v3920
  %v3922 = vsel %vm2738, %v3823, 0.0
  %v3923 = vadd.f32 %v3921, %v3922
  %v3924 = vsel %vm2738, %v3824, 0.0
  %v3925 = vadd.f32 %v3923, %v3924
  %v3926 = vsel %vm2738, %v3825, 0.0
  %v3927 = vadd.f32 %v3925, %v3926
  %v3928 = vsel %vm2738, %v3826, 0.0
  %v3929 = vadd.f32 %v3927, %v3928
  %v3930 = vsel %vm2738, %v3827, 0.0
  %v3931 = vadd.f32 %v3929, %v3930
  %v3932 = vsel %vm2738, %v3828, 0.0
  %v3933 = vadd.f32 %v3931, %v3932
  %v3934 = vsel %vm2738, %v3829, 0.0
  %v3935 = vadd.f32 %v3933, %v3934
  %v3936 = vsel %vm2738, %v3830, 0.0
  %v3937 = vadd.f32 %v3935, %v3936
  %v3938 = vsel %vm2738, %v3831, 0.0
  %v3939 = vadd.f32 %v3937, %v3938
  %v3940 = vsel %vm2738, %v3832, 0.0
  %v3941 = vadd.f32 %v3939, %v3940
  %v3942 = vsel %vm2738, %v3833, 0.0
  %v3943 = vadd.f32 %v3941, %v3942
  %v3944 = vsel %vm2738, %v3834, 0.0
  %v3945 = vadd.f32 %v3943, %v3944
  %v3946 = vsel %vm2738, %v3835, 0.0
  %v3947 = vadd.f32 %v3945, %v3946
  %v3948 = vsel %vm2738, %v3836, 0.0
  %v3949 = vadd.f32 %v3947, %v3948
  %v3950 = vsel %vm2738, %v3837, 0.0
  %v3951 = vadd.f32 %v3949, %v3950
  %v3952 = vsel %vm2738, %v3838, 0.0
  %v3953 = vadd.f32 %v3951, %v3952
  %v3954 = vsel %vm2738, %v3839, 0.0
  %v3955 = vadd.f32 %v3953, %v3954
  %v3956 = vsel %vm2738, %v3840, 0.0
  %v3957 = vadd.f32 %v3955, %v3956
  %v3958 = vsel %vm2738, %v3841, 0.0
  %v3959 = vadd.f32 %v3957, %v3958
  %v3960 = vsel %vm2738, %v3842, 0.0
  %v3961 = vadd.f32 %v3959, %v3960
  %v3962 = vsel %vm2738, %v3843, 0.0
  %v3963 = vadd.f32 %v3961, %v3962
  %v3964 = vsel %vm2738, %v3844, 0.0
  %v3965 = vadd.f32 %v3963, %v3964
  %v3966 = vsel %vm2738, %v3845, 0.0
  %v3967 = vadd.f32 %v3965, %v3966
  %v3968 = vsel %vm2738, %v3846, 0.0
  %v3969 = vadd.f32 %v3967, %v3968
  %v3970 = vsel %vm2738, %v3847, 0.0
  %v3971 = vadd.f32 %v3969, %v3970
  %v3972 = vsel %vm2738, %v3848, 0.0
  %v3973 = vadd.f32 %v3971, %v3972
  %v3974 = vsel %vm2738, %v3849, 0.0
  %v3975 = vadd.f32 %v3973, %v3974
  %v3976 = vsel %vm2738, %v3850, 0.0
  %v3977 = vadd.f32 %v3975, %v3976
  %v3978 = vrot.slane %v3977, 4
  %v3979 = vadd.f32 %v3977, %v3978
  %v3980 = vrot.slane %v3979, 2
  %v3981 = vadd.f32 %v3979, %v3980
  %v3982 = vrot.slane %v3981, 1
  %v3983 = vadd.f32 %v3981, %v3982
  %v3984 = vmul.f32 %v3787, %v3787
  %v3985 = vmul.f32 %v3788, %v3788
  %v3986 = vmul.f32 %v3789, %v3789
  %v3987 = vmul.f32 %v3790, %v3790
  %v3988 = vmul.f32 %v3791, %v3791
  %v3989 = vmul.f32 %v3792, %v3792
  %v3990 = vmul.f32 %v3793, %v3793
  %v3991 = vmul.f32 %v3794, %v3794
  %v3992 = vmul.f32 %v3795, %v3795
  %v3993 = vmul.f32 %v3796, %v3796
  %v3994 = vmul.f32 %v3797, %v3797
  %v3995 = vmul.f32 %v3798, %v3798
  %v3996 = vmul.f32 %v3799, %v3799
  %v3997 = vmul.f32 %v3800, %v3800
  %v3998 = vmul.f32 %v3801, %v3801
  %v3999 = vmul.f32 %v3802, %v3802
  %v4000 = vmul.f32 %v3803, %v3803
  %v4001 = vmul.f32 %v3804, %v3804
  %v4002 = vmul.f32 %v3805, %v3805
  %v4003 = vmul.f32 %v3806, %v3806
  %v4004 = vmul.f32 %v3807, %v3807
  %v4005 = vmul.f32 %v3808, %v3808
  %v4006 = vmul.f32 %v3809, %v3809
  %v4007 = vmul.f32 %v3810, %v3810
  %v4008 = vmul.f32 %v3811, %v3811
  %v4009 = vmul.f32 %v3812, %v3812
  %v4010 = vmul.f32 %v3813, %v3813
  %v4011 = vmul.f32 %v3814, %v3814
  %v4012 = vmul.f32 %v3815, %v3815
  %v4013 = vmul.f32 %v3816, %v3816
  %v4014 = vmul.f32 %v3817, %v3817
  %v4015 = vmul.f32 %v3818, %v3818
  %v4016 = vmul.f32 %v3819, %v3819
  %v4017 = vmul.f32 %v3820, %v3820
  %v4018 = vmul.f32 %v3821, %v3821
  %v4019 = vmul.f32 %v3822, %v3822
  %v4020 = vmul.f32 %v3823, %v3823
  %v4021 = vmul.f32 %v3824, %v3824
  %v4022 = vmul.f32 %v3825, %v3825
  %v4023 = vmul.f32 %v3826, %v3826
  %v4024 = vmul.f32 %v3827, %v3827
  %v4025 = vmul.f32 %v3828, %v3828
  %v4026 = vmul.f32 %v3829, %v3829
  %v4027 = vmul.f32 %v3830, %v3830
  %v4028 = vmul.f32 %v3831, %v3831
  %v4029 = vmul.f32 %v3832, %v3832
  %v4030 = vmul.f32 %v3833, %v3833
  %v4031 = vmul.f32 %v3834, %v3834
  %v4032 = vmul.f32 %v3835, %v3835
  %v4033 = vmul.f32 %v3836, %v3836
  %v4034 = vmul.f32 %v3837, %v3837
  %v4035 = vmul.f32 %v3838, %v3838
  %v4036 = vmul.f32 %v3839, %v3839
  %v4037 = vmul.f32 %v3840, %v3840
  %v4038 = vmul.f32 %v3841, %v3841
  %v4039 = vmul.f32 %v3842, %v3842
  %v4040 = vmul.f32 %v3843, %v3843
  %v4041 = vmul.f32 %v3844, %v3844
  %v4042 = vmul.f32 %v3845, %v3845
  %v4043 = vmul.f32 %v3846, %v3846
  %v4044 = vmul.f32 %v3847, %v3847
  %v4045 = vmul.f32 %v3848, %v3848
  %v4046 = vmul.f32 %v3849, %v3849
  %v4047 = vmul.f32 %v3850, %v3850
  %v4048 = vsel %vm2738, %v3984, 0.0
  %v4049 = vsel %vm2738, %v3985, 0.0
  %v4050 = vadd.f32 %v4048, %v4049
  %v4051 = vsel %vm2738, %v3986, 0.0
  %v4052 = vadd.f32 %v4050, %v4051
  %v4053 = vsel %vm2738, %v3987, 0.0
  %v4054 = vadd.f32 %v4052, %v4053
  %v4055 = vsel %vm2738, %v3988, 0.0
  %v4056 = vadd.f32 %v4054, %v4055
  %v4057 = vsel %vm2738, %v3989, 0.0
  %v4058 = vadd.f32 %v4056, %v4057
  %v4059 = vsel %vm2738, %v3990, 0.0
  %v4060 = vadd.f32 %v4058, %v4059
  %v4061 = vsel %vm2738, %v3991, 0.0
  %v4062 = vadd.f32 %v4060, %v4061
  %v4063 = vsel %vm2738, %v3992, 0.0
  %v4064 = vadd.f32 %v4062, %v4063
  %v4065 = vsel %vm2738, %v3993, 0.0
  %v4066 = vadd.f32 %v4064, %v4065
  %v4067 = vsel %vm2738, %v3994, 0.0
  %v4068 = vadd.f32 %v4066, %v4067
  %v4069 = vsel %vm2738, %v3995, 0.0
  %v4070 = vadd.f32 %v4068, %v4069
  %v4071 = vsel %vm2738, %v3996, 0.0
  %v4072 = vadd.f32 %v4070, %v4071
  %v4073 = vsel %vm2738, %v3997, 0.0
  %v4074 = vadd.f32 %v4072, %v4073
  %v4075 = vsel %vm2738, %v3998, 0.0
  %v4076 = vadd.f32 %v4074, %v4075
  %v4077 = vsel %vm2738, %v3999, 0.0
  %v4078 = vadd.f32 %v4076, %v4077
  %v4079 = vsel %vm2738, %v4000, 0.0
  %v4080 = vadd.f32 %v4078, %v4079
  %v4081 = vsel %vm2738, %v4001, 0.0
  %v4082 = vadd.f32 %v4080, %v4081
  %v4083 = vsel %vm2738, %v4002, 0.0
  %v4084 = vadd.f32 %v4082, %v4083
  %v4085 = vsel %vm2738, %v4003, 0.0
  %v4086 = vadd.f32 %v4084, %v4085
  %v4087 = vsel %vm2738, %v4004, 0.0
  %v4088 = vadd.f32 %v4086, %v4087
  %v4089 = vsel %vm2738, %v4005, 0.0
  %v4090 = vadd.f32 %v4088, %v4089
  %v4091 = vsel %vm2738, %v4006, 0.0
  %v4092 = vadd.f32 %v4090, %v4091
  %v4093 = vsel %vm2738, %v4007, 0.0
  %v4094 = vadd.f32 %v4092, %v4093
  %v4095 = vsel %vm2738, %v4008, 0.0
  %v4096 = vadd.f32 %v4094, %v4095
  %v4097 = vsel %vm2738, %v4009, 0.0
  %v4098 = vadd.f32 %v4096, %v4097
  %v4099 = vsel %vm2738, %v4010, 0.0
  %v4100 = vadd.f32 %v4098, %v4099
  %v4101 = vsel %vm2738, %v4011, 0.0
  %v4102 = vadd.f32 %v4100, %v4101
  %v4103 = vsel %vm2738, %v4012, 0.0
  %v4104 = vadd.f32 %v4102, %v4103
  %v4105 = vsel %vm2738, %v4013, 0.0
  %v4106 = vadd.f32 %v4104, %v4105
  %v4107 = vsel %vm2738, %v4014, 0.0
  %v4108 = vadd.f32 %v4106, %v4107
  %v4109 = vsel %vm2738, %v4015, 0.0
  %v4110 = vadd.f32 %v4108, %v4109
  %v4111 = vsel %vm2738, %v4016, 0.0
  %v4112 = vadd.f32 %v4110, %v4111
  %v4113 = vsel %vm2738, %v4017, 0.0
  %v4114 = vadd.f32 %v4112, %v4113
  %v4115 = vsel %vm2738, %v4018, 0.0
  %v4116 = vadd.f32 %v4114, %v4115
  %v4117 = vsel %vm2738, %v4019, 0.0
  %v4118 = vadd.f32 %v4116, %v4117
  %v4119 = vsel %vm2738, %v4020, 0.0
  %v4120 = vadd.f32 %v4118, %v4119
  %v4121 = vsel %vm2738, %v4021, 0.0
  %v4122 = vadd.f32 %v4120, %v4121
  %v4123 = vsel %vm2738, %v4022, 0.0
  %v4124 = vadd.f32 %v4122, %v4123
  %v4125 = vsel %vm2738, %v4023, 0.0
  %v4126 = vadd.f32 %v4124, %v4125
  %v4127 = vsel %vm2738, %v4024, 0.0
  %v4128 = vadd.f32 %v4126, %v4127
  %v4129 = vsel %vm2738, %v4025, 0.0
  %v4130 = vadd.f32 %v4128, %v4129
  %v4131 = vsel %vm2738, %v4026, 0.0
  %v4132 = vadd.f32 %v4130, %v4131
  %v4133 = vsel %vm2738, %v4027, 0.0
  %v4134 = vadd.f32 %v4132, %v4133
  %v4135 = vsel %vm2738, %v4028, 0.0
  %v4136 = vadd.f32 %v4134, %v4135
  %v4137 = vsel %vm2738, %v4029, 0.0
  %v4138 = vadd.f32 %v4136, %v4137
  %v4139 = vsel %vm2738, %v4030, 0.0
  %v4140 = vadd.f32 %v4138, %v4139
  %v4141 = vsel %vm2738, %v4031, 0.0
  %v4142 = vadd.f32 %v4140, %v4141
  %v4143 = vsel %vm2738, %v4032, 0.0
  %v4144 = vadd.f32 %v4142, %v4143
  %v4145 = vsel %vm2738, %v4033, 0.0
  %v4146 = vadd.f32 %v4144, %v4145
  %v4147 = vsel %vm2738, %v4034, 0.0
  %v4148 = vadd.f32 %v4146, %v4147
  %v4149 = vsel %vm2738, %v4035, 0.0
  %v4150 = vadd.f32 %v4148, %v4149
  %v4151 = vsel %vm2738, %v4036, 0.0
  %v4152 = vadd.f32 %v4150, %v4151
  %v4153 = vsel %vm2738, %v4037, 0.0
  %v4154 = vadd.f32 %v4152, %v4153
  %v4155 = vsel %vm2738, %v4038, 0.0
  %v4156 = vadd.f32 %v4154, %v4155
  %v4157 = vsel %vm2738, %v4039, 0.0
  %v4158 = vadd.f32 %v4156, %v4157
  %v4159 = vsel %vm2738, %v4040, 0.0
  %v4160 = vadd.f32 %v4158, %v4159
  %v4161 = vsel %vm2738, %v4041, 0.0
  %v4162 = vadd.f32 %v4160, %v4161
  %v4163 = vsel %vm2738, %v4042, 0.0
  %v4164 = vadd.f32 %v4162, %v4163
  %v4165 = vsel %vm2738, %v4043, 0.0
  %v4166 = vadd.f32 %v4164, %v4165
  %v4167 = vsel %vm2738, %v4044, 0.0
  %v4168 = vadd.f32 %v4166, %v4167
  %v4169 = vsel %vm2738, %v4045, 0.0
  %v4170 = vadd.f32 %v4168, %v4169
  %v4171 = vsel %vm2738, %v4046, 0.0
  %v4172 = vadd.f32 %v4170, %v4171
  %v4173 = vsel %vm2738, %v4047, 0.0
  %v4174 = vadd.f32 %v4172, %v4173
  %v4175 = vrot.slane %v4174, 4
  %v4176 = vadd.f32 %v4174, %v4175
  %v4177 = vrot.slane %v4176, 2
  %v4178 = vadd.f32 %v4176, %v4177
  %v4179 = vrot.slane %v4178, 1
  %v4180 = vadd.f32 %v4178, %v4179
  %v4181 = vmul.f32 %v3983, 0.001953125
  %v4182 = vmul.f32 %v4180, 0.001953125
  %v4183 = vmul.f32 %v4181, %v4181
  %v4184 = vsub.f32 %v4182, %v4183
  %v4185 = vadd.f32 %v4184, 1e-05
  %v4186 = vrsqrt.pop %v4185
  %v4187 = vld [vmem:[%s6] sm:$0x1]
  %v4188 = vmul.f32 %v4186, %v4187
  %v4189 = vld [vmem:[%s7] sm:$0x1]
  %v4190 = vmul.f32 %v4181, %v4188
  %v4191 = vsub.f32 %v4189, %v4190
  %v4192 = vlaneseq
  %v4193 = vshrl.u32 %v4192, 7
  %v4194 = vsub.s32 0, %v4193
  %v4195 = vrot.slane %v4188, %v4194
  %v4196 = vmul.f32 %v3787, %v4195
  %v4197 = vmul.f32 %v3788, %v4195
  %v4198 = vmul.f32 %v3789, %v4195
  %v4199 = vmul.f32 %v3790, %v4195
  %v4200 = vmul.f32 %v3791, %v4195
  %v4201 = vmul.f32 %v3792, %v4195
  %v4202 = vmul.f32 %v3793, %v4195
  %v4203 = vmul.f32 %v3794, %v4195
  %v4204 = vmul.f32 %v3795, %v4195
  %v4205 = vmul.f32 %v3796, %v4195
  %v4206 = vmul.f32 %v3797, %v4195
  %v4207 = vmul.f32 %v3798, %v4195
  %v4208 = vmul.f32 %v3799, %v4195
  %v4209 = vmul.f32 %v3800, %v4195
  %v4210 = vmul.f32 %v3801, %v4195
  %v4211 = vmul.f32 %v3802, %v4195
  %v4212 = vmul.f32 %v3803, %v4195
  %v4213 = vmul.f32 %v3804, %v4195
  %v4214 = vmul.f32 %v3805, %v4195
  %v4215 = vmul.f32 %v3806, %v4195
  %v4216 = vmul.f32 %v3807, %v4195
  %v4217 = vmul.f32 %v3808, %v4195
  %v4218 = vmul.f32 %v3809, %v4195
  %v4219 = vmul.f32 %v3810, %v4195
  %v4220 = vmul.f32 %v3811, %v4195
  %v4221 = vmul.f32 %v3812, %v4195
  %v4222 = vmul.f32 %v3813, %v4195
  %v4223 = vmul.f32 %v3814, %v4195
  %v4224 = vmul.f32 %v3815, %v4195
  %v4225 = vmul.f32 %v3816, %v4195
  %v4226 = vmul.f32 %v3817, %v4195
  %v4227 = vmul.f32 %v3818, %v4195
  %v4228 = vmul.f32 %v3819, %v4195
  %v4229 = vmul.f32 %v3820, %v4195
  %v4230 = vmul.f32 %v3821, %v4195
  %v4231 = vmul.f32 %v3822, %v4195
  %v4232 = vmul.f32 %v3823, %v4195
  %v4233 = vmul.f32 %v3824, %v4195
  %v4234 = vmul.f32 %v3825, %v4195
  %v4235 = vmul.f32 %v3826, %v4195
  %v4236 = vmul.f32 %v3827, %v4195
  %v4237 = vmul.f32 %v3828, %v4195
  %v4238 = vmul.f32 %v3829, %v4195
  %v4239 = vmul.f32 %v3830, %v4195
  %v4240 = vmul.f32 %v3831, %v4195
  %v4241 = vmul.f32 %v3832, %v4195
  %v4242 = vmul.f32 %v3833, %v4195
  %v4243 = vmul.f32 %v3834, %v4195
  %v4244 = vmul.f32 %v3835, %v4195
  %v4245 = vmul.f32 %v3836, %v4195
  %v4246 = vmul.f32 %v3837, %v4195
  %v4247 = vmul.f32 %v3838, %v4195
  %v4248 = vmul.f32 %v3839, %v4195
  %v4249 = vmul.f32 %v3840, %v4195
  %v4250 = vmul.f32 %v3841, %v4195
  %v4251 = vmul.f32 %v3842, %v4195
  %v4252 = vmul.f32 %v3843, %v4195
  %v4253 = vmul.f32 %v3844, %v4195
  %v4254 = vmul.f32 %v3845, %v4195
  %v4255 = vmul.f32 %v3846, %v4195
  %v4256 = vmul.f32 %v3847, %v4195
  %v4257 = vmul.f32 %v3848, %v4195
  %v4258 = vmul.f32 %v3849, %v4195
  %v4259 = vmul.f32 %v3850, %v4195
  %v4261 = vlaneseq
  %v4262 = vshrl.u32 %v4261, 7
  %v4263 = vsub.s32 0, %v4262
  %v4264 = vrot.slane %v4191, %v4263
  %v4266 = vadd.f32 %v4196, %v4264
  %v4267 = vadd.f32 %v4197, %v4264
  %v4268 = vadd.f32 %v4198, %v4264
  %v4269 = vadd.f32 %v4199, %v4264
  %v4270 = vadd.f32 %v4200, %v4264
  %v4271 = vadd.f32 %v4201, %v4264
  %v4272 = vadd.f32 %v4202, %v4264
  %v4273 = vadd.f32 %v4203, %v4264
  %v4274 = vadd.f32 %v4204, %v4264
  %v4275 = vadd.f32 %v4205, %v4264
  %v4276 = vadd.f32 %v4206, %v4264
  %v4277 = vadd.f32 %v4207, %v4264
  %v4278 = vadd.f32 %v4208, %v4264
  %v4279 = vadd.f32 %v4209, %v4264
  %v4280 = vadd.f32 %v4210, %v4264
  %v4281 = vadd.f32 %v4211, %v4264
  %v4282 = vadd.f32 %v4212, %v4264
  %v4283 = vadd.f32 %v4213, %v4264
  %v4284 = vadd.f32 %v4214, %v4264
  %v4285 = vadd.f32 %v4215, %v4264
  %v4286 = vadd.f32 %v4216, %v4264
  %v4287 = vadd.f32 %v4217, %v4264
  %v4288 = vadd.f32 %v4218, %v4264
  %v4289 = vadd.f32 %v4219, %v4264
  %v4290 = vadd.f32 %v4220, %v4264
  %v4291 = vadd.f32 %v4221, %v4264
  %v4292 = vadd.f32 %v4222, %v4264
  %v4293 = vadd.f32 %v4223, %v4264
  %v4294 = vadd.f32 %v4224, %v4264
  %v4295 = vadd.f32 %v4225, %v4264
  %v4296 = vadd.f32 %v4226, %v4264
  %v4297 = vadd.f32 %v4227, %v4264
  %v4298 = vadd.f32 %v4228, %v4264
  %v4299 = vadd.f32 %v4229, %v4264
  %v4300 = vadd.f32 %v4230, %v4264
  %v4301 = vadd.f32 %v4231, %v4264
  %v4302 = vadd.f32 %v4232, %v4264
  %v4303 = vadd.f32 %v4233, %v4264
  %v4304 = vadd.f32 %v4234, %v4264
  %v4305 = vadd.f32 %v4235, %v4264
  %v4306 = vadd.f32 %v4236, %v4264
  %v4307 = vadd.f32 %v4237, %v4264
  %v4308 = vadd.f32 %v4238, %v4264
  %v4309 = vadd.f32 %v4239, %v4264
  %v4310 = vadd.f32 %v4240, %v4264
  %v4311 = vadd.f32 %v4241, %v4264
  %v4312 = vadd.f32 %v4242, %v4264
  %v4313 = vadd.f32 %v4243, %v4264
  %v4314 = vadd.f32 %v4244, %v4264
  %v4315 = vadd.f32 %v4245, %v4264
  %v4316 = vadd.f32 %v4246, %v4264
  %v4317 = vadd.f32 %v4247, %v4264
  %v4318 = vadd.f32 %v4248, %v4264
  %v4319 = vadd.f32 %v4249, %v4264
  %v4320 = vadd.f32 %v4250, %v4264
  %v4321 = vadd.f32 %v4251, %v4264
  %v4322 = vadd.f32 %v4252, %v4264
  %v4323 = vadd.f32 %v4253, %v4264
  %v4324 = vadd.f32 %v4254, %v4264
  %v4325 = vadd.f32 %v4255, %v4264
  %v4326 = vadd.f32 %v4256, %v4264
  %v4327 = vadd.f32 %v4257, %v4264
  %v4328 = vadd.f32 %v4258, %v4264
  %v4329 = vadd.f32 %v4259, %v4264
  %v4330 = vld [vmem:[%s1] sm:$0x3]
  %v4331 = vld [vmem:[%s4] sm:$0xff]
  %v4332 = vld [vmem:[%s4 + $0x8] sm:$0xff]
  %v4333 = vld [vmem:[%s4 + $0x10] sm:$0xff]
  %v4334 = vld [vmem:[%s4 + $0x18] sm:$0xff]
  %v4335 = vld [vmem:[%s5] sm:$0x1]
  %v4337 = vlaneseq
  %v4338 = vshrl.u32 %v4337, 7
  %v4339 = vsub.s32 0, %v4338
  %v4340 = vrot.slane %v4335, %v4339
  %v4343 = vsel %vm3128, %v4330, 0
  %4345 = vmatprep.subr.mxu0 0.0
  %4346 = vmatpush1.msra.mxu0 %v4331
  %4347 = vmatprep.subr.mxu0 0.0
  %4348 = vmatpush1.msra.mxu0 %v4332
  %4349 = vmatprep.subr.mxu0 0.0
  %4350 = vmatpush1.msra.mxu0 %v4333
  %4351 = vmatprep.subr.mxu0 0.0
  %4352 = vmatpush1.msra.mxu0 %v4334
  %4353 = vmatprep.subr.mxu0 0.0
  %4354 = vmatpush1.msra.mxu0 0.0
  %4355 = vmatprep.subr.mxu0 0.0
  %4356 = vmatpush1.msra.mxu0 0.0
  %4357 = vmatprep.subr.mxu0 0.0
  %4358 = vmatpush1.msra.mxu0 0.0
  %4359 = vmatprep.subr.mxu0 0.0
  %4360 = vmatpush1.msra.mxu0 0.0
  %4361 = vmatprep.subr.mxu0 0.0
  %4362 = vmatpush1.msra.mxu0 0.0
  %4363 = vmatprep.subr.mxu0 0.0
  %4364 = vmatpush1.msra.mxu0 0.0
  %4365 = vmatprep.subr.mxu0 0.0
  %4366 = vmatpush1.msra.mxu0 0.0
  %4367 = vmatprep.subr.mxu0 0.0
  %4368 = vmatpush1.msra.mxu0 0.0
  %4369 = vmatprep.subr.mxu0 0.0
  %4370 = vmatpush1.msra.mxu0 0.0
  %4371 = vmatprep.subr.mxu0 0.0
  %4372 = vmatpush1.msra.mxu0 0.0
  %4373 = vmatprep.subr.mxu0 0.0
  %4374 = vmatpush1.msra.mxu0 0.0
  %4375 = vmatprep.subr.mxu0 0.0
  %4376 = vmatpush1.msra.mxu0 0.0
  %4377 = vmatprep.subr.mxu0 0.0
  %4378 = vmatpush1.msra.mxu0 0.0
  %4379 = vmatprep.subr.mxu0 0.0
  %4380 = vmatpush1.msra.mxu0 0.0
  %4381 = vmatprep.subr.mxu0 0.0
  %4382 = vmatpush1.msra.mxu0 0.0
  %4383 = vmatprep.subr.mxu0 0.0
  %4384 = vmatpush1.msra.mxu0 0.0
  %4385 = vmatprep.subr.mxu0 0.0
  %4386 = vmatpush1.msra.mxu0 0.0
  %4387 = vmatprep.subr.mxu0 0.0
  %4388 = vmatpush1.msra.mxu0 0.0
  %4389 = vmatprep.subr.mxu0 0.0
  %4390 = vmatpush1.msra.mxu0 0.0
  %4391 = vmatprep.subr.mxu0 0.0
  %4392 = vmatpush1.msra.mxu0 0.0
  %4393 = vmatprep.subr.mxu0 0.0
  %4394 = vmatpush1.msra.mxu0 0.0
  %4395 = vmatprep.subr.mxu0 0.0
  %4396 = vmatpush1.msra.mxu0 0.0
  %4397 = vmatprep.subr.mxu0 0.0
  %4398 = vmatpush1.msra.mxu0 0.0
  %4399 = vmatprep.subr.mxu0 0.0
  %4400 = vmatpush1.msra.mxu0 0.0
  %4401 = vmatprep.subr.mxu0 0.0
  %4402 = vmatpush1.msra.mxu0 0.0
  %4403 = vmatprep.subr.mxu0 0.0
  %4404 = vmatpush1.msra.mxu0 0.0
  %4405 = vmatprep.subr.mxu0 0.0
  %4406 = vmatpush1.msra.mxu0 0.0
  %4407 = vmatprep.subr.mxu0 0.0
  %4408 = vmatpush1.msra.mxu0 0.0
  %4409 = vmatprep.mubr.f32.mxu0 0.0
  %4410 = vmatmul.mubr.f32.gmra.mrb[0].mxu0 %v4343
  %v4411 = vpop.f32.mrb[0].mxu0
  %v4412 = vadd.f32 %v4340, %v4411
  %v4413 = vpop.f32.mrb[0].mxu0
  %4414 = vdwg.mxu0
  %v4415 = vmax.f32 %v4412, 0.0
  %v4418 = vunpack.c.l.s4 1966171168
  %v4419 = vunpack.c.0.s8 %v4418
  %v4420 = vlaneseq
  %v4421 = vshrl.u32 %v4420, 7
  %v4422 = vsub.s32 %v4419, %v4421
  %v4423 = vrot.slane %v4415, %v4422
  %v4424 = vcombine.high %v4423, %v4423
  %v4426 = vunpack.c.l.s4 1966171168
  %v4427 = vunpack.c.0.s8 %v4426
  %v4428 = vlaneseq
  %v4429 = vshrl.u32 %v4428, 7
  %v4430 = vsub.s32 %v4427, %v4429
  %v4431 = vrot.slane %v4423, %v4430
  %v4433 = vunpack.c.l.s4 1966171168
  %v4434 = vunpack.c.0.s8 %v4433
  %v4435 = vlaneseq
  %v4436 = vshrl.u32 %v4435, 7
  %v4437 = vsub.s32 %v4434, %v4436
  %v4438 = vrot.slane %v4424, %v4437
  %v4439 = vlaneseq
  %v4440 = vshrl.u32 %v4439, 7
  %v4441 = vsub.s32 0, %v4440
  %v4442 = vrot.slane %v4431, %v4441
  %v4443 = vlaneseq
  %v4444 = vshrl.u32 %v4443, 7
  %v4445 = vsub.s32 0, %v4444
  %v4446 = vrot.slane %v4438, %v4445
  %v4449 = vadd.f32 %v4266, %v4442
  %v4450 = vadd.f32 %v4267, %v4442
  %v4451 = vadd.f32 %v4268, %v4442
  %v4452 = vadd.f32 %v4269, %v4442
  %v4453 = vadd.f32 %v4270, %v4442
  %v4454 = vadd.f32 %v4271, %v4442
  %v4455 = vadd.f32 %v4272, %v4442
  %v4456 = vadd.f32 %v4273, %v4442
  %v4457 = vadd.f32 %v4274, %v4442
  %v4458 = vadd.f32 %v4275, %v4442
  %v4459 = vadd.f32 %v4276, %v4442
  %v4460 = vadd.f32 %v4277, %v4442
  %v4461 = vadd.f32 %v4278, %v4442
  %v4462 = vadd.f32 %v4279, %v4442
  %v4463 = vadd.f32 %v4280, %v4442
  %v4464 = vadd.f32 %v4281, %v4442
  %v4465 = vadd.f32 %v4282, %v4442
  %v4466 = vadd.f32 %v4283, %v4442
  %v4467 = vadd.f32 %v4284, %v4442
  %v4468 = vadd.f32 %v4285, %v4442
  %v4469 = vadd.f32 %v4286, %v4442
  %v4470 = vadd.f32 %v4287, %v4442
  %v4471 = vadd.f32 %v4288, %v4442
  %v4472 = vadd.f32 %v4289, %v4442
  %v4473 = vadd.f32 %v4290, %v4442
  %v4474 = vadd.f32 %v4291, %v4442
  %v4475 = vadd.f32 %v4292, %v4442
  %v4476 = vadd.f32 %v4293, %v4442
  %v4477 = vadd.f32 %v4294, %v4442
  %v4478 = vadd.f32 %v4295, %v4442
  %v4479 = vadd.f32 %v4296, %v4442
  %v4480 = vadd.f32 %v4297, %v4442
  %v4481 = vadd.f32 %v4298, %v4446
  %v4482 = vadd.f32 %v4299, %v4446
  %v4483 = vadd.f32 %v4300, %v4446
  %v4484 = vadd.f32 %v4301, %v4446
  %v4485 = vadd.f32 %v4302, %v4446
  %v4486 = vadd.f32 %v4303, %v4446
  %v4487 = vadd.f32 %v4304, %v4446
  %v4488 = vadd.f32 %v4305, %v4446
  %v4489 = vadd.f32 %v4306, %v4446
  %v4490 = vadd.f32 %v4307, %v4446
  %v4491 = vadd.f32 %v4308, %v4446
  %v4492 = vadd.f32 %v4309, %v4446
  %v4493 = vadd.f32 %v4310, %v4446
  %v4494 = vadd.f32 %v4311, %v4446
  %v4495 = vadd.f32 %v4312, %v4446
  %v4496 = vadd.f32 %v4313, %v4446
  %v4497 = vadd.f32 %v4314, %v4446
  %v4498 = vadd.f32 %v4315, %v4446
  %v4499 = vadd.f32 %v4316, %v4446
  %v4500 = vadd.f32 %v4317, %v4446
  %v4501 = vadd.f32 %v4318, %v4446
  %v4502 = vadd.f32 %v4319, %v4446
  %v4503 = vadd.f32 %v4320, %v4446
  %v4504 = vadd.f32 %v4321, %v4446
  %v4505 = vadd.f32 %v4322, %v4446
  %v4506 = vadd.f32 %v4323, %v4446
  %v4507 = vadd.f32 %v4324, %v4446
  %v4508 = vadd.f32 %v4325, %v4446
  %v4509 = vadd.f32 %v4326, %v4446
  %v4510 = vadd.f32 %v4327, %v4446
  %v4511 = vadd.f32 %v4328, %v4446
  %v4512 = vadd.f32 %v4329, %v4446
  %4513 = vst.msk [vmem:[#allocation2] sm:$0xff] %vm2738, 0.0
  %4514 = vst.msk [vmem:[#allocation2 + $0x8] sm:$0xff] %vm2738, 0.0
  %vm4515 = vcmask 60416
  %4516 = vst.msk [vmem:[#allocation2 + $0x10] sm:$0xf] %vm4515, 0.0
  %4517 = vst.msk [vmem:[#allocation2 + $0x1e0] sm:$0xff] %vm2738, 0.0
  %4518 = vst.msk [vmem:[#allocation2 + $0x1e8] sm:$0xff] %vm2738, 0.0
  %4519 = vst.msk [vmem:[#allocation2 + $0x1f0] sm:$0xf] %vm4515, 0.0
  %s4520 = scalar_lea.vmem [#allocation2], 408
  %4521 = vst.msk [vmem:[%s4520] sm:$0xff] %vm2738, 0.0
  %4522 = vst.msk [vmem:[%s4520 + $0x8] sm:$0xff] %vm2738, 0.0
  %4523 = vst.msk [vmem:[%s4520 + $0x10] sm:$0xf] %vm4515, 0.0
  %4524 = vst.msk [vmem:[%s4520 + $0x18] sm:$0xff] %vm2738, 0.0
  %4525 = vst.msk [vmem:[%s4520 + $0x20] sm:$0xff] %vm2738, 0.0
  %4526 = vst.msk [vmem:[%s4520 + $0x28] sm:$0xf] %vm4515, 0.0
  %4527 = vst.msk [vmem:[%s4520 + $0x30] sm:$0xff] %vm2738, 0.0
  %4528 = vst.msk [vmem:[%s4520 + $0x38] sm:$0xff] %vm2738, 0.0
  %4529 = vst.msk [vmem:[%s4520 + $0x40] sm:$0xf] %vm4515, 0.0
  %4530 = vst.msk [vmem:[%s4520 + $0x1e0] sm:$0xff] %vm2738, 0.0
  %4531 = vst.msk [vmem:[%s4520 + $0x1e8] sm:$0xff] %vm2738, 0.0
  %4532 = vst.msk [vmem:[%s4520 + $0x1f0] sm:$0xf] %vm4515, 0.0
  %4533 = vst.msk [vmem:[%s4520 + $0x1f8] sm:$0xff] %vm2738, 0.0
  %4534 = vst.msk [vmem:[%s4520 + $0x200] sm:$0xff] %vm2738, 0.0
  %4535 = vst.msk [vmem:[%s4520 + $0x208] sm:$0xf] %vm4515, 0.0
  %4536 = vst.msk [vmem:[%s4520 + $0x210] sm:$0xff] %vm2738, 0.0
  %4537 = vst.msk [vmem:[%s4520 + $0x218] sm:$0xff] %vm2738, 0.0
  %4538 = vst.msk [vmem:[%s4520 + $0x220] sm:$0xf] %vm4515, 0.0
  %vm4539 = vcmask 57344
  %4540 = vst.msk [vmem:[#allocation2] sm:$0x1] %vm4539, 0.0
  %4541 = vst.msk [vmem:[#allocation2 + $0x18] sm:$0x1] %vm4539, 0.0
  %4542 = vst.msk [vmem:[#allocation2 + $0x30] sm:$0x1] %vm4539, 0.0
  %4543 = vst.msk [vmem:[#allocation2 + $0x48] sm:$0x1] %vm4539, 0.0
  %4544 = vst.msk [vmem:[#allocation2 + $0x60] sm:$0x1] %vm4539, 0.0
  %4545 = vst.msk [vmem:[#allocation2 + $0x78] sm:$0x1] %vm4539, 0.0
  %4546 = vst.msk [vmem:[#allocation2 + $0x90] sm:$0x1] %vm4539, 0.0
  %4547 = vst.msk [vmem:[#allocation2 + $0xa8] sm:$0x1] %vm4539, 0.0
  %4548 = vst.msk [vmem:[#allocation2 + $0xc0] sm:$0x1] %vm4539, 0.0
  %4549 = vst.msk [vmem:[#allocation2 + $0xd8] sm:$0x1] %vm4539, 0.0
  %4550 = vst.msk [vmem:[#allocation2 + $0xf0] sm:$0x1] %vm4539, 0.0
  %4551 = vst.msk [vmem:[#allocation2 + $0x108] sm:$0x1] %vm4539, 0.0
  %4552 = vst.msk [vmem:[#allocation2 + $0x120] sm:$0x1] %vm4539, 0.0
  %4553 = vst.msk [vmem:[#allocation2 + $0x138] sm:$0x1] %vm4539, 0.0
  %4554 = vst.msk [vmem:[#allocation2 + $0x150] sm:$0x1] %vm4539, 0.0
  %4555 = vst.msk [vmem:[#allocation2 + $0x168] sm:$0x1] %vm4539, 0.0
  %4556 = vst.msk [vmem:[#allocation2 + $0x180] sm:$0x1] %vm4539, 0.0
  %4557 = vst.msk [vmem:[#allocation2 + $0x198] sm:$0x1] %vm4539, 0.0
  %4558 = vst.msk [vmem:[#allocation2 + $0x1b0] sm:$0x1] %vm4539, 0.0
  %4559 = vst.msk [vmem:[#allocation2 + $0x1c8] sm:$0x1] %vm4539, 0.0
  %4560 = vst.msk [vmem:[#allocation2 + $0x1e0] sm:$0x1] %vm4539, 0.0
  %4561 = vst.msk [vmem:[#allocation2 + $0x1f8] sm:$0x1] %vm4539, 0.0
  %4562 = vst.msk [vmem:[#allocation2 + $0x210] sm:$0x1] %vm4539, 0.0
  %4563 = vst.msk [vmem:[#allocation2 + $0x228] sm:$0x1] %vm4539, 0.0
  %4564 = vst.msk [vmem:[#allocation2 + $0x240] sm:$0x1] %vm4539, 0.0
  %4565 = vst.msk [vmem:[#allocation2 + $0x258] sm:$0x1] %vm4539, 0.0
  %4566 = vst.msk [vmem:[#allocation2 + $0x270] sm:$0x1] %vm4539, 0.0
  %4567 = vst.msk [vmem:[#allocation2 + $0x288] sm:$0x1] %vm4539, 0.0
  %4568 = vst.msk [vmem:[#allocation2 + $0x2a0] sm:$0x1] %vm4539, 0.0
  %4569 = vst.msk [vmem:[#allocation2 + $0x2b8] sm:$0x1] %vm4539, 0.0
  %4570 = vst.msk [vmem:[#allocation2 + $0x2d0] sm:$0x1] %vm4539, 0.0
  %4571 = vst.msk [vmem:[#allocation2 + $0x2e8] sm:$0x1] %vm4539, 0.0
  %4572 = vst.msk [vmem:[#allocation2 + $0x300] sm:$0x1] %vm4539, 0.0
  %4573 = vst.msk [vmem:[#allocation2 + $0x318] sm:$0x1] %vm4539, 0.0
  %4574 = vst.msk [vmem:[#allocation2 + $0x330] sm:$0x1] %vm4539, 0.0
  %4575 = vst.msk [vmem:[#allocation2 + $0x348] sm:$0x1] %vm4539, 0.0
  %4576 = vst.msk [vmem:[#allocation2 + $0x360] sm:$0x1] %vm4539, 0.0
  %4577 = vst.msk [vmem:[#allocation2 + $0x378] sm:$0x1] %vm4539, 0.0
  %4578 = vst.msk [vmem:[#allocation2 + $0x390] sm:$0x1] %vm4539, 0.0
  %4579 = vst.msk [vmem:[#allocation2 + $0x3a8] sm:$0x1] %vm4539, 0.0
  %vm4580 = vcmask 59392
  %4581 = vst.msk [vmem:[#allocation2 + $0x11] sm:$0x7] %vm4580, 0.0
  %4582 = vst.msk [vmem:[#allocation2 + $0x29] sm:$0x7] %vm4580, 0.0
  %4583 = vst.msk [vmem:[#allocation2 + $0x41] sm:$0x7] %vm4580, 0.0
  %4584 = vst.msk [vmem:[#allocation2 + $0x59] sm:$0x7] %vm4580, 0.0
  %4585 = vst.msk [vmem:[#allocation2 + $0x71] sm:$0x7] %vm4580, 0.0
  %4586 = vst.msk [vmem:[#allocation2 + $0x89] sm:$0x7] %vm4580, 0.0
  %4587 = vst.msk [vmem:[#allocation2 + $0xa1] sm:$0x7] %vm4580, 0.0
  %4588 = vst.msk [vmem:[#allocation2 + $0xb9] sm:$0x7] %vm4580, 0.0
  %4589 = vst.msk [vmem:[#allocation2 + $0xd1] sm:$0x7] %vm4580, 0.0
  %4590 = vst.msk [vmem:[#allocation2 + $0xe9] sm:$0x7] %vm4580, 0.0
  %4591 = vst.msk [vmem:[#allocation2 + $0x101] sm:$0x7] %vm4580, 0.0
  %4592 = vst.msk [vmem:[#allocation2 + $0x119] sm:$0x7] %vm4580, 0.0
  %4593 = vst.msk [vmem:[#allocation2 + $0x131] sm:$0x7] %vm4580, 0.0
  %4594 = vst.msk [vmem:[#allocation2 + $0x149] sm:$0x7] %vm4580, 0.0
  %4595 = vst.msk [vmem:[#allocation2 + $0x161] sm:$0x7] %vm4580, 0.0
  %4596 = vst.msk [vmem:[#allocation2 + $0x179] sm:$0x7] %vm4580, 0.0
  %4597 = vst.msk [vmem:[#allocation2 + $0x191] sm:$0x7] %vm4580, 0.0
  %4598 = vst.msk [vmem:[#allocation2 + $0x1a9] sm:$0x7] %vm4580, 0.0
  %4599 = vst.msk [vmem:[#allocation2 + $0x1c1] sm:$0x7] %vm4580, 0.0
  %4600 = vst.msk [vmem:[#allocation2 + $0x1d9] sm:$0x7] %vm4580, 0.0
  %4601 = vst.msk [vmem:[#allocation2 + $0x1f1] sm:$0x7] %vm4580, 0.0
  %4602 = vst.msk [vmem:[#allocation2 + $0x209] sm:$0x7] %vm4580, 0.0
  %4603 = vst.msk [vmem:[#allocation2 + $0x221] sm:$0x7] %vm4580, 0.0
  %4604 = vst.msk [vmem:[#allocation2 + $0x239] sm:$0x7] %vm4580, 0.0
  %4605 = vst.msk [vmem:[#allocation2 + $0x251] sm:$0x7] %vm4580, 0.0
  %4606 = vst.msk [vmem:[#allocation2 + $0x269] sm:$0x7] %vm4580, 0.0
  %4607 = vst.msk [vmem:[#allocation2 + $0x281] sm:$0x7] %vm4580, 0.0
  %4608 = vst.msk [vmem:[#allocation2 + $0x299] sm:$0x7] %vm4580, 0.0
  %4609 = vst.msk [vmem:[#allocation2 + $0x2b1] sm:$0x7] %vm4580, 0.0
  %4610 = vst.msk [vmem:[#allocation2 + $0x2c9] sm:$0x7] %vm4580, 0.0
  %4611 = vst.msk [vmem:[#allocation2 + $0x2e1] sm:$0x7] %vm4580, 0.0
  %4612 = vst.msk [vmem:[#allocation2 + $0x2f9] sm:$0x7] %vm4580, 0.0
  %4613 = vst.msk [vmem:[#allocation2 + $0x311] sm:$0x7] %vm4580, 0.0
  %4614 = vst.msk [vmem:[#allocation2 + $0x329] sm:$0x7] %vm4580, 0.0
  %4615 = vst.msk [vmem:[#allocation2 + $0x341] sm:$0x7] %vm4580, 0.0
  %4616 = vst.msk [vmem:[#allocation2 + $0x359] sm:$0x7] %vm4580, 0.0
  %4617 = vst.msk [vmem:[#allocation2 + $0x371] sm:$0x7] %vm4580, 0.0
  %4618 = vst.msk [vmem:[#allocation2 + $0x389] sm:$0x7] %vm4580, 0.0
  %4619 = vst.msk [vmem:[#allocation2 + $0x3a1] sm:$0x7] %vm4580, 0.0
  %4620 = vst.msk [vmem:[#allocation2 + $0x3b9] sm:$0x7] %vm4580, 0.0
  %s4621 = scalar_lea.vmem [#allocation2], 24
  %4622 = vst.msk [vmem:[%s4621 + $0x1] sm:$0xff] %vm2738, %v4449
  %4623 = vst.msk [vmem:[%s4621 + $0x9] sm:$0xff] %vm2738, %v4450
  %4624 = vst.msk [vmem:[%s4621 + $0x19] sm:$0xff] %vm2738, %v4451
  %4625 = vst.msk [vmem:[%s4621 + $0x21] sm:$0xff] %vm2738, %v4452
  %4626 = vst.msk [vmem:[%s4621 + $0x31] sm:$0xff] %vm2738, %v4453
  %4627 = vst.msk [vmem:[%s4621 + $0x39] sm:$0xff] %vm2738, %v4454
  %4628 = vst.msk [vmem:[%s4621 + $0x49] sm:$0xff] %vm2738, %v4455
  %4629 = vst.msk [vmem:[%s4621 + $0x51] sm:$0xff] %vm2738, %v4456
  %4630 = vst.msk [vmem:[%s4621 + $0x61] sm:$0xff] %vm2738, %v4457
  %4631 = vst.msk [vmem:[%s4621 + $0x69] sm:$0xff] %vm2738, %v4458
  %4632 = vst.msk [vmem:[%s4621 + $0x79] sm:$0xff] %vm2738, %v4459
  %4633 = vst.msk [vmem:[%s4621 + $0x81] sm:$0xff] %vm2738, %v4460
  %4634 = vst.msk [vmem:[%s4621 + $0x91] sm:$0xff] %vm2738, %v4461
  %4635 = vst.msk [vmem:[%s4621 + $0x99] sm:$0xff] %vm2738, %v4462
  %4636 = vst.msk [vmem:[%s4621 + $0xa9] sm:$0xff] %vm2738, %v4463
  %4637 = vst.msk [vmem:[%s4621 + $0xb1] sm:$0xff] %vm2738, %v4464
  %4638 = vst.msk [vmem:[%s4621 + $0xc1] sm:$0xff] %vm2738, %v4465
  %4639 = vst.msk [vmem:[%s4621 + $0xc9] sm:$0xff] %vm2738, %v4466
  %4640 = vst.msk [vmem:[%s4621 + $0xd9] sm:$0xff] %vm2738, %v4467
  %4641 = vst.msk [vmem:[%s4621 + $0xe1] sm:$0xff] %vm2738, %v4468
  %4642 = vst.msk [vmem:[%s4621 + $0xf1] sm:$0xff] %vm2738, %v4469
  %4643 = vst.msk [vmem:[%s4621 + $0xf9] sm:$0xff] %vm2738, %v4470
  %4644 = vst.msk [vmem:[%s4621 + $0x109] sm:$0xff] %vm2738, %v4471
  %4645 = vst.msk [vmem:[%s4621 + $0x111] sm:$0xff] %vm2738, %v4472
  %4646 = vst.msk [vmem:[%s4621 + $0x121] sm:$0xff] %vm2738, %v4473
  %4647 = vst.msk [vmem:[%s4621 + $0x129] sm:$0xff] %vm2738, %v4474
  %4648 = vst.msk [vmem:[%s4621 + $0x139] sm:$0xff] %vm2738, %v4475
  %4649 = vst.msk [vmem:[%s4621 + $0x141] sm:$0xff] %vm2738, %v4476
  %4650 = vst.msk [vmem:[%s4621 + $0x151] sm:$0xff] %vm2738, %v4477
  %4651 = vst.msk [vmem:[%s4621 + $0x159] sm:$0xff] %vm2738, %v4478
  %4652 = vst.msk [vmem:[%s4621 + $0x169] sm:$0xff] %vm2738, %v4479
  %4653 = vst.msk [vmem:[%s4621 + $0x171] sm:$0xff] %vm2738, %v4480
  %4654 = vst.msk [vmem:[%s4621 + $0x1e1] sm:$0xff] %vm2738, %v4481
  %4655 = vst.msk [vmem:[%s4621 + $0x1e9] sm:$0xff] %vm2738, %v4482
  %4656 = vst.msk [vmem:[%s4621 + $0x1f9] sm:$0xff] %vm2738, %v4483
  %4657 = vst.msk [vmem:[%s4621 + $0x201] sm:$0xff] %vm2738, %v4484
  %4658 = vst.msk [vmem:[%s4621 + $0x211] sm:$0xff] %vm2738, %v4485
  %4659 = vst.msk [vmem:[%s4621 + $0x219] sm:$0xff] %vm2738, %v4486
  %4660 = vst.msk [vmem:[%s4621 + $0x229] sm:$0xff] %vm2738, %v4487
  %4661 = vst.msk [vmem:[%s4621 + $0x231] sm:$0xff] %vm2738, %v4488
  %4662 = vst.msk [vmem:[%s4621 + $0x241] sm:$0xff] %vm2738, %v4489
  %4663 = vst.msk [vmem:[%s4621 + $0x249] sm:$0xff] %vm2738, %v4490
  %4664 = vst.msk [vmem:[%s4621 + $0x259] sm:$0xff] %vm2738, %v4491
  %4665 = vst.msk [vmem:[%s4621 + $0x261] sm:$0xff] %vm2738, %v4492
  %4666 = vst.msk [vmem:[%s4621 + $0x271] sm:$0xff] %vm2738, %v4493
  %4667 = vst.msk [vmem:[%s4621 + $0x279] sm:$0xff] %vm2738, %v4494
  %4668 = vst.msk [vmem:[%s4621 + $0x289] sm:$0xff] %vm2738, %v4495
  %4669 = vst.msk [vmem:[%s4621 + $0x291] sm:$0xff] %vm2738, %v4496
  %4670 = vst.msk [vmem:[%s4621 + $0x2a1] sm:$0xff] %vm2738, %v4497
  %4671 = vst.msk [vmem:[%s4621 + $0x2a9] sm:$0xff] %vm2738, %v4498
  %4672 = vst.msk [vmem:[%s4621 + $0x2b9] sm:$0xff] %vm2738, %v4499
  %4673 = vst.msk [vmem:[%s4621 + $0x2c1] sm:$0xff] %vm2738, %v4500
  %4674 = vst.msk [vmem:[%s4621 + $0x2d1] sm:$0xff] %vm2738, %v4501
  %4675 = vst.msk [vmem:[%s4621 + $0x2d9] sm:$0xff] %vm2738, %v4502
  %4676 = vst.msk [vmem:[%s4621 + $0x2e9] sm:$0xff] %vm2738, %v4503
  %4677 = vst.msk [vmem:[%s4621 + $0x2f1] sm:$0xff] %vm2738, %v4504
  %4678 = vst.msk [vmem:[%s4621 + $0x301] sm:$0xff] %vm2738, %v4505
  %4679 = vst.msk [vmem:[%s4621 + $0x309] sm:$0xff] %vm2738, %v4506
  %4680 = vst.msk [vmem:[%s4621 + $0x319] sm:$0xff] %vm2738, %v4507
  %4681 = vst.msk [vmem:[%s4621 + $0x321] sm:$0xff] %vm2738, %v4508
  %4682 = vst.msk [vmem:[%s4621 + $0x331] sm:$0xff] %vm2738, %v4509
  %4683 = vst.msk [vmem:[%s4621 + $0x339] sm:$0xff] %vm2738, %v4510
  %4684 = vst.msk [vmem:[%s4621 + $0x349] sm:$0xff] %vm2738, %v4511
  %4685 = vst.msk [vmem:[%s4621 + $0x351] sm:$0xff] %vm2738, %v4512
  %v4686 = vld [vmem:[#allocation2] sm:$0xff]
  %v4687 = vld [vmem:[#allocation2 + $0x8] sm:$0xff]
  %v4688 = vld [vmem:[#allocation2 + $0x18] sm:$0xff]
  %v4689 = vld [vmem:[#allocation2 + $0x20] sm:$0xff]
  %v4690 = vld [vmem:[#allocation2 + $0x30] sm:$0xff]
  %v4691 = vld [vmem:[#allocation2 + $0x38] sm:$0xff]
  %v4692 = vld [vmem:[#allocation2 + $0x48] sm:$0xff]
  %v4693 = vld [vmem:[#allocation2 + $0x50] sm:$0xff]
  %v4694 = vld [vmem:[#allocation2 + $0x60] sm:$0xff]
  %v4695 = vld [vmem:[#allocation2 + $0x68] sm:$0xff]
  %v4696 = vld [vmem:[#allocation2 + $0x78] sm:$0xff]
  %v4697 = vld [vmem:[#allocation2 + $0x80] sm:$0xff]
  %v4698 = vld [vmem:[#allocation2 + $0x90] sm:$0xff]
  %v4699 = vld [vmem:[#allocation2 + $0x98] sm:$0xff]
  %v4700 = vld [vmem:[#allocation2 + $0xa8] sm:$0xff]
  %v4701 = vld [vmem:[#allocation2 + $0xb0] sm:$0xff]
  %v4702 = vld [vmem:[#allocation2 + $0xc0] sm:$0xff]
  %v4703 = vld [vmem:[#allocation2 + $0xc8] sm:$0xff]
  %v4704 = vld [vmem:[#allocation2 + $0xd8] sm:$0xff]
  %v4705 = vld [vmem:[#allocation2 + $0xe0] sm:$0xff]
  %v4706 = vld [vmem:[#allocation2 + $0xf0] sm:$0xff]
  %v4707 = vld [vmem:[#allocation2 + $0xf8] sm:$0xff]
  %v4708 = vld [vmem:[#allocation2 + $0x108] sm:$0xff]
  %v4709 = vld [vmem:[#allocation2 + $0x110] sm:$0xff]
  %v4710 = vld [vmem:[#allocation2 + $0x120] sm:$0xff]
  %v4711 = vld [vmem:[#allocation2 + $0x128] sm:$0xff]
  %v4712 = vld [vmem:[#allocation2 + $0x138] sm:$0xff]
  %v4713 = vld [vmem:[#allocation2 + $0x140] sm:$0xff]
  %v4714 = vld [vmem:[#allocation2 + $0x150] sm:$0xff]
  %v4715 = vld [vmem:[#allocation2 + $0x158] sm:$0xff]
  %v4716 = vld [vmem:[#allocation2 + $0x168] sm:$0xff]
  %v4717 = vld [vmem:[#allocation2 + $0x170] sm:$0xff]
  %v4718 = vld [vmem:[#allocation2 + $0x1e0] sm:$0xff]
  %v4719 = vld [vmem:[#allocation2 + $0x1e8] sm:$0xff]
  %v4720 = vld [vmem:[#allocation2 + $0x1f8] sm:$0xff]
  %v4721 = vld [vmem:[#allocation2 + $0x200] sm:$0xff]
  %v4722 = vld [vmem:[#allocation2 + $0x210] sm:$0xff]
  %v4723 = vld [vmem:[#allocation2 + $0x218] sm:$0xff]
  %v4724 = vld [vmem:[#allocation2 + $0x228] sm:$0xff]
  %v4725 = vld [vmem:[#allocation2 + $0x230] sm:$0xff]
  %v4726 = vld [vmem:[#allocation2 + $0x240] sm:$0xff]
  %v4727 = vld [vmem:[#allocation2 + $0x248] sm:$0xff]
  %v4728 = vld [vmem:[#allocation2 + $0x258] sm:$0xff]
  %v4729 = vld [vmem:[#allocation2 + $0x260] sm:$0xff]
  %v4730 = vld [vmem:[#allocation2 + $0x270] sm:$0xff]
  %v4731 = vld [vmem:[#allocation2 + $0x278] sm:$0xff]
  %v4732 = vld [vmem:[#allocation2 + $0x288] sm:$0xff]
  %v4733 = vld [vmem:[#allocation2 + $0x290] sm:$0xff]
  %v4734 = vld [vmem:[#allocation2 + $0x2a0] sm:$0xff]
  %v4735 = vld [vmem:[#allocation2 + $0x2a8] sm:$0xff]
  %v4736 = vld [vmem:[#allocation2 + $0x2b8] sm:$0xff]
  %v4737 = vld [vmem:[#allocation2 + $0x2c0] sm:$0xff]
  %v4738 = vld [vmem:[#allocation2 + $0x2d0] sm:$0xff]
  %v4739 = vld [vmem:[#allocation2 + $0x2d8] sm:$0xff]
  %v4740 = vld [vmem:[#allocation2 + $0x2e8] sm:$0xff]
  %v4741 = vld [vmem:[#allocation2 + $0x2f0] sm:$0xff]
  %v4742 = vld [vmem:[#allocation2 + $0x300] sm:$0xff]
  %v4743 = vld [vmem:[#allocation2 + $0x308] sm:$0xff]
  %v4744 = vld [vmem:[#allocation2 + $0x318] sm:$0xff]
  %v4745 = vld [vmem:[#allocation2 + $0x320] sm:$0xff]
  %v4746 = vld [vmem:[#allocation2 + $0x330] sm:$0xff]
  %v4747 = vld [vmem:[#allocation2 + $0x338] sm:$0xff]
  %v4748 = vld [vmem:[#allocation2 + $0x348] sm:$0xff]
  %v4749 = vld [vmem:[#allocation2 + $0x350] sm:$0xff]
  %v4750 = vld [vmem:[#allocation2 + $0x1] sm:$0xff]
  %v4751 = vld [vmem:[#allocation2 + $0x9] sm:$0xff]
  %v4752 = vld [vmem:[#allocation2 + $0x19] sm:$0xff]
  %v4753 = vld [vmem:[#allocation2 + $0x21] sm:$0xff]
  %v4754 = vld [vmem:[#allocation2 + $0x31] sm:$0xff]
  %v4755 = vld [vmem:[#allocation2 + $0x39] sm:$0xff]
  %v4756 = vld [vmem:[#allocation2 + $0x49] sm:$0xff]
  %v4757 = vld [vmem:[#allocation2 + $0x51] sm:$0xff]
  %v4758 = vld [vmem:[#allocation2 + $0x61] sm:$0xff]
  %v4759 = vld [vmem:[#allocation2 + $0x69] sm:$0xff]
  %v4760 = vld [vmem:[#allocation2 + $0x79] sm:$0xff]
  %v4761 = vld [vmem:[#allocation2 + $0x81] sm:$0xff]
  %v4762 = vld [vmem:[#allocation2 + $0x91] sm:$0xff]
  %v4763 = vld [vmem:[#allocation2 + $0x99] sm:$0xff]
  %v4764 = vld [vmem:[#allocation2 + $0xa9] sm:$0xff]
  %v4765 = vld [vmem:[#allocation2 + $0xb1] sm:$0xff]
  %v4766 = vld [vmem:[#allocation2 + $0xc1] sm:$0xff]
  %v4767 = vld [vmem:[#allocation2 + $0xc9] sm:$0xff]
  %v4768 = vld [vmem:[#allocation2 + $0xd9] sm:$0xff]
  %v4769 = vld [vmem:[#allocation2 + $0xe1] sm:$0xff]
  %v4770 = vld [vmem:[#allocation2 + $0xf1] sm:$0xff]
  %v4771 = vld [vmem:[#allocation2 + $0xf9] sm:$0xff]
  %v4772 = vld [vmem:[#allocation2 + $0x109] sm:$0xff]
  %v4773 = vld [vmem:[#allocation2 + $0x111] sm:$0xff]
  %v4774 = vld [vmem:[#allocation2 + $0x121] sm:$0xff]
  %v4775 = vld [vmem:[#allocation2 + $0x129] sm:$0xff]
  %v4776 = vld [vmem:[#allocation2 + $0x139] sm:$0xff]
  %v4777 = vld [vmem:[#allocation2 + $0x141] sm:$0xff]
  %v4778 = vld [vmem:[#allocation2 + $0x151] sm:$0xff]
  %v4779 = vld [vmem:[#allocation2 + $0x159] sm:$0xff]
  %v4780 = vld [vmem:[#allocation2 + $0x169] sm:$0xff]
  %v4781 = vld [vmem:[#allocation2 + $0x171] sm:$0xff]
  %v4782 = vld [vmem:[#allocation2 + $0x1e1] sm:$0xff]
  %v4783 = vld [vmem:[#allocation2 + $0x1e9] sm:$0xff]
  %v4784 = vld [vmem:[#allocation2 + $0x1f9] sm:$0xff]
  %v4785 = vld [vmem:[#allocation2 + $0x201] sm:$0xff]
  %v4786 = vld [vmem:[#allocation2 + $0x211] sm:$0xff]
  %v4787 = vld [vmem:[#allocation2 + $0x219] sm:$0xff]
  %v4788 = vld [vmem:[#allocation2 + $0x229] sm:$0xff]
  %v4789 = vld [vmem:[#allocation2 + $0x231] sm:$0xff]
  %v4790 = vld [vmem:[#allocation2 + $0x241] sm:$0xff]
  %v4791 = vld [vmem:[#allocation2 + $0x249] sm:$0xff]
  %v4792 = vld [vmem:[#allocation2 + $0x259] sm:$0xff]
  %v4793 = vld [vmem:[#allocation2 + $0x261] sm:$0xff]
  %v4794 = vld [vmem:[#allocation2 + $0x271] sm:$0xff]
  %v4795 = vld [vmem:[#allocation2 + $0x279] sm:$0xff]
  %v4796 = vld [vmem:[#allocation2 + $0x289] sm:$0xff]
  %v4797 = vld [vmem:[#allocation2 + $0x291] sm:$0xff]
  %v4798 = vld [vmem:[#allocation2 + $0x2a1] sm:$0xff]
  %v4799 = vld [vmem:[#allocation2 + $0x2a9] sm:$0xff]
  %v4800 = vld [vmem:[#allocation2 + $0x2b9] sm:$0xff]
  %v4801 = vld [vmem:[#allocation2 + $0x2c1] sm:$0xff]
  %v4802 = vld [vmem:[#allocation2 + $0x2d1] sm:$0xff]
  %v4803 = vld [vmem:[#allocation2 + $0x2d9] sm:$0xff]
  %v4804 = vld [vmem:[#allocation2 + $0x2e9] sm:$0xff]
  %v4805 = vld [vmem:[#allocation2 + $0x2f1] sm:$0xff]
  %v4806 = vld [vmem:[#allocation2 + $0x301] sm:$0xff]
  %v4807 = vld [vmem:[#allocation2 + $0x309] sm:$0xff]
  %v4808 = vld [vmem:[#allocation2 + $0x319] sm:$0xff]
  %v4809 = vld [vmem:[#allocation2 + $0x321] sm:$0xff]
  %v4810 = vld [vmem:[#allocation2 + $0x331] sm:$0xff]
  %v4811 = vld [vmem:[#allocation2 + $0x339] sm:$0xff]
  %v4812 = vld [vmem:[#allocation2 + $0x349] sm:$0xff]
  %v4813 = vld [vmem:[#allocation2 + $0x351] sm:$0xff]
  %v4814 = vld [vmem:[#allocation2 + $0x2] sm:$0xff]
  %v4815 = vld [vmem:[#allocation2 + $0xa] sm:$0xff]
  %v4816 = vld [vmem:[#allocation2 + $0x1a] sm:$0xff]
  %v4817 = vld [vmem:[#allocation2 + $0x22] sm:$0xff]
  %v4818 = vld [vmem:[#allocation2 + $0x32] sm:$0xff]
  %v4819 = vld [vmem:[#allocation2 + $0x3a] sm:$0xff]
  %v4820 = vld [vmem:[#allocation2 + $0x4a] sm:$0xff]
  %v4821 = vld [vmem:[#allocation2 + $0x52] sm:$0xff]
  %v4822 = vld [vmem:[#allocation2 + $0x62] sm:$0xff]
  %v4823 = vld [vmem:[#allocation2 + $0x6a] sm:$0xff]
  %v4824 = vld [vmem:[#allocation2 + $0x7a] sm:$0xff]
  %v4825 = vld [vmem:[#allocation2 + $0x82] sm:$0xff]
  %v4826 = vld [vmem:[#allocation2 + $0x92] sm:$0xff]
  %v4827 = vld [vmem:[#allocation2 + $0x9a] sm:$0xff]
  %v4828 = vld [vmem:[#allocation2 + $0xaa] sm:$0xff]
  %v4829 = vld [vmem:[#allocation2 + $0xb2] sm:$0xff]
  %v4830 = vld [vmem:[#allocation2 + $0xc2] sm:$0xff]
  %v4831 = vld [vmem:[#allocation2 + $0xca] sm:$0xff]
  %v4832 = vld [vmem:[#allocation2 + $0xda] sm:$0xff]
  %v4833 = vld [vmem:[#allocation2 + $0xe2] sm:$0xff]
  %v4834 = vld [vmem:[#allocation2 + $0xf2] sm:$0xff]
  %v4835 = vld [vmem:[#allocation2 + $0xfa] sm:$0xff]
  %v4836 = vld [vmem:[#allocation2 + $0x10a] sm:$0xff]
  %v4837 = vld [vmem:[#allocation2 + $0x112] sm:$0xff]
  %v4838 = vld [vmem:[#allocation2 + $0x122] sm:$0xff]
  %v4839 = vld [vmem:[#allocation2 + $0x12a] sm:$0xff]
  %v4840 = vld [vmem:[#allocation2 + $0x13a] sm:$0xff]
  %v4841 = vld [vmem:[#allocation2 + $0x142] sm:$0xff]
  %v4842 = vld [vmem:[#allocation2 + $0x152] sm:$0xff]
  %v4843 = vld [vmem:[#allocation2 + $0x15a] sm:$0xff]
  %v4844 = vld [vmem:[#allocation2 + $0x16a] sm:$0xff]
  %v4845 = vld [vmem:[#allocation2 + $0x172] sm:$0xff]
  %v4846 = vld [vmem:[#allocation2 + $0x1e2] sm:$0xff]
  %v4847 = vld [vmem:[#allocation2 + $0x1ea] sm:$0xff]
  %v4848 = vld [vmem:[#allocation2 + $0x1fa] sm:$0xff]
  %v4849 = vld [vmem:[#allocation2 + $0x202] sm:$0xff]
  %v4850 = vld [vmem:[#allocation2 + $0x212] sm:$0xff]
  %v4851 = vld [vmem:[#allocation2 + $0x21a] sm:$0xff]
  %v4852 = vld [vmem:[#allocation2 + $0x22a] sm:$0xff]
  %v4853 = vld [vmem:[#allocation2 + $0x232] sm:$0xff]
  %v4854 = vld [vmem:[#allocation2 + $0x242] sm:$0xff]
  %v4855 = vld [vmem:[#allocation2 + $0x24a] sm:$0xff]
  %v4856 = vld [vmem:[#allocation2 + $0x25a] sm:$0xff]
  %v4857 = vld [vmem:[#allocation2 + $0x262] sm:$0xff]
  %v4858 = vld [vmem:[#allocation2 + $0x272] sm:$0xff]
  %v4859 = vld [vmem:[#allocation2 + $0x27a] sm:$0xff]
  %v4860 = vld [vmem:[#allocation2 + $0x28a] sm:$0xff]
  %v4861 = vld [vmem:[#allocation2 + $0x292] sm:$0xff]
  %v4862 = vld [vmem:[#allocation2 + $0x2a2] sm:$0xff]
  %v4863 = vld [vmem:[#allocation2 + $0x2aa] sm:$0xff]
  %v4864 = vld [vmem:[#allocation2 + $0x2ba] sm:$0xff]
  %v4865 = vld [vmem:[#allocation2 + $0x2c2] sm:$0xff]
  %v4866 = vld [vmem:[#allocation2 + $0x2d2] sm:$0xff]
  %v4867 = vld [vmem:[#allocation2 + $0x2da] sm:$0xff]
  %v4868 = vld [vmem:[#allocation2 + $0x2ea] sm:$0xff]
  %v4869 = vld [vmem:[#allocation2 + $0x2f2] sm:$0xff]
  %v4870 = vld [vmem:[#allocation2 + $0x302] sm:$0xff]
  %v4871 = vld [vmem:[#allocation2 + $0x30a] sm:$0xff]
  %v4872 = vld [vmem:[#allocation2 + $0x31a] sm:$0xff]
  %v4873 = vld [vmem:[#allocation2 + $0x322] sm:$0xff]
  %v4874 = vld [vmem:[#allocation2 + $0x332] sm:$0xff]
  %v4875 = vld [vmem:[#allocation2 + $0x33a] sm:$0xff]
  %v4876 = vld [vmem:[#allocation2 + $0x34a] sm:$0xff]
  %v4877 = vld [vmem:[#allocation2 + $0x352] sm:$0xff]
  %v4878 = vld [vmem:[%s4621] sm:$0xff]
  %v4879 = vld [vmem:[%s4621 + $0x8] sm:$0xff]
  %v4880 = vld [vmem:[%s4621 + $0x18] sm:$0xff]
  %v4881 = vld [vmem:[%s4621 + $0x20] sm:$0xff]
  %v4882 = vld [vmem:[%s4621 + $0x30] sm:$0xff]
  %v4883 = vld [vmem:[%s4621 + $0x38] sm:$0xff]
  %v4884 = vld [vmem:[%s4621 + $0x48] sm:$0xff]
  %v4885 = vld [vmem:[%s4621 + $0x50] sm:$0xff]
  %v4886 = vld [vmem:[%s4621 + $0x60] sm:$0xff]
  %v4887 = vld [vmem:[%s4621 + $0x68] sm:$0xff]
  %v4888 = vld [vmem:[%s4621 + $0x78] sm:$0xff]
  %v4889 = vld [vmem:[%s4621 + $0x80] sm:$0xff]
  %v4890 = vld [vmem:[%s4621 + $0x90] sm:$0xff]
  %v4891 = vld [vmem:[%s4621 + $0x98] sm:$0xff]
  %v4892 = vld [vmem:[%s4621 + $0xa8] sm:$0xff]
  %v4893 = vld [vmem:[%s4621 + $0xb0] sm:$0xff]
  %v4894 = vld [vmem:[%s4621 + $0xc0] sm:$0xff]
  %v4895 = vld [vmem:[%s4621 + $0xc8] sm:$0xff]
  %v4896 = vld [vmem:[%s4621 + $0xd8] sm:$0xff]
  %v4897 = vld [vmem:[%s4621 + $0xe0] sm:$0xff]
  %v4898 = vld [vmem:[%s4621 + $0xf0] sm:$0xff]
  %v4899 = vld [vmem:[%s4621 + $0xf8] sm:$0xff]
  %v4900 = vld [vmem:[%s4621 + $0x108] sm:$0xff]
  %v4901 = vld [vmem:[%s4621 + $0x110] sm:$0xff]
  %v4902 = vld [vmem:[%s4621 + $0x120] sm:$0xff]
  %v4903 = vld [vmem:[%s4621 + $0x128] sm:$0xff]
  %v4904 = vld [vmem:[%s4621 + $0x138] sm:$0xff]
  %v4905 = vld [vmem:[%s4621 + $0x140] sm:$0xff]
  %v4906 = vld [vmem:[%s4621 + $0x150] sm:$0xff]
  %v4907 = vld [vmem:[%s4621 + $0x158] sm:$0xff]
  %v4908 = vld [vmem:[%s4621 + $0x168] sm:$0xff]
  %v4909 = vld [vmem:[%s4621 + $0x170] sm:$0xff]
  %v4910 = vld [vmem:[%s4621 + $0x1e0] sm:$0xff]
  %v4911 = vld [vmem:[%s4621 + $0x1e8] sm:$0xff]
  %v4912 = vld [vmem:[%s4621 + $0x1f8] sm:$0xff]
  %v4913 = vld [vmem:[%s4621 + $0x200] sm:$0xff]
  %v4914 = vld [vmem:[%s4621 + $0x210] sm:$0xff]
  %v4915 = vld [vmem:[%s4621 + $0x218] sm:$0xff]
  %v4916 = vld [vmem:[%s4621 + $0x228] sm:$0xff]
  %v4917 = vld [vmem:[%s4621 + $0x230] sm:$0xff]
  %v4918 = vld [vmem:[%s4621 + $0x240] sm:$0xff]
  %v4919 = vld [vmem:[%s4621 + $0x248] sm:$0xff]
  %v4920 = vld [vmem:[%s4621 + $0x258] sm:$0xff]
  %v4921 = vld [vmem:[%s4621 + $0x260] sm:$0xff]
  %v4922 = vld [vmem:[%s4621 + $0x270] sm:$0xff]
  %v4923 = vld [vmem:[%s4621 + $0x278] sm:$0xff]
  %v4924 = vld [vmem:[%s4621 + $0x288] sm:$0xff]
  %v4925 = vld [vmem:[%s4621 + $0x290] sm:$0xff]
  %v4926 = vld [vmem:[%s4621 + $0x2a0] sm:$0xff]
  %v4927 = vld [vmem:[%s4621 + $0x2a8] sm:$0xff]
  %v4928 = vld [vmem:[%s4621 + $0x2b8] sm:$0xff]
  %v4929 = vld [vmem:[%s4621 + $0x2c0] sm:$0xff]
  %v4930 = vld [vmem:[%s4621 + $0x2d0] sm:$0xff]
  %v4931 = vld [vmem:[%s4621 + $0x2d8] sm:$0xff]
  %v4932 = vld [vmem:[%s4621 + $0x2e8] sm:$0xff]
  %v4933 = vld [vmem:[%s4621 + $0x2f0] sm:$0xff]
  %v4934 = vld [vmem:[%s4621 + $0x300] sm:$0xff]
  %v4935 = vld [vmem:[%s4621 + $0x308] sm:$0xff]
  %v4936 = vld [vmem:[%s4621 + $0x318] sm:$0xff]
  %v4937 = vld [vmem:[%s4621 + $0x320] sm:$0xff]
  %v4938 = vld [vmem:[%s4621 + $0x330] sm:$0xff]
  %v4939 = vld [vmem:[%s4621 + $0x338] sm:$0xff]
  %v4940 = vld [vmem:[%s4621 + $0x348] sm:$0xff]
  %v4941 = vld [vmem:[%s4621 + $0x350] sm:$0xff]
  %v4942 = vld [vmem:[%s4621 + $0x1] sm:$0xff]
  %v4943 = vld [vmem:[%s4621 + $0x9] sm:$0xff]
  %v4944 = vld [vmem:[%s4621 + $0x19] sm:$0xff]
  %v4945 = vld [vmem:[%s4621 + $0x21] sm:$0xff]
  %v4946 = vld [vmem:[%s4621 + $0x31] sm:$0xff]
  %v4947 = vld [vmem:[%s4621 + $0x39] sm:$0xff]
  %v4948 = vld [vmem:[%s4621 + $0x49] sm:$0xff]
  %v4949 = vld [vmem:[%s4621 + $0x51] sm:$0xff]
  %v4950 = vld [vmem:[%s4621 + $0x61] sm:$0xff]
  %v4951 = vld [vmem:[%s4621 + $0x69] sm:$0xff]
  %v4952 = vld [vmem:[%s4621 + $0x79] sm:$0xff]
  %v4953 = vld [vmem:[%s4621 + $0x81] sm:$0xff]
  %v4954 = vld [vmem:[%s4621 + $0x91] sm:$0xff]
  %v4955 = vld [vmem:[%s4621 + $0x99] sm:$0xff]
  %v4956 = vld [vmem:[%s4621 + $0xa9] sm:$0xff]
  %v4957 = vld [vmem:[%s4621 + $0xb1] sm:$0xff]
  %v4958 = vld [vmem:[%s4621 + $0xc1] sm:$0xff]
  %v4959 = vld [vmem:[%s4621 + $0xc9] sm:$0xff]
  %v4960 = vld [vmem:[%s4621 + $0xd9] sm:$0xff]
  %v4961 = vld [vmem:[%s4621 + $0xe1] sm:$0xff]
  %v4962 = vld [vmem:[%s4621 + $0xf1] sm:$0xff]
  %v4963 = vld [vmem:[%s4621 + $0xf9] sm:$0xff]
  %v4964 = vld [vmem:[%s4621 + $0x109] sm:$0xff]
  %v4965 = vld [vmem:[%s4621 + $0x111] sm:$0xff]
  %v4966 = vld [vmem:[%s4621 + $0x121] sm:$0xff]
  %v4967 = vld [vmem:[%s4621 + $0x129] sm:$0xff]
  %v4968 = vld [vmem:[%s4621 + $0x139] sm:$0xff]
  %v4969 = vld [vmem:[%s4621 + $0x141] sm:$0xff]
  %v4970 = vld [vmem:[%s4621 + $0x151] sm:$0xff]
  %v4971 = vld [vmem:[%s4621 + $0x159] sm:$0xff]
  %v4972 = vld [vmem:[%s4621 + $0x169] sm:$0xff]
  %v4973 = vld [vmem:[%s4621 + $0x171] sm:$0xff]
  %v4974 = vld [vmem:[%s4621 + $0x1e1] sm:$0xff]
  %v4975 = vld [vmem:[%s4621 + $0x1e9] sm:$0xff]
  %v4976 = vld [vmem:[%s4621 + $0x1f9] sm:$0xff]
  %v4977 = vld [vmem:[%s4621 + $0x201] sm:$0xff]
  %v4978 = vld [vmem:[%s4621 + $0x211] sm:$0xff]
  %v4979 = vld [vmem:[%s4621 + $0x219] sm:$0xff]
  %v4980 = vld [vmem:[%s4621 + $0x229] sm:$0xff]
  %v4981 = vld [vmem:[%s4621 + $0x231] sm:$0xff]
  %v4982 = vld [vmem:[%s4621 + $0x241] sm:$0xff]
  %v4983 = vld [vmem:[%s4621 + $0x249] sm:$0xff]
  %v4984 = vld [vmem:[%s4621 + $0x259] sm:$0xff]
  %v4985 = vld [vmem:[%s4621 + $0x261] sm:$0xff]
  %v4986 = vld [vmem:[%s4621 + $0x271] sm:$0xff]
  %v4987 = vld [vmem:[%s4621 + $0x279] sm:$0xff]
  %v4988 = vld [vmem:[%s4621 + $0x289] sm:$0xff]
  %v4989 = vld [vmem:[%s4621 + $0x291] sm:$0xff]
  %v4990 = vld [vmem:[%s4621 + $0x2a1] sm:$0xff]
  %v4991 = vld [vmem:[%s4621 + $0x2a9] sm:$0xff]
  %v4992 = vld [vmem:[%s4621 + $0x2b9] sm:$0xff]
  %v4993 = vld [vmem:[%s4621 + $0x2c1] sm:$0xff]
  %v4994 = vld [vmem:[%s4621 + $0x2d1] sm:$0xff]
  %v4995 = vld [vmem:[%s4621 + $0x2d9] sm:$0xff]
  %v4996 = vld [vmem:[%s4621 + $0x2e9] sm:$0xff]
  %v4997 = vld [vmem:[%s4621 + $0x2f1] sm:$0xff]
  %v4998 = vld [vmem:[%s4621 + $0x301] sm:$0xff]
  %v4999 = vld [vmem:[%s4621 + $0x309] sm:$0xff]
  %v5000 = vld [vmem:[%s4621 + $0x319] sm:$0xff]
  %v5001 = vld [vmem:[%s4621 + $0x321] sm:$0xff]
  %v5002 = vld [vmem:[%s4621 + $0x331] sm:$0xff]
  %v5003 = vld [vmem:[%s4621 + $0x339] sm:$0xff]
  %v5004 = vld [vmem:[%s4621 + $0x349] sm:$0xff]
  %v5005 = vld [vmem:[%s4621 + $0x351] sm:$0xff]
  %v5006 = vld [vmem:[%s4621 + $0x2] sm:$0xff]
  %v5007 = vld [vmem:[%s4621 + $0xa] sm:$0xff]
  %v5008 = vld [vmem:[%s4621 + $0x1a] sm:$0xff]
  %v5009 = vld [vmem:[%s4621 + $0x22] sm:$0xff]
  %v5010 = vld [vmem:[%s4621 + $0x32] sm:$0xff]
  %v5011 = vld [vmem:[%s4621 + $0x3a] sm:$0xff]
  %v5012 = vld [vmem:[%s4621 + $0x4a] sm:$0xff]
  %v5013 = vld [vmem:[%s4621 + $0x52] sm:$0xff]
  %v5014 = vld [vmem:[%s4621 + $0x62] sm:$0xff]
  %v5015 = vld [vmem:[%s4621 + $0x6a] sm:$0xff]
  %v5016 = vld [vmem:[%s4621 + $0x7a] sm:$0xff]
  %v5017 = vld [vmem:[%s4621 + $0x82] sm:$0xff]
  %v5018 = vld [vmem:[%s4621 + $0x92] sm:$0xff]
  %v5019 = vld [vmem:[%s4621 + $0x9a] sm:$0xff]
  %v5020 = vld [vmem:[%s4621 + $0xaa] sm:$0xff]
  %v5021 = vld [vmem:[%s4621 + $0xb2] sm:$0xff]
  %v5022 = vld [vmem:[%s4621 + $0xc2] sm:$0xff]
  %v5023 = vld [vmem:[%s4621 + $0xca] sm:$0xff]
  %v5024 = vld [vmem:[%s4621 + $0xda] sm:$0xff]
  %v5025 = vld [vmem:[%s4621 + $0xe2] sm:$0xff]
  %v5026 = vld [vmem:[%s4621 + $0xf2] sm:$0xff]
  %v5027 = vld [vmem:[%s4621 + $0xfa] sm:$0xff]
  %v5028 = vld [vmem:[%s4621 + $0x10a] sm:$0xff]
  %v5029 = vld [vmem:[%s4621 + $0x112] sm:$0xff]
  %v5030 = vld [vmem:[%s4621 + $0x122] sm:$0xff]
  %v5031 = vld [vmem:[%s4621 + $0x12a] sm:$0xff]
  %v5032 = vld [vmem:[%s4621 + $0x13a] sm:$0xff]
  %v5033 = vld [vmem:[%s4621 + $0x142] sm:$0xff]
  %v5034 = vld [vmem:[%s4621 + $0x152] sm:$0xff]
  %v5035 = vld [vmem:[%s4621 + $0x15a] sm:$0xff]
  %v5036 = vld [vmem:[%s4621 + $0x16a] sm:$0xff]
  %v5037 = vld [vmem:[%s4621 + $0x172] sm:$0xff]
  %v5038 = vld [vmem:[%s4621 + $0x1e2] sm:$0xff]
  %v5039 = vld [vmem:[%s4621 + $0x1ea] sm:$0xff]
  %v5040 = vld [vmem:[%s4621 + $0x1fa] sm:$0xff]
  %v5041 = vld [vmem:[%s4621 + $0x202] sm:$0xff]
  %v5042 = vld [vmem:[%s4621 + $0x212] sm:$0xff]
  %v5043 = vld [vmem:[%s4621 + $0x21a] sm:$0xff]
  %v5044 = vld [vmem:[%s4621 + $0x22a] sm:$0xff]
  %v5045 = vld [vmem:[%s4621 + $0x232] sm:$0xff]
  %v5046 = vld [vmem:[%s4621 + $0x242] sm:$0xff]
  %v5047 = vld [vmem:[%s4621 + $0x24a] sm:$0xff]
  %v5048 = vld [vmem:[%s4621 + $0x25a] sm:$0xff]
  %v5049 = vld [vmem:[%s4621 + $0x262] sm:$0xff]
  %v5050 = vld [vmem:[%s4621 + $0x272] sm:$0xff]
  %v5051 = vld [vmem:[%s4621 + $0x27a] sm:$0xff]
  %v5052 = vld [vmem:[%s4621 + $0x28a] sm:$0xff]
  %v5053 = vld [vmem:[%s4621 + $0x292] sm:$0xff]
  %v5054 = vld [vmem:[%s4621 + $0x2a2] sm:$0xff]
  %v5055 = vld [vmem:[%s4621 + $0x2aa] sm:$0xff]
  %v5056 = vld [vmem:[%s4621 + $0x2ba] sm:$0xff]
  %v5057 = vld [vmem:[%s4621 + $0x2c2] sm:$0xff]
  %v5058 = vld [vmem:[%s4621 + $0x2d2] sm:$0xff]
  %v5059 = vld [vmem:[%s4621 + $0x2da] sm:$0xff]
  %v5060 = vld [vmem:[%s4621 + $0x2ea] sm:$0xff]
  %v5061 = vld [vmem:[%s4621 + $0x2f2] sm:$0xff]
  %v5062 = vld [vmem:[%s4621 + $0x302] sm:$0xff]
  %v5063 = vld [vmem:[%s4621 + $0x30a] sm:$0xff]
  %v5064 = vld [vmem:[%s4621 + $0x31a] sm:$0xff]
  %v5065 = vld [vmem:[%s4621 + $0x322] sm:$0xff]
  %v5066 = vld [vmem:[%s4621 + $0x332] sm:$0xff]
  %v5067 = vld [vmem:[%s4621 + $0x33a] sm:$0xff]
  %v5068 = vld [vmem:[%s4621 + $0x34a] sm:$0xff]
  %v5069 = vld [vmem:[%s4621 + $0x352] sm:$0xff]
  %s5070 = scalar_lea.vmem [#allocation2], 48
  %v5071 = vld [vmem:[%s5070] sm:$0xff]
  %v5072 = vld [vmem:[%s5070 + $0x8] sm:$0xff]
  %v5073 = vld [vmem:[%s5070 + $0x18] sm:$0xff]
  %v5074 = vld [vmem:[%s5070 + $0x20] sm:$0xff]
  %v5075 = vld [vmem:[%s5070 + $0x30] sm:$0xff]
  %v5076 = vld [vmem:[%s5070 + $0x38] sm:$0xff]
  %v5077 = vld [vmem:[%s5070 + $0x48] sm:$0xff]
  %v5078 = vld [vmem:[%s5070 + $0x50] sm:$0xff]
  %v5079 = vld [vmem:[%s5070 + $0x60] sm:$0xff]
  %v5080 = vld [vmem:[%s5070 + $0x68] sm:$0xff]
  %v5081 = vld [vmem:[%s5070 + $0x78] sm:$0xff]
  %v5082 = vld [vmem:[%s5070 + $0x80] sm:$0xff]
  %v5083 = vld [vmem:[%s5070 + $0x90] sm:$0xff]
  %v5084 = vld [vmem:[%s5070 + $0x98] sm:$0xff]
  %v5085 = vld [vmem:[%s5070 + $0xa8] sm:$0xff]
  %v5086 = vld [vmem:[%s5070 + $0xb0] sm:$0xff]
  %v5087 = vld [vmem:[%s5070 + $0xc0] sm:$0xff]
  %v5088 = vld [vmem:[%s5070 + $0xc8] sm:$0xff]
  %v5089 = vld [vmem:[%s5070 + $0xd8] sm:$0xff]
  %v5090 = vld [vmem:[%s5070 + $0xe0] sm:$0xff]
  %v5091 = vld [vmem:[%s5070 + $0xf0] sm:$0xff]
  %v5092 = vld [vmem:[%s5070 + $0xf8] sm:$0xff]
  %v5093 = vld [vmem:[%s5070 + $0x108] sm:$0xff]
  %v5094 = vld [vmem:[%s5070 + $0x110] sm:$0xff]
  %v5095 = vld [vmem:[%s5070 + $0x120] sm:$0xff]
  %v5096 = vld [vmem:[%s5070 + $0x128] sm:$0xff]
  %v5097 = vld [vmem:[%s5070 + $0x138] sm:$0xff]
  %v5098 = vld [vmem:[%s5070 + $0x140] sm:$0xff]
  %v5099 = vld [vmem:[%s5070 + $0x150] sm:$0xff]
  %v5100 = vld [vmem:[%s5070 + $0x158] sm:$0xff]
  %v5101 = vld [vmem:[%s5070 + $0x168] sm:$0xff]
  %v5102 = vld [vmem:[%s5070 + $0x170] sm:$0xff]
  %v5103 = vld [vmem:[%s5070 + $0x1e0] sm:$0xff]
  %v5104 = vld [vmem:[%s5070 + $0x1e8] sm:$0xff]
  %v5105 = vld [vmem:[%s5070 + $0x1f8] sm:$0xff]
  %v5106 = vld [vmem:[%s5070 + $0x200] sm:$0xff]
  %v5107 = vld [vmem:[%s5070 + $0x210] sm:$0xff]
  %v5108 = vld [vmem:[%s5070 + $0x218] sm:$0xff]
  %v5109 = vld [vmem:[%s5070 + $0x228] sm:$0xff]
  %v5110 = vld [vmem:[%s5070 + $0x230] sm:$0xff]
  %v5111 = vld [vmem:[%s5070 + $0x240] sm:$0xff]
  %v5112 = vld [vmem:[%s5070 + $0x248] sm:$0xff]
  %v5113 = vld [vmem:[%s5070 + $0x258] sm:$0xff]
  %v5114 = vld [vmem:[%s5070 + $0x260] sm:$0xff]
  %v5115 = vld [vmem:[%s5070 + $0x270] sm:$0xff]
  %v5116 = vld [vmem:[%s5070 + $0x278] sm:$0xff]
  %v5117 = vld [vmem:[%s5070 + $0x288] sm:$0xff]
  %v5118 = vld [vmem:[%s5070 + $0x290] sm:$0xff]
  %v5119 = vld [vmem:[%s5070 + $0x2a0] sm:$0xff]
  %v5120 = vld [vmem:[%s5070 + $0x2a8] sm:$0xff]
  %v5121 = vld [vmem:[%s5070 + $0x2b8] sm:$0xff]
  %v5122 = vld [vmem:[%s5070 + $0x2c0] sm:$0xff]
  %v5123 = vld [vmem:[%s5070 + $0x2d0] sm:$0xff]
  %v5124 = vld [vmem:[%s5070 + $0x2d8] sm:$0xff]
  %v5125 = vld [vmem:[%s5070 + $0x2e8] sm:$0xff]
  %v5126 = vld [vmem:[%s5070 + $0x2f0] sm:$0xff]
  %v5127 = vld [vmem:[%s5070 + $0x300] sm:$0xff]
  %v5128 = vld [vmem:[%s5070 + $0x308] sm:$0xff]
  %v5129 = vld [vmem:[%s5070 + $0x318] sm:$0xff]
  %v5130 = vld [vmem:[%s5070 + $0x320] sm:$0xff]
  %v5131 = vld [vmem:[%s5070 + $0x330] sm:$0xff]
  %v5132 = vld [vmem:[%s5070 + $0x338] sm:$0xff]
  %v5133 = vld [vmem:[%s5070 + $0x348] sm:$0xff]
  %v5134 = vld [vmem:[%s5070 + $0x350] sm:$0xff]
  %v5135 = vld [vmem:[%s5070 + $0x1] sm:$0xff]
  %v5136 = vld [vmem:[%s5070 + $0x9] sm:$0xff]
  %v5137 = vld [vmem:[%s5070 + $0x19] sm:$0xff]
  %v5138 = vld [vmem:[%s5070 + $0x21] sm:$0xff]
  %v5139 = vld [vmem:[%s5070 + $0x31] sm:$0xff]
  %v5140 = vld [vmem:[%s5070 + $0x39] sm:$0xff]
  %v5141 = vld [vmem:[%s5070 + $0x49] sm:$0xff]
  %v5142 = vld [vmem:[%s5070 + $0x51] sm:$0xff]
  %v5143 = vld [vmem:[%s5070 + $0x61] sm:$0xff]
  %v5144 = vld [vmem:[%s5070 + $0x69] sm:$0xff]
  %v5145 = vld [vmem:[%s5070 + $0x79] sm:$0xff]
  %v5146 = vld [vmem:[%s5070 + $0x81] sm:$0xff]
  %v5147 = vld [vmem:[%s5070 + $0x91] sm:$0xff]
  %v5148 = vld [vmem:[%s5070 + $0x99] sm:$0xff]
  %v5149 = vld [vmem:[%s5070 + $0xa9] sm:$0xff]
  %v5150 = vld [vmem:[%s5070 + $0xb1] sm:$0xff]
  %v5151 = vld [vmem:[%s5070 + $0xc1] sm:$0xff]
  %v5152 = vld [vmem:[%s5070 + $0xc9] sm:$0xff]
  %v5153 = vld [vmem:[%s5070 + $0xd9] sm:$0xff]
  %v5154 = vld [vmem:[%s5070 + $0xe1] sm:$0xff]
  %v5155 = vld [vmem:[%s5070 + $0xf1] sm:$0xff]
  %v5156 = vld [vmem:[%s5070 + $0xf9] sm:$0xff]
  %v5157 = vld [vmem:[%s5070 + $0x109] sm:$0xff]
  %v5158 = vld [vmem:[%s5070 + $0x111] sm:$0xff]
  %v5159 = vld [vmem:[%s5070 + $0x121] sm:$0xff]
  %v5160 = vld [vmem:[%s5070 + $0x129] sm:$0xff]
  %v5161 = vld [vmem:[%s5070 + $0x139] sm:$0xff]
  %v5162 = vld [vmem:[%s5070 + $0x141] sm:$0xff]
  %v5163 = vld [vmem:[%s5070 + $0x151] sm:$0xff]
  %v5164 = vld [vmem:[%s5070 + $0x159] sm:$0xff]
  %v5165 = vld [vmem:[%s5070 + $0x169] sm:$0xff]
  %v5166 = vld [vmem:[%s5070 + $0x171] sm:$0xff]
  %v5167 = vld [vmem:[%s5070 + $0x1e1] sm:$0xff]
  %v5168 = vld [vmem:[%s5070 + $0x1e9] sm:$0xff]
  %v5169 = vld [vmem:[%s5070 + $0x1f9] sm:$0xff]
  %v5170 = vld [vmem:[%s5070 + $0x201] sm:$0xff]
  %v5171 = vld [vmem:[%s5070 + $0x211] sm:$0xff]
  %v5172 = vld [vmem:[%s5070 + $0x219] sm:$0xff]
  %v5173 = vld [vmem:[%s5070 + $0x229] sm:$0xff]
  %v5174 = vld [vmem:[%s5070 + $0x231] sm:$0xff]
  %v5175 = vld [vmem:[%s5070 + $0x241] sm:$0xff]
  %v5176 = vld [vmem:[%s5070 + $0x249] sm:$0xff]
  %v5177 = vld [vmem:[%s5070 + $0x259] sm:$0xff]
  %v5178 = vld [vmem:[%s5070 + $0x261] sm:$0xff]
  %v5179 = vld [vmem:[%s5070 + $0x271] sm:$0xff]
  %v5180 = vld [vmem:[%s5070 + $0x279] sm:$0xff]
  %v5181 = vld [vmem:[%s5070 + $0x289] sm:$0xff]
  %v5182 = vld [vmem:[%s5070 + $0x291] sm:$0xff]
  %v5183 = vld [vmem:[%s5070 + $0x2a1] sm:$0xff]
  %v5184 = vld [vmem:[%s5070 + $0x2a9] sm:$0xff]
  %v5185 = vld [vmem:[%s5070 + $0x2b9] sm:$0xff]
  %v5186 = vld [vmem:[%s5070 + $0x2c1] sm:$0xff]
  %v5187 = vld [vmem:[%s5070 + $0x2d1] sm:$0xff]
  %v5188 = vld [vmem:[%s5070 + $0x2d9] sm:$0xff]
  %v5189 = vld [vmem:[%s5070 + $0x2e9] sm:$0xff]
  %v5190 = vld [vmem:[%s5070 + $0x2f1] sm:$0xff]
  %v5191 = vld [vmem:[%s5070 + $0x301] sm:$0xff]
  %v5192 = vld [vmem:[%s5070 + $0x309] sm:$0xff]
  %v5193 = vld [vmem:[%s5070 + $0x319] sm:$0xff]
  %v5194 = vld [vmem:[%s5070 + $0x321] sm:$0xff]
  %v5195 = vld [vmem:[%s5070 + $0x331] sm:$0xff]
  %v5196 = vld [vmem:[%s5070 + $0x339] sm:$0xff]
  %v5197 = vld [vmem:[%s5070 + $0x349] sm:$0xff]
  %v5198 = vld [vmem:[%s5070 + $0x351] sm:$0xff]
  %v5199 = vld [vmem:[%s5070 + $0x2] sm:$0xff]
  %v5200 = vld [vmem:[%s5070 + $0xa] sm:$0xff]
  %v5201 = vld [vmem:[%s5070 + $0x1a] sm:$0xff]
  %v5202 = vld [vmem:[%s5070 + $0x22] sm:$0xff]
  %v5203 = vld [vmem:[%s5070 + $0x32] sm:$0xff]
  %v5204 = vld [vmem:[%s5070 + $0x3a] sm:$0xff]
  %v5205 = vld [vmem:[%s5070 + $0x4a] sm:$0xff]
  %v5206 = vld [vmem:[%s5070 + $0x52] sm:$0xff]
  %v5207 = vld [vmem:[%s5070 + $0x62] sm:$0xff]
  %v5208 = vld [vmem:[%s5070 + $0x6a] sm:$0xff]
  %v5209 = vld [vmem:[%s5070 + $0x7a] sm:$0xff]
  %v5210 = vld [vmem:[%s5070 + $0x82] sm:$0xff]
  %v5211 = vld [vmem:[%s5070 + $0x92] sm:$0xff]
  %v5212 = vld [vmem:[%s5070 + $0x9a] sm:$0xff]
  %v5213 = vld [vmem:[%s5070 + $0xaa] sm:$0xff]
  %v5214 = vld [vmem:[%s5070 + $0xb2] sm:$0xff]
  %v5215 = vld [vmem:[%s5070 + $0xc2] sm:$0xff]
  %v5216 = vld [vmem:[%s5070 + $0xca] sm:$0xff]
  %v5217 = vld [vmem:[%s5070 + $0xda] sm:$0xff]
  %v5218 = vld [vmem:[%s5070 + $0xe2] sm:$0xff]
  %v5219 = vld [vmem:[%s5070 + $0xf2] sm:$0xff]
  %v5220 = vld [vmem:[%s5070 + $0xfa] sm:$0xff]
  %v5221 = vld [vmem:[%s5070 + $0x10a] sm:$0xff]
  %v5222 = vld [vmem:[%s5070 + $0x112] sm:$0xff]
  %v5223 = vld [vmem:[%s5070 + $0x122] sm:$0xff]
  %v5224 = vld [vmem:[%s5070 + $0x12a] sm:$0xff]
  %v5225 = vld [vmem:[%s5070 + $0x13a] sm:$0xff]
  %v5226 = vld [vmem:[%s5070 + $0x142] sm:$0xff]
  %v5227 = vld [vmem:[%s5070 + $0x152] sm:$0xff]
  %v5228 = vld [vmem:[%s5070 + $0x15a] sm:$0xff]
  %v5229 = vld [vmem:[%s5070 + $0x16a] sm:$0xff]
  %v5230 = vld [vmem:[%s5070 + $0x172] sm:$0xff]
  %v5231 = vld [vmem:[%s5070 + $0x1e2] sm:$0xff]
  %v5232 = vld [vmem:[%s5070 + $0x1ea] sm:$0xff]
  %v5233 = vld [vmem:[%s5070 + $0x1fa] sm:$0xff]
  %v5234 = vld [vmem:[%s5070 + $0x202] sm:$0xff]
  %v5235 = vld [vmem:[%s5070 + $0x212] sm:$0xff]
  %v5236 = vld [vmem:[%s5070 + $0x21a] sm:$0xff]
  %v5237 = vld [vmem:[%s5070 + $0x22a] sm:$0xff]
  %v5238 = vld [vmem:[%s5070 + $0x232] sm:$0xff]
  %v5239 = vld [vmem:[%s5070 + $0x242] sm:$0xff]
  %v5240 = vld [vmem:[%s5070 + $0x24a] sm:$0xff]
  %v5241 = vld [vmem:[%s5070 + $0x25a] sm:$0xff]
  %v5242 = vld [vmem:[%s5070 + $0x262] sm:$0xff]
  %v5243 = vld [vmem:[%s5070 + $0x272] sm:$0xff]
  %v5244 = vld [vmem:[%s5070 + $0x27a] sm:$0xff]
  %v5245 = vld [vmem:[%s5070 + $0x28a] sm:$0xff]
  %v5246 = vld [vmem:[%s5070 + $0x292] sm:$0xff]
  %v5247 = vld [vmem:[%s5070 + $0x2a2] sm:$0xff]
  %v5248 = vld [vmem:[%s5070 + $0x2aa] sm:$0xff]
  %v5249 = vld [vmem:[%s5070 + $0x2ba] sm:$0xff]
  %v5250 = vld [vmem:[%s5070 + $0x2c2] sm:$0xff]
  %v5251 = vld [vmem:[%s5070 + $0x2d2] sm:$0xff]
  %v5252 = vld [vmem:[%s5070 + $0x2da] sm:$0xff]
  %v5253 = vld [vmem:[%s5070 + $0x2ea] sm:$0xff]
  %v5254 = vld [vmem:[%s5070 + $0x2f2] sm:$0xff]
  %v5255 = vld [vmem:[%s5070 + $0x302] sm:$0xff]
  %v5256 = vld [vmem:[%s5070 + $0x30a] sm:$0xff]
  %v5257 = vld [vmem:[%s5070 + $0x31a] sm:$0xff]
  %v5258 = vld [vmem:[%s5070 + $0x322] sm:$0xff]
  %v5259 = vld [vmem:[%s5070 + $0x332] sm:$0xff]
  %v5260 = vld [vmem:[%s5070 + $0x33a] sm:$0xff]
  %v5261 = vld [vmem:[%s5070 + $0x34a] sm:$0xff]
  %v5262 = vld [vmem:[%s5070 + $0x352] sm:$0xff]
  %5327 = vrot.lane.b32.xlu0 %v4750, 8
  %v5328 = vpop.permute.xlu0 %5327
  %5329 = vrot.lane.b32.xlu0 %v4751, 8
  %v5330 = vpop.permute.xlu0 %5329
  %5331 = vrot.lane.b32.xlu0 %v4752, 8
  %v5332 = vpop.permute.xlu0 %5331
  %5333 = vrot.lane.b32.xlu0 %v4753, 8
  %v5334 = vpop.permute.xlu0 %5333
  %5335 = vrot.lane.b32.xlu0 %v4754, 8
  %v5336 = vpop.permute.xlu0 %5335
  %5337 = vrot.lane.b32.xlu0 %v4755, 8
  %v5338 = vpop.permute.xlu0 %5337
  %5339 = vrot.lane.b32.xlu0 %v4756, 8
  %v5340 = vpop.permute.xlu0 %5339
  %5341 = vrot.lane.b32.xlu0 %v4757, 8
  %v5342 = vpop.permute.xlu0 %5341
  %5343 = vrot.lane.b32.xlu0 %v4758, 8
  %v5344 = vpop.permute.xlu0 %5343
  %5345 = vrot.lane.b32.xlu0 %v4759, 8
  %v5346 = vpop.permute.xlu0 %5345
  %5347 = vrot.lane.b32.xlu0 %v4760, 8
  %v5348 = vpop.permute.xlu0 %5347
  %5349 = vrot.lane.b32.xlu0 %v4761, 8
  %v5350 = vpop.permute.xlu0 %5349
  %5351 = vrot.lane.b32.xlu0 %v4762, 8
  %v5352 = vpop.permute.xlu0 %5351
  %5353 = vrot.lane.b32.xlu0 %v4763, 8
  %v5354 = vpop.permute.xlu0 %5353
  %5355 = vrot.lane.b32.xlu0 %v4764, 8
  %v5356 = vpop.permute.xlu0 %5355
  %5357 = vrot.lane.b32.xlu0 %v4765, 8
  %v5358 = vpop.permute.xlu0 %5357
  %5359 = vrot.lane.b32.xlu0 %v4766, 8
  %v5360 = vpop.permute.xlu0 %5359
  %5361 = vrot.lane.b32.xlu0 %v4767, 8
  %v5362 = vpop.permute.xlu0 %5361
  %5363 = vrot.lane.b32.xlu0 %v4768, 8
  %v5364 = vpop.permute.xlu0 %5363
  %5365 = vrot.lane.b32.xlu0 %v4769, 8
  %v5366 = vpop.permute.xlu0 %5365
  %5367 = vrot.lane.b32.xlu0 %v4770, 8
  %v5368 = vpop.permute.xlu0 %5367
  %5369 = vrot.lane.b32.xlu0 %v4771, 8
  %v5370 = vpop.permute.xlu0 %5369
  %5371 = vrot.lane.b32.xlu0 %v4772, 8
  %v5372 = vpop.permute.xlu0 %5371
  %5373 = vrot.lane.b32.xlu0 %v4773, 8
  %v5374 = vpop.permute.xlu0 %5373
  %5375 = vrot.lane.b32.xlu0 %v4774, 8
  %v5376 = vpop.permute.xlu0 %5375
  %5377 = vrot.lane.b32.xlu0 %v4775, 8
  %v5378 = vpop.permute.xlu0 %5377
  %5379 = vrot.lane.b32.xlu0 %v4776, 8
  %v5380 = vpop.permute.xlu0 %5379
  %5381 = vrot.lane.b32.xlu0 %v4777, 8
  %v5382 = vpop.permute.xlu0 %5381
  %5383 = vrot.lane.b32.xlu0 %v4778, 8
  %v5384 = vpop.permute.xlu0 %5383
  %5385 = vrot.lane.b32.xlu0 %v4779, 8
  %v5386 = vpop.permute.xlu0 %5385
  %5387 = vrot.lane.b32.xlu0 %v4780, 8
  %v5388 = vpop.permute.xlu0 %5387
  %5389 = vrot.lane.b32.xlu0 %v4781, 8
  %v5390 = vpop.permute.xlu0 %5389
  %5391 = vrot.lane.b32.xlu0 %v4782, 8
  %v5392 = vpop.permute.xlu0 %5391
  %5393 = vrot.lane.b32.xlu0 %v4783, 8
  %v5394 = vpop.permute.xlu0 %5393
  %5395 = vrot.lane.b32.xlu0 %v4784, 8
  %v5396 = vpop.permute.xlu0 %5395
  %5397 = vrot.lane.b32.xlu0 %v4785, 8
  %v5398 = vpop.permute.xlu0 %5397
  %5399 = vrot.lane.b32.xlu0 %v4786, 8
  %v5400 = vpop.permute.xlu0 %5399
  %5401 = vrot.lane.b32.xlu0 %v4787, 8
  %v5402 = vpop.permute.xlu0 %5401
  %5403 = vrot.lane.b32.xlu0 %v4788, 8
  %v5404 = vpop.permute.xlu0 %5403
  %5405 = vrot.lane.b32.xlu0 %v4789, 8
  %v5406 = vpop.permute.xlu0 %5405
  %5407 = vrot.lane.b32.xlu0 %v4790, 8
  %v5408 = vpop.permute.xlu0 %5407
  %5409 = vrot.lane.b32.xlu0 %v4791, 8
  %v5410 = vpop.permute.xlu0 %5409
  %5411 = vrot.lane.b32.xlu0 %v4792, 8
  %v5412 = vpop.permute.xlu0 %5411
  %5413 = vrot.lane.b32.xlu0 %v4793, 8
  %v5414 = vpop.permute.xlu0 %5413
  %5415 = vrot.lane.b32.xlu0 %v4794, 8
  %v5416 = vpop.permute.xlu0 %5415
  %5417 = vrot.lane.b32.xlu0 %v4795, 8
  %v5418 = vpop.permute.xlu0 %5417
  %5419 = vrot.lane.b32.xlu0 %v4796, 8
  %v5420 = vpop.permute.xlu0 %5419
  %5421 = vrot.lane.b32.xlu0 %v4797, 8
  %v5422 = vpop.permute.xlu0 %5421
  %5423 = vrot.lane.b32.xlu0 %v4798, 8
  %v5424 = vpop.permute.xlu0 %5423
  %5425 = vrot.lane.b32.xlu0 %v4799, 8
  %v5426 = vpop.permute.xlu0 %5425
  %5427 = vrot.lane.b32.xlu0 %v4800, 8
  %v5428 = vpop.permute.xlu0 %5427
  %5429 = vrot.lane.b32.xlu0 %v4801, 8
  %v5430 = vpop.permute.xlu0 %5429
  %5431 = vrot.lane.b32.xlu0 %v4802, 8
  %v5432 = vpop.permute.xlu0 %5431
  %5433 = vrot.lane.b32.xlu0 %v4803, 8
  %v5434 = vpop.permute.xlu0 %5433
  %5435 = vrot.lane.b32.xlu0 %v4804, 8
  %v5436 = vpop.permute.xlu0 %5435
  %5437 = vrot.lane.b32.xlu0 %v4805, 8
  %v5438 = vpop.permute.xlu0 %5437
  %5439 = vrot.lane.b32.xlu0 %v4806, 8
  %v5440 = vpop.permute.xlu0 %5439
  %5441 = vrot.lane.b32.xlu0 %v4807, 8
  %v5442 = vpop.permute.xlu0 %5441
  %5443 = vrot.lane.b32.xlu0 %v4808, 8
  %v5444 = vpop.permute.xlu0 %5443
  %5445 = vrot.lane.b32.xlu0 %v4809, 8
  %v5446 = vpop.permute.xlu0 %5445
  %5447 = vrot.lane.b32.xlu0 %v4810, 8
  %v5448 = vpop.permute.xlu0 %5447
  %5449 = vrot.lane.b32.xlu0 %v4811, 8
  %v5450 = vpop.permute.xlu0 %5449
  %5451 = vrot.lane.b32.xlu0 %v4812, 8
  %v5452 = vpop.permute.xlu0 %5451
  %5453 = vrot.lane.b32.xlu0 %v4813, 8
  %v5454 = vpop.permute.xlu0 %5453
  %5583 = vrot.lane.b32.xlu0 %v4814, 16
  %v5584 = vpop.permute.xlu0 %5583
  %5585 = vrot.lane.b32.xlu0 %v4815, 16
  %v5586 = vpop.permute.xlu0 %5585
  %5587 = vrot.lane.b32.xlu0 %v4816, 16
  %v5588 = vpop.permute.xlu0 %5587
  %5589 = vrot.lane.b32.xlu0 %v4817, 16
  %v5590 = vpop.permute.xlu0 %5589
  %5591 = vrot.lane.b32.xlu0 %v4818, 16
  %v5592 = vpop.permute.xlu0 %5591
  %5593 = vrot.lane.b32.xlu0 %v4819, 16
  %v5594 = vpop.permute.xlu0 %5593
  %5595 = vrot.lane.b32.xlu0 %v4820, 16
  %v5596 = vpop.permute.xlu0 %5595
  %5597 = vrot.lane.b32.xlu0 %v4821, 16
  %v5598 = vpop.permute.xlu0 %5597
  %5599 = vrot.lane.b32.xlu0 %v4822, 16
  %v5600 = vpop.permute.xlu0 %5599
  %5601 = vrot.lane.b32.xlu0 %v4823, 16
  %v5602 = vpop.permute.xlu0 %5601
  %5603 = vrot.lane.b32.xlu0 %v4824, 16
  %v5604 = vpop.permute.xlu0 %5603
  %5605 = vrot.lane.b32.xlu0 %v4825, 16
  %v5606 = vpop.permute.xlu0 %5605
  %5607 = vrot.lane.b32.xlu0 %v4826, 16
  %v5608 = vpop.permute.xlu0 %5607
  %5609 = vrot.lane.b32.xlu0 %v4827, 16
  %v5610 = vpop.permute.xlu0 %5609
  %5611 = vrot.lane.b32.xlu0 %v4828, 16
  %v5612 = vpop.permute.xlu0 %5611
  %5613 = vrot.lane.b32.xlu0 %v4829, 16
  %v5614 = vpop.permute.xlu0 %5613
  %5615 = vrot.lane.b32.xlu0 %v4830, 16
  %v5616 = vpop.permute.xlu0 %5615
  %5617 = vrot.lane.b32.xlu0 %v4831, 16
  %v5618 = vpop.permute.xlu0 %5617
  %5619 = vrot.lane.b32.xlu0 %v4832, 16
  %v5620 = vpop.permute.xlu0 %5619
  %5621 = vrot.lane.b32.xlu0 %v4833, 16
  %v5622 = vpop.permute.xlu0 %5621
  %5623 = vrot.lane.b32.xlu0 %v4834, 16
  %v5624 = vpop.permute.xlu0 %5623
  %5625 = vrot.lane.b32.xlu0 %v4835, 16
  %v5626 = vpop.permute.xlu0 %5625
  %5627 = vrot.lane.b32.xlu0 %v4836, 16
  %v5628 = vpop.permute.xlu0 %5627
  %5629 = vrot.lane.b32.xlu0 %v4837, 16
  %v5630 = vpop.permute.xlu0 %5629
  %5631 = vrot.lane.b32.xlu0 %v4838, 16
  %v5632 = vpop.permute.xlu0 %5631
  %5633 = vrot.lane.b32.xlu0 %v4839, 16
  %v5634 = vpop.permute.xlu0 %5633
  %5635 = vrot.lane.b32.xlu0 %v4840, 16
  %v5636 = vpop.permute.xlu0 %5635
  %5637 = vrot.lane.b32.xlu0 %v4841, 16
  %v5638 = vpop.permute.xlu0 %5637
  %5639 = vrot.lane.b32.xlu0 %v4842, 16
  %v5640 = vpop.permute.xlu0 %5639
  %5641 = vrot.lane.b32.xlu0 %v4843, 16
  %v5642 = vpop.permute.xlu0 %5641
  %5643 = vrot.lane.b32.xlu0 %v4844, 16
  %v5644 = vpop.permute.xlu0 %5643
  %5645 = vrot.lane.b32.xlu0 %v4845, 16
  %v5646 = vpop.permute.xlu0 %5645
  %5647 = vrot.lane.b32.xlu0 %v4846, 16
  %v5648 = vpop.permute.xlu0 %5647
  %5649 = vrot.lane.b32.xlu0 %v4847, 16
  %v5650 = vpop.permute.xlu0 %5649
  %5651 = vrot.lane.b32.xlu0 %v4848, 16
  %v5652 = vpop.permute.xlu0 %5651
  %5653 = vrot.lane.b32.xlu0 %v4849, 16
  %v5654 = vpop.permute.xlu0 %5653
  %5655 = vrot.lane.b32.xlu0 %v4850, 16
  %v5656 = vpop.permute.xlu0 %5655
  %5657 = vrot.lane.b32.xlu0 %v4851, 16
  %v5658 = vpop.permute.xlu0 %5657
  %5659 = vrot.lane.b32.xlu0 %v4852, 16
  %v5660 = vpop.permute.xlu0 %5659
  %5661 = vrot.lane.b32.xlu0 %v4853, 16
  %v5662 = vpop.permute.xlu0 %5661
  %5663 = vrot.lane.b32.xlu0 %v4854, 16
  %v5664 = vpop.permute.xlu0 %5663
  %5665 = vrot.lane.b32.xlu0 %v4855, 16
  %v5666 = vpop.permute.xlu0 %5665
  %5667 = vrot.lane.b32.xlu0 %v4856, 16
  %v5668 = vpop.permute.xlu0 %5667
  %5669 = vrot.lane.b32.xlu0 %v4857, 16
  %v5670 = vpop.permute.xlu0 %5669
  %5671 = vrot.lane.b32.xlu0 %v4858, 16
  %v5672 = vpop.permute.xlu0 %5671
  %5673 = vrot.lane.b32.xlu0 %v4859, 16
  %v5674 = vpop.permute.xlu0 %5673
  %5675 = vrot.lane.b32.xlu0 %v4860, 16
  %v5676 = vpop.permute.xlu0 %5675
  %5677 = vrot.lane.b32.xlu0 %v4861, 16
  %v5678 = vpop.permute.xlu0 %5677
  %5679 = vrot.lane.b32.xlu0 %v4862, 16
  %v5680 = vpop.permute.xlu0 %5679
  %5681 = vrot.lane.b32.xlu0 %v4863, 16
  %v5682 = vpop.permute.xlu0 %5681
  %5683 = vrot.lane.b32.xlu0 %v4864, 16
  %v5684 = vpop.permute.xlu0 %5683
  %5685 = vrot.lane.b32.xlu0 %v4865, 16
  %v5686 = vpop.permute.xlu0 %5685
  %5687 = vrot.lane.b32.xlu0 %v4866, 16
  %v5688 = vpop.permute.xlu0 %5687
  %5689 = vrot.lane.b32.xlu0 %v4867, 16
  %v5690 = vpop.permute.xlu0 %5689
  %5691 = vrot.lane.b32.xlu0 %v4868, 16
  %v5692 = vpop.permute.xlu0 %5691
  %5693 = vrot.lane.b32.xlu0 %v4869, 16
  %v5694 = vpop.permute.xlu0 %5693
  %5695 = vrot.lane.b32.xlu0 %v4870, 16
  %v5696 = vpop.permute.xlu0 %5695
  %5697 = vrot.lane.b32.xlu0 %v4871, 16
  %v5698 = vpop.permute.xlu0 %5697
  %5699 = vrot.lane.b32.xlu0 %v4872, 16
  %v5700 = vpop.permute.xlu0 %5699
  %5701 = vrot.lane.b32.xlu0 %v4873, 16
  %v5702 = vpop.permute.xlu0 %5701
  %5703 = vrot.lane.b32.xlu0 %v4874, 16
  %v5704 = vpop.permute.xlu0 %5703
  %5705 = vrot.lane.b32.xlu0 %v4875, 16
  %v5706 = vpop.permute.xlu0 %5705
  %5707 = vrot.lane.b32.xlu0 %v4876, 16
  %v5708 = vpop.permute.xlu0 %5707
  %5709 = vrot.lane.b32.xlu0 %v4877, 16
  %v5710 = vpop.permute.xlu0 %5709
  %5839 = vrot.lane.b32.xlu0 %v4878, 24
  %v5840 = vpop.permute.xlu0 %5839
  %5841 = vrot.lane.b32.xlu0 %v4879, 24
  %v5842 = vpop.permute.xlu0 %5841
  %5843 = vrot.lane.b32.xlu0 %v4880, 24
  %v5844 = vpop.permute.xlu0 %5843
  %5845 = vrot.lane.b32.xlu0 %v4881, 24
  %v5846 = vpop.permute.xlu0 %5845
  %5847 = vrot.lane.b32.xlu0 %v4882, 24
  %v5848 = vpop.permute.xlu0 %5847
  %5849 = vrot.lane.b32.xlu0 %v4883, 24
  %v5850 = vpop.permute.xlu0 %5849
  %5851 = vrot.lane.b32.xlu0 %v4884, 24
  %v5852 = vpop.permute.xlu0 %5851
  %5853 = vrot.lane.b32.xlu0 %v4885, 24
  %v5854 = vpop.permute.xlu0 %5853
  %5855 = vrot.lane.b32.xlu0 %v4886, 24
  %v5856 = vpop.permute.xlu0 %5855
  %5857 = vrot.lane.b32.xlu0 %v4887, 24
  %v5858 = vpop.permute.xlu0 %5857
  %5859 = vrot.lane.b32.xlu0 %v4888, 24
  %v5860 = vpop.permute.xlu0 %5859
  %5861 = vrot.lane.b32.xlu0 %v4889, 24
  %v5862 = vpop.permute.xlu0 %5861
  %5863 = vrot.lane.b32.xlu0 %v4890, 24
  %v5864 = vpop.permute.xlu0 %5863
  %5865 = vrot.lane.b32.xlu0 %v4891, 24
  %v5866 = vpop.permute.xlu0 %5865
  %5867 = vrot.lane.b32.xlu0 %v4892, 24
  %v5868 = vpop.permute.xlu0 %5867
  %5869 = vrot.lane.b32.xlu0 %v4893, 24
  %v5870 = vpop.permute.xlu0 %5869
  %5871 = vrot.lane.b32.xlu0 %v4894, 24
  %v5872 = vpop.permute.xlu0 %5871
  %5873 = vrot.lane.b32.xlu0 %v4895, 24
  %v5874 = vpop.permute.xlu0 %5873
  %5875 = vrot.lane.b32.xlu0 %v4896, 24
  %v5876 = vpop.permute.xlu0 %5875
  %5877 = vrot.lane.b32.xlu0 %v4897, 24
  %v5878 = vpop.permute.xlu0 %5877
  %5879 = vrot.lane.b32.xlu0 %v4898, 24
  %v5880 = vpop.permute.xlu0 %5879
  %5881 = vrot.lane.b32.xlu0 %v4899, 24
  %v5882 = vpop.permute.xlu0 %5881
  %5883 = vrot.lane.b32.xlu0 %v4900, 24
  %v5884 = vpop.permute.xlu0 %5883
  %5885 = vrot.lane.b32.xlu0 %v4901, 24
  %v5886 = vpop.permute.xlu0 %5885
  %5887 = vrot.lane.b32.xlu0 %v4902, 24
  %v5888 = vpop.permute.xlu0 %5887
  %5889 = vrot.lane.b32.xlu0 %v4903, 24
  %v5890 = vpop.permute.xlu0 %5889
  %5891 = vrot.lane.b32.xlu0 %v4904, 24
  %v5892 = vpop.permute.xlu0 %5891
  %5893 = vrot.lane.b32.xlu0 %v4905, 24
  %v5894 = vpop.permute.xlu0 %5893
  %5895 = vrot.lane.b32.xlu0 %v4906, 24
  %v5896 = vpop.permute.xlu0 %5895
  %5897 = vrot.lane.b32.xlu0 %v4907, 24
  %v5898 = vpop.permute.xlu0 %5897
  %5899 = vrot.lane.b32.xlu0 %v4908, 24
  %v5900 = vpop.permute.xlu0 %5899
  %5901 = vrot.lane.b32.xlu0 %v4909, 24
  %v5902 = vpop.permute.xlu0 %5901
  %5903 = vrot.lane.b32.xlu0 %v4910, 24
  %v5904 = vpop.permute.xlu0 %5903
  %5905 = vrot.lane.b32.xlu0 %v4911, 24
  %v5906 = vpop.permute.xlu0 %5905
  %5907 = vrot.lane.b32.xlu0 %v4912, 24
  %v5908 = vpop.permute.xlu0 %5907
  %5909 = vrot.lane.b32.xlu0 %v4913, 24
  %v5910 = vpop.permute.xlu0 %5909
  %5911 = vrot.lane.b32.xlu0 %v4914, 24
  %v5912 = vpop.permute.xlu0 %5911
  %5913 = vrot.lane.b32.xlu0 %v4915, 24
  %v5914 = vpop.permute.xlu0 %5913
  %5915 = vrot.lane.b32.xlu0 %v4916, 24
  %v5916 = vpop.permute.xlu0 %5915
  %5917 = vrot.lane.b32.xlu0 %v4917, 24
  %v5918 = vpop.permute.xlu0 %5917
  %5919 = vrot.lane.b32.xlu0 %v4918, 24
  %v5920 = vpop.permute.xlu0 %5919
  %5921 = vrot.lane.b32.xlu0 %v4919, 24
  %v5922 = vpop.permute.xlu0 %5921
  %5923 = vrot.lane.b32.xlu0 %v4920, 24
  %v5924 = vpop.permute.xlu0 %5923
  %5925 = vrot.lane.b32.xlu0 %v4921, 24
  %v5926 = vpop.permute.xlu0 %5925
  %5927 = vrot.lane.b32.xlu0 %v4922, 24
  %v5928 = vpop.permute.xlu0 %5927
  %5929 = vrot.lane.b32.xlu0 %v4923, 24
  %v5930 = vpop.permute.xlu0 %5929
  %5931 = vrot.lane.b32.xlu0 %v4924, 24
  %v5932 = vpop.permute.xlu0 %5931
  %5933 = vrot.lane.b32.xlu0 %v4925, 24
  %v5934 = vpop.permute.xlu0 %5933
  %5935 = vrot.lane.b32.xlu0 %v4926, 24
  %v5936 = vpop.permute.xlu0 %5935
  %5937 = vrot.lane.b32.xlu0 %v4927, 24
  %v5938 = vpop.permute.xlu0 %5937
  %5939 = vrot.lane.b32.xlu0 %v4928, 24
  %v5940 = vpop.permute.xlu0 %5939
  %5941 = vrot.lane.b32.xlu0 %v4929, 24
  %v5942 = vpop.permute.xlu0 %5941
  %5943 = vrot.lane.b32.xlu0 %v4930, 24
  %v5944 = vpop.permute.xlu0 %5943
  %5945 = vrot.lane.b32.xlu0 %v4931, 24
  %v5946 = vpop.permute.xlu0 %5945
  %5947 = vrot.lane.b32.xlu0 %v4932, 24
  %v5948 = vpop.permute.xlu0 %5947
  %5949 = vrot.lane.b32.xlu0 %v4933, 24
  %v5950 = vpop.permute.xlu0 %5949
  %5951 = vrot.lane.b32.xlu0 %v4934, 24
  %v5952 = vpop.permute.xlu0 %5951
  %5953 = vrot.lane.b32.xlu0 %v4935, 24
  %v5954 = vpop.permute.xlu0 %5953
  %5955 = vrot.lane.b32.xlu0 %v4936, 24
  %v5956 = vpop.permute.xlu0 %5955
  %5957 = vrot.lane.b32.xlu0 %v4937, 24
  %v5958 = vpop.permute.xlu0 %5957
  %5959 = vrot.lane.b32.xlu0 %v4938, 24
  %v5960 = vpop.permute.xlu0 %5959
  %5961 = vrot.lane.b32.xlu0 %v4939, 24
  %v5962 = vpop.permute.xlu0 %5961
  %5963 = vrot.lane.b32.xlu0 %v4940, 24
  %v5964 = vpop.permute.xlu0 %5963
  %5965 = vrot.lane.b32.xlu0 %v4941, 24
  %v5966 = vpop.permute.xlu0 %5965
  %6095 = vrot.lane.b32.xlu0 %v4942, 32
  %v6096 = vpop.permute.xlu0 %6095
  %6097 = vrot.lane.b32.xlu0 %v4943, 32
  %v6098 = vpop.permute.xlu0 %6097
  %6099 = vrot.lane.b32.xlu0 %v4944, 32
  %v6100 = vpop.permute.xlu0 %6099
  %6101 = vrot.lane.b32.xlu0 %v4945, 32
  %v6102 = vpop.permute.xlu0 %6101
  %6103 = vrot.lane.b32.xlu0 %v4946, 32
  %v6104 = vpop.permute.xlu0 %6103
  %6105 = vrot.lane.b32.xlu0 %v4947, 32
  %v6106 = vpop.permute.xlu0 %6105
  %6107 = vrot.lane.b32.xlu0 %v4948, 32
  %v6108 = vpop.permute.xlu0 %6107
  %6109 = vrot.lane.b32.xlu0 %v4949, 32
  %v6110 = vpop.permute.xlu0 %6109
  %6111 = vrot.lane.b32.xlu0 %v4950, 32
  %v6112 = vpop.permute.xlu0 %6111
  %6113 = vrot.lane.b32.xlu0 %v4951, 32
  %v6114 = vpop.permute.xlu0 %6113
  %6115 = vrot.lane.b32.xlu0 %v4952, 32
  %v6116 = vpop.permute.xlu0 %6115
  %6117 = vrot.lane.b32.xlu0 %v4953, 32
  %v6118 = vpop.permute.xlu0 %6117
  %6119 = vrot.lane.b32.xlu0 %v4954, 32
  %v6120 = vpop.permute.xlu0 %6119
  %6121 = vrot.lane.b32.xlu0 %v4955, 32
  %v6122 = vpop.permute.xlu0 %6121
  %6123 = vrot.lane.b32.xlu0 %v4956, 32
  %v6124 = vpop.permute.xlu0 %6123
  %6125 = vrot.lane.b32.xlu0 %v4957, 32
  %v6126 = vpop.permute.xlu0 %6125
  %6127 = vrot.lane.b32.xlu0 %v4958, 32
  %v6128 = vpop.permute.xlu0 %6127
  %6129 = vrot.lane.b32.xlu0 %v4959, 32
  %v6130 = vpop.permute.xlu0 %6129
  %6131 = vrot.lane.b32.xlu0 %v4960, 32
  %v6132 = vpop.permute.xlu0 %6131
  %6133 = vrot.lane.b32.xlu0 %v4961, 32
  %v6134 = vpop.permute.xlu0 %6133
  %6135 = vrot.lane.b32.xlu0 %v4962, 32
  %v6136 = vpop.permute.xlu0 %6135
  %6137 = vrot.lane.b32.xlu0 %v4963, 32
  %v6138 = vpop.permute.xlu0 %6137
  %6139 = vrot.lane.b32.xlu0 %v4964, 32
  %v6140 = vpop.permute.xlu0 %6139
  %6141 = vrot.lane.b32.xlu0 %v4965, 32
  %v6142 = vpop.permute.xlu0 %6141
  %6143 = vrot.lane.b32.xlu0 %v4966, 32
  %v6144 = vpop.permute.xlu0 %6143
  %6145 = vrot.lane.b32.xlu0 %v4967, 32
  %v6146 = vpop.permute.xlu0 %6145
  %6147 = vrot.lane.b32.xlu0 %v4968, 32
  %v6148 = vpop.permute.xlu0 %6147
  %6149 = vrot.lane.b32.xlu0 %v4969, 32
  %v6150 = vpop.permute.xlu0 %6149
  %6151 = vrot.lane.b32.xlu0 %v4970, 32
  %v6152 = vpop.permute.xlu0 %6151
  %6153 = vrot.lane.b32.xlu0 %v4971, 32
  %v6154 = vpop.permute.xlu0 %6153
  %6155 = vrot.lane.b32.xlu0 %v4972, 32
  %v6156 = vpop.permute.xlu0 %6155
  %6157 = vrot.lane.b32.xlu0 %v4973, 32
  %v6158 = vpop.permute.xlu0 %6157
  %6159 = vrot.lane.b32.xlu0 %v4974, 32
  %v6160 = vpop.permute.xlu0 %6159
  %6161 = vrot.lane.b32.xlu0 %v4975, 32
  %v6162 = vpop.permute.xlu0 %6161
  %6163 = vrot.lane.b32.xlu0 %v4976, 32
  %v6164 = vpop.permute.xlu0 %6163
  %6165 = vrot.lane.b32.xlu0 %v4977, 32
  %v6166 = vpop.permute.xlu0 %6165
  %6167 = vrot.lane.b32.xlu0 %v4978, 32
  %v6168 = vpop.permute.xlu0 %6167
  %6169 = vrot.lane.b32.xlu0 %v4979, 32
  %v6170 = vpop.permute.xlu0 %6169
  %6171 = vrot.lane.b32.xlu0 %v4980, 32
  %v6172 = vpop.permute.xlu0 %6171
  %6173 = vrot.lane.b32.xlu0 %v4981, 32
  %v6174 = vpop.permute.xlu0 %6173
  %6175 = vrot.lane.b32.xlu0 %v4982, 32
  %v6176 = vpop.permute.xlu0 %6175
  %6177 = vrot.lane.b32.xlu0 %v4983, 32
  %v6178 = vpop.permute.xlu0 %6177
  %6179 = vrot.lane.b32.xlu0 %v4984, 32
  %v6180 = vpop.permute.xlu0 %6179
  %6181 = vrot.lane.b32.xlu0 %v4985, 32
  %v6182 = vpop.permute.xlu0 %6181
  %6183 = vrot.lane.b32.xlu0 %v4986, 32
  %v6184 = vpop.permute.xlu0 %6183
  %6185 = vrot.lane.b32.xlu0 %v4987, 32
  %v6186 = vpop.permute.xlu0 %6185
  %6187 = vrot.lane.b32.xlu0 %v4988, 32
  %v6188 = vpop.permute.xlu0 %6187
  %6189 = vrot.lane.b32.xlu0 %v4989, 32
  %v6190 = vpop.permute.xlu0 %6189
  %6191 = vrot.lane.b32.xlu0 %v4990, 32
  %v6192 = vpop.permute.xlu0 %6191
  %6193 = vrot.lane.b32.xlu0 %v4991, 32
  %v6194 = vpop.permute.xlu0 %6193
  %6195 = vrot.lane.b32.xlu0 %v4992, 32
  %v6196 = vpop.permute.xlu0 %6195
  %6197 = vrot.lane.b32.xlu0 %v4993, 32
  %v6198 = vpop.permute.xlu0 %6197
  %6199 = vrot.lane.b32.xlu0 %v4994, 32
  %v6200 = vpop.permute.xlu0 %6199
  %6201 = vrot.lane.b32.xlu0 %v4995, 32
  %v6202 = vpop.permute.xlu0 %6201
  %6203 = vrot.lane.b32.xlu0 %v4996, 32
  %v6204 = vpop.permute.xlu0 %6203
  %6205 = vrot.lane.b32.xlu0 %v4997, 32
  %v6206 = vpop.permute.xlu0 %6205
  %6207 = vrot.lane.b32.xlu0 %v4998, 32
  %v6208 = vpop.permute.xlu0 %6207
  %6209 = vrot.lane.b32.xlu0 %v4999, 32
  %v6210 = vpop.permute.xlu0 %6209
  %6211 = vrot.lane.b32.xlu0 %v5000, 32
  %v6212 = vpop.permute.xlu0 %6211
  %6213 = vrot.lane.b32.xlu0 %v5001, 32
  %v6214 = vpop.permute.xlu0 %6213
  %6215 = vrot.lane.b32.xlu0 %v5002, 32
  %v6216 = vpop.permute.xlu0 %6215
  %6217 = vrot.lane.b32.xlu0 %v5003, 32
  %v6218 = vpop.permute.xlu0 %6217
  %6219 = vrot.lane.b32.xlu0 %v5004, 32
  %v6220 = vpop.permute.xlu0 %6219
  %6221 = vrot.lane.b32.xlu0 %v5005, 32
  %v6222 = vpop.permute.xlu0 %6221
  %6351 = vrot.lane.b32.xlu0 %v5006, 40
  %v6352 = vpop.permute.xlu0 %6351
  %6353 = vrot.lane.b32.xlu0 %v5007, 40
  %v6354 = vpop.permute.xlu0 %6353
  %6355 = vrot.lane.b32.xlu0 %v5008, 40
  %v6356 = vpop.permute.xlu0 %6355
  %6357 = vrot.lane.b32.xlu0 %v5009, 40
  %v6358 = vpop.permute.xlu0 %6357
  %6359 = vrot.lane.b32.xlu0 %v5010, 40
  %v6360 = vpop.permute.xlu0 %6359
  %6361 = vrot.lane.b32.xlu0 %v5011, 40
  %v6362 = vpop.permute.xlu0 %6361
  %6363 = vrot.lane.b32.xlu0 %v5012, 40
  %v6364 = vpop.permute.xlu0 %6363
  %6365 = vrot.lane.b32.xlu0 %v5013, 40
  %v6366 = vpop.permute.xlu0 %6365
  %6367 = vrot.lane.b32.xlu0 %v5014, 40
  %v6368 = vpop.permute.xlu0 %6367
  %6369 = vrot.lane.b32.xlu0 %v5015, 40
  %v6370 = vpop.permute.xlu0 %6369
  %6371 = vrot.lane.b32.xlu0 %v5016, 40
  %v6372 = vpop.permute.xlu0 %6371
  %6373 = vrot.lane.b32.xlu0 %v5017, 40
  %v6374 = vpop.permute.xlu0 %6373
  %6375 = vrot.lane.b32.xlu0 %v5018, 40
  %v6376 = vpop.permute.xlu0 %6375
  %6377 = vrot.lane.b32.xlu0 %v5019, 40
  %v6378 = vpop.permute.xlu0 %6377
  %6379 = vrot.lane.b32.xlu0 %v5020, 40
  %v6380 = vpop.permute.xlu0 %6379
  %6381 = vrot.lane.b32.xlu0 %v5021, 40
  %v6382 = vpop.permute.xlu0 %6381
  %6383 = vrot.lane.b32.xlu0 %v5022, 40
  %v6384 = vpop.permute.xlu0 %6383
  %6385 = vrot.lane.b32.xlu0 %v5023, 40
  %v6386 = vpop.permute.xlu0 %6385
  %6387 = vrot.lane.b32.xlu0 %v5024, 40
  %v6388 = vpop.permute.xlu0 %6387
  %6389 = vrot.lane.b32.xlu0 %v5025, 40
  %v6390 = vpop.permute.xlu0 %6389
  %6391 = vrot.lane.b32.xlu0 %v5026, 40
  %v6392 = vpop.permute.xlu0 %6391
  %6393 = vrot.lane.b32.xlu0 %v5027, 40
  %v6394 = vpop.permute.xlu0 %6393
  %6395 = vrot.lane.b32.xlu0 %v5028, 40
  %v6396 = vpop.permute.xlu0 %6395
  %6397 = vrot.lane.b32.xlu0 %v5029, 40
  %v6398 = vpop.permute.xlu0 %6397
  %6399 = vrot.lane.b32.xlu0 %v5030, 40
  %v6400 = vpop.permute.xlu0 %6399
  %6401 = vrot.lane.b32.xlu0 %v5031, 40
  %v6402 = vpop.permute.xlu0 %6401
  %6403 = vrot.lane.b32.xlu0 %v5032, 40
  %v6404 = vpop.permute.xlu0 %6403
  %6405 = vrot.lane.b32.xlu0 %v5033, 40
  %v6406 = vpop.permute.xlu0 %6405
  %6407 = vrot.lane.b32.xlu0 %v5034, 40
  %v6408 = vpop.permute.xlu0 %6407
  %6409 = vrot.lane.b32.xlu0 %v5035, 40
  %v6410 = vpop.permute.xlu0 %6409
  %6411 = vrot.lane.b32.xlu0 %v5036, 40
  %v6412 = vpop.permute.xlu0 %6411
  %6413 = vrot.lane.b32.xlu0 %v5037, 40
  %v6414 = vpop.permute.xlu0 %6413
  %6415 = vrot.lane.b32.xlu0 %v5038, 40
  %v6416 = vpop.permute.xlu0 %6415
  %6417 = vrot.lane.b32.xlu0 %v5039, 40
  %v6418 = vpop.permute.xlu0 %6417
  %6419 = vrot.lane.b32.xlu0 %v5040, 40
  %v6420 = vpop.permute.xlu0 %6419
  %6421 = vrot.lane.b32.xlu0 %v5041, 40
  %v6422 = vpop.permute.xlu0 %6421
  %6423 = vrot.lane.b32.xlu0 %v5042, 40
  %v6424 = vpop.permute.xlu0 %6423
  %6425 = vrot.lane.b32.xlu0 %v5043, 40
  %v6426 = vpop.permute.xlu0 %6425
  %6427 = vrot.lane.b32.xlu0 %v5044, 40
  %v6428 = vpop.permute.xlu0 %6427
  %6429 = vrot.lane.b32.xlu0 %v5045, 40
  %v6430 = vpop.permute.xlu0 %6429
  %6431 = vrot.lane.b32.xlu0 %v5046, 40
  %v6432 = vpop.permute.xlu0 %6431
  %6433 = vrot.lane.b32.xlu0 %v5047, 40
  %v6434 = vpop.permute.xlu0 %6433
  %6435 = vrot.lane.b32.xlu0 %v5048, 40
  %v6436 = vpop.permute.xlu0 %6435
  %6437 = vrot.lane.b32.xlu0 %v5049, 40
  %v6438 = vpop.permute.xlu0 %6437
  %6439 = vrot.lane.b32.xlu0 %v5050, 40
  %v6440 = vpop.permute.xlu0 %6439
  %6441 = vrot.lane.b32.xlu0 %v5051, 40
  %v6442 = vpop.permute.xlu0 %6441
  %6443 = vrot.lane.b32.xlu0 %v5052, 40
  %v6444 = vpop.permute.xlu0 %6443
  %6445 = vrot.lane.b32.xlu0 %v5053, 40
  %v6446 = vpop.permute.xlu0 %6445
  %6447 = vrot.lane.b32.xlu0 %v5054, 40
  %v6448 = vpop.permute.xlu0 %6447
  %6449 = vrot.lane.b32.xlu0 %v5055, 40
  %v6450 = vpop.permute.xlu0 %6449
  %6451 = vrot.lane.b32.xlu0 %v5056, 40
  %v6452 = vpop.permute.xlu0 %6451
  %6453 = vrot.lane.b32.xlu0 %v5057, 40
  %v6454 = vpop.permute.xlu0 %6453
  %6455 = vrot.lane.b32.xlu0 %v5058, 40
  %v6456 = vpop.permute.xlu0 %6455
  %6457 = vrot.lane.b32.xlu0 %v5059, 40
  %v6458 = vpop.permute.xlu0 %6457
  %6459 = vrot.lane.b32.xlu0 %v5060, 40
  %v6460 = vpop.permute.xlu0 %6459
  %6461 = vrot.lane.b32.xlu0 %v5061, 40
  %v6462 = vpop.permute.xlu0 %6461
  %6463 = vrot.lane.b32.xlu0 %v5062, 40
  %v6464 = vpop.permute.xlu0 %6463
  %6465 = vrot.lane.b32.xlu0 %v5063, 40
  %v6466 = vpop.permute.xlu0 %6465
  %6467 = vrot.lane.b32.xlu0 %v5064, 40
  %v6468 = vpop.permute.xlu0 %6467
  %6469 = vrot.lane.b32.xlu0 %v5065, 40
  %v6470 = vpop.permute.xlu0 %6469
  %6471 = vrot.lane.b32.xlu0 %v5066, 40
  %v6472 = vpop.permute.xlu0 %6471
  %6473 = vrot.lane.b32.xlu0 %v5067, 40
  %v6474 = vpop.permute.xlu0 %6473
  %6475 = vrot.lane.b32.xlu0 %v5068, 40
  %v6476 = vpop.permute.xlu0 %6475
  %6477 = vrot.lane.b32.xlu0 %v5069, 40
  %v6478 = vpop.permute.xlu0 %6477
  %6607 = vrot.lane.b32.xlu0 %v5071, 48
  %v6608 = vpop.permute.xlu0 %6607
  %6609 = vrot.lane.b32.xlu0 %v5072, 48
  %v6610 = vpop.permute.xlu0 %6609
  %6611 = vrot.lane.b32.xlu0 %v5073, 48
  %v6612 = vpop.permute.xlu0 %6611
  %6613 = vrot.lane.b32.xlu0 %v5074, 48
  %v6614 = vpop.permute.xlu0 %6613
  %6615 = vrot.lane.b32.xlu0 %v5075, 48
  %v6616 = vpop.permute.xlu0 %6615
  %6617 = vrot.lane.b32.xlu0 %v5076, 48
  %v6618 = vpop.permute.xlu0 %6617
  %6619 = vrot.lane.b32.xlu0 %v5077, 48
  %v6620 = vpop.permute.xlu0 %6619
  %6621 = vrot.lane.b32.xlu0 %v5078, 48
  %v6622 = vpop.permute.xlu0 %6621
  %6623 = vrot.lane.b32.xlu0 %v5079, 48
  %v6624 = vpop.permute.xlu0 %6623
  %6625 = vrot.lane.b32.xlu0 %v5080, 48
  %v6626 = vpop.permute.xlu0 %6625
  %6627 = vrot.lane.b32.xlu0 %v5081, 48
  %v6628 = vpop.permute.xlu0 %6627
  %6629 = vrot.lane.b32.xlu0 %v5082, 48
  %v6630 = vpop.permute.xlu0 %6629
  %6631 = vrot.lane.b32.xlu0 %v5083, 48
  %v6632 = vpop.permute.xlu0 %6631
  %6633 = vrot.lane.b32.xlu0 %v5084, 48
  %v6634 = vpop.permute.xlu0 %6633
  %6635 = vrot.lane.b32.xlu0 %v5085, 48
  %v6636 = vpop.permute.xlu0 %6635
  %6637 = vrot.lane.b32.xlu0 %v5086, 48
  %v6638 = vpop.permute.xlu0 %6637
  %6639 = vrot.lane.b32.xlu0 %v5087, 48
  %v6640 = vpop.permute.xlu0 %6639
  %6641 = vrot.lane.b32.xlu0 %v5088, 48
  %v6642 = vpop.permute.xlu0 %6641
  %6643 = vrot.lane.b32.xlu0 %v5089, 48
  %v6644 = vpop.permute.xlu0 %6643
  %6645 = vrot.lane.b32.xlu0 %v5090, 48
  %v6646 = vpop.permute.xlu0 %6645
  %6647 = vrot.lane.b32.xlu0 %v5091, 48
  %v6648 = vpop.permute.xlu0 %6647
  %6649 = vrot.lane.b32.xlu0 %v5092, 48
  %v6650 = vpop.permute.xlu0 %6649
  %6651 = vrot.lane.b32.xlu0 %v5093, 48
  %v6652 = vpop.permute.xlu0 %6651
  %6653 = vrot.lane.b32.xlu0 %v5094, 48
  %v6654 = vpop.permute.xlu0 %6653
  %6655 = vrot.lane.b32.xlu0 %v5095, 48
  %v6656 = vpop.permute.xlu0 %6655
  %6657 = vrot.lane.b32.xlu0 %v5096, 48
  %v6658 = vpop.permute.xlu0 %6657
  %6659 = vrot.lane.b32.xlu0 %v5097, 48
  %v6660 = vpop.permute.xlu0 %6659
  %6661 = vrot.lane.b32.xlu0 %v5098, 48
  %v6662 = vpop.permute.xlu0 %6661
  %6663 = vrot.lane.b32.xlu0 %v5099, 48
  %v6664 = vpop.permute.xlu0 %6663
  %6665 = vrot.lane.b32.xlu0 %v5100, 48
  %v6666 = vpop.permute.xlu0 %6665
  %6667 = vrot.lane.b32.xlu0 %v5101, 48
  %v6668 = vpop.permute.xlu0 %6667
  %6669 = vrot.lane.b32.xlu0 %v5102, 48
  %v6670 = vpop.permute.xlu0 %6669
  %6671 = vrot.lane.b32.xlu0 %v5103, 48
  %v6672 = vpop.permute.xlu0 %6671
  %6673 = vrot.lane.b32.xlu0 %v5104, 48
  %v6674 = vpop.permute.xlu0 %6673
  %6675 = vrot.lane.b32.xlu0 %v5105, 48
  %v6676 = vpop.permute.xlu0 %6675
  %6677 = vrot.lane.b32.xlu0 %v5106, 48
  %v6678 = vpop.permute.xlu0 %6677
  %6679 = vrot.lane.b32.xlu0 %v5107, 48
  %v6680 = vpop.permute.xlu0 %6679
  %6681 = vrot.lane.b32.xlu0 %v5108, 48
  %v6682 = vpop.permute.xlu0 %6681
  %6683 = vrot.lane.b32.xlu0 %v5109, 48
  %v6684 = vpop.permute.xlu0 %6683
  %6685 = vrot.lane.b32.xlu0 %v5110, 48
  %v6686 = vpop.permute.xlu0 %6685
  %6687 = vrot.lane.b32.xlu0 %v5111, 48
  %v6688 = vpop.permute.xlu0 %6687
  %6689 = vrot.lane.b32.xlu0 %v5112, 48
  %v6690 = vpop.permute.xlu0 %6689
  %6691 = vrot.lane.b32.xlu0 %v5113, 48
  %v6692 = vpop.permute.xlu0 %6691
  %6693 = vrot.lane.b32.xlu0 %v5114, 48
  %v6694 = vpop.permute.xlu0 %6693
  %6695 = vrot.lane.b32.xlu0 %v5115, 48
  %v6696 = vpop.permute.xlu0 %6695
  %6697 = vrot.lane.b32.xlu0 %v5116, 48
  %v6698 = vpop.permute.xlu0 %6697
  %6699 = vrot.lane.b32.xlu0 %v5117, 48
  %v6700 = vpop.permute.xlu0 %6699
  %6701 = vrot.lane.b32.xlu0 %v5118, 48
  %v6702 = vpop.permute.xlu0 %6701
  %6703 = vrot.lane.b32.xlu0 %v5119, 48
  %v6704 = vpop.permute.xlu0 %6703
  %6705 = vrot.lane.b32.xlu0 %v5120, 48
  %v6706 = vpop.permute.xlu0 %6705
  %6707 = vrot.lane.b32.xlu0 %v5121, 48
  %v6708 = vpop.permute.xlu0 %6707
  %6709 = vrot.lane.b32.xlu0 %v5122, 48
  %v6710 = vpop.permute.xlu0 %6709
  %6711 = vrot.lane.b32.xlu0 %v5123, 48
  %v6712 = vpop.permute.xlu0 %6711
  %6713 = vrot.lane.b32.xlu0 %v5124, 48
  %v6714 = vpop.permute.xlu0 %6713
  %6715 = vrot.lane.b32.xlu0 %v5125, 48
  %v6716 = vpop.permute.xlu0 %6715
  %6717 = vrot.lane.b32.xlu0 %v5126, 48
  %v6718 = vpop.permute.xlu0 %6717
  %6719 = vrot.lane.b32.xlu0 %v5127, 48
  %v6720 = vpop.permute.xlu0 %6719
  %6721 = vrot.lane.b32.xlu0 %v5128, 48
  %v6722 = vpop.permute.xlu0 %6721
  %6723 = vrot.lane.b32.xlu0 %v5129, 48
  %v6724 = vpop.permute.xlu0 %6723
  %6725 = vrot.lane.b32.xlu0 %v5130, 48
  %v6726 = vpop.permute.xlu0 %6725
  %6727 = vrot.lane.b32.xlu0 %v5131, 48
  %v6728 = vpop.permute.xlu0 %6727
  %6729 = vrot.lane.b32.xlu0 %v5132, 48
  %v6730 = vpop.permute.xlu0 %6729
  %6731 = vrot.lane.b32.xlu0 %v5133, 48
  %v6732 = vpop.permute.xlu0 %6731
  %6733 = vrot.lane.b32.xlu0 %v5134, 48
  %v6734 = vpop.permute.xlu0 %6733
  %6863 = vrot.lane.b32.xlu0 %v5135, 56
  %v6864 = vpop.permute.xlu0 %6863
  %6865 = vrot.lane.b32.xlu0 %v5136, 56
  %v6866 = vpop.permute.xlu0 %6865
  %6867 = vrot.lane.b32.xlu0 %v5137, 56
  %v6868 = vpop.permute.xlu0 %6867
  %6869 = vrot.lane.b32.xlu0 %v5138, 56
  %v6870 = vpop.permute.xlu0 %6869
  %6871 = vrot.lane.b32.xlu0 %v5139, 56
  %v6872 = vpop.permute.xlu0 %6871
  %6873 = vrot.lane.b32.xlu0 %v5140, 56
  %v6874 = vpop.permute.xlu0 %6873
  %6875 = vrot.lane.b32.xlu0 %v5141, 56
  %v6876 = vpop.permute.xlu0 %6875
  %6877 = vrot.lane.b32.xlu0 %v5142, 56
  %v6878 = vpop.permute.xlu0 %6877
  %6879 = vrot.lane.b32.xlu0 %v5143, 56
  %v6880 = vpop.permute.xlu0 %6879
  %6881 = vrot.lane.b32.xlu0 %v5144, 56
  %v6882 = vpop.permute.xlu0 %6881
  %6883 = vrot.lane.b32.xlu0 %v5145, 56
  %v6884 = vpop.permute.xlu0 %6883
  %6885 = vrot.lane.b32.xlu0 %v5146, 56
  %v6886 = vpop.permute.xlu0 %6885
  %6887 = vrot.lane.b32.xlu0 %v5147, 56
  %v6888 = vpop.permute.xlu0 %6887
  %6889 = vrot.lane.b32.xlu0 %v5148, 56
  %v6890 = vpop.permute.xlu0 %6889
  %6891 = vrot.lane.b32.xlu0 %v5149, 56
  %v6892 = vpop.permute.xlu0 %6891
  %6893 = vrot.lane.b32.xlu0 %v5150, 56
  %v6894 = vpop.permute.xlu0 %6893
  %6895 = vrot.lane.b32.xlu0 %v5151, 56
  %v6896 = vpop.permute.xlu0 %6895
  %6897 = vrot.lane.b32.xlu0 %v5152, 56
  %v6898 = vpop.permute.xlu0 %6897
  %6899 = vrot.lane.b32.xlu0 %v5153, 56
  %v6900 = vpop.permute.xlu0 %6899
  %6901 = vrot.lane.b32.xlu0 %v5154, 56
  %v6902 = vpop.permute.xlu0 %6901
  %6903 = vrot.lane.b32.xlu0 %v5155, 56
  %v6904 = vpop.permute.xlu0 %6903
  %6905 = vrot.lane.b32.xlu0 %v5156, 56
  %v6906 = vpop.permute.xlu0 %6905
  %6907 = vrot.lane.b32.xlu0 %v5157, 56
  %v6908 = vpop.permute.xlu0 %6907
  %6909 = vrot.lane.b32.xlu0 %v5158, 56
  %v6910 = vpop.permute.xlu0 %6909
  %6911 = vrot.lane.b32.xlu0 %v5159, 56
  %v6912 = vpop.permute.xlu0 %6911
  %6913 = vrot.lane.b32.xlu0 %v5160, 56
  %v6914 = vpop.permute.xlu0 %6913
  %6915 = vrot.lane.b32.xlu0 %v5161, 56
  %v6916 = vpop.permute.xlu0 %6915
  %6917 = vrot.lane.b32.xlu0 %v5162, 56
  %v6918 = vpop.permute.xlu0 %6917
  %6919 = vrot.lane.b32.xlu0 %v5163, 56
  %v6920 = vpop.permute.xlu0 %6919
  %6921 = vrot.lane.b32.xlu0 %v5164, 56
  %v6922 = vpop.permute.xlu0 %6921
  %6923 = vrot.lane.b32.xlu0 %v5165, 56
  %v6924 = vpop.permute.xlu0 %6923
  %6925 = vrot.lane.b32.xlu0 %v5166, 56
  %v6926 = vpop.permute.xlu0 %6925
  %6927 = vrot.lane.b32.xlu0 %v5167, 56
  %v6928 = vpop.permute.xlu0 %6927
  %6929 = vrot.lane.b32.xlu0 %v5168, 56
  %v6930 = vpop.permute.xlu0 %6929
  %6931 = vrot.lane.b32.xlu0 %v5169, 56
  %v6932 = vpop.permute.xlu0 %6931
  %6933 = vrot.lane.b32.xlu0 %v5170, 56
  %v6934 = vpop.permute.xlu0 %6933
  %6935 = vrot.lane.b32.xlu0 %v5171, 56
  %v6936 = vpop.permute.xlu0 %6935
  %6937 = vrot.lane.b32.xlu0 %v5172, 56
  %v6938 = vpop.permute.xlu0 %6937
  %6939 = vrot.lane.b32.xlu0 %v5173, 56
  %v6940 = vpop.permute.xlu0 %6939
  %6941 = vrot.lane.b32.xlu0 %v5174, 56
  %v6942 = vpop.permute.xlu0 %6941
  %6943 = vrot.lane.b32.xlu0 %v5175, 56
  %v6944 = vpop.permute.xlu0 %6943
  %6945 = vrot.lane.b32.xlu0 %v5176, 56
  %v6946 = vpop.permute.xlu0 %6945
  %6947 = vrot.lane.b32.xlu0 %v5177, 56
  %v6948 = vpop.permute.xlu0 %6947
  %6949 = vrot.lane.b32.xlu0 %v5178, 56
  %v6950 = vpop.permute.xlu0 %6949
  %6951 = vrot.lane.b32.xlu0 %v5179, 56
  %v6952 = vpop.permute.xlu0 %6951
  %6953 = vrot.lane.b32.xlu0 %v5180, 56
  %v6954 = vpop.permute.xlu0 %6953
  %6955 = vrot.lane.b32.xlu0 %v5181, 56
  %v6956 = vpop.permute.xlu0 %6955
  %6957 = vrot.lane.b32.xlu0 %v5182, 56
  %v6958 = vpop.permute.xlu0 %6957
  %6959 = vrot.lane.b32.xlu0 %v5183, 56
  %v6960 = vpop.permute.xlu0 %6959
  %6961 = vrot.lane.b32.xlu0 %v5184, 56
  %v6962 = vpop.permute.xlu0 %6961
  %6963 = vrot.lane.b32.xlu0 %v5185, 56
  %v6964 = vpop.permute.xlu0 %6963
  %6965 = vrot.lane.b32.xlu0 %v5186, 56
  %v6966 = vpop.permute.xlu0 %6965
  %6967 = vrot.lane.b32.xlu0 %v5187, 56
  %v6968 = vpop.permute.xlu0 %6967
  %6969 = vrot.lane.b32.xlu0 %v5188, 56
  %v6970 = vpop.permute.xlu0 %6969
  %6971 = vrot.lane.b32.xlu0 %v5189, 56
  %v6972 = vpop.permute.xlu0 %6971
  %6973 = vrot.lane.b32.xlu0 %v5190, 56
  %v6974 = vpop.permute.xlu0 %6973
  %6975 = vrot.lane.b32.xlu0 %v5191, 56
  %v6976 = vpop.permute.xlu0 %6975
  %6977 = vrot.lane.b32.xlu0 %v5192, 56
  %v6978 = vpop.permute.xlu0 %6977
  %6979 = vrot.lane.b32.xlu0 %v5193, 56
  %v6980 = vpop.permute.xlu0 %6979
  %6981 = vrot.lane.b32.xlu0 %v5194, 56
  %v6982 = vpop.permute.xlu0 %6981
  %6983 = vrot.lane.b32.xlu0 %v5195, 56
  %v6984 = vpop.permute.xlu0 %6983
  %6985 = vrot.lane.b32.xlu0 %v5196, 56
  %v6986 = vpop.permute.xlu0 %6985
  %6987 = vrot.lane.b32.xlu0 %v5197, 56
  %v6988 = vpop.permute.xlu0 %6987
  %6989 = vrot.lane.b32.xlu0 %v5198, 56
  %v6990 = vpop.permute.xlu0 %6989
  %7119 = vrot.lane.b32.xlu0 %v5199, 64
  %v7120 = vpop.permute.xlu0 %7119
  %7121 = vrot.lane.b32.xlu0 %v5200, 64
  %v7122 = vpop.permute.xlu0 %7121
  %7123 = vrot.lane.b32.xlu0 %v5201, 64
  %v7124 = vpop.permute.xlu0 %7123
  %7125 = vrot.lane.b32.xlu0 %v5202, 64
  %v7126 = vpop.permute.xlu0 %7125
  %7127 = vrot.lane.b32.xlu0 %v5203, 64
  %v7128 = vpop.permute.xlu0 %7127
  %7129 = vrot.lane.b32.xlu0 %v5204, 64
  %v7130 = vpop.permute.xlu0 %7129
  %7131 = vrot.lane.b32.xlu0 %v5205, 64
  %v7132 = vpop.permute.xlu0 %7131
  %7133 = vrot.lane.b32.xlu0 %v5206, 64
  %v7134 = vpop.permute.xlu0 %7133
  %7135 = vrot.lane.b32.xlu0 %v5207, 64
  %v7136 = vpop.permute.xlu0 %7135
  %7137 = vrot.lane.b32.xlu0 %v5208, 64
  %v7138 = vpop.permute.xlu0 %7137
  %7139 = vrot.lane.b32.xlu0 %v5209, 64
  %v7140 = vpop.permute.xlu0 %7139
  %7141 = vrot.lane.b32.xlu0 %v5210, 64
  %v7142 = vpop.permute.xlu0 %7141
  %7143 = vrot.lane.b32.xlu0 %v5211, 64
  %v7144 = vpop.permute.xlu0 %7143
  %7145 = vrot.lane.b32.xlu0 %v5212, 64
  %v7146 = vpop.permute.xlu0 %7145
  %7147 = vrot.lane.b32.xlu0 %v5213, 64
  %v7148 = vpop.permute.xlu0 %7147
  %7149 = vrot.lane.b32.xlu0 %v5214, 64
  %v7150 = vpop.permute.xlu0 %7149
  %7151 = vrot.lane.b32.xlu0 %v5215, 64
  %v7152 = vpop.permute.xlu0 %7151
  %7153 = vrot.lane.b32.xlu0 %v5216, 64
  %v7154 = vpop.permute.xlu0 %7153
  %7155 = vrot.lane.b32.xlu0 %v5217, 64
  %v7156 = vpop.permute.xlu0 %7155
  %7157 = vrot.lane.b32.xlu0 %v5218, 64
  %v7158 = vpop.permute.xlu0 %7157
  %7159 = vrot.lane.b32.xlu0 %v5219, 64
  %v7160 = vpop.permute.xlu0 %7159
  %7161 = vrot.lane.b32.xlu0 %v5220, 64
  %v7162 = vpop.permute.xlu0 %7161
  %7163 = vrot.lane.b32.xlu0 %v5221, 64
  %v7164 = vpop.permute.xlu0 %7163
  %7165 = vrot.lane.b32.xlu0 %v5222, 64
  %v7166 = vpop.permute.xlu0 %7165
  %7167 = vrot.lane.b32.xlu0 %v5223, 64
  %v7168 = vpop.permute.xlu0 %7167
  %7169 = vrot.lane.b32.xlu0 %v5224, 64
  %v7170 = vpop.permute.xlu0 %7169
  %7171 = vrot.lane.b32.xlu0 %v5225, 64
  %v7172 = vpop.permute.xlu0 %7171
  %7173 = vrot.lane.b32.xlu0 %v5226, 64
  %v7174 = vpop.permute.xlu0 %7173
  %7175 = vrot.lane.b32.xlu0 %v5227, 64
  %v7176 = vpop.permute.xlu0 %7175
  %7177 = vrot.lane.b32.xlu0 %v5228, 64
  %v7178 = vpop.permute.xlu0 %7177
  %7179 = vrot.lane.b32.xlu0 %v5229, 64
  %v7180 = vpop.permute.xlu0 %7179
  %7181 = vrot.lane.b32.xlu0 %v5230, 64
  %v7182 = vpop.permute.xlu0 %7181
  %7183 = vrot.lane.b32.xlu0 %v5231, 64
  %v7184 = vpop.permute.xlu0 %7183
  %7185 = vrot.lane.b32.xlu0 %v5232, 64
  %v7186 = vpop.permute.xlu0 %7185
  %7187 = vrot.lane.b32.xlu0 %v5233, 64
  %v7188 = vpop.permute.xlu0 %7187
  %7189 = vrot.lane.b32.xlu0 %v5234, 64
  %v7190 = vpop.permute.xlu0 %7189
  %7191 = vrot.lane.b32.xlu0 %v5235, 64
  %v7192 = vpop.permute.xlu0 %7191
  %7193 = vrot.lane.b32.xlu0 %v5236, 64
  %v7194 = vpop.permute.xlu0 %7193
  %7195 = vrot.lane.b32.xlu0 %v5237, 64
  %v7196 = vpop.permute.xlu0 %7195
  %7197 = vrot.lane.b32.xlu0 %v5238, 64
  %v7198 = vpop.permute.xlu0 %7197
  %7199 = vrot.lane.b32.xlu0 %v5239, 64
  %v7200 = vpop.permute.xlu0 %7199
  %7201 = vrot.lane.b32.xlu0 %v5240, 64
  %v7202 = vpop.permute.xlu0 %7201
  %7203 = vrot.lane.b32.xlu0 %v5241, 64
  %v7204 = vpop.permute.xlu0 %7203
  %7205 = vrot.lane.b32.xlu0 %v5242, 64
  %v7206 = vpop.permute.xlu0 %7205
  %7207 = vrot.lane.b32.xlu0 %v5243, 64
  %v7208 = vpop.permute.xlu0 %7207
  %7209 = vrot.lane.b32.xlu0 %v5244, 64
  %v7210 = vpop.permute.xlu0 %7209
  %7211 = vrot.lane.b32.xlu0 %v5245, 64
  %v7212 = vpop.permute.xlu0 %7211
  %7213 = vrot.lane.b32.xlu0 %v5246, 64
  %v7214 = vpop.permute.xlu0 %7213
  %7215 = vrot.lane.b32.xlu0 %v5247, 64
  %v7216 = vpop.permute.xlu0 %7215
  %7217 = vrot.lane.b32.xlu0 %v5248, 64
  %v7218 = vpop.permute.xlu0 %7217
  %7219 = vrot.lane.b32.xlu0 %v5249, 64
  %v7220 = vpop.permute.xlu0 %7219
  %7221 = vrot.lane.b32.xlu0 %v5250, 64
  %v7222 = vpop.permute.xlu0 %7221
  %7223 = vrot.lane.b32.xlu0 %v5251, 64
  %v7224 = vpop.permute.xlu0 %7223
  %7225 = vrot.lane.b32.xlu0 %v5252, 64
  %v7226 = vpop.permute.xlu0 %7225
  %7227 = vrot.lane.b32.xlu0 %v5253, 64
  %v7228 = vpop.permute.xlu0 %7227
  %7229 = vrot.lane.b32.xlu0 %v5254, 64
  %v7230 = vpop.permute.xlu0 %7229
  %7231 = vrot.lane.b32.xlu0 %v5255, 64
  %v7232 = vpop.permute.xlu0 %7231
  %7233 = vrot.lane.b32.xlu0 %v5256, 64
  %v7234 = vpop.permute.xlu0 %7233
  %7235 = vrot.lane.b32.xlu0 %v5257, 64
  %v7236 = vpop.permute.xlu0 %7235
  %7237 = vrot.lane.b32.xlu0 %v5258, 64
  %v7238 = vpop.permute.xlu0 %7237
  %7239 = vrot.lane.b32.xlu0 %v5259, 64
  %v7240 = vpop.permute.xlu0 %7239
  %7241 = vrot.lane.b32.xlu0 %v5260, 64
  %v7242 = vpop.permute.xlu0 %7241
  %7243 = vrot.lane.b32.xlu0 %v5261, 64
  %v7244 = vpop.permute.xlu0 %7243
  %7245 = vrot.lane.b32.xlu0 %v5262, 64
  %v7246 = vpop.permute.xlu0 %7245
  %v7311 = vsel %vm2738, %v4686, %v5328
  %v7312 = vsel %vm2738, %v4687, %v5330
  %v7313 = vsel %vm2738, %v4688, %v5332
  %v7314 = vsel %vm2738, %v4689, %v5334
  %v7315 = vsel %vm2738, %v4690, %v5336
  %v7316 = vsel %vm2738, %v4691, %v5338
  %v7317 = vsel %vm2738, %v4692, %v5340
  %v7318 = vsel %vm2738, %v4693, %v5342
  %v7319 = vsel %vm2738, %v4694, %v5344
  %v7320 = vsel %vm2738, %v4695, %v5346
  %v7321 = vsel %vm2738, %v4696, %v5348
  %v7322 = vsel %vm2738, %v4697, %v5350
  %v7323 = vsel %vm2738, %v4698, %v5352
  %v7324 = vsel %vm2738, %v4699, %v5354
  %v7325 = vsel %vm2738, %v4700, %v5356
  %v7326 = vsel %vm2738, %v4701, %v5358
  %v7327 = vsel %vm2738, %v4702, %v5360
  %v7328 = vsel %vm2738, %v4703, %v5362
  %v7329 = vsel %vm2738, %v4704, %v5364
  %v7330 = vsel %vm2738, %v4705, %v5366
  %v7331 = vsel %vm2738, %v4706, %v5368
  %v7332 = vsel %vm2738, %v4707, %v5370
  %v7333 = vsel %vm2738, %v4708, %v5372
  %v7334 = vsel %vm2738, %v4709, %v5374
  %v7335 = vsel %vm2738, %v4710, %v5376
  %v7336 = vsel %vm2738, %v4711, %v5378
  %v7337 = vsel %vm2738, %v4712, %v5380
  %v7338 = vsel %vm2738, %v4713, %v5382
  %v7339 = vsel %vm2738, %v4714, %v5384
  %v7340 = vsel %vm2738, %v4715, %v5386
  %v7341 = vsel %vm2738, %v4716, %v5388
  %v7342 = vsel %vm2738, %v4717, %v5390
  %v7343 = vsel %vm2738, %v4718, %v5392
  %v7344 = vsel %vm2738, %v4719, %v5394
  %v7345 = vsel %vm2738, %v4720, %v5396
  %v7346 = vsel %vm2738, %v4721, %v5398
  %v7347 = vsel %vm2738, %v4722, %v5400
  %v7348 = vsel %vm2738, %v4723, %v5402
  %v7349 = vsel %vm2738, %v4724, %v5404
  %v7350 = vsel %vm2738, %v4725, %v5406
  %v7351 = vsel %vm2738, %v4726, %v5408
  %v7352 = vsel %vm2738, %v4727, %v5410
  %v7353 = vsel %vm2738, %v4728, %v5412
  %v7354 = vsel %vm2738, %v4729, %v5414
  %v7355 = vsel %vm2738, %v4730, %v5416
  %v7356 = vsel %vm2738, %v4731, %v5418
  %v7357 = vsel %vm2738, %v4732, %v5420
  %v7358 = vsel %vm2738, %v4733, %v5422
  %v7359 = vsel %vm2738, %v4734, %v5424
  %v7360 = vsel %vm2738, %v4735, %v5426
  %v7361 = vsel %vm2738, %v4736, %v5428
  %v7362 = vsel %vm2738, %v4737, %v5430
  %v7363 = vsel %vm2738, %v4738, %v5432
  %v7364 = vsel %vm2738, %v4739, %v5434
  %v7365 = vsel %vm2738, %v4740, %v5436
  %v7366 = vsel %vm2738, %v4741, %v5438
  %v7367 = vsel %vm2738, %v4742, %v5440
  %v7368 = vsel %vm2738, %v4743, %v5442
  %v7369 = vsel %vm2738, %v4744, %v5444
  %v7370 = vsel %vm2738, %v4745, %v5446
  %v7371 = vsel %vm2738, %v4746, %v5448
  %v7372 = vsel %vm2738, %v4747, %v5450
  %v7373 = vsel %vm2738, %v4748, %v5452
  %v7374 = vsel %vm2738, %v4749, %v5454
  %v7375 = vsel %vm2868, %v7311, %v5584
  %v7376 = vsel %vm2868, %v7312, %v5586
  %v7377 = vsel %vm2868, %v7313, %v5588
  %v7378 = vsel %vm2868, %v7314, %v5590
  %v7379 = vsel %vm2868, %v7315, %v5592
  %v7380 = vsel %vm2868, %v7316, %v5594
  %v7381 = vsel %vm2868, %v7317, %v5596
  %v7382 = vsel %vm2868, %v7318, %v5598
  %v7383 = vsel %vm2868, %v7319, %v5600
  %v7384 = vsel %vm2868, %v7320, %v5602
  %v7385 = vsel %vm2868, %v7321, %v5604
  %v7386 = vsel %vm2868, %v7322, %v5606
  %v7387 = vsel %vm2868, %v7323, %v5608
  %v7388 = vsel %vm2868, %v7324, %v5610
  %v7389 = vsel %vm2868, %v7325, %v5612
  %v7390 = vsel %vm2868, %v7326, %v5614
  %v7391 = vsel %vm2868, %v7327, %v5616
  %v7392 = vsel %vm2868, %v7328, %v5618
  %v7393 = vsel %vm2868, %v7329, %v5620
  %v7394 = vsel %vm2868, %v7330, %v5622
  %v7395 = vsel %vm2868, %v7331, %v5624
  %v7396 = vsel %vm2868, %v7332, %v5626
  %v7397 = vsel %vm2868, %v7333, %v5628
  %v7398 = vsel %vm2868, %v7334, %v5630
  %v7399 = vsel %vm2868, %v7335, %v5632
  %v7400 = vsel %vm2868, %v7336, %v5634
  %v7401 = vsel %vm2868, %v7337, %v5636
  %v7402 = vsel %vm2868, %v7338, %v5638
  %v7403 = vsel %vm2868, %v7339, %v5640
  %v7404 = vsel %vm2868, %v7340, %v5642
  %v7405 = vsel %vm2868, %v7341, %v5644
  %v7406 = vsel %vm2868, %v7342, %v5646
  %v7407 = vsel %vm2868, %v7343, %v5648
  %v7408 = vsel %vm2868, %v7344, %v5650
  %v7409 = vsel %vm2868, %v7345, %v5652
  %v7410 = vsel %vm2868, %v7346, %v5654
  %v7411 = vsel %vm2868, %v7347, %v5656
  %v7412 = vsel %vm2868, %v7348, %v5658
  %v7413 = vsel %vm2868, %v7349, %v5660
  %v7414 = vsel %vm2868, %v7350, %v5662
  %v7415 = vsel %vm2868, %v7351, %v5664
  %v7416 = vsel %vm2868, %v7352, %v5666
  %v7417 = vsel %vm2868, %v7353, %v5668
  %v7418 = vsel %vm2868, %v7354, %v5670
  %v7419 = vsel %vm2868, %v7355, %v5672
  %v7420 = vsel %vm2868, %v7356, %v5674
  %v7421 = vsel %vm2868, %v7357, %v5676
  %v7422 = vsel %vm2868, %v7358, %v5678
  %v7423 = vsel %vm2868, %v7359, %v5680
  %v7424 = vsel %vm2868, %v7360, %v5682
  %v7425 = vsel %vm2868, %v7361, %v5684
  %v7426 = vsel %vm2868, %v7362, %v5686
  %v7427 = vsel %vm2868, %v7363, %v5688
  %v7428 = vsel %vm2868, %v7364, %v5690
  %v7429 = vsel %vm2868, %v7365, %v5692
  %v7430 = vsel %vm2868, %v7366, %v5694
  %v7431 = vsel %vm2868, %v7367, %v5696
  %v7432 = vsel %vm2868, %v7368, %v5698
  %v7433 = vsel %vm2868, %v7369, %v5700
  %v7434 = vsel %vm2868, %v7370, %v5702
  %v7435 = vsel %vm2868, %v7371, %v5704
  %v7436 = vsel %vm2868, %v7372, %v5706
  %v7437 = vsel %vm2868, %v7373, %v5708
  %v7438 = vsel %vm2868, %v7374, %v5710
  %v7439 = vsel %vm2998, %v7375, %v5840
  %v7440 = vsel %vm2998, %v7376, %v5842
  %v7441 = vsel %vm2998, %v7377, %v5844
  %v7442 = vsel %vm2998, %v7378, %v5846
  %v7443 = vsel %vm2998, %v7379, %v5848
  %v7444 = vsel %vm2998, %v7380, %v5850
  %v7445 = vsel %vm2998, %v7381, %v5852
  %v7446 = vsel %vm2998, %v7382, %v5854
  %v7447 = vsel %vm2998, %v7383, %v5856
  %v7448 = vsel %vm2998, %v7384, %v5858
  %v7449 = vsel %vm2998, %v7385, %v5860
  %v7450 = vsel %vm2998, %v7386, %v5862
  %v7451 = vsel %vm2998, %v7387, %v5864
  %v7452 = vsel %vm2998, %v7388, %v5866
  %v7453 = vsel %vm2998, %v7389, %v5868
  %v7454 = vsel %vm2998, %v7390, %v5870
  %v7455 = vsel %vm2998, %v7391, %v5872
  %v7456 = vsel %vm2998, %v7392, %v5874
  %v7457 = vsel %vm2998, %v7393, %v5876
  %v7458 = vsel %vm2998, %v7394, %v5878
  %v7459 = vsel %vm2998, %v7395, %v5880
  %v7460 = vsel %vm2998, %v7396, %v5882
  %v7461 = vsel %vm2998, %v7397, %v5884
  %v7462 = vsel %vm2998, %v7398, %v5886
  %v7463 = vsel %vm2998, %v7399, %v5888
  %v7464 = vsel %vm2998, %v7400, %v5890
  %v7465 = vsel %vm2998, %v7401, %v5892
  %v7466 = vsel %vm2998, %v7402, %v5894
  %v7467 = vsel %vm2998, %v7403, %v5896
  %v7468 = vsel %vm2998, %v7404, %v5898
  %v7469 = vsel %vm2998, %v7405, %v5900
  %v7470 = vsel %vm2998, %v7406, %v5902
  %v7471 = vsel %vm2998, %v7407, %v5904
  %v7472 = vsel %vm2998, %v7408, %v5906
  %v7473 = vsel %vm2998, %v7409, %v5908
  %v7474 = vsel %vm2998, %v7410, %v5910
  %v7475 = vsel %vm2998, %v7411, %v5912
  %v7476 = vsel %vm2998, %v7412, %v5914
  %v7477 = vsel %vm2998, %v7413, %v5916
  %v7478 = vsel %vm2998, %v7414, %v5918
  %v7479 = vsel %vm2998, %v7415, %v5920
  %v7480 = vsel %vm2998, %v7416, %v5922
  %v7481 = vsel %vm2998, %v7417, %v5924
  %v7482 = vsel %vm2998, %v7418, %v5926
  %v7483 = vsel %vm2998, %v7419, %v5928
  %v7484 = vsel %vm2998, %v7420, %v5930
  %v7485 = vsel %vm2998, %v7421, %v5932
  %v7486 = vsel %vm2998, %v7422, %v5934
  %v7487 = vsel %vm2998, %v7423, %v5936
  %v7488 = vsel %vm2998, %v7424, %v5938
  %v7489 = vsel %vm2998, %v7425, %v5940
  %v7490 = vsel %vm2998, %v7426, %v5942
  %v7491 = vsel %vm2998, %v7427, %v5944
  %v7492 = vsel %vm2998, %v7428, %v5946
  %v7493 = vsel %vm2998, %v7429, %v5948
  %v7494 = vsel %vm2998, %v7430, %v5950
  %v7495 = vsel %vm2998, %v7431, %v5952
  %v7496 = vsel %vm2998, %v7432, %v5954
  %v7497 = vsel %vm2998, %v7433, %v5956
  %v7498 = vsel %vm2998, %v7434, %v5958
  %v7499 = vsel %vm2998, %v7435, %v5960
  %v7500 = vsel %vm2998, %v7436, %v5962
  %v7501 = vsel %vm2998, %v7437, %v5964
  %v7502 = vsel %vm2998, %v7438, %v5966
  %v7503 = vsel %vm3128, %v7439, %v6096
  %v7504 = vsel %vm3128, %v7440, %v6098
  %v7505 = vsel %vm3128, %v7441, %v6100
  %v7506 = vsel %vm3128, %v7442, %v6102
  %v7507 = vsel %vm3128, %v7443, %v6104
  %v7508 = vsel %vm3128, %v7444, %v6106
  %v7509 = vsel %vm3128, %v7445, %v6108
  %v7510 = vsel %vm3128, %v7446, %v6110
  %v7511 = vsel %vm3128, %v7447, %v6112
  %v7512 = vsel %vm3128, %v7448, %v6114
  %v7513 = vsel %vm3128, %v7449, %v6116
  %v7514 = vsel %vm3128, %v7450, %v6118
  %v7515 = vsel %vm3128, %v7451, %v6120
  %v7516 = vsel %vm3128, %v7452, %v6122
  %v7517 = vsel %vm3128, %v7453, %v6124
  %v7518 = vsel %vm3128, %v7454, %v6126
  %v7519 = vsel %vm3128, %v7455, %v6128
  %v7520 = vsel %vm3128, %v7456, %v6130
  %v7521 = vsel %vm3128, %v7457, %v6132
  %v7522 = vsel %vm3128, %v7458, %v6134
  %v7523 = vsel %vm3128, %v7459, %v6136
  %v7524 = vsel %vm3128, %v7460, %v6138
  %v7525 = vsel %vm3128, %v7461, %v6140
  %v7526 = vsel %vm3128, %v7462, %v6142
  %v7527 = vsel %vm3128, %v7463, %v6144
  %v7528 = vsel %vm3128, %v7464, %v6146
  %v7529 = vsel %vm3128, %v7465, %v6148
  %v7530 = vsel %vm3128, %v7466, %v6150
  %v7531 = vsel %vm3128, %v7467, %v6152
  %v7532 = vsel %vm3128, %v7468, %v6154
  %v7533 = vsel %vm3128, %v7469, %v6156
  %v7534 = vsel %vm3128, %v7470, %v6158
  %v7535 = vsel %vm3128, %v7471, %v6160
  %v7536 = vsel %vm3128, %v7472, %v6162
  %v7537 = vsel %vm3128, %v7473, %v6164
  %v7538 = vsel %vm3128, %v7474, %v6166
  %v7539 = vsel %vm3128, %v7475, %v6168
  %v7540 = vsel %vm3128, %v7476, %v6170
  %v7541 = vsel %vm3128, %v7477, %v6172
  %v7542 = vsel %vm3128, %v7478, %v6174
  %v7543 = vsel %vm3128, %v7479, %v6176
  %v7544 = vsel %vm3128, %v7480, %v6178
  %v7545 = vsel %vm3128, %v7481, %v6180
  %v7546 = vsel %vm3128, %v7482, %v6182
  %v7547 = vsel %vm3128, %v7483, %v6184
  %v7548 = vsel %vm3128, %v7484, %v6186
  %v7549 = vsel %vm3128, %v7485, %v6188
  %v7550 = vsel %vm3128, %v7486, %v6190
  %v7551 = vsel %vm3128, %v7487, %v6192
  %v7552 = vsel %vm3128, %v7488, %v6194
  %v7553 = vsel %vm3128, %v7489, %v6196
  %v7554 = vsel %vm3128, %v7490, %v6198
  %v7555 = vsel %vm3128, %v7491, %v6200
  %v7556 = vsel %vm3128, %v7492, %v6202
  %v7557 = vsel %vm3128, %v7493, %v6204
  %v7558 = vsel %vm3128, %v7494, %v6206
  %v7559 = vsel %vm3128, %v7495, %v6208
  %v7560 = vsel %vm3128, %v7496, %v6210
  %v7561 = vsel %vm3128, %v7497, %v6212
  %v7562 = vsel %vm3128, %v7498, %v6214
  %v7563 = vsel %vm3128, %v7499, %v6216
  %v7564 = vsel %vm3128, %v7500, %v6218
  %v7565 = vsel %vm3128, %v7501, %v6220
  %v7566 = vsel %vm3128, %v7502, %v6222
  %vm7567 = vcmask 326656
  %v7568 = vsel %vm7567, %v7503, %v6352
  %v7569 = vsel %vm7567, %v7504, %v6354
  %v7570 = vsel %vm7567, %v7505, %v6356
  %v7571 = vsel %vm7567, %v7506, %v6358
  %v7572 = vsel %vm7567, %v7507, %v6360
  %v7573 = vsel %vm7567, %v7508, %v6362
  %v7574 = vsel %vm7567, %v7509, %v6364
  %v7575 = vsel %vm7567, %v7510, %v6366
  %v7576 = vsel %vm7567, %v7511, %v6368
  %v7577 = vsel %vm7567, %v7512, %v6370
  %v7578 = vsel %vm7567, %v7513, %v6372
  %v7579 = vsel %vm7567, %v7514, %v6374
  %v7580 = vsel %vm7567, %v7515, %v6376
  %v7581 = vsel %vm7567, %v7516, %v6378
  %v7582 = vsel %vm7567, %v7517, %v6380
  %v7583 = vsel %vm7567, %v7518, %v6382
  %v7584 = vsel %vm7567, %v7519, %v6384
  %v7585 = vsel %vm7567, %v7520, %v6386
  %v7586 = vsel %vm7567, %v7521, %v6388
  %v7587 = vsel %vm7567, %v7522, %v6390
  %v7588 = vsel %vm7567, %v7523, %v6392
  %v7589 = vsel %vm7567, %v7524, %v6394
  %v7590 = vsel %vm7567, %v7525, %v6396
  %v7591 = vsel %vm7567, %v7526, %v6398
  %v7592 = vsel %vm7567, %v7527, %v6400
  %v7593 = vsel %vm7567, %v7528, %v6402
  %v7594 = vsel %vm7567, %v7529, %v6404
  %v7595 = vsel %vm7567, %v7530, %v6406
  %v7596 = vsel %vm7567, %v7531, %v6408
  %v7597 = vsel %vm7567, %v7532, %v6410
  %v7598 = vsel %vm7567, %v7533, %v6412
  %v7599 = vsel %vm7567, %v7534, %v6414
  %v7600 = vsel %vm7567, %v7535, %v6416
  %v7601 = vsel %vm7567, %v7536, %v6418
  %v7602 = vsel %vm7567, %v7537, %v6420
  %v7603 = vsel %vm7567, %v7538, %v6422
  %v7604 = vsel %vm7567, %v7539, %v6424
  %v7605 = vsel %vm7567, %v7540, %v6426
  %v7606 = vsel %vm7567, %v7541, %v6428
  %v7607 = vsel %vm7567, %v7542, %v6430
  %v7608 = vsel %vm7567, %v7543, %v6432
  %v7609 = vsel %vm7567, %v7544, %v6434
  %v7610 = vsel %vm7567, %v7545, %v6436
  %v7611 = vsel %vm7567, %v7546, %v6438
  %v7612 = vsel %vm7567, %v7547, %v6440
  %v7613 = vsel %vm7567, %v7548, %v6442
  %v7614 = vsel %vm7567, %v7549, %v6444
  %v7615 = vsel %vm7567, %v7550, %v6446
  %v7616 = vsel %vm7567, %v7551, %v6448
  %v7617 = vsel %vm7567, %v7552, %v6450
  %v7618 = vsel %vm7567, %v7553, %v6452
  %v7619 = vsel %vm7567, %v7554, %v6454
  %v7620 = vsel %vm7567, %v7555, %v6456
  %v7621 = vsel %vm7567, %v7556, %v6458
  %v7622 = vsel %vm7567, %v7557, %v6460
  %v7623 = vsel %vm7567, %v7558, %v6462
  %v7624 = vsel %vm7567, %v7559, %v6464
  %v7625 = vsel %vm7567, %v7560, %v6466
  %v7626 = vsel %vm7567, %v7561, %v6468
  %v7627 = vsel %vm7567, %v7562, %v6470
  %v7628 = vsel %vm7567, %v7563, %v6472
  %v7629 = vsel %vm7567, %v7564, %v6474
  %v7630 = vsel %vm7567, %v7565, %v6476
  %v7631 = vsel %vm7567, %v7566, %v6478
  %vm7632 = vcmask 392192
  %v7633 = vsel %vm7632, %v7568, %v6608
  %v7634 = vsel %vm7632, %v7569, %v6610
  %v7635 = vsel %vm7632, %v7570, %v6612
  %v7636 = vsel %vm7632, %v7571, %v6614
  %v7637 = vsel %vm7632, %v7572, %v6616
  %v7638 = vsel %vm7632, %v7573, %v6618
  %v7639 = vsel %vm7632, %v7574, %v6620
  %v7640 = vsel %vm7632, %v7575, %v6622
  %v7641 = vsel %vm7632, %v7576, %v6624
  %v7642 = vsel %vm7632, %v7577, %v6626
  %v7643 = vsel %vm7632, %v7578, %v6628
  %v7644 = vsel %vm7632, %v7579, %v6630
  %v7645 = vsel %vm7632, %v7580, %v6632
  %v7646 = vsel %vm7632, %v7581, %v6634
  %v7647 = vsel %vm7632, %v7582, %v6636
  %v7648 = vsel %vm7632, %v7583, %v6638
  %v7649 = vsel %vm7632, %v7584, %v6640
  %v7650 = vsel %vm7632, %v7585, %v6642
  %v7651 = vsel %vm7632, %v7586, %v6644
  %v7652 = vsel %vm7632, %v7587, %v6646
  %v7653 = vsel %vm7632, %v7588, %v6648
  %v7654 = vsel %vm7632, %v7589, %v6650
  %v7655 = vsel %vm7632, %v7590, %v6652
  %v7656 = vsel %vm7632, %v7591, %v6654
  %v7657 = vsel %vm7632, %v7592, %v6656
  %v7658 = vsel %vm7632, %v7593, %v6658
  %v7659 = vsel %vm7632, %v7594, %v6660
  %v7660 = vsel %vm7632, %v7595, %v6662
  %v7661 = vsel %vm7632, %v7596, %v6664
  %v7662 = vsel %vm7632, %v7597, %v6666
  %v7663 = vsel %vm7632, %v7598, %v6668
  %v7664 = vsel %vm7632, %v7599, %v6670
  %v7665 = vsel %vm7632, %v7600, %v6672
  %v7666 = vsel %vm7632, %v7601, %v6674
  %v7667 = vsel %vm7632, %v7602, %v6676
  %v7668 = vsel %vm7632, %v7603, %v6678
  %v7669 = vsel %vm7632, %v7604, %v6680
  %v7670 = vsel %vm7632, %v7605, %v6682
  %v7671 = vsel %vm7632, %v7606, %v6684
  %v7672 = vsel %vm7632, %v7607, %v6686
  %v7673 = vsel %vm7632, %v7608, %v6688
  %v7674 = vsel %vm7632, %v7609, %v6690
  %v7675 = vsel %vm7632, %v7610, %v6692
  %v7676 = vsel %vm7632, %v7611, %v6694
  %v7677 = vsel %vm7632, %v7612, %v6696
  %v7678 = vsel %vm7632, %v7613, %v6698
  %v7679 = vsel %vm7632, %v7614, %v6700
  %v7680 = vsel %vm7632, %v7615, %v6702
  %v7681 = vsel %vm7632, %v7616, %v6704
  %v7682 = vsel %vm7632, %v7617, %v6706
  %v7683 = vsel %vm7632, %v7618, %v6708
  %v7684 = vsel %vm7632, %v7619, %v6710
  %v7685 = vsel %vm7632, %v7620, %v6712
  %v7686 = vsel %vm7632, %v7621, %v6714
  %v7687 = vsel %vm7632, %v7622, %v6716
  %v7688 = vsel %vm7632, %v7623, %v6718
  %v7689 = vsel %vm7632, %v7624, %v6720
  %v7690 = vsel %vm7632, %v7625, %v6722
  %v7691 = vsel %vm7632, %v7626, %v6724
  %v7692 = vsel %vm7632, %v7627, %v6726
  %v7693 = vsel %vm7632, %v7628, %v6728
  %v7694 = vsel %vm7632, %v7629, %v6730
  %v7695 = vsel %vm7632, %v7630, %v6732
  %v7696 = vsel %vm7632, %v7631, %v6734
  %vm7697 = vcmask 457728
  %v7698 = vsel %vm7697, %v7633, %v6864
  %v7699 = vsel %vm7697, %v7634, %v6866
  %v7700 = vsel %vm7697, %v7635, %v6868
  %v7701 = vsel %vm7697, %v7636, %v6870
  %v7702 = vsel %vm7697, %v7637, %v6872
  %v7703 = vsel %vm7697, %v7638, %v6874
  %v7704 = vsel %vm7697, %v7639, %v6876
  %v7705 = vsel %vm7697, %v7640, %v6878
  %v7706 = vsel %vm7697, %v7641, %v6880
  %v7707 = vsel %vm7697, %v7642, %v6882
  %v7708 = vsel %vm7697, %v7643, %v6884
  %v7709 = vsel %vm7697, %v7644, %v6886
  %v7710 = vsel %vm7697, %v7645, %v6888
  %v7711 = vsel %vm7697, %v7646, %v6890
  %v7712 = vsel %vm7697, %v7647, %v6892
  %v7713 = vsel %vm7697, %v7648, %v6894
  %v7714 = vsel %vm7697, %v7649, %v6896
  %v7715 = vsel %vm7697, %v7650, %v6898
  %v7716 = vsel %vm7697, %v7651, %v6900
  %v7717 = vsel %vm7697, %v7652, %v6902
  %v7718 = vsel %vm7697, %v7653, %v6904
  %v7719 = vsel %vm7697, %v7654, %v6906
  %v7720 = vsel %vm7697, %v7655, %v6908
  %v7721 = vsel %vm7697, %v7656, %v6910
  %v7722 = vsel %vm7697, %v7657, %v6912
  %v7723 = vsel %vm7697, %v7658, %v6914
  %v7724 = vsel %vm7697, %v7659, %v6916
  %v7725 = vsel %vm7697, %v7660, %v6918
  %v7726 = vsel %vm7697, %v7661, %v6920
  %v7727 = vsel %vm7697, %v7662, %v6922
  %v7728 = vsel %vm7697, %v7663, %v6924
  %v7729 = vsel %vm7697, %v7664, %v6926
  %v7730 = vsel %vm7697, %v7665, %v6928
  %v7731 = vsel %vm7697, %v7666, %v6930
  %v7732 = vsel %vm7697, %v7667, %v6932
  %v7733 = vsel %vm7697, %v7668, %v6934
  %v7734 = vsel %vm7697, %v7669, %v6936
  %v7735 = vsel %vm7697, %v7670, %v6938
  %v7736 = vsel %vm7697, %v7671, %v6940
  %v7737 = vsel %vm7697, %v7672, %v6942
  %v7738 = vsel %vm7697, %v7673, %v6944
  %v7739 = vsel %vm7697, %v7674, %v6946
  %v7740 = vsel %vm7697, %v7675, %v6948
  %v7741 = vsel %vm7697, %v7676, %v6950
  %v7742 = vsel %vm7697, %v7677, %v6952
  %v7743 = vsel %vm7697, %v7678, %v6954
  %v7744 = vsel %vm7697, %v7679, %v6956
  %v7745 = vsel %vm7697, %v7680, %v6958
  %v7746 = vsel %vm7697, %v7681, %v6960
  %v7747 = vsel %vm7697, %v7682, %v6962
  %v7748 = vsel %vm7697, %v7683, %v6964
  %v7749 = vsel %vm7697, %v7684, %v6966
  %v7750 = vsel %vm7697, %v7685, %v6968
  %v7751 = vsel %vm7697, %v7686, %v6970
  %v7752 = vsel %vm7697, %v7687, %v6972
  %v7753 = vsel %vm7697, %v7688, %v6974
  %v7754 = vsel %vm7697, %v7689, %v6976
  %v7755 = vsel %vm7697, %v7690, %v6978
  %v7756 = vsel %vm7697, %v7691, %v6980
  %v7757 = vsel %vm7697, %v7692, %v6982
  %v7758 = vsel %vm7697, %v7693, %v6984
  %v7759 = vsel %vm7697, %v7694, %v6986
  %v7760 = vsel %vm7697, %v7695, %v6988
  %v7761 = vsel %vm7697, %v7696, %v6990
  %vm7762 = vcmask 523264
  %v7763 = vsel %vm7762, %v7698, %v7120
  %v7764 = vsel %vm7762, %v7699, %v7122
  %v7765 = vsel %vm7762, %v7700, %v7124
  %v7766 = vsel %vm7762, %v7701, %v7126
  %v7767 = vsel %vm7762, %v7702, %v7128
  %v7768 = vsel %vm7762, %v7703, %v7130
  %v7769 = vsel %vm7762, %v7704, %v7132
  %v7770 = vsel %vm7762, %v7705, %v7134
  %v7771 = vsel %vm7762, %v7706, %v7136
  %v7772 = vsel %vm7762, %v7707, %v7138
  %v7773 = vsel %vm7762, %v7708, %v7140
  %v7774 = vsel %vm7762, %v7709, %v7142
  %v7775 = vsel %vm7762, %v7710, %v7144
  %v7776 = vsel %vm7762, %v7711, %v7146
  %v7777 = vsel %vm7762, %v7712, %v7148
  %v7778 = vsel %vm7762, %v7713, %v7150
  %v7779 = vsel %vm7762, %v7714, %v7152
  %v7780 = vsel %vm7762, %v7715, %v7154
  %v7781 = vsel %vm7762, %v7716, %v7156
  %v7782 = vsel %vm7762, %v7717, %v7158
  %v7783 = vsel %vm7762, %v7718, %v7160
  %v7784 = vsel %vm7762, %v7719, %v7162
  %v7785 = vsel %vm7762, %v7720, %v7164
  %v7786 = vsel %vm7762, %v7721, %v7166
  %v7787 = vsel %vm7762, %v7722, %v7168
  %v7788 = vsel %vm7762, %v7723, %v7170
  %v7789 = vsel %vm7762, %v7724, %v7172
  %v7790 = vsel %vm7762, %v7725, %v7174
  %v7791 = vsel %vm7762, %v7726, %v7176
  %v7792 = vsel %vm7762, %v7727, %v7178
  %v7793 = vsel %vm7762, %v7728, %v7180
  %v7794 = vsel %vm7762, %v7729, %v7182
  %v7795 = vsel %vm7762, %v7730, %v7184
  %v7796 = vsel %vm7762, %v7731, %v7186
  %v7797 = vsel %vm7762, %v7732, %v7188
  %v7798 = vsel %vm7762, %v7733, %v7190
  %v7799 = vsel %vm7762, %v7734, %v7192
  %v7800 = vsel %vm7762, %v7735, %v7194
  %v7801 = vsel %vm7762, %v7736, %v7196
  %v7802 = vsel %vm7762, %v7737, %v7198
  %v7803 = vsel %vm7762, %v7738, %v7200
  %v7804 = vsel %vm7762, %v7739, %v7202
  %v7805 = vsel %vm7762, %v7740, %v7204
  %v7806 = vsel %vm7762, %v7741, %v7206
  %v7807 = vsel %vm7762, %v7742, %v7208
  %v7808 = vsel %vm7762, %v7743, %v7210
  %v7809 = vsel %vm7762, %v7744, %v7212
  %v7810 = vsel %vm7762, %v7745, %v7214
  %v7811 = vsel %vm7762, %v7746, %v7216
  %v7812 = vsel %vm7762, %v7747, %v7218
  %v7813 = vsel %vm7762, %v7748, %v7220
  %v7814 = vsel %vm7762, %v7749, %v7222
  %v7815 = vsel %vm7762, %v7750, %v7224
  %v7816 = vsel %vm7762, %v7751, %v7226
  %v7817 = vsel %vm7762, %v7752, %v7228
  %v7818 = vsel %vm7762, %v7753, %v7230
  %v7819 = vsel %vm7762, %v7754, %v7232
  %v7820 = vsel %vm7762, %v7755, %v7234
  %v7821 = vsel %vm7762, %v7756, %v7236
  %v7822 = vsel %vm7762, %v7757, %v7238
  %v7823 = vsel %vm7762, %v7758, %v7240
  %v7824 = vsel %vm7762, %v7759, %v7242
  %v7825 = vsel %vm7762, %v7760, %v7244
  %v7826 = vsel %vm7762, %v7761, %v7246
  %v7827 = vld [vmem:[%s8] sm:$0xff]
  %v7828 = vld [vmem:[%s8 + $0x8] sm:$0xff]
  %v7829 = vld [vmem:[%s8 + $0x10] sm:$0xff]
  %v7830 = vld [vmem:[%s8 + $0x18] sm:$0xff]
  %v7831 = vld [vmem:[%s8 + $0x20] sm:$0xff]
  %v7832 = vld [vmem:[%s8 + $0x28] sm:$0xff]
  %v7833 = vld [vmem:[%s8 + $0x30] sm:$0xff]
  %v7834 = vld [vmem:[%s8 + $0x38] sm:$0xff]
  %v7835 = vld [vmem:[%s8 + $0x40] sm:$0xff]
  %v7836 = vld [vmem:[%s9] sm:$0x1]
  %v7838 = vlaneseq
  %v7839 = vshrl.u32 %v7838, 7
  %v7840 = vsub.s32 0, %v7839
  %v7841 = vrot.slane %v7836, %v7840
  %vm7843 = vcmask 588800
  %v7845 = vsel %vm7843, %v7763, 0
  %v7848 = vsel %vm7843, %v7764, 0
  %v7851 = vsel %vm7843, %v7765, 0
  %v7854 = vsel %vm7843, %v7766, 0
  %v7857 = vsel %vm7843, %v7767, 0
  %v7860 = vsel %vm7843, %v7768, 0
  %v7863 = vsel %vm7843, %v7769, 0
  %v7866 = vsel %vm7843, %v7770, 0
  %v7869 = vsel %vm7843, %v7771, 0
  %v7872 = vsel %vm7843, %v7772, 0
  %v7875 = vsel %vm7843, %v7773, 0
  %v7878 = vsel %vm7843, %v7774, 0
  %v7881 = vsel %vm7843, %v7775, 0
  %v7884 = vsel %vm7843, %v7776, 0
  %v7887 = vsel %vm7843, %v7777, 0
  %v7890 = vsel %vm7843, %v7778, 0
  %v7893 = vsel %vm7843, %v7779, 0
  %v7896 = vsel %vm7843, %v7780, 0
  %v7899 = vsel %vm7843, %v7781, 0
  %v7902 = vsel %vm7843, %v7782, 0
  %v7905 = vsel %vm7843, %v7783, 0
  %v7908 = vsel %vm7843, %v7784, 0
  %v7911 = vsel %vm7843, %v7785, 0
  %v7914 = vsel %vm7843, %v7786, 0
  %v7917 = vsel %vm7843, %v7787, 0
  %v7920 = vsel %vm7843, %v7788, 0
  %v7923 = vsel %vm7843, %v7789, 0
  %v7926 = vsel %vm7843, %v7790, 0
  %v7929 = vsel %vm7843, %v7791, 0
  %v7932 = vsel %vm7843, %v7792, 0
  %v7935 = vsel %vm7843, %v7793, 0
  %v7938 = vsel %vm7843, %v7794, 0
  %v7941 = vsel %vm7843, %v7795, 0
  %v7944 = vsel %vm7843, %v7796, 0
  %v7947 = vsel %vm7843, %v7797, 0
  %v7950 = vsel %vm7843, %v7798, 0
  %v7953 = vsel %vm7843, %v7799, 0
  %v7956 = vsel %vm7843, %v7800, 0
  %v7959 = vsel %vm7843, %v7801, 0
  %v7962 = vsel %vm7843, %v7802, 0
  %v7965 = vsel %vm7843, %v7803, 0
  %v7968 = vsel %vm7843, %v7804, 0
  %v7971 = vsel %vm7843, %v7805, 0
  %v7974 = vsel %vm7843, %v7806, 0
  %v7977 = vsel %vm7843, %v7807, 0
  %v7980 = vsel %vm7843, %v7808, 0
  %v7983 = vsel %vm7843, %v7809, 0
  %v7986 = vsel %vm7843, %v7810, 0
  %v7989 = vsel %vm7843, %v7811, 0
  %v7992 = vsel %vm7843, %v7812, 0
  %v7995 = vsel %vm7843, %v7813, 0
  %v7998 = vsel %vm7843, %v7814, 0
  %v8001 = vsel %vm7843, %v7815, 0
  %v8004 = vsel %vm7843, %v7816, 0
  %v8007 = vsel %vm7843, %v7817, 0
  %v8010 = vsel %vm7843, %v7818, 0
  %v8013 = vsel %vm7843, %v7819, 0
  %v8016 = vsel %vm7843, %v7820, 0
  %v8019 = vsel %vm7843, %v7821, 0
  %v8022 = vsel %vm7843, %v7822, 0
  %v8025 = vsel %vm7843, %v7823, 0
  %v8028 = vsel %vm7843, %v7824, 0
  %v8031 = vsel %vm7843, %v7825, 0
  %v8034 = vsel %vm7843, %v7826, 0
  %8036 = vmatprep.subr.mxu0 0.0
  %8037 = vmatpush1.msra.mxu0 %v7827
  %8038 = vmatprep.subr.mxu0 0.0
  %8039 = vmatpush1.msra.mxu0 %v7828
  %8040 = vmatprep.subr.mxu0 0.0
  %8041 = vmatpush1.msra.mxu0 %v7829
  %8042 = vmatprep.subr.mxu0 0.0
  %8043 = vmatpush1.msra.mxu0 %v7830
  %8044 = vmatprep.subr.mxu0 0.0
  %8045 = vmatpush1.msra.mxu0 %v7831
  %8046 = vmatprep.subr.mxu0 0.0
  %8047 = vmatpush1.msra.mxu0 %v7832
  %8048 = vmatprep.subr.mxu0 0.0
  %8049 = vmatpush1.msra.mxu0 %v7833
  %8050 = vmatprep.subr.mxu0 0.0
  %8051 = vmatpush1.msra.mxu0 %v7834
  %8052 = vmatprep.subr.mxu0 0.0
  %8053 = vmatpush1.msra.mxu0 %v7835
  %8054 = vmatprep.subr.mxu0 0.0
  %8055 = vmatpush1.msra.mxu0 0.0
  %8056 = vmatprep.subr.mxu0 0.0
  %8057 = vmatpush1.msra.mxu0 0.0
  %8058 = vmatprep.subr.mxu0 0.0
  %8059 = vmatpush1.msra.mxu0 0.0
  %8060 = vmatprep.subr.mxu0 0.0
  %8061 = vmatpush1.msra.mxu0 0.0
  %8062 = vmatprep.subr.mxu0 0.0
  %8063 = vmatpush1.msra.mxu0 0.0
  %8064 = vmatprep.subr.mxu0 0.0
  %8065 = vmatpush1.msra.mxu0 0.0
  %8066 = vmatprep.subr.mxu0 0.0
  %8067 = vmatpush1.msra.mxu0 0.0
  %8068 = vmatprep.subr.mxu0 0.0
  %8069 = vmatpush1.msra.mxu0 0.0
  %8070 = vmatprep.subr.mxu0 0.0
  %8071 = vmatpush1.msra.mxu0 0.0
  %8072 = vmatprep.subr.mxu0 0.0
  %8073 = vmatpush1.msra.mxu0 0.0
  %8074 = vmatprep.subr.mxu0 0.0
  %8075 = vmatpush1.msra.mxu0 0.0
  %8076 = vmatprep.subr.mxu0 0.0
  %8077 = vmatpush1.msra.mxu0 0.0
  %8078 = vmatprep.subr.mxu0 0.0
  %8079 = vmatpush1.msra.mxu0 0.0
  %8080 = vmatprep.subr.mxu0 0.0
  %8081 = vmatpush1.msra.mxu0 0.0
  %8082 = vmatprep.subr.mxu0 0.0
  %8083 = vmatpush1.msra.mxu0 0.0
  %8084 = vmatprep.subr.mxu0 0.0
  %8085 = vmatpush1.msra.mxu0 0.0
  %8086 = vmatprep.subr.mxu0 0.0
  %8087 = vmatpush1.msra.mxu0 0.0
  %8088 = vmatprep.subr.mxu0 0.0
  %8089 = vmatpush1.msra.mxu0 0.0
  %8090 = vmatprep.subr.mxu0 0.0
  %8091 = vmatpush1.msra.mxu0 0.0
  %8092 = vmatprep.subr.mxu0 0.0
  %8093 = vmatpush1.msra.mxu0 0.0
  %8094 = vmatprep.subr.mxu0 0.0
  %8095 = vmatpush1.msra.mxu0 0.0
  %8096 = vmatprep.subr.mxu0 0.0
  %8097 = vmatpush1.msra.mxu0 0.0
  %8098 = vmatprep.subr.mxu0 0.0
  %8099 = vmatpush1.msra.mxu0 0.0
  %8100 = vmatprep.mubr.f32.mxu0 0.0
  %8101 = vmatmul.mubr.f32.gmra.mrb[0].mxu0 %v7845
  %v8102 = vpop.f32.mrb[0].mxu0
  %v8103 = vadd.f32 %v7841, %v8102
  %v8104 = vpop.f32.mrb[0].mxu0
  %8105 = vmatprep.mubr.f32.mxu0 0.0
  %8106 = vmatmul.mubr.f32.gmra.mrb[0].mxu0 %v7848
  %v8107 = vpop.f32.mrb[0].mxu0
  %v8108 = vadd.f32 %v7841, %v8107
  %v8109 = vpop.f32.mrb[0].mxu0
  %8110 = vmatprep.mubr.f32.mxu0 0.0
  %8111 = vmatmul.mubr.f32.gmra.mrb[0].mxu0 %v7851
  %v8112 = vpop.f32.mrb[0].mxu0
  %v8113 = vadd.f32 %v7841, %v8112
  %v8114 = vpop.f32.mrb[0].mxu0
  %8115 = vmatprep.mubr.f32.mxu0 0.0
  %8116 = vmatmul.mubr.f32.gmra.mrb[0].mxu0 %v7854
  %v8117 = vpop.f32.mrb[0].mxu0
  %v8118 = vadd.f32 %v7841, %v8117
  %v8119 = vpop.f32.mrb[0].mxu0
  %8120 = vmatprep.mubr.f32.mxu0 0.0
  %8121 = vmatmul.mubr.f32.gmra.mrb[0].mxu0 %v7857
  %v8122 = vpop.f32.mrb[0].mxu0
  %v8123 = vadd.f32 %v7841, %v8122
  %v8124 = vpop.f32.mrb[0].mxu0
  %8125 = vmatprep.mubr.f32.mxu0 0.0
  %8126 = vmatmul.mubr.f32.gmra.mrb[0].mxu0 %v7860
  %v8127 = vpop.f32.mrb[0].mxu0
  %v8128 = vadd.f32 %v7841, %v8127
  %v8129 = vpop.f32.mrb[0].mxu0
  %8130 = vmatprep.mubr.f32.mxu0 0.0
  %8131 = vmatmul.mubr.f32.gmra.mrb[0].mxu0 %v7863
  %v8132 = vpop.f32.mrb[0].mxu0
  %v8133 = vadd.f32 %v7841, %v8132
  %v8134 = vpop.f32.mrb[0].mxu0
  %8135 = vmatprep.mubr.f32.mxu0 0.0
  %8136 = vmatmul.mubr.f32.gmra.mrb[0].mxu0 %v7866
  %v8137 = vpop.f32.mrb[0].mxu0
  %v8138 = vadd.f32 %v7841, %v8137
  %v8139 = vpop.f32.mrb[0].mxu0
  %8140 = vmatprep.mubr.f32.mxu0 0.0
  %8141 = vmatmul.mubr.f32.gmra.mrb[0].mxu0 %v7869
  %v8142 = vpop.f32.mrb[0].mxu0
  %v8143 = vadd.f32 %v7841, %v8142
  %v8144 = vpop.f32.mrb[0].mxu0
  %8145 = vmatprep.mubr.f32.mxu0 0.0
  %8146 = vmatmul.mubr.f32.gmra.mrb[0].mxu0 %v7872
  %v8147 = vpop.f32.mrb[0].mxu0
  %v8148 = vadd.f32 %v7841, %v8147
  %v8149 = vpop.f32.mrb[0].mxu0
  %8150 = vmatprep.mubr.f32.mxu0 0.0
  %8151 = vmatmul.mubr.f32.gmra.mrb[0].mxu0 %v7875
  %v8152 = vpop.f32.mrb[0].mxu0
  %v8153 = vadd.f32 %v7841, %v8152
  %v8154 = vpop.f32.mrb[0].mxu0
  %8155 = vmatprep.mubr.f32.mxu0 0.0
  %8156 = vmatmul.mubr.f32.gmra.mrb[0].mxu0 %v7878
  %v8157 = vpop.f32.mrb[0].mxu0
  %v8158 = vadd.f32 %v7841, %v8157
  %v8159 = vpop.f32.mrb[0].mxu0
  %8160 = vmatprep.mubr.f32.mxu0 0.0
  %8161 = vmatmul.mubr.f32.gmra.mrb[0].mxu0 %v7881
  %v8162 = vpop.f32.mrb[0].mxu0
  %v8163 = vadd.f32 %v7841, %v8162
  %v8164 = vpop.f32.mrb[0].mxu0
  %8165 = vmatprep.mubr.f32.mxu0 0.0
  %8166 = vmatmul.mubr.f32.gmra.mrb[0].mxu0 %v7884
  %v8167 = vpop.f32.mrb[0].mxu0
  %v8168 = vadd.f32 %v7841, %v8167
  %v8169 = vpop.f32.mrb[0].mxu0
  %8170 = vmatprep.mubr.f32.mxu0 0.0
  %8171 = vmatmul.mubr.f32.gmra.mrb[0].mxu0 %v7887
  %v8172 = vpop.f32.mrb[0].mxu0
  %v8173 = vadd.f32 %v7841, %v8172
  %v8174 = vpop.f32.mrb[0].mxu0
  %8175 = vmatprep.mubr.f32.mxu0 0.0
  %8176 = vmatmul.mubr.f32.gmra.mrb[0].mxu0 %v7890
  %v8177 = vpop.f32.mrb[0].mxu0
  %v8178 = vadd.f32 %v7841, %v8177
  %v8179 = vpop.f32.mrb[0].mxu0
  %8180 = vmatprep.mubr.f32.mxu0 0.0
  %8181 = vmatmul.mubr.f32.gmra.mrb[0].mxu0 %v7893
  %v8182 = vpop.f32.mrb[0].mxu0
  %v8183 = vadd.f32 %v7841, %v8182
  %v8184 = vpop.f32.mrb[0].mxu0
  %8185 = vmatprep.mubr.f32.mxu0 0.0
  %8186 = vmatmul.mubr.f32.gmra.mrb[0].mxu0 %v7896
  %v8187 = vpop.f32.mrb[0].mxu0
  %v8188 = vadd.f32 %v7841, %v8187
  %v8189 = vpop.f32.mrb[0].mxu0
  %8190 = vmatprep.mubr.f32.mxu0 0.0
  %8191 = vmatmul.mubr.f32.gmra.mrb[0].mxu0 %v7899
  %v8192 = vpop.f32.mrb[0].mxu0
  %v8193 = vadd.f32 %v7841, %v8192
  %v8194 = vpop.f32.mrb[0].mxu0
  %8195 = vmatprep.mubr.f32.mxu0 0.0
  %8196 = vmatmul.mubr.f32.gmra.mrb[0].mxu0 %v7902
  %v8197 = vpop.f32.mrb[0].mxu0
  %v8198 = vadd.f32 %v7841, %v8197
  %v8199 = vpop.f32.mrb[0].mxu0
  %8200 = vmatprep.mubr.f32.mxu0 0.0
  %8201 = vmatmul.mubr.f32.gmra.mrb[0].mxu0 %v7905
  %v8202 = vpop.f32.mrb[0].mxu0
  %v8203 = vadd.f32 %v7841, %v8202
  %v8204 = vpop.f32.mrb[0].mxu0
  %8205 = vmatprep.mubr.f32.mxu0 0.0
  %8206 = vmatmul.mubr.f32.gmra.mrb[0].mxu0 %v7908
  %v8207 = vpop.f32.mrb[0].mxu0
  %v8208 = vadd.f32 %v7841, %v8207
  %v8209 = vpop.f32.mrb[0].mxu0
  %8210 = vmatprep.mubr.f32.mxu0 0.0
  %8211 = vmatmul.mubr.f32.gmra.mrb[0].mxu0 %v7911
  %v8212 = vpop.f32.mrb[0].mxu0
  %v8213 = vadd.f32 %v7841, %v8212
  %v8214 = vpop.f32.mrb[0].mxu0
  %8215 = vmatprep.mubr.f32.mxu0 0.0
  %8216 = vmatmul.mubr.f32.gmra.mrb[0].mxu0 %v7914
  %v8217 = vpop.f32.mrb[0].mxu0
  %v8218 = vadd.f32 %v7841, %v8217
  %v8219 = vpop.f32.mrb[0].mxu0
  %8220 = vmatprep.mubr.f32.mxu0 0.0
  %8221 = vmatmul.mubr.f32.gmra.mrb[0].mxu0 %v7917
  %v8222 = vpop.f32.mrb[0].mxu0
  %v8223 = vadd.f32 %v7841, %v8222
  %v8224 = vpop.f32.mrb[0].mxu0
  %8225 = vmatprep.mubr.f32.mxu0 0.0
  %8226 = vmatmul.mubr.f32.gmra.mrb[0].mxu0 %v7920
  %v8227 = vpop.f32.mrb[0].mxu0
  %v8228 = vadd.f32 %v7841, %v8227
  %v8229 = vpop.f32.mrb[0].mxu0
  %8230 = vmatprep.mubr.f32.mxu0 0.0
  %8231 = vmatmul.mubr.f32.gmra.mrb[0].mxu0 %v7923
  %v8232 = vpop.f32.mrb[0].mxu0
  %v8233 = vadd.f32 %v7841, %v8232
  %v8234 = vpop.f32.mrb[0].mxu0
  %8235 = vmatprep.mubr.f32.mxu0 0.0
  %8236 = vmatmul.mubr.f32.gmra.mrb[0].mxu0 %v7926
  %v8237 = vpop.f32.mrb[0].mxu0
  %v8238 = vadd.f32 %v7841, %v8237
  %v8239 = vpop.f32.mrb[0].mxu0
  %8240 = vmatprep.mubr.f32.mxu0 0.0
  %8241 = vmatmul.mubr.f32.gmra.mrb[0].mxu0 %v7929
  %v8242 = vpop.f32.mrb[0].mxu0
  %v8243 = vadd.f32 %v7841, %v8242
  %v8244 = vpop.f32.mrb[0].mxu0
  %8245 = vmatprep.mubr.f32.mxu0 0.0
  %8246 = vmatmul.mubr.f32.gmra.mrb[0].mxu0 %v7932
  %v8247 = vpop.f32.mrb[0].mxu0
  %v8248 = vadd.f32 %v7841, %v8247
  %v8249 = vpop.f32.mrb[0].mxu0
  %8250 = vmatprep.mubr.f32.mxu0 0.0
  %8251 = vmatmul.mubr.f32.gmra.mrb[0].mxu0 %v7935
  %v8252 = vpop.f32.mrb[0].mxu0
  %v8253 = vadd.f32 %v7841, %v8252
  %v8254 = vpop.f32.mrb[0].mxu0
  %8255 = vmatprep.mubr.f32.mxu0 0.0
  %8256 = vmatmul.mubr.f32.gmra.mrb[0].mxu0 %v7938
  %v8257 = vpop.f32.mrb[0].mxu0
  %v8258 = vadd.f32 %v7841, %v8257
  %v8259 = vpop.f32.mrb[0].mxu0
  %8260 = vmatprep.mubr.f32.mxu0 0.0
  %8261 = vmatmul.mubr.f32.gmra.mrb[0].mxu0 %v7941
  %v8262 = vpop.f32.mrb[0].mxu0
  %v8263 = vadd.f32 %v7841, %v8262
  %v8264 = vpop.f32.mrb[0].mxu0
  %8265 = vmatprep.mubr.f32.mxu0 0.0
  %8266 = vmatmul.mubr.f32.gmra.mrb[0].mxu0 %v7944
  %v8267 = vpop.f32.mrb[0].mxu0
  %v8268 = vadd.f32 %v7841, %v8267
  %v8269 = vpop.f32.mrb[0].mxu0
  %8270 = vmatprep.mubr.f32.mxu0 0.0
  %8271 = vmatmul.mubr.f32.gmra.mrb[0].mxu0 %v7947
  %v8272 = vpop.f32.mrb[0].mxu0
  %v8273 = vadd.f32 %v7841, %v8272
  %v8274 = vpop.f32.mrb[0].mxu0
  %8275 = vmatprep.mubr.f32.mxu0 0.0
  %8276 = vmatmul.mubr.f32.gmra.mrb[0].mxu0 %v7950
  %v8277 = vpop.f32.mrb[0].mxu0
  %v8278 = vadd.f32 %v7841, %v8277
  %v8279 = vpop.f32.mrb[0].mxu0
  %8280 = vmatprep.mubr.f32.mxu0 0.0
  %8281 = vmatmul.mubr.f32.gmra.mrb[0].mxu0 %v7953
  %v8282 = vpop.f32.mrb[0].mxu0
  %v8283 = vadd.f32 %v7841, %v8282
  %v8284 = vpop.f32.mrb[0].mxu0
  %8285 = vmatprep.mubr.f32.mxu0 0.0
  %8286 = vmatmul.mubr.f32.gmra.mrb[0].mxu0 %v7956
  %v8287 = vpop.f32.mrb[0].mxu0
  %v8288 = vadd.f32 %v7841, %v8287
  %v8289 = vpop.f32.mrb[0].mxu0
  %8290 = vmatprep.mubr.f32.mxu0 0.0
  %8291 = vmatmul.mubr.f32.gmra.mrb[0].mxu0 %v7959
  %v8292 = vpop.f32.mrb[0].mxu0
  %v8293 = vadd.f32 %v7841, %v8292
  %v8294 = vpop.f32.mrb[0].mxu0
  %8295 = vmatprep.mubr.f32.mxu0 0.0
  %8296 = vmatmul.mubr.f32.gmra.mrb[0].mxu0 %v7962
  %v8297 = vpop.f32.mrb[0].mxu0
  %v8298 = vadd.f32 %v7841, %v8297
  %v8299 = vpop.f32.mrb[0].mxu0
  %8300 = vmatprep.mubr.f32.mxu0 0.0
  %8301 = vmatmul.mubr.f32.gmra.mrb[0].mxu0 %v7965
  %v8302 = vpop.f32.mrb[0].mxu0
  %v8303 = vadd.f32 %v7841, %v8302
  %v8304 = vpop.f32.mrb[0].mxu0
  %8305 = vmatprep.mubr.f32.mxu0 0.0
  %8306 = vmatmul.mubr.f32.gmra.mrb[0].mxu0 %v7968
  %v8307 = vpop.f32.mrb[0].mxu0
  %v8308 = vadd.f32 %v7841, %v8307
  %v8309 = vpop.f32.mrb[0].mxu0
  %8310 = vmatprep.mubr.f32.mxu0 0.0
  %8311 = vmatmul.mubr.f32.gmra.mrb[0].mxu0 %v7971
  %v8312 = vpop.f32.mrb[0].mxu0
  %v8313 = vadd.f32 %v7841, %v8312
  %v8314 = vpop.f32.mrb[0].mxu0
  %8315 = vmatprep.mubr.f32.mxu0 0.0
  %8316 = vmatmul.mubr.f32.gmra.mrb[0].mxu0 %v7974
  %v8317 = vpop.f32.mrb[0].mxu0
  %v8318 = vadd.f32 %v7841, %v8317
  %v8319 = vpop.f32.mrb[0].mxu0
  %8320 = vmatprep.mubr.f32.mxu0 0.0
  %8321 = vmatmul.mubr.f32.gmra.mrb[0].mxu0 %v7977
  %v8322 = vpop.f32.mrb[0].mxu0
  %v8323 = vadd.f32 %v7841, %v8322
  %v8324 = vpop.f32.mrb[0].mxu0
  %8325 = vmatprep.mubr.f32.mxu0 0.0
  %8326 = vmatmul.mubr.f32.gmra.mrb[0].mxu0 %v7980
  %v8327 = vpop.f32.mrb[0].mxu0
  %v8328 = vadd.f32 %v7841, %v8327
  %v8329 = vpop.f32.mrb[0].mxu0
  %8330 = vmatprep.mubr.f32.mxu0 0.0
  %8331 = vmatmul.mubr.f32.gmra.mrb[0].mxu0 %v7983
  %v8332 = vpop.f32.mrb[0].mxu0
  %v8333 = vadd.f32 %v7841, %v8332
  %v8334 = vpop.f32.mrb[0].mxu0
  %8335 = vmatprep.mubr.f32.mxu0 0.0
  %8336 = vmatmul.mubr.f32.gmra.mrb[0].mxu0 %v7986
  %v8337 = vpop.f32.mrb[0].mxu0
  %v8338 = vadd.f32 %v7841, %v8337
  %v8339 = vpop.f32.mrb[0].mxu0
  %8340 = vmatprep.mubr.f32.mxu0 0.0
  %8341 = vmatmul.mubr.f32.gmra.mrb[0].mxu0 %v7989
  %v8342 = vpop.f32.mrb[0].mxu0
  %v8343 = vadd.f32 %v7841, %v8342
  %v8344 = vpop.f32.mrb[0].mxu0
  %8345 = vmatprep.mubr.f32.mxu0 0.0
  %8346 = vmatmul.mubr.f32.gmra.mrb[0].mxu0 %v7992
  %v8347 = vpop.f32.mrb[0].mxu0
  %v8348 = vadd.f32 %v7841, %v8347
  %v8349 = vpop.f32.mrb[0].mxu0
  %8350 = vmatprep.mubr.f32.mxu0 0.0
  %8351 = vmatmul.mubr.f32.gmra.mrb[0].mxu0 %v7995
  %v8352 = vpop.f32.mrb[0].mxu0
  %v8353 = vadd.f32 %v7841, %v8352
  %v8354 = vpop.f32.mrb[0].mxu0
  %8355 = vmatprep.mubr.f32.mxu0 0.0
  %8356 = vmatmul.mubr.f32.gmra.mrb[0].mxu0 %v7998
  %v8357 = vpop.f32.mrb[0].mxu0
  %v8358 = vadd.f32 %v7841, %v8357
  %v8359 = vpop.f32.mrb[0].mxu0
  %8360 = vmatprep.mubr.f32.mxu0 0.0
  %8361 = vmatmul.mubr.f32.gmra.mrb[0].mxu0 %v8001
  %v8362 = vpop.f32.mrb[0].mxu0
  %v8363 = vadd.f32 %v7841, %v8362
  %v8364 = vpop.f32.mrb[0].mxu0
  %8365 = vmatprep.mubr.f32.mxu0 0.0
  %8366 = vmatmul.mubr.f32.gmra.mrb[0].mxu0 %v8004
  %v8367 = vpop.f32.mrb[0].mxu0
  %v8368 = vadd.f32 %v7841, %v8367
  %v8369 = vpop.f32.mrb[0].mxu0
  %8370 = vmatprep.mubr.f32.mxu0 0.0
  %8371 = vmatmul.mubr.f32.gmra.mrb[0].mxu0 %v8007
  %v8372 = vpop.f32.mrb[0].mxu0
  %v8373 = vadd.f32 %v7841, %v8372
  %v8374 = vpop.f32.mrb[0].mxu0
  %8375 = vmatprep.mubr.f32.mxu0 0.0
  %8376 = vmatmul.mubr.f32.gmra.mrb[0].mxu0 %v8010
  %v8377 = vpop.f32.mrb[0].mxu0
  %v8378 = vadd.f32 %v7841, %v8377
  %v8379 = vpop.f32.mrb[0].mxu0
  %8380 = vmatprep.mubr.f32.mxu0 0.0
  %8381 = vmatmul.mubr.f32.gmra.mrb[0].mxu0 %v8013
  %v8382 = vpop.f32.mrb[0].mxu0
  %v8383 = vadd.f32 %v7841, %v8382
  %v8384 = vpop.f32.mrb[0].mxu0
  %8385 = vmatprep.mubr.f32.mxu0 0.0
  %8386 = vmatmul.mubr.f32.gmra.mrb[0].mxu0 %v8016
  %v8387 = vpop.f32.mrb[0].mxu0
  %v8388 = vadd.f32 %v7841, %v8387
  %v8389 = vpop.f32.mrb[0].mxu0
  %8390 = vmatprep.mubr.f32.mxu0 0.0
  %8391 = vmatmul.mubr.f32.gmra.mrb[0].mxu0 %v8019
  %v8392 = vpop.f32.mrb[0].mxu0
  %v8393 = vadd.f32 %v7841, %v8392
  %v8394 = vpop.f32.mrb[0].mxu0
  %8395 = vmatprep.mubr.f32.mxu0 0.0
  %8396 = vmatmul.mubr.f32.gmra.mrb[0].mxu0 %v8022
  %v8397 = vpop.f32.mrb[0].mxu0
  %v8398 = vadd.f32 %v7841, %v8397
  %v8399 = vpop.f32.mrb[0].mxu0
  %8400 = vmatprep.mubr.f32.mxu0 0.0
  %8401 = vmatmul.mubr.f32.gmra.mrb[0].mxu0 %v8025
  %v8402 = vpop.f32.mrb[0].mxu0
  %v8403 = vadd.f32 %v7841, %v8402
  %v8404 = vpop.f32.mrb[0].mxu0
  %8405 = vmatprep.mubr.f32.mxu0 0.0
  %8406 = vmatmul.mubr.f32.gmra.mrb[0].mxu0 %v8028
  %v8407 = vpop.f32.mrb[0].mxu0
  %v8408 = vadd.f32 %v7841, %v8407
  %v8409 = vpop.f32.mrb[0].mxu0
  %8410 = vmatprep.mubr.f32.mxu0 0.0
  %8411 = vmatmul.mubr.f32.gmra.mrb[0].mxu0 %v8031
  %v8412 = vpop.f32.mrb[0].mxu0
  %v8413 = vadd.f32 %v7841, %v8412
  %v8414 = vpop.f32.mrb[0].mxu0
  %8415 = vmatprep.mubr.f32.mxu0 0.0
  %8416 = vmatmul.mubr.f32.gmra.mrb[0].mxu0 %v8034
  %v8417 = vpop.f32.mrb[0].mxu0
  %v8418 = vadd.f32 %v7841, %v8417
  %v8419 = vpop.f32.mrb[0].mxu0
  %8420 = vdwg.mxu0
  %v8421 = vmax.f32 %v8103, 0.0
  %v8422 = vmax.f32 %v8108, 0.0
  %v8423 = vmax.f32 %v8113, 0.0
  %v8424 = vmax.f32 %v8118, 0.0
  %v8425 = vmax.f32 %v8123, 0.0
  %v8426 = vmax.f32 %v8128, 0.0
  %v8427 = vmax.f32 %v8133, 0.0
  %v8428 = vmax.f32 %v8138, 0.0
  %v8429 = vmax.f32 %v8143, 0.0
  %v8430 = vmax.f32 %v8148, 0.0
  %v8431 = vmax.f32 %v8153, 0.0
  %v8432 = vmax.f32 %v8158, 0.0
  %v8433 = vmax.f32 %v8163, 0.0
  %v8434 = vmax.f32 %v8168, 0.0
  %v8435 = vmax.f32 %v8173, 0.0
  %v8436 = vmax.f32 %v8178, 0.0
  %v8437 = vmax.f32 %v8183, 0.0
  %v8438 = vmax.f32 %v8188, 0.0
  %v8439 = vmax.f32 %v8193, 0.0
  %v8440 = vmax.f32 %v8198, 0.0
  %v8441 = vmax.f32 %v8203, 0.0
  %v8442 = vmax.f32 %v8208, 0.0
  %v8443 = vmax.f32 %v8213, 0.0
  %v8444 = vmax.f32 %v8218, 0.0
  %v8445 = vmax.f32 %v8223, 0.0
  %v8446 = vmax.f32 %v8228, 0.0
  %v8447 = vmax.f32 %v8233, 0.0
  %v8448 = vmax.f32 %v8238, 0.0
  %v8449 = vmax.f32 %v8243, 0.0
  %v8450 = vmax.f32 %v8248, 0.0
  %v8451 = vmax.f32 %v8253, 0.0
  %v8452 = vmax.f32 %v8258, 0.0
  %v8453 = vmax.f32 %v8263, 0.0
  %v8454 = vmax.f32 %v8268, 0.0
  %v8455 = vmax.f32 %v8273, 0.0
  %v8456 = vmax.f32 %v8278, 0.0
  %v8457 = vmax.f32 %v8283, 0.0
  %v8458 = vmax.f32 %v8288, 0.0
  %v8459 = vmax.f32 %v8293, 0.0
  %v8460 = vmax.f32 %v8298, 0.0
  %v8461 = vmax.f32 %v8303, 0.0
  %v8462 = vmax.f32 %v8308, 0.0
  %v8463 = vmax.f32 %v8313, 0.0
  %v8464 = vmax.f32 %v8318, 0.0
  %v8465 = vmax.f32 %v8323, 0.0
  %v8466 = vmax.f32 %v8328, 0.0
  %v8467 = vmax.f32 %v8333, 0.0
  %v8468 = vmax.f32 %v8338, 0.0
  %v8469 = vmax.f32 %v8343, 0.0
  %v8470 = vmax.f32 %v8348, 0.0
  %v8471 = vmax.f32 %v8353, 0.0
  %v8472 = vmax.f32 %v8358, 0.0
  %v8473 = vmax.f32 %v8363, 0.0
  %v8474 = vmax.f32 %v8368, 0.0
  %v8475 = vmax.f32 %v8373, 0.0
  %v8476 = vmax.f32 %v8378, 0.0
  %v8477 = vmax.f32 %v8383, 0.0
  %v8478 = vmax.f32 %v8388, 0.0
  %v8479 = vmax.f32 %v8393, 0.0
  %v8480 = vmax.f32 %v8398, 0.0
  %v8481 = vmax.f32 %v8403, 0.0
  %v8482 = vmax.f32 %v8408, 0.0
  %v8483 = vmax.f32 %v8413, 0.0
  %v8484 = vmax.f32 %v8418, 0.0
  %v8485 = vsel %vm2738, %v8421, 0.0
  %v8486 = vsel %vm2738, %v8422, 0.0
  %v8487 = vadd.f32 %v8485, %v8486
  %v8488 = vsel %vm2738, %v8423, 0.0
  %v8489 = vadd.f32 %v8487, %v8488
  %v8490 = vsel %vm2738, %v8424, 0.0
  %v8491 = vadd.f32 %v8489, %v8490
  %v8492 = vsel %vm2738, %v8425, 0.0
  %v8493 = vadd.f32 %v8491, %v8492
  %v8494 = vsel %vm2738, %v8426, 0.0
  %v8495 = vadd.f32 %v8493, %v8494
  %v8496 = vsel %vm2738, %v8427, 0.0
  %v8497 = vadd.f32 %v8495, %v8496
  %v8498 = vsel %vm2738, %v8428, 0.0
  %v8499 = vadd.f32 %v8497, %v8498
  %v8500 = vsel %vm2738, %v8429, 0.0
  %v8501 = vadd.f32 %v8499, %v8500
  %v8502 = vsel %vm2738, %v8430, 0.0
  %v8503 = vadd.f32 %v8501, %v8502
  %v8504 = vsel %vm2738, %v8431, 0.0
  %v8505 = vadd.f32 %v8503, %v8504
  %v8506 = vsel %vm2738, %v8432, 0.0
  %v8507 = vadd.f32 %v8505, %v8506
  %v8508 = vsel %vm2738, %v8433, 0.0
  %v8509 = vadd.f32 %v8507, %v8508
  %v8510 = vsel %vm2738, %v8434, 0.0
  %v8511 = vadd.f32 %v8509, %v8510
  %v8512 = vsel %vm2738, %v8435, 0.0
  %v8513 = vadd.f32 %v8511, %v8512
  %v8514 = vsel %vm2738, %v8436, 0.0
  %v8515 = vadd.f32 %v8513, %v8514
  %v8516 = vsel %vm2738, %v8437, 0.0
  %v8517 = vadd.f32 %v8515, %v8516
  %v8518 = vsel %vm2738, %v8438, 0.0
  %v8519 = vadd.f32 %v8517, %v8518
  %v8520 = vsel %vm2738, %v8439, 0.0
  %v8521 = vadd.f32 %v8519, %v8520
  %v8522 = vsel %vm2738, %v8440, 0.0
  %v8523 = vadd.f32 %v8521, %v8522
  %v8524 = vsel %vm2738, %v8441, 0.0
  %v8525 = vadd.f32 %v8523, %v8524
  %v8526 = vsel %vm2738, %v8442, 0.0
  %v8527 = vadd.f32 %v8525, %v8526
  %v8528 = vsel %vm2738, %v8443, 0.0
  %v8529 = vadd.f32 %v8527, %v8528
  %v8530 = vsel %vm2738, %v8444, 0.0
  %v8531 = vadd.f32 %v8529, %v8530
  %v8532 = vsel %vm2738, %v8445, 0.0
  %v8533 = vadd.f32 %v8531, %v8532
  %v8534 = vsel %vm2738, %v8446, 0.0
  %v8535 = vadd.f32 %v8533, %v8534
  %v8536 = vsel %vm2738, %v8447, 0.0
  %v8537 = vadd.f32 %v8535, %v8536
  %v8538 = vsel %vm2738, %v8448, 0.0
  %v8539 = vadd.f32 %v8537, %v8538
  %v8540 = vsel %vm2738, %v8449, 0.0
  %v8541 = vadd.f32 %v8539, %v8540
  %v8542 = vsel %vm2738, %v8450, 0.0
  %v8543 = vadd.f32 %v8541, %v8542
  %v8544 = vsel %vm2738, %v8451, 0.0
  %v8545 = vadd.f32 %v8543, %v8544
  %v8546 = vsel %vm2738, %v8452, 0.0
  %v8547 = vadd.f32 %v8545, %v8546
  %v8548 = vsel %vm2738, %v8453, 0.0
  %v8549 = vadd.f32 %v8547, %v8548
  %v8550 = vsel %vm2738, %v8454, 0.0
  %v8551 = vadd.f32 %v8549, %v8550
  %v8552 = vsel %vm2738, %v8455, 0.0
  %v8553 = vadd.f32 %v8551, %v8552
  %v8554 = vsel %vm2738, %v8456, 0.0
  %v8555 = vadd.f32 %v8553, %v8554
  %v8556 = vsel %vm2738, %v8457, 0.0
  %v8557 = vadd.f32 %v8555, %v8556
  %v8558 = vsel %vm2738, %v8458, 0.0
  %v8559 = vadd.f32 %v8557, %v8558
  %v8560 = vsel %vm2738, %v8459, 0.0
  %v8561 = vadd.f32 %v8559, %v8560
  %v8562 = vsel %vm2738, %v8460, 0.0
  %v8563 = vadd.f32 %v8561, %v8562
  %v8564 = vsel %vm2738, %v8461, 0.0
  %v8565 = vadd.f32 %v8563, %v8564
  %v8566 = vsel %vm2738, %v8462, 0.0
  %v8567 = vadd.f32 %v8565, %v8566
  %v8568 = vsel %vm2738, %v8463, 0.0
  %v8569 = vadd.f32 %v8567, %v8568
  %v8570 = vsel %vm2738, %v8464, 0.0
  %v8571 = vadd.f32 %v8569, %v8570
  %v8572 = vsel %vm2738, %v8465, 0.0
  %v8573 = vadd.f32 %v8571, %v8572
  %v8574 = vsel %vm2738, %v8466, 0.0
  %v8575 = vadd.f32 %v8573, %v8574
  %v8576 = vsel %vm2738, %v8467, 0.0
  %v8577 = vadd.f32 %v8575, %v8576
  %v8578 = vsel %vm2738, %v8468, 0.0
  %v8579 = vadd.f32 %v8577, %v8578
  %v8580 = vsel %vm2738, %v8469, 0.0
  %v8581 = vadd.f32 %v8579, %v8580
  %v8582 = vsel %vm2738, %v8470, 0.0
  %v8583 = vadd.f32 %v8581, %v8582
  %v8584 = vsel %vm2738, %v8471, 0.0
  %v8585 = vadd.f32 %v8583, %v8584
  %v8586 = vsel %vm2738, %v8472, 0.0
  %v8587 = vadd.f32 %v8585, %v8586
  %v8588 = vsel %vm2738, %v8473, 0.0
  %v8589 = vadd.f32 %v8587, %v8588
  %v8590 = vsel %vm2738, %v8474, 0.0
  %v8591 = vadd.f32 %v8589, %v8590
  %v8592 = vsel %vm2738, %v8475, 0.0
  %v8593 = vadd.f32 %v8591, %v8592
  %v8594 = vsel %vm2738, %v8476, 0.0
  %v8595 = vadd.f32 %v8593, %v8594
  %v8596 = vsel %vm2738, %v8477, 0.0
  %v8597 = vadd.f32 %v8595, %v8596
  %v8598 = vsel %vm2738, %v8478, 0.0
  %v8599 = vadd.f32 %v8597, %v8598
  %v8600 = vsel %vm2738, %v8479, 0.0
  %v8601 = vadd.f32 %v8599, %v8600
  %v8602 = vsel %vm2738, %v8480, 0.0
  %v8603 = vadd.f32 %v8601, %v8602
  %v8604 = vsel %vm2738, %v8481, 0.0
  %v8605 = vadd.f32 %v8603, %v8604
  %v8606 = vsel %vm2738, %v8482, 0.0
  %v8607 = vadd.f32 %v8605, %v8606
  %v8608 = vsel %vm2738, %v8483, 0.0
  %v8609 = vadd.f32 %v8607, %v8608
  %v8610 = vsel %vm2738, %v8484, 0.0
  %v8611 = vadd.f32 %v8609, %v8610
  %v8612 = vrot.slane %v8611, 4
  %v8613 = vadd.f32 %v8611, %v8612
  %v8614 = vrot.slane %v8613, 2
  %v8615 = vadd.f32 %v8613, %v8614
  %v8616 = vrot.slane %v8615, 1
  %v8617 = vadd.f32 %v8615, %v8616
  %v8618 = vmul.f32 %v8421, %v8421
  %v8619 = vmul.f32 %v8422, %v8422
  %v8620 = vmul.f32 %v8423, %v8423
  %v8621 = vmul.f32 %v8424, %v8424
  %v8622 = vmul.f32 %v8425, %v8425
  %v8623 = vmul.f32 %v8426, %v8426
  %v8624 = vmul.f32 %v8427, %v8427
  %v8625 = vmul.f32 %v8428, %v8428
  %v8626 = vmul.f32 %v8429, %v8429
  %v8627 = vmul.f32 %v8430, %v8430
  %v8628 = vmul.f32 %v8431, %v8431
  %v8629 = vmul.f32 %v8432, %v8432
  %v8630 = vmul.f32 %v8433, %v8433
  %v8631 = vmul.f32 %v8434, %v8434
  %v8632 = vmul.f32 %v8435, %v8435
  %v8633 = vmul.f32 %v8436, %v8436
  %v8634 = vmul.f32 %v8437, %v8437
  %v8635 = vmul.f32 %v8438, %v8438
  %v8636 = vmul.f32 %v8439, %v8439
  %v8637 = vmul.f32 %v8440, %v8440
  %v8638 = vmul.f32 %v8441, %v8441
  %v8639 = vmul.f32 %v8442, %v8442
  %v8640 = vmul.f32 %v8443, %v8443
  %v8641 = vmul.f32 %v8444, %v8444
  %v8642 = vmul.f32 %v8445, %v8445
  %v8643 = vmul.f32 %v8446, %v8446
  %v8644 = vmul.f32 %v8447, %v8447
  %v8645 = vmul.f32 %v8448, %v8448
  %v8646 = vmul.f32 %v8449, %v8449
  %v8647 = vmul.f32 %v8450, %v8450
  %v8648 = vmul.f32 %v8451, %v8451
  %v8649 = vmul.f32 %v8452, %v8452
  %v8650 = vmul.f32 %v8453, %v8453
  %v8651 = vmul.f32 %v8454, %v8454
  %v8652 = vmul.f32 %v8455, %v8455
  %v8653 = vmul.f32 %v8456, %v8456
  %v8654 = vmul.f32 %v8457, %v8457
  %v8655 = vmul.f32 %v8458, %v8458
  %v8656 = vmul.f32 %v8459, %v8459
  %v8657 = vmul.f32 %v8460, %v8460
  %v8658 = vmul.f32 %v8461, %v8461
  %v8659 = vmul.f32 %v8462, %v8462
  %v8660 = vmul.f32 %v8463, %v8463
  %v8661 = vmul.f32 %v8464, %v8464
  %v8662 = vmul.f32 %v8465, %v8465
  %v8663 = vmul.f32 %v8466, %v8466
  %v8664 = vmul.f32 %v8467, %v8467
  %v8665 = vmul.f32 %v8468, %v8468
  %v8666 = vmul.f32 %v8469, %v8469
  %v8667 = vmul.f32 %v8470, %v8470
  %v8668 = vmul.f32 %v8471, %v8471
  %v8669 = vmul.f32 %v8472, %v8472
  %v8670 = vmul.f32 %v8473, %v8473
  %v8671 = vmul.f32 %v8474, %v8474
  %v8672 = vmul.f32 %v8475, %v8475
  %v8673 = vmul.f32 %v8476, %v8476
  %v8674 = vmul.f32 %v8477, %v8477
  %v8675 = vmul.f32 %v8478, %v8478
  %v8676 = vmul.f32 %v8479, %v8479
  %v8677 = vmul.f32 %v8480, %v8480
  %v8678 = vmul.f32 %v8481, %v8481
  %v8679 = vmul.f32 %v8482, %v8482
  %v8680 = vmul.f32 %v8483, %v8483
  %v8681 = vmul.f32 %v8484, %v8484
  %v8682 = vsel %vm2738, %v8618, 0.0
  %v8683 = vsel %vm2738, %v8619, 0.0
  %v8684 = vadd.f32 %v8682, %v8683
  %v8685 = vsel %vm2738, %v8620, 0.0
  %v8686 = vadd.f32 %v8684, %v8685
  %v8687 = vsel %vm2738, %v8621, 0.0
  %v8688 = vadd.f32 %v8686, %v8687
  %v8689 = vsel %vm2738, %v8622, 0.0
  %v8690 = vadd.f32 %v8688, %v8689
  %v8691 = vsel %vm2738, %v8623, 0.0
  %v8692 = vadd.f32 %v8690, %v8691
  %v8693 = vsel %vm2738, %v8624, 0.0
  %v8694 = vadd.f32 %v8692, %v8693
  %v8695 = vsel %vm2738, %v8625, 0.0
  %v8696 = vadd.f32 %v8694, %v8695
  %v8697 = vsel %vm2738, %v8626, 0.0
  %v8698 = vadd.f32 %v8696, %v8697
  %v8699 = vsel %vm2738, %v8627, 0.0
  %v8700 = vadd.f32 %v8698, %v8699
  %v8701 = vsel %vm2738, %v8628, 0.0
  %v8702 = vadd.f32 %v8700, %v8701
  %v8703 = vsel %vm2738, %v8629, 0.0
  %v8704 = vadd.f32 %v8702, %v8703
  %v8705 = vsel %vm2738, %v8630, 0.0
  %v8706 = vadd.f32 %v8704, %v8705
  %v8707 = vsel %vm2738, %v8631, 0.0
  %v8708 = vadd.f32 %v8706, %v8707
  %v8709 = vsel %vm2738, %v8632, 0.0
  %v8710 = vadd.f32 %v8708, %v8709
  %v8711 = vsel %vm2738, %v8633, 0.0
  %v8712 = vadd.f32 %v8710, %v8711
  %v8713 = vsel %vm2738, %v8634, 0.0
  %v8714 = vadd.f32 %v8712, %v8713
  %v8715 = vsel %vm2738, %v8635, 0.0
  %v8716 = vadd.f32 %v8714, %v8715
  %v8717 = vsel %vm2738, %v8636, 0.0
  %v8718 = vadd.f32 %v8716, %v8717
  %v8719 = vsel %vm2738, %v8637, 0.0
  %v8720 = vadd.f32 %v8718, %v8719
  %v8721 = vsel %vm2738, %v8638, 0.0
  %v8722 = vadd.f32 %v8720, %v8721
  %v8723 = vsel %vm2738, %v8639, 0.0
  %v8724 = vadd.f32 %v8722, %v8723
  %v8725 = vsel %vm2738, %v8640, 0.0
  %v8726 = vadd.f32 %v8724, %v8725
  %v8727 = vsel %vm2738, %v8641, 0.0
  %v8728 = vadd.f32 %v8726, %v8727
  %v8729 = vsel %vm2738, %v8642, 0.0
  %v8730 = vadd.f32 %v8728, %v8729
  %v8731 = vsel %vm2738, %v8643, 0.0
  %v8732 = vadd.f32 %v8730, %v8731
  %v8733 = vsel %vm2738, %v8644, 0.0
  %v8734 = vadd.f32 %v8732, %v8733
  %v8735 = vsel %vm2738, %v8645, 0.0
  %v8736 = vadd.f32 %v8734, %v8735
  %v8737 = vsel %vm2738, %v8646, 0.0
  %v8738 = vadd.f32 %v8736, %v8737
  %v8739 = vsel %vm2738, %v8647, 0.0
  %v8740 = vadd.f32 %v8738, %v8739
  %v8741 = vsel %vm2738, %v8648, 0.0
  %v8742 = vadd.f32 %v8740, %v8741
  %v8743 = vsel %vm2738, %v8649, 0.0
  %v8744 = vadd.f32 %v8742, %v8743
  %v8745 = vsel %vm2738, %v8650, 0.0
  %v8746 = vadd.f32 %v8744, %v8745
  %v8747 = vsel %vm2738, %v8651, 0.0
  %v8748 = vadd.f32 %v8746, %v8747
  %v8749 = vsel %vm2738, %v8652, 0.0
  %v8750 = vadd.f32 %v8748, %v8749
  %v8751 = vsel %vm2738, %v8653, 0.0
  %v8752 = vadd.f32 %v8750, %v8751
  %v8753 = vsel %vm2738, %v8654, 0.0
  %v8754 = vadd.f32 %v8752, %v8753
  %v8755 = vsel %vm2738, %v8655, 0.0
  %v8756 = vadd.f32 %v8754, %v8755
  %v8757 = vsel %vm2738, %v8656, 0.0
  %v8758 = vadd.f32 %v8756, %v8757
  %v8759 = vsel %vm2738, %v8657, 0.0
  %v8760 = vadd.f32 %v8758, %v8759
  %v8761 = vsel %vm2738, %v8658, 0.0
  %v8762 = vadd.f32 %v8760, %v8761
  %v8763 = vsel %vm2738, %v8659, 0.0
  %v8764 = vadd.f32 %v8762, %v8763
  %v8765 = vsel %vm2738, %v8660, 0.0
  %v8766 = vadd.f32 %v8764, %v8765
  %v8767 = vsel %vm2738, %v8661, 0.0
  %v8768 = vadd.f32 %v8766, %v8767
  %v8769 = vsel %vm2738, %v8662, 0.0
  %v8770 = vadd.f32 %v8768, %v8769
  %v8771 = vsel %vm2738, %v8663, 0.0
  %v8772 = vadd.f32 %v8770, %v8771
  %v8773 = vsel %vm2738, %v8664, 0.0
  %v8774 = vadd.f32 %v8772, %v8773
  %v8775 = vsel %vm2738, %v8665, 0.0
  %v8776 = vadd.f32 %v8774, %v8775
  %v8777 = vsel %vm2738, %v8666, 0.0
  %v8778 = vadd.f32 %v8776, %v8777
  %v8779 = vsel %vm2738, %v8667, 0.0
  %v8780 = vadd.f32 %v8778, %v8779
  %v8781 = vsel %vm2738, %v8668, 0.0
  %v8782 = vadd.f32 %v8780, %v8781
  %v8783 = vsel %vm2738, %v8669, 0.0
  %v8784 = vadd.f32 %v8782, %v8783
  %v8785 = vsel %vm2738, %v8670, 0.0
  %v8786 = vadd.f32 %v8784, %v8785
  %v8787 = vsel %vm2738, %v8671, 0.0
  %v8788 = vadd.f32 %v8786, %v8787
  %v8789 = vsel %vm2738, %v8672, 0.0
  %v8790 = vadd.f32 %v8788, %v8789
  %v8791 = vsel %vm2738, %v8673, 0.0
  %v8792 = vadd.f32 %v8790, %v8791
  %v8793 = vsel %vm2738, %v8674, 0.0
  %v8794 = vadd.f32 %v8792, %v8793
  %v8795 = vsel %vm2738, %v8675, 0.0
  %v8796 = vadd.f32 %v8794, %v8795
  %v8797 = vsel %vm2738, %v8676, 0.0
  %v8798 = vadd.f32 %v8796, %v8797
  %v8799 = vsel %vm2738, %v8677, 0.0
  %v8800 = vadd.f32 %v8798, %v8799
  %v8801 = vsel %vm2738, %v8678, 0.0
  %v8802 = vadd.f32 %v8800, %v8801
  %v8803 = vsel %vm2738, %v8679, 0.0
  %v8804 = vadd.f32 %v8802, %v8803
  %v8805 = vsel %vm2738, %v8680, 0.0
  %v8806 = vadd.f32 %v8804, %v8805
  %v8807 = vsel %vm2738, %v8681, 0.0
  %v8808 = vadd.f32 %v8806, %v8807
  %v8809 = vrot.slane %v8808, 4
  %v8810 = vadd.f32 %v8808, %v8809
  %v8811 = vrot.slane %v8810, 2
  %v8812 = vadd.f32 %v8810, %v8811
  %v8813 = vrot.slane %v8812, 1
  %v8814 = vadd.f32 %v8812, %v8813
  %v8815 = vmul.f32 %v8617, 0.001953125
  %v8816 = vmul.f32 %v8814, 0.001953125
  %v8817 = vmul.f32 %v8815, %v8815
  %v8818 = vsub.f32 %v8816, %v8817
  %v8819 = vadd.f32 %v8818, 1e-05
  %v8820 = vrsqrt.pop %v8819
  %v8821 = vld [vmem:[%s10] sm:$0x1]
  %v8822 = vmul.f32 %v8820, %v8821
  %v8823 = vld [vmem:[%s11] sm:$0x1]
  %v8824 = vmul.f32 %v8815, %v8822
  %v8825 = vsub.f32 %v8823, %v8824
  %v8826 = vlaneseq
  %v8827 = vshrl.u32 %v8826, 7
  %v8828 = vsub.s32 0, %v8827
  %v8829 = vrot.slane %v8822, %v8828
  %v8830 = vmul.f32 %v8421, %v8829
  %v8831 = vmul.f32 %v8422, %v8829
  %v8832 = vmul.f32 %v8423, %v8829
  %v8833 = vmul.f32 %v8424, %v8829
  %v8834 = vmul.f32 %v8425, %v8829
  %v8835 = vmul.f32 %v8426, %v8829
  %v8836 = vmul.f32 %v8427, %v8829
  %v8837 = vmul.f32 %v8428, %v8829
  %v8838 = vmul.f32 %v8429, %v8829
  %v8839 = vmul.f32 %v8430, %v8829
  %v8840 = vmul.f32 %v8431, %v8829
  %v8841 = vmul.f32 %v8432, %v8829
  %v8842 = vmul.f32 %v8433, %v8829
  %v8843 = vmul.f32 %v8434, %v8829
  %v8844 = vmul.f32 %v8435, %v8829
  %v8845 = vmul.f32 %v8436, %v8829
  %v8846 = vmul.f32 %v8437, %v8829
  %v8847 = vmul.f32 %v8438, %v8829
  %v8848 = vmul.f32 %v8439, %v8829
  %v8849 = vmul.f32 %v8440, %v8829
  %v8850 = vmul.f32 %v8441, %v8829
  %v8851 = vmul.f32 %v8442, %v8829
  %v8852 = vmul.f32 %v8443, %v8829
  %v8853 = vmul.f32 %v8444, %v8829
  %v8854 = vmul.f32 %v8445, %v8829
  %v8855 = vmul.f32 %v8446, %v8829
  %v8856 = vmul.f32 %v8447, %v8829
  %v8857 = vmul.f32 %v8448, %v8829
  %v8858 = vmul.f32 %v8449, %v8829
  %v8859 = vmul.f32 %v8450, %v8829
  %v8860 = vmul.f32 %v8451, %v8829
  %v8861 = vmul.f32 %v8452, %v8829
  %v8862 = vmul.f32 %v8453, %v8829
  %v8863 = vmul.f32 %v8454, %v8829
  %v8864 = vmul.f32 %v8455, %v8829
  %v8865 = vmul.f32 %v8456, %v8829
  %v8866 = vmul.f32 %v8457, %v8829
  %v8867 = vmul.f32 %v8458, %v8829
  %v8868 = vmul.f32 %v8459, %v8829
  %v8869 = vmul.f32 %v8460, %v8829
  %v8870 = vmul.f32 %v8461, %v8829
  %v8871 = vmul.f32 %v8462, %v8829
  %v8872 = vmul.f32 %v8463, %v8829
  %v8873 = vmul.f32 %v8464, %v8829
  %v8874 = vmul.f32 %v8465, %v8829
  %v8875 = vmul.f32 %v8466, %v8829
  %v8876 = vmul.f32 %v8467, %v8829
  %v8877 = vmul.f32 %v8468, %v8829
  %v8878 = vmul.f32 %v8469, %v8829
  %v8879 = vmul.f32 %v8470, %v8829
  %v8880 = vmul.f32 %v8471, %v8829
  %v8881 = vmul.f32 %v8472, %v8829
  %v8882 = vmul.f32 %v8473, %v8829
  %v8883 = vmul.f32 %v8474, %v8829
  %v8884 = vmul.f32 %v8475, %v8829
  %v8885 = vmul.f32 %v8476, %v8829
  %v8886 = vmul.f32 %v8477, %v8829
  %v8887 = vmul.f32 %v8478, %v8829
  %v8888 = vmul.f32 %v8479, %v8829
  %v8889 = vmul.f32 %v8480, %v8829
  %v8890 = vmul.f32 %v8481, %v8829
  %v8891 = vmul.f32 %v8482, %v8829
  %v8892 = vmul.f32 %v8483, %v8829
  %v8893 = vmul.f32 %v8484, %v8829
  %v8895 = vlaneseq
  %v8896 = vshrl.u32 %v8895, 7
  %v8897 = vsub.s32 0, %v8896
  %v8898 = vrot.slane %v8825, %v8897
  %v8900 = vadd.f32 %v8830, %v8898
  %v8901 = vadd.f32 %v8831, %v8898
  %v8902 = vadd.f32 %v8832, %v8898
  %v8903 = vadd.f32 %v8833, %v8898
  %v8904 = vadd.f32 %v8834, %v8898
  %v8905 = vadd.f32 %v8835, %v8898
  %v8906 = vadd.f32 %v8836, %v8898
  %v8907 = vadd.f32 %v8837, %v8898
  %v8908 = vadd.f32 %v8838, %v8898
  %v8909 = vadd.f32 %v8839, %v8898
  %v8910 = vadd.f32 %v8840, %v8898
  %v8911 = vadd.f32 %v8841, %v8898
  %v8912 = vadd.f32 %v8842, %v8898
  %v8913 = vadd.f32 %v8843, %v8898
  %v8914 = vadd.f32 %v8844, %v8898
  %v8915 = vadd.f32 %v8845, %v8898
  %v8916 = vadd.f32 %v8846, %v8898
  %v8917 = vadd.f32 %v8847, %v8898
  %v8918 = vadd.f32 %v8848, %v8898
  %v8919 = vadd.f32 %v8849, %v8898
  %v8920 = vadd.f32 %v8850, %v8898
  %v8921 = vadd.f32 %v8851, %v8898
  %v8922 = vadd.f32 %v8852, %v8898
  %v8923 = vadd.f32 %v8853, %v8898
  %v8924 = vadd.f32 %v8854, %v8898
  %v8925 = vadd.f32 %v8855, %v8898
  %v8926 = vadd.f32 %v8856, %v8898
  %v8927 = vadd.f32 %v8857, %v8898
  %v8928 = vadd.f32 %v8858, %v8898
  %v8929 = vadd.f32 %v8859, %v8898
  %v8930 = vadd.f32 %v8860, %v8898
  %v8931 = vadd.f32 %v8861, %v8898
  %v8932 = vadd.f32 %v8862, %v8898
  %v8933 = vadd.f32 %v8863, %v8898
  %v8934 = vadd.f32 %v8864, %v8898
  %v8935 = vadd.f32 %v8865, %v8898
  %v8936 = vadd.f32 %v8866, %v8898
  %v8937 = vadd.f32 %v8867, %v8898
  %v8938 = vadd.f32 %v8868, %v8898
  %v8939 = vadd.f32 %v8869, %v8898
  %v8940 = vadd.f32 %v8870, %v8898
  %v8941 = vadd.f32 %v8871, %v8898
  %v8942 = vadd.f32 %v8872, %v8898
  %v8943 = vadd.f32 %v8873, %v8898
  %v8944 = vadd.f32 %v8874, %v8898
  %v8945 = vadd.f32 %v8875, %v8898
  %v8946 = vadd.f32 %v8876, %v8898
  %v8947 = vadd.f32 %v8877, %v8898
  %v8948 = vadd.f32 %v8878, %v8898
  %v8949 = vadd.f32 %v8879, %v8898
  %v8950 = vadd.f32 %v8880, %v8898
  %v8951 = vadd.f32 %v8881, %v8898
  %v8952 = vadd.f32 %v8882, %v8898
  %v8953 = vadd.f32 %v8883, %v8898
  %v8954 = vadd.f32 %v8884, %v8898
  %v8955 = vadd.f32 %v8885, %v8898
  %v8956 = vadd.f32 %v8886, %v8898
  %v8957 = vadd.f32 %v8887, %v8898
  %v8958 = vadd.f32 %v8888, %v8898
  %v8959 = vadd.f32 %v8889, %v8898
  %v8960 = vadd.f32 %v8890, %v8898
  %v8961 = vadd.f32 %v8891, %v8898
  %v8962 = vadd.f32 %v8892, %v8898
  %v8963 = vadd.f32 %v8893, %v8898
  %8964 = vst.msk [vmem:[%s4621 + $0x1] sm:$0xff] %vm2738, %v8900
  %8965 = vst.msk [vmem:[%s4621 + $0x9] sm:$0xff] %vm2738, %v8901
  %8966 = vst.msk [vmem:[%s4621 + $0x19] sm:$0xff] %vm2738, %v8902
  %8967 = vst.msk [vmem:[%s4621 + $0x21] sm:$0xff] %vm2738, %v8903
  %8968 = vst.msk [vmem:[%s4621 + $0x31] sm:$0xff] %vm2738, %v8904
  %8969 = vst.msk [vmem:[%s4621 + $0x39] sm:$0xff] %vm2738, %v8905
  %8970 = vst.msk [vmem:[%s4621 + $0x49] sm:$0xff] %vm2738, %v8906
  %8971 = vst.msk [vmem:[%s4621 + $0x51] sm:$0xff] %vm2738, %v8907
  %8972 = vst.msk [vmem:[%s4621 + $0x61] sm:$0xff] %vm2738, %v8908
  %8973 = vst.msk [vmem:[%s4621 + $0x69] sm:$0xff] %vm2738, %v8909
  %8974 = vst.msk [vmem:[%s4621 + $0x79] sm:$0xff] %vm2738, %v8910
  %8975 = vst.msk [vmem:[%s4621 + $0x81] sm:$0xff] %vm2738, %v8911
  %8976 = vst.msk [vmem:[%s4621 + $0x91] sm:$0xff] %vm2738, %v8912
  %8977 = vst.msk [vmem:[%s4621 + $0x99] sm:$0xff] %vm2738, %v8913
  %8978 = vst.msk [vmem:[%s4621 + $0xa9] sm:$0xff] %vm2738, %v8914
  %8979 = vst.msk [vmem:[%s4621 + $0xb1] sm:$0xff] %vm2738, %v8915
  %8980 = vst.msk [vmem:[%s4621 + $0xc1] sm:$0xff] %vm2738, %v8916
  %8981 = vst.msk [vmem:[%s4621 + $0xc9] sm:$0xff] %vm2738, %v8917
  %8982 = vst.msk [vmem:[%s4621 + $0xd9] sm:$0xff] %vm2738, %v8918
  %8983 = vst.msk [vmem:[%s4621 + $0xe1] sm:$0xff] %vm2738, %v8919
  %8984 = vst.msk [vmem:[%s4621 + $0xf1] sm:$0xff] %vm2738, %v8920
  %8985 = vst.msk [vmem:[%s4621 + $0xf9] sm:$0xff] %vm2738, %v8921
  %8986 = vst.msk [vmem:[%s4621 + $0x109] sm:$0xff] %vm2738, %v8922
  %8987 = vst.msk [vmem:[%s4621 + $0x111] sm:$0xff] %vm2738, %v8923
  %8988 = vst.msk [vmem:[%s4621 + $0x121] sm:$0xff] %vm2738, %v8924
  %8989 = vst.msk [vmem:[%s4621 + $0x129] sm:$0xff] %vm2738, %v8925
  %8990 = vst.msk [vmem:[%s4621 + $0x139] sm:$0xff] %vm2738, %v8926
  %8991 = vst.msk [vmem:[%s4621 + $0x141] sm:$0xff] %vm2738, %v8927
  %8992 = vst.msk [vmem:[%s4621 + $0x151] sm:$0xff] %vm2738, %v8928
  %8993 = vst.msk [vmem:[%s4621 + $0x159] sm:$0xff] %vm2738, %v8929
  %8994 = vst.msk [vmem:[%s4621 + $0x169] sm:$0xff] %vm2738, %v8930
  %8995 = vst.msk [vmem:[%s4621 + $0x171] sm:$0xff] %vm2738, %v8931
  %8996 = vst.msk [vmem:[%s4621 + $0x1e1] sm:$0xff] %vm2738, %v8932
  %8997 = vst.msk [vmem:[%s4621 + $0x1e9] sm:$0xff] %vm2738, %v8933
  %8998 = vst.msk [vmem:[%s4621 + $0x1f9] sm:$0xff] %vm2738, %v8934
  %8999 = vst.msk [vmem:[%s4621 + $0x201] sm:$0xff] %vm2738, %v8935
  %9000 = vst.msk [vmem:[%s4621 + $0x211] sm:$0xff] %vm2738, %v8936
  %9001 = vst.msk [vmem:[%s4621 + $0x219] sm:$0xff] %vm2738, %v8937
  %9002 = vst.msk [vmem:[%s4621 + $0x229] sm:$0xff] %vm2738, %v8938
  %9003 = vst.msk [vmem:[%s4621 + $0x231] sm:$0xff] %vm2738, %v8939
  %9004 = vst.msk [vmem:[%s4621 + $0x241] sm:$0xff] %vm2738, %v8940
  %9005 = vst.msk [vmem:[%s4621 + $0x249] sm:$0xff] %vm2738, %v8941
  %9006 = vst.msk [vmem:[%s4621 + $0x259] sm:$0xff] %vm2738, %v8942
  %9007 = vst.msk [vmem:[%s4621 + $0x261] sm:$0xff] %vm2738, %v8943
  %9008 = vst.msk [vmem:[%s4621 + $0x271] sm:$0xff] %vm2738, %v8944
  %9009 = vst.msk [vmem:[%s4621 + $0x279] sm:$0xff] %vm2738, %v8945
  %9010 = vst.msk [vmem:[%s4621 + $0x289] sm:$0xff] %vm2738, %v8946
  %9011 = vst.msk [vmem:[%s4621 + $0x291] sm:$0xff] %vm2738, %v8947
  %9012 = vst.msk [vmem:[%s4621 + $0x2a1] sm:$0xff] %vm2738, %v8948
  %9013 = vst.msk [vmem:[%s4621 + $0x2a9] sm:$0xff] %vm2738, %v8949
  %9014 = vst.msk [vmem:[%s4621 + $0x2b9] sm:$0xff] %vm2738, %v8950
  %9015 = vst.msk [vmem:[%s4621 + $0x2c1] sm:$0xff] %vm2738, %v8951
  %9016 = vst.msk [vmem:[%s4621 + $0x2d1] sm:$0xff] %vm2738, %v8952
  %9017 = vst.msk [vmem:[%s4621 + $0x2d9] sm:$0xff] %vm2738, %v8953
  %9018 = vst.msk [vmem:[%s4621 + $0x2e9] sm:$0xff] %vm2738, %v8954
  %9019 = vst.msk [vmem:[%s4621 + $0x2f1] sm:$0xff] %vm2738, %v8955
  %9020 = vst.msk [vmem:[%s4621 + $0x301] sm:$0xff] %vm2738, %v8956
  %9021 = vst.msk [vmem:[%s4621 + $0x309] sm:$0xff] %vm2738, %v8957
  %9022 = vst.msk [vmem:[%s4621 + $0x319] sm:$0xff] %vm2738, %v8958
  %9023 = vst.msk [vmem:[%s4621 + $0x321] sm:$0xff] %vm2738, %v8959
  %9024 = vst.msk [vmem:[%s4621 + $0x331] sm:$0xff] %vm2738, %v8960
  %9025 = vst.msk [vmem:[%s4621 + $0x339] sm:$0xff] %vm2738, %v8961
  %9026 = vst.msk [vmem:[%s4621 + $0x349] sm:$0xff] %vm2738, %v8962
  %9027 = vst.msk [vmem:[%s4621 + $0x351] sm:$0xff] %vm2738, %v8963
  %v9028 = vld [vmem:[#allocation2] ss:$2 sm:$0xff]
  %s9029 = scalar_lea.vmem [#allocation2], 16
  %v9030 = vld [vmem:[%s9029] ss:$2 sm:$0x3]
  %s9031 = scalar_lea.vmem [#allocation2], 48
  %v9032 = vld [vmem:[%s9031] ss:$2 sm:$0xff]
  %s9033 = scalar_lea.vmem [#allocation2], 64
  %v9034 = vld [vmem:[%s9033] ss:$2 sm:$0x3]
  %s9035 = scalar_lea.vmem [#allocation2], 96
  %v9036 = vld [vmem:[%s9035] ss:$2 sm:$0xff]
  %s9037 = scalar_lea.vmem [#allocation2], 112
  %v9038 = vld [vmem:[%s9037] ss:$2 sm:$0x3]
  %s9039 = scalar_lea.vmem [#allocation2], 144
  %v9040 = vld [vmem:[%s9039] ss:$2 sm:$0xff]
  %s9041 = scalar_lea.vmem [#allocation2], 160
  %v9042 = vld [vmem:[%s9041] ss:$2 sm:$0x3]
  %s9043 = scalar_lea.vmem [#allocation2], 192
  %v9044 = vld [vmem:[%s9043] ss:$2 sm:$0xff]
  %s9045 = scalar_lea.vmem [#allocation2], 208
  %v9046 = vld [vmem:[%s9045] ss:$2 sm:$0x3]
  %s9047 = scalar_lea.vmem [#allocation2], 240
  %v9048 = vld [vmem:[%s9047] ss:$2 sm:$0xff]
  %s9049 = scalar_lea.vmem [#allocation2], 256
  %v9050 = vld [vmem:[%s9049] ss:$2 sm:$0x3]
  %s9051 = scalar_lea.vmem [#allocation2], 288
  %v9052 = vld [vmem:[%s9051] ss:$2 sm:$0xff]
  %s9053 = scalar_lea.vmem [#allocation2], 304
  %v9054 = vld [vmem:[%s9053] ss:$2 sm:$0x3]
  %s9055 = scalar_lea.vmem [#allocation2], 336
  %v9056 = vld [vmem:[%s9055] ss:$2 sm:$0xff]
  %s9057 = scalar_lea.vmem [#allocation2], 352
  %v9058 = vld [vmem:[%s9057] ss:$2 sm:$0x3]
  %s9059 = scalar_lea.vmem [#allocation2], 384
  %v9060 = vld [vmem:[%s9059] ss:$2 sm:$0xff]
  %s9061 = scalar_lea.vmem [#allocation2], 400
  %v9062 = vld [vmem:[%s9061] ss:$2 sm:$0x3]
  %s9063 = scalar_lea.vmem [#allocation2], 480
  %v9064 = vld [vmem:[%s9063] ss:$2 sm:$0xff]
  %s9065 = scalar_lea.vmem [#allocation2], 496
  %v9066 = vld [vmem:[%s9065] ss:$2 sm:$0x3]
  %s9067 = scalar_lea.vmem [#allocation2], 528
  %v9068 = vld [vmem:[%s9067] ss:$2 sm:$0xff]
  %s9069 = scalar_lea.vmem [#allocation2], 544
  %v9070 = vld [vmem:[%s9069] ss:$2 sm:$0x3]
  %s9071 = scalar_lea.vmem [#allocation2], 576
  %v9072 = vld [vmem:[%s9071] ss:$2 sm:$0xff]
  %s9073 = scalar_lea.vmem [#allocation2], 592
  %v9074 = vld [vmem:[%s9073] ss:$2 sm:$0x3]
  %s9075 = scalar_lea.vmem [#allocation2], 624
  %v9076 = vld [vmem:[%s9075] ss:$2 sm:$0xff]
  %s9077 = scalar_lea.vmem [#allocation2], 640
  %v9078 = vld [vmem:[%s9077] ss:$2 sm:$0x3]
  %s9079 = scalar_lea.vmem [#allocation2], 672
  %v9080 = vld [vmem:[%s9079] ss:$2 sm:$0xff]
  %s9081 = scalar_lea.vmem [#allocation2], 688
  %v9082 = vld [vmem:[%s9081] ss:$2 sm:$0x3]
  %s9083 = scalar_lea.vmem [#allocation2], 720
  %v9084 = vld [vmem:[%s9083] ss:$2 sm:$0xff]
  %s9085 = scalar_lea.vmem [#allocation2], 736
  %v9086 = vld [vmem:[%s9085] ss:$2 sm:$0x3]
  %s9087 = scalar_lea.vmem [#allocation2], 768
  %v9088 = vld [vmem:[%s9087] ss:$2 sm:$0xff]
  %s9089 = scalar_lea.vmem [#allocation2], 784
  %v9090 = vld [vmem:[%s9089] ss:$2 sm:$0x3]
  %s9091 = scalar_lea.vmem [#allocation2], 816
  %v9092 = vld [vmem:[%s9091] ss:$2 sm:$0xff]
  %s9093 = scalar_lea.vmem [#allocation2], 832
  %v9094 = vld [vmem:[%s9093] ss:$2 sm:$0x3]
  %s9095 = scalar_lea.vmem [#allocation2], 864
  %v9096 = vld [vmem:[%s9095] ss:$2 sm:$0xff]
  %s9097 = scalar_lea.vmem [#allocation2], 880
  %v9098 = vld [vmem:[%s9097] ss:$2 sm:$0x3]
  %s9099 = scalar_lea.vmem [#allocation2], 1
  %v9100 = vld [vmem:[%s9099] ss:$2 sm:$0xff]
  %s9101 = scalar_lea.vmem [#allocation2], 17
  %v9102 = vld [vmem:[%s9101] ss:$2 sm:$0x3]
  %s9103 = scalar_lea.vmem [#allocation2], 49
  %v9104 = vld [vmem:[%s9103] ss:$2 sm:$0xff]
  %s9105 = scalar_lea.vmem [#allocation2], 65
  %v9106 = vld [vmem:[%s9105] ss:$2 sm:$0x3]
  %s9107 = scalar_lea.vmem [#allocation2], 97
  %v9108 = vld [vmem:[%s9107] ss:$2 sm:$0xff]
  %s9109 = scalar_lea.vmem [#allocation2], 113
  %v9110 = vld [vmem:[%s9109] ss:$2 sm:$0x3]
  %s9111 = scalar_lea.vmem [#allocation2], 145
  %v9112 = vld [vmem:[%s9111] ss:$2 sm:$0xff]
  %s9113 = scalar_lea.vmem [#allocation2], 161
  %v9114 = vld [vmem:[%s9113] ss:$2 sm:$0x3]
  %s9115 = scalar_lea.vmem [#allocation2], 193
  %v9116 = vld [vmem:[%s9115] ss:$2 sm:$0xff]
  %s9117 = scalar_lea.vmem [#allocation2], 209
  %v9118 = vld [vmem:[%s9117] ss:$2 sm:$0x3]
  %s9119 = scalar_lea.vmem [#allocation2], 241
  %v9120 = vld [vmem:[%s9119] ss:$2 sm:$0xff]
  %s9121 = scalar_lea.vmem [#allocation2], 257
  %v9122 = vld [vmem:[%s9121] ss:$2 sm:$0x3]
  %s9123 = scalar_lea.vmem [#allocation2], 289
  %v9124 = vld [vmem:[%s9123] ss:$2 sm:$0xff]
  %s9125 = scalar_lea.vmem [#allocation2], 305
  %v9126 = vld [vmem:[%s9125] ss:$2 sm:$0x3]
  %s9127 = scalar_lea.vmem [#allocation2], 337
  %v9128 = vld [vmem:[%s9127] ss:$2 sm:$0xff]
  %s9129 = scalar_lea.vmem [#allocation2], 353
  %v9130 = vld [vmem:[%s9129] ss:$2 sm:$0x3]
  %s9131 = scalar_lea.vmem [#allocation2], 385
  %v9132 = vld [vmem:[%s9131] ss:$2 sm:$0xff]
  %s9133 = scalar_lea.vmem [#allocation2], 401
  %v9134 = vld [vmem:[%s9133] ss:$2 sm:$0x3]
  %s9135 = scalar_lea.vmem [#allocation2], 481
  %v9136 = vld [vmem:[%s9135] ss:$2 sm:$0xff]
  %s9137 = scalar_lea.vmem [#allocation2], 497
  %v9138 = vld [vmem:[%s9137] ss:$2 sm:$0x3]
  %s9139 = scalar_lea.vmem [#allocation2], 529
  %v9140 = vld [vmem:[%s9139] ss:$2 sm:$0xff]
  %s9141 = scalar_lea.vmem [#allocation2], 545
  %v9142 = vld [vmem:[%s9141] ss:$2 sm:$0x3]
  %s9143 = scalar_lea.vmem [#allocation2], 577
  %v9144 = vld [vmem:[%s9143] ss:$2 sm:$0xff]
  %s9145 = scalar_lea.vmem [#allocation2], 593
  %v9146 = vld [vmem:[%s9145] ss:$2 sm:$0x3]
  %s9147 = scalar_lea.vmem [#allocation2], 625
  %v9148 = vld [vmem:[%s9147] ss:$2 sm:$0xff]
  %s9149 = scalar_lea.vmem [#allocation2], 641
  %v9150 = vld [vmem:[%s9149] ss:$2 sm:$0x3]
  %s9151 = scalar_lea.vmem [#allocation2], 673
  %v9152 = vld [vmem:[%s9151] ss:$2 sm:$0xff]
  %s9153 = scalar_lea.vmem [#allocation2], 689
  %v9154 = vld [vmem:[%s9153] ss:$2 sm:$0x3]
  %s9155 = scalar_lea.vmem [#allocation2], 721
  %v9156 = vld [vmem:[%s9155] ss:$2 sm:$0xff]
  %s9157 = scalar_lea.vmem [#allocation2], 737
  %v9158 = vld [vmem:[%s9157] ss:$2 sm:$0x3]
  %s9159 = scalar_lea.vmem [#allocation2], 769
  %v9160 = vld [vmem:[%s9159] ss:$2 sm:$0xff]
  %s9161 = scalar_lea.vmem [#allocation2], 785
  %v9162 = vld [vmem:[%s9161] ss:$2 sm:$0x3]
  %s9163 = scalar_lea.vmem [#allocation2], 817
  %v9164 = vld [vmem:[%s9163] ss:$2 sm:$0xff]
  %s9165 = scalar_lea.vmem [#allocation2], 833
  %v9166 = vld [vmem:[%s9165] ss:$2 sm:$0x3]
  %s9167 = scalar_lea.vmem [#allocation2], 865
  %v9168 = vld [vmem:[%s9167] ss:$2 sm:$0xff]
  %s9169 = scalar_lea.vmem [#allocation2], 881
  %v9170 = vld [vmem:[%s9169] ss:$2 sm:$0x3]
  %v9171 = vld [vmem:[%s4621] ss:$2 sm:$0xff]
  %s9172 = scalar_lea.vmem %s4621, 16 [#allocation2]
  %v9173 = vld [vmem:[%s9172] ss:$2 sm:$0x3]
  %s9174 = scalar_lea.vmem %s4621, 48 [#allocation2]
  %v9175 = vld [vmem:[%s9174] ss:$2 sm:$0xff]
  %s9176 = scalar_lea.vmem %s4621, 64 [#allocation2]
  %v9177 = vld [vmem:[%s9176] ss:$2 sm:$0x3]
  %s9178 = scalar_lea.vmem %s4621, 96 [#allocation2]
  %v9179 = vld [vmem:[%s9178] ss:$2 sm:$0xff]
  %s9180 = scalar_lea.vmem %s4621, 112 [#allocation2]
  %v9181 = vld [vmem:[%s9180] ss:$2 sm:$0x3]
  %s9182 = scalar_lea.vmem %s4621, 144 [#allocation2]
  %v9183 = vld [vmem:[%s9182] ss:$2 sm:$0xff]
  %s9184 = scalar_lea.vmem %s4621, 160 [#allocation2]
  %v9185 = vld [vmem:[%s9184] ss:$2 sm:$0x3]
  %s9186 = scalar_lea.vmem %s4621, 192 [#allocation2]
  %v9187 = vld [vmem:[%s9186] ss:$2 sm:$0xff]
  %s9188 = scalar_lea.vmem %s4621, 208 [#allocation2]
  %v9189 = vld [vmem:[%s9188] ss:$2 sm:$0x3]
  %s9190 = scalar_lea.vmem %s4621, 240 [#allocation2]
  %v9191 = vld [vmem:[%s9190] ss:$2 sm:$0xff]
  %s9192 = scalar_lea.vmem %s4621, 256 [#allocation2]
  %v9193 = vld [vmem:[%s9192] ss:$2 sm:$0x3]
  %s9194 = scalar_lea.vmem %s4621, 288 [#allocation2]
  %v9195 = vld [vmem:[%s9194] ss:$2 sm:$0xff]
  %s9196 = scalar_lea.vmem %s4621, 304 [#allocation2]
  %v9197 = vld [vmem:[%s9196] ss:$2 sm:$0x3]
  %s9198 = scalar_lea.vmem %s4621, 336 [#allocation2]
  %v9199 = vld [vmem:[%s9198] ss:$2 sm:$0xff]
  %s9200 = scalar_lea.vmem %s4621, 352 [#allocation2]
  %v9201 = vld [vmem:[%s9200] ss:$2 sm:$0x3]
  %s9202 = scalar_lea.vmem %s4621, 384 [#allocation2]
  %v9203 = vld [vmem:[%s9202] ss:$2 sm:$0xff]
  %s9204 = scalar_lea.vmem %s4621, 400 [#allocation2]
  %v9205 = vld [vmem:[%s9204] ss:$2 sm:$0x3]
  %s9206 = scalar_lea.vmem %s4621, 480 [#allocation2]
  %v9207 = vld [vmem:[%s9206] ss:$2 sm:$0xff]
  %s9208 = scalar_lea.vmem %s4621, 496 [#allocation2]
  %v9209 = vld [vmem:[%s9208] ss:$2 sm:$0x3]
  %s9210 = scalar_lea.vmem %s4621, 528 [#allocation2]
  %v9211 = vld [vmem:[%s9210] ss:$2 sm:$0xff]
  %s9212 = scalar_lea.vmem %s4621, 544 [#allocation2]
  %v9213 = vld [vmem:[%s9212] ss:$2 sm:$0x3]
  %s9214 = scalar_lea.vmem %s4621, 576 [#allocation2]
  %v9215 = vld [vmem:[%s9214] ss:$2 sm:$0xff]
  %s9216 = scalar_lea.vmem %s4621, 592 [#allocation2]
  %v9217 = vld [vmem:[%s9216] ss:$2 sm:$0x3]
  %s9218 = scalar_lea.vmem %s4621, 624 [#allocation2]
  %v9219 = vld [vmem:[%s9218] ss:$2 sm:$0xff]
  %s9220 = scalar_lea.vmem %s4621, 640 [#allocation2]
  %v9221 = vld [vmem:[%s9220] ss:$2 sm:$0x3]
  %s9222 = scalar_lea.vmem %s4621, 672 [#allocation2]
  %v9223 = vld [vmem:[%s9222] ss:$2 sm:$0xff]
  %s9224 = scalar_lea.vmem %s4621, 688 [#allocation2]
  %v9225 = vld [vmem:[%s9224] ss:$2 sm:$0x3]
  %s9226 = scalar_lea.vmem %s4621, 720 [#allocation2]
  %v9227 = vld [vmem:[%s9226] ss:$2 sm:$0xff]
  %s9228 = scalar_lea.vmem %s4621, 736 [#allocation2]
  %v9229 = vld [vmem:[%s9228] ss:$2 sm:$0x3]
  %s9230 = scalar_lea.vmem %s4621, 768 [#allocation2]
  %v9231 = vld [vmem:[%s9230] ss:$2 sm:$0xff]
  %s9232 = scalar_lea.vmem %s4621, 784 [#allocation2]
  %v9233 = vld [vmem:[%s9232] ss:$2 sm:$0x3]
  %s9234 = scalar_lea.vmem %s4621, 816 [#allocation2]
  %v9235 = vld [vmem:[%s9234] ss:$2 sm:$0xff]
  %s9236 = scalar_lea.vmem %s4621, 832 [#allocation2]
  %v9237 = vld [vmem:[%s9236] ss:$2 sm:$0x3]
  %s9238 = scalar_lea.vmem %s4621, 864 [#allocation2]
  %v9239 = vld [vmem:[%s9238] ss:$2 sm:$0xff]
  %s9240 = scalar_lea.vmem %s4621, 880 [#allocation2]
  %v9241 = vld [vmem:[%s9240] ss:$2 sm:$0x3]
  %s9242 = scalar_lea.vmem %s4621, 1 [#allocation2]
  %v9243 = vld [vmem:[%s9242] ss:$2 sm:$0xff]
  %s9244 = scalar_lea.vmem %s4621, 17 [#allocation2]
  %v9245 = vld [vmem:[%s9244] ss:$2 sm:$0x3]
  %s9246 = scalar_lea.vmem %s4621, 49 [#allocation2]
  %v9247 = vld [vmem:[%s9246] ss:$2 sm:$0xff]
  %s9248 = scalar_lea.vmem %s4621, 65 [#allocation2]
  %v9249 = vld [vmem:[%s9248] ss:$2 sm:$0x3]
  %s9250 = scalar_lea.vmem %s4621, 97 [#allocation2]
  %v9251 = vld [vmem:[%s9250] ss:$2 sm:$0xff]
  %s9252 = scalar_lea.vmem %s4621, 113 [#allocation2]
  %v9253 = vld [vmem:[%s9252] ss:$2 sm:$0x3]
  %s9254 = scalar_lea.vmem %s4621, 145 [#allocation2]
  %v9255 = vld [vmem:[%s9254] ss:$2 sm:$0xff]
  %s9256 = scalar_lea.vmem %s4621, 161 [#allocation2]
  %v9257 = vld [vmem:[%s9256] ss:$2 sm:$0x3]
  %s9258 = scalar_lea.vmem %s4621, 193 [#allocation2]
  %v9259 = vld [vmem:[%s9258] ss:$2 sm:$0xff]
  %s9260 = scalar_lea.vmem %s4621, 209 [#allocation2]
  %v9261 = vld [vmem:[%s9260] ss:$2 sm:$0x3]
  %s9262 = scalar_lea.vmem %s4621, 241 [#allocation2]
  %v9263 = vld [vmem:[%s9262] ss:$2 sm:$0xff]
  %s9264 = scalar_lea.vmem %s4621, 257 [#allocation2]
  %v9265 = vld [vmem:[%s9264] ss:$2 sm:$0x3]
  %s9266 = scalar_lea.vmem %s4621, 289 [#allocation2]
  %v9267 = vld [vmem:[%s9266] ss:$2 sm:$0xff]
  %s9268 = scalar_lea.vmem %s4621, 305 [#allocation2]
  %v9269 = vld [vmem:[%s9268] ss:$2 sm:$0x3]
  %s9270 = scalar_lea.vmem %s4621, 337 [#allocation2]
  %v9271 = vld [vmem:[%s9270] ss:$2 sm:$0xff]
  %s9272 = scalar_lea.vmem %s4621, 353 [#allocation2]
  %v9273 = vld [vmem:[%s9272] ss:$2 sm:$0x3]
  %s9274 = scalar_lea.vmem %s4621, 385 [#allocation2]
  %v9275 = vld [vmem:[%s9274] ss:$2 sm:$0xff]
  %s9276 = scalar_lea.vmem %s4621, 401 [#allocation2]
  %v9277 = vld [vmem:[%s9276] ss:$2 sm:$0x3]
  %s9278 = scalar_lea.vmem %s4621, 481 [#allocation2]
  %v9279 = vld [vmem:[%s9278] ss:$2 sm:$0xff]
  %s9280 = scalar_lea.vmem %s4621, 497 [#allocation2]
  %v9281 = vld [vmem:[%s9280] ss:$2 sm:$0x3]
  %s9282 = scalar_lea.vmem %s4621, 529 [#allocation2]
  %v9283 = vld [vmem:[%s9282] ss:$2 sm:$0xff]
  %s9284 = scalar_lea.vmem %s4621, 545 [#allocation2]
  %v9285 = vld [vmem:[%s9284] ss:$2 sm:$0x3]
  %s9286 = scalar_lea.vmem %s4621, 577 [#allocation2]
  %v9287 = vld [vmem:[%s9286] ss:$2 sm:$0xff]
  %s9288 = scalar_lea.vmem %s4621, 593 [#allocation2]
  %v9289 = vld [vmem:[%s9288] ss:$2 sm:$0x3]
  %s9290 = scalar_lea.vmem %s4621, 625 [#allocation2]
  %v9291 = vld [vmem:[%s9290] ss:$2 sm:$0xff]
  %s9292 = scalar_lea.vmem %s4621, 641 [#allocation2]
  %v9293 = vld [vmem:[%s9292] ss:$2 sm:$0x3]
  %s9294 = scalar_lea.vmem %s4621, 673 [#allocation2]
  %v9295 = vld [vmem:[%s9294] ss:$2 sm:$0xff]
  %s9296 = scalar_lea.vmem %s4621, 689 [#allocation2]
  %v9297 = vld [vmem:[%s9296] ss:$2 sm:$0x3]
  %s9298 = scalar_lea.vmem %s4621, 721 [#allocation2]
  %v9299 = vld [vmem:[%s9298] ss:$2 sm:$0xff]
  %s9300 = scalar_lea.vmem %s4621, 737 [#allocation2]
  %v9301 = vld [vmem:[%s9300] ss:$2 sm:$0x3]
  %s9302 = scalar_lea.vmem %s4621, 769 [#allocation2]
  %v9303 = vld [vmem:[%s9302] ss:$2 sm:$0xff]
  %s9304 = scalar_lea.vmem %s4621, 785 [#allocation2]
  %v9305 = vld [vmem:[%s9304] ss:$2 sm:$0x3]
  %s9306 = scalar_lea.vmem %s4621, 817 [#allocation2]
  %v9307 = vld [vmem:[%s9306] ss:$2 sm:$0xff]
  %s9308 = scalar_lea.vmem %s4621, 833 [#allocation2]
  %v9309 = vld [vmem:[%s9308] ss:$2 sm:$0x3]
  %s9310 = scalar_lea.vmem %s4621, 865 [#allocation2]
  %v9311 = vld [vmem:[%s9310] ss:$2 sm:$0xff]
  %s9312 = scalar_lea.vmem %s4621, 881 [#allocation2]
  %v9313 = vld [vmem:[%s9312] ss:$2 sm:$0x3]
  %9330 = vrot.lane.b32.xlu0 %v9100, 8
  %v9331 = vpop.permute.xlu0 %9330
  %9332 = vrot.lane.b32.xlu0 %v9104, 8
  %v9333 = vpop.permute.xlu0 %9332
  %9334 = vrot.lane.b32.xlu0 %v9108, 8
  %v9335 = vpop.permute.xlu0 %9334
  %9336 = vrot.lane.b32.xlu0 %v9112, 8
  %v9337 = vpop.permute.xlu0 %9336
  %9338 = vrot.lane.b32.xlu0 %v9116, 8
  %v9339 = vpop.permute.xlu0 %9338
  %9340 = vrot.lane.b32.xlu0 %v9120, 8
  %v9341 = vpop.permute.xlu0 %9340
  %9342 = vrot.lane.b32.xlu0 %v9124, 8
  %v9343 = vpop.permute.xlu0 %9342
  %9344 = vrot.lane.b32.xlu0 %v9128, 8
  %v9345 = vpop.permute.xlu0 %9344
  %9346 = vrot.lane.b32.xlu0 %v9136, 8
  %v9347 = vpop.permute.xlu0 %9346
  %9348 = vrot.lane.b32.xlu0 %v9140, 8
  %v9349 = vpop.permute.xlu0 %9348
  %9350 = vrot.lane.b32.xlu0 %v9144, 8
  %v9351 = vpop.permute.xlu0 %9350
  %9352 = vrot.lane.b32.xlu0 %v9148, 8
  %v9353 = vpop.permute.xlu0 %9352
  %9354 = vrot.lane.b32.xlu0 %v9152, 8
  %v9355 = vpop.permute.xlu0 %9354
  %9356 = vrot.lane.b32.xlu0 %v9156, 8
  %v9357 = vpop.permute.xlu0 %9356
  %9358 = vrot.lane.b32.xlu0 %v9160, 8
  %v9359 = vpop.permute.xlu0 %9358
  %9360 = vrot.lane.b32.xlu0 %v9164, 8
  %v9361 = vpop.permute.xlu0 %9360
  %vm9410 = vcmask 1046528
  %v9411 = vrot.slane %v9028, 1
  %v9412 = vrot.slane %v9030, 1
  %v9413 = vsel %vm9410, %v9411, %v9412
  %v9414 = vrot.slane %v9032, 1
  %v9415 = vrot.slane %v9034, 1
  %v9416 = vsel %vm9410, %v9414, %v9415
  %v9417 = vrot.slane %v9036, 1
  %v9418 = vrot.slane %v9038, 1
  %v9419 = vsel %vm9410, %v9417, %v9418
  %v9420 = vrot.slane %v9040, 1
  %v9421 = vrot.slane %v9042, 1
  %v9422 = vsel %vm9410, %v9420, %v9421
  %v9423 = vrot.slane %v9044, 1
  %v9424 = vrot.slane %v9046, 1
  %v9425 = vsel %vm9410, %v9423, %v9424
  %v9426 = vrot.slane %v9048, 1
  %v9427 = vrot.slane %v9050, 1
  %v9428 = vsel %vm9410, %v9426, %v9427
  %v9429 = vrot.slane %v9052, 1
  %v9430 = vrot.slane %v9054, 1
  %v9431 = vsel %vm9410, %v9429, %v9430
  %v9432 = vrot.slane %v9056, 1
  %v9433 = vrot.slane %v9058, 1
  %v9434 = vsel %vm9410, %v9432, %v9433
  %v9435 = vrot.slane %v9064, 1
  %v9436 = vrot.slane %v9066, 1
  %v9437 = vsel %vm9410, %v9435, %v9436
  %v9438 = vrot.slane %v9068, 1
  %v9439 = vrot.slane %v9070, 1
  %v9440 = vsel %vm9410, %v9438, %v9439
  %v9441 = vrot.slane %v9072, 1
  %v9442 = vrot.slane %v9074, 1
  %v9443 = vsel %vm9410, %v9441, %v9442
  %v9444 = vrot.slane %v9076, 1
  %v9445 = vrot.slane %v9078, 1
  %v9446 = vsel %vm9410, %v9444, %v9445
  %v9447 = vrot.slane %v9080, 1
  %v9448 = vrot.slane %v9082, 1
  %v9449 = vsel %vm9410, %v9447, %v9448
  %v9450 = vrot.slane %v9084, 1
  %v9451 = vrot.slane %v9086, 1
  %v9452 = vsel %vm9410, %v9450, %v9451
  %v9453 = vrot.slane %v9088, 1
  %v9454 = vrot.slane %v9090, 1
  %v9455 = vsel %vm9410, %v9453, %v9454
  %v9456 = vrot.slane %v9092, 1
  %v9457 = vrot.slane %v9094, 1
  %v9458 = vsel %vm9410, %v9456, %v9457
  %9459 = vrot.lane.b32.xlu0 %v9413, 16
  %v9460 = vpop.permute.xlu0 %9459
  %9461 = vrot.lane.b32.xlu0 %v9416, 16
  %v9462 = vpop.permute.xlu0 %9461
  %9463 = vrot.lane.b32.xlu0 %v9419, 16
  %v9464 = vpop.permute.xlu0 %9463
  %9465 = vrot.lane.b32.xlu0 %v9422, 16
  %v9466 = vpop.permute.xlu0 %9465
  %9467 = vrot.lane.b32.xlu0 %v9425, 16
  %v9468 = vpop.permute.xlu0 %9467
  %9469 = vrot.lane.b32.xlu0 %v9428, 16
  %v9470 = vpop.permute.xlu0 %9469
  %9471 = vrot.lane.b32.xlu0 %v9431, 16
  %v9472 = vpop.permute.xlu0 %9471
  %9473 = vrot.lane.b32.xlu0 %v9434, 16
  %v9474 = vpop.permute.xlu0 %9473
  %9475 = vrot.lane.b32.xlu0 %v9437, 16
  %v9476 = vpop.permute.xlu0 %9475
  %9477 = vrot.lane.b32.xlu0 %v9440, 16
  %v9478 = vpop.permute.xlu0 %9477
  %9479 = vrot.lane.b32.xlu0 %v9443, 16
  %v9480 = vpop.permute.xlu0 %9479
  %9481 = vrot.lane.b32.xlu0 %v9446, 16
  %v9482 = vpop.permute.xlu0 %9481
  %9483 = vrot.lane.b32.xlu0 %v9449, 16
  %v9484 = vpop.permute.xlu0 %9483
  %9485 = vrot.lane.b32.xlu0 %v9452, 16
  %v9486 = vpop.permute.xlu0 %9485
  %9487 = vrot.lane.b32.xlu0 %v9455, 16
  %v9488 = vpop.permute.xlu0 %9487
  %9489 = vrot.lane.b32.xlu0 %v9458, 16
  %v9490 = vpop.permute.xlu0 %9489
  %v9523 = vrot.slane %v9100, 1
  %v9524 = vrot.slane %v9102, 1
  %v9525 = vsel %vm9410, %v9523, %v9524
  %v9526 = vrot.slane %v9104, 1
  %v9527 = vrot.slane %v9106, 1
  %v9528 = vsel %vm9410, %v9526, %v9527
  %v9529 = vrot.slane %v9108, 1
  %v9530 = vrot.slane %v9110, 1
  %v9531 = vsel %vm9410, %v9529, %v9530
  %v9532 = vrot.slane %v9112, 1
  %v9533 = vrot.slane %v9114, 1
  %v9534 = vsel %vm9410, %v9532, %v9533
  %v9535 = vrot.slane %v9116, 1
  %v9536 = vrot.slane %v9118, 1
  %v9537 = vsel %vm9410, %v9535, %v9536
  %v9538 = vrot.slane %v9120, 1
  %v9539 = vrot.slane %v9122, 1
  %v9540 = vsel %vm9410, %v9538, %v9539
  %v9541 = vrot.slane %v9124, 1
  %v9542 = vrot.slane %v9126, 1
  %v9543 = vsel %vm9410, %v9541, %v9542
  %v9544 = vrot.slane %v9128, 1
  %v9545 = vrot.slane %v9130, 1
  %v9546 = vsel %vm9410, %v9544, %v9545
  %v9547 = vrot.slane %v9136, 1
  %v9548 = vrot.slane %v9138, 1
  %v9549 = vsel %vm9410, %v9547, %v9548
  %v9550 = vrot.slane %v9140, 1
  %v9551 = vrot.slane %v9142, 1
  %v9552 = vsel %vm9410, %v9550, %v9551
  %v9553 = vrot.slane %v9144, 1
  %v9554 = vrot.slane %v9146, 1
  %v9555 = vsel %vm9410, %v9553, %v9554
  %v9556 = vrot.slane %v9148, 1
  %v9557 = vrot.slane %v9150, 1
  %v9558 = vsel %vm9410, %v9556, %v9557
  %v9559 = vrot.slane %v9152, 1
  %v9560 = vrot.slane %v9154, 1
  %v9561 = vsel %vm9410, %v9559, %v9560
  %v9562 = vrot.slane %v9156, 1
  %v9563 = vrot.slane %v9158, 1
  %v9564 = vsel %vm9410, %v9562, %v9563
  %v9565 = vrot.slane %v9160, 1
  %v9566 = vrot.slane %v9162, 1
  %v9567 = vsel %vm9410, %v9565, %v9566
  %v9568 = vrot.slane %v9164, 1
  %v9569 = vrot.slane %v9166, 1
  %v9570 = vsel %vm9410, %v9568, %v9569
  %9571 = vrot.lane.b32.xlu0 %v9525, 24
  %v9572 = vpop.permute.xlu0 %9571
  %9573 = vrot.lane.b32.xlu0 %v9528, 24
  %v9574 = vpop.permute.xlu0 %9573
  %9575 = vrot.lane.b32.xlu0 %v9531, 24
  %v9576 = vpop.permute.xlu0 %9575
  %9577 = vrot.lane.b32.xlu0 %v9534, 24
  %v9578 = vpop.permute.xlu0 %9577
  %9579 = vrot.lane.b32.xlu0 %v9537, 24
  %v9580 = vpop.permute.xlu0 %9579
  %9581 = vrot.lane.b32.xlu0 %v9540, 24
  %v9582 = vpop.permute.xlu0 %9581
  %9583 = vrot.lane.b32.xlu0 %v9543, 24
  %v9584 = vpop.permute.xlu0 %9583
  %9585 = vrot.lane.b32.xlu0 %v9546, 24
  %v9586 = vpop.permute.xlu0 %9585
  %9587 = vrot.lane.b32.xlu0 %v9549, 24
  %v9588 = vpop.permute.xlu0 %9587
  %9589 = vrot.lane.b32.xlu0 %v9552, 24
  %v9590 = vpop.permute.xlu0 %9589
  %9591 = vrot.lane.b32.xlu0 %v9555, 24
  %v9592 = vpop.permute.xlu0 %9591
  %9593 = vrot.lane.b32.xlu0 %v9558, 24
  %v9594 = vpop.permute.xlu0 %9593
  %9595 = vrot.lane.b32.xlu0 %v9561, 24
  %v9596 = vpop.permute.xlu0 %9595
  %9597 = vrot.lane.b32.xlu0 %v9564, 24
  %v9598 = vpop.permute.xlu0 %9597
  %9599 = vrot.lane.b32.xlu0 %v9567, 24
  %v9600 = vpop.permute.xlu0 %9599
  %9601 = vrot.lane.b32.xlu0 %v9570, 24
  %v9602 = vpop.permute.xlu0 %9601
  %9635 = vrot.lane.b32.xlu0 %v9171, 32
  %v9636 = vpop.permute.xlu0 %9635
  %9637 = vrot.lane.b32.xlu0 %v9175, 32
  %v9638 = vpop.permute.xlu0 %9637
  %9639 = vrot.lane.b32.xlu0 %v9179, 32
  %v9640 = vpop.permute.xlu0 %9639
  %9641 = vrot.lane.b32.xlu0 %v9183, 32
  %v9642 = vpop.permute.xlu0 %9641
  %9643 = vrot.lane.b32.xlu0 %v9187, 32
  %v9644 = vpop.permute.xlu0 %9643
  %9645 = vrot.lane.b32.xlu0 %v9191, 32
  %v9646 = vpop.permute.xlu0 %9645
  %9647 = vrot.lane.b32.xlu0 %v9195, 32
  %v9648 = vpop.permute.xlu0 %9647
  %9649 = vrot.lane.b32.xlu0 %v9199, 32
  %v9650 = vpop.permute.xlu0 %9649
  %9651 = vrot.lane.b32.xlu0 %v9207, 32
  %v9652 = vpop.permute.xlu0 %9651
  %9653 = vrot.lane.b32.xlu0 %v9211, 32
  %v9654 = vpop.permute.xlu0 %9653
  %9655 = vrot.lane.b32.xlu0 %v9215, 32
  %v9656 = vpop.permute.xlu0 %9655
  %9657 = vrot.lane.b32.xlu0 %v9219, 32
  %v9658 = vpop.permute.xlu0 %9657
  %9659 = vrot.lane.b32.xlu0 %v9223, 32
  %v9660 = vpop.permute.xlu0 %9659
  %9661 = vrot.lane.b32.xlu0 %v9227, 32
  %v9662 = vpop.permute.xlu0 %9661
  %9663 = vrot.lane.b32.xlu0 %v9231, 32
  %v9664 = vpop.permute.xlu0 %9663
  %9665 = vrot.lane.b32.xlu0 %v9235, 32
  %v9666 = vpop.permute.xlu0 %9665
  %9699 = vrot.lane.b32.xlu0 %v9243, 40
  %v9700 = vpop.permute.xlu0 %9699
  %9701 = vrot.lane.b32.xlu0 %v9247, 40
  %v9702 = vpop.permute.xlu0 %9701
  %9703 = vrot.lane.b32.xlu0 %v9251, 40
  %v9704 = vpop.permute.xlu0 %9703
  %9705 = vrot.lane.b32.xlu0 %v9255, 40
  %v9706 = vpop.permute.xlu0 %9705
  %9707 = vrot.lane.b32.xlu0 %v9259, 40
  %v9708 = vpop.permute.xlu0 %9707
  %9709 = vrot.lane.b32.xlu0 %v9263, 40
  %v9710 = vpop.permute.xlu0 %9709
  %9711 = vrot.lane.b32.xlu0 %v9267, 40
  %v9712 = vpop.permute.xlu0 %9711
  %9713 = vrot.lane.b32.xlu0 %v9271, 40
  %v9714 = vpop.permute.xlu0 %9713
  %9715 = vrot.lane.b32.xlu0 %v9279, 40
  %v9716 = vpop.permute.xlu0 %9715
  %9717 = vrot.lane.b32.xlu0 %v9283, 40
  %v9718 = vpop.permute.xlu0 %9717
  %9719 = vrot.lane.b32.xlu0 %v9287, 40
  %v9720 = vpop.permute.xlu0 %9719
  %9721 = vrot.lane.b32.xlu0 %v9291, 40
  %v9722 = vpop.permute.xlu0 %9721
  %9723 = vrot.lane.b32.xlu0 %v9295, 40
  %v9724 = vpop.permute.xlu0 %9723
  %9725 = vrot.lane.b32.xlu0 %v9299, 40
  %v9726 = vpop.permute.xlu0 %9725
  %9727 = vrot.lane.b32.xlu0 %v9303, 40
  %v9728 = vpop.permute.xlu0 %9727
  %9729 = vrot.lane.b32.xlu0 %v9307, 40
  %v9730 = vpop.permute.xlu0 %9729
  %v9763 = vrot.slane %v9171, 1
  %v9764 = vrot.slane %v9173, 1
  %v9765 = vsel %vm9410, %v9763, %v9764
  %v9766 = vrot.slane %v9175, 1
  %v9767 = vrot.slane %v9177, 1
  %v9768 = vsel %vm9410, %v9766, %v9767
  %v9769 = vrot.slane %v9179, 1
  %v9770 = vrot.slane %v9181, 1
  %v9771 = vsel %vm9410, %v9769, %v9770
  %v9772 = vrot.slane %v9183, 1
  %v9773 = vrot.slane %v9185, 1
  %v9774 = vsel %vm9410, %v9772, %v9773
  %v9775 = vrot.slane %v9187, 1
  %v9776 = vrot.slane %v9189, 1
  %v9777 = vsel %vm9410, %v9775, %v9776
  %v9778 = vrot.slane %v9191, 1
  %v9779 = vrot.slane %v9193, 1
  %v9780 = vsel %vm9410, %v9778, %v9779
  %v9781 = vrot.slane %v9195, 1
  %v9782 = vrot.slane %v9197, 1
  %v9783 = vsel %vm9410, %v9781, %v9782
  %v9784 = vrot.slane %v9199, 1
  %v9785 = vrot.slane %v9201, 1
  %v9786 = vsel %vm9410, %v9784, %v9785
  %v9787 = vrot.slane %v9207, 1
  %v9788 = vrot.slane %v9209, 1
  %v9789 = vsel %vm9410, %v9787, %v9788
  %v9790 = vrot.slane %v9211, 1
  %v9791 = vrot.slane %v9213, 1
  %v9792 = vsel %vm9410, %v9790, %v9791
  %v9793 = vrot.slane %v9215, 1
  %v9794 = vrot.slane %v9217, 1
  %v9795 = vsel %vm9410, %v9793, %v9794
  %v9796 = vrot.slane %v9219, 1
  %v9797 = vrot.slane %v9221, 1
  %v9798 = vsel %vm9410, %v9796, %v9797
  %v9799 = vrot.slane %v9223, 1
  %v9800 = vrot.slane %v9225, 1
  %v9801 = vsel %vm9410, %v9799, %v9800
  %v9802 = vrot.slane %v9227, 1
  %v9803 = vrot.slane %v9229, 1
  %v9804 = vsel %vm9410, %v9802, %v9803
  %v9805 = vrot.slane %v9231, 1
  %v9806 = vrot.slane %v9233, 1
  %v9807 = vsel %vm9410, %v9805, %v9806
  %v9808 = vrot.slane %v9235, 1
  %v9809 = vrot.slane %v9237, 1
  %v9810 = vsel %vm9410, %v9808, %v9809
  %9811 = vrot.lane.b32.xlu0 %v9765, 48
  %v9812 = vpop.permute.xlu0 %9811
  %9813 = vrot.lane.b32.xlu0 %v9768, 48
  %v9814 = vpop.permute.xlu0 %9813
  %9815 = vrot.lane.b32.xlu0 %v9771, 48
  %v9816 = vpop.permute.xlu0 %9815
  %9817 = vrot.lane.b32.xlu0 %v9774, 48
  %v9818 = vpop.permute.xlu0 %9817
  %9819 = vrot.lane.b32.xlu0 %v9777, 48
  %v9820 = vpop.permute.xlu0 %9819
  %9821 = vrot.lane.b32.xlu0 %v9780, 48
  %v9822 = vpop.permute.xlu0 %9821
  %9823 = vrot.lane.b32.xlu0 %v9783, 48
  %v9824 = vpop.permute.xlu0 %9823
  %9825 = vrot.lane.b32.xlu0 %v9786, 48
  %v9826 = vpop.permute.xlu0 %9825
  %9827 = vrot.lane.b32.xlu0 %v9789, 48
  %v9828 = vpop.permute.xlu0 %9827
  %9829 = vrot.lane.b32.xlu0 %v9792, 48
  %v9830 = vpop.permute.xlu0 %9829
  %9831 = vrot.lane.b32.xlu0 %v9795, 48
  %v9832 = vpop.permute.xlu0 %9831
  %9833 = vrot.lane.b32.xlu0 %v9798, 48
  %v9834 = vpop.permute.xlu0 %9833
  %9835 = vrot.lane.b32.xlu0 %v9801, 48
  %v9836 = vpop.permute.xlu0 %9835
  %9837 = vrot.lane.b32.xlu0 %v9804, 48
  %v9838 = vpop.permute.xlu0 %9837
  %9839 = vrot.lane.b32.xlu0 %v9807, 48
  %v9840 = vpop.permute.xlu0 %9839
  %9841 = vrot.lane.b32.xlu0 %v9810, 48
  %v9842 = vpop.permute.xlu0 %9841
  %v9875 = vrot.slane %v9243, 1
  %v9876 = vrot.slane %v9245, 1
  %v9877 = vsel %vm9410, %v9875, %v9876
  %v9878 = vrot.slane %v9247, 1
  %v9879 = vrot.slane %v9249, 1
  %v9880 = vsel %vm9410, %v9878, %v9879
  %v9881 = vrot.slane %v9251, 1
  %v9882 = vrot.slane %v9253, 1
  %v9883 = vsel %vm9410, %v9881, %v9882
  %v9884 = vrot.slane %v9255, 1
  %v9885 = vrot.slane %v9257, 1
  %v9886 = vsel %vm9410, %v9884, %v9885
  %v9887 = vrot.slane %v9259, 1
  %v9888 = vrot.slane %v9261, 1
  %v9889 = vsel %vm9410, %v9887, %v9888
  %v9890 = vrot.slane %v9263, 1
  %v9891 = vrot.slane %v9265, 1
  %v9892 = vsel %vm9410, %v9890, %v9891
  %v9893 = vrot.slane %v9267, 1
  %v9894 = vrot.slane %v9269, 1
  %v9895 = vsel %vm9410, %v9893, %v9894
  %v9896 = vrot.slane %v9271, 1
  %v9897 = vrot.slane %v9273, 1
  %v9898 = vsel %vm9410, %v9896, %v9897
  %v9899 = vrot.slane %v9279, 1
  %v9900 = vrot.slane %v9281, 1
  %v9901 = vsel %vm9410, %v9899, %v9900
  %v9902 = vrot.slane %v9283, 1
  %v9903 = vrot.slane %v9285, 1
  %v9904 = vsel %vm9410, %v9902, %v9903
  %v9905 = vrot.slane %v9287, 1
  %v9906 = vrot.slane %v9289, 1
  %v9907 = vsel %vm9410, %v9905, %v9906
  %v9908 = vrot.slane %v9291, 1
  %v9909 = vrot.slane %v9293, 1
  %v9910 = vsel %vm9410, %v9908, %v9909
  %v9911 = vrot.slane %v9295, 1
  %v9912 = vrot.slane %v9297, 1
  %v9913 = vsel %vm9410, %v9911, %v9912
  %v9914 = vrot.slane %v9299, 1
  %v9915 = vrot.slane %v9301, 1
  %v9916 = vsel %vm9410, %v9914, %v9915
  %v9917 = vrot.slane %v9303, 1
  %v9918 = vrot.slane %v9305, 1
  %v9919 = vsel %vm9410, %v9917, %v9918
  %v9920 = vrot.slane %v9307, 1
  %v9921 = vrot.slane %v9309, 1
  %v9922 = vsel %vm9410, %v9920, %v9921
  %9923 = vrot.lane.b32.xlu0 %v9877, 56
  %v9924 = vpop.permute.xlu0 %9923
  %9925 = vrot.lane.b32.xlu0 %v9880, 56
  %v9926 = vpop.permute.xlu0 %9925
  %9927 = vrot.lane.b32.xlu0 %v9883, 56
  %v9928 = vpop.permute.xlu0 %9927
  %9929 = vrot.lane.b32.xlu0 %v9886, 56
  %v9930 = vpop.permute.xlu0 %9929
  %9931 = vrot.lane.b32.xlu0 %v9889, 56
  %v9932 = vpop.permute.xlu0 %9931
  %9933 = vrot.lane.b32.xlu0 %v9892, 56
  %v9934 = vpop.permute.xlu0 %9933
  %9935 = vrot.lane.b32.xlu0 %v9895, 56
  %v9936 = vpop.permute.xlu0 %9935
  %9937 = vrot.lane.b32.xlu0 %v9898, 56
  %v9938 = vpop.permute.xlu0 %9937
  %9939 = vrot.lane.b32.xlu0 %v9901, 56
  %v9940 = vpop.permute.xlu0 %9939
  %9941 = vrot.lane.b32.xlu0 %v9904, 56
  %v9942 = vpop.permute.xlu0 %9941
  %9943 = vrot.lane.b32.xlu0 %v9907, 56
  %v9944 = vpop.permute.xlu0 %9943
  %9945 = vrot.lane.b32.xlu0 %v9910, 56
  %v9946 = vpop.permute.xlu0 %9945
  %9947 = vrot.lane.b32.xlu0 %v9913, 56
  %v9948 = vpop.permute.xlu0 %9947
  %9949 = vrot.lane.b32.xlu0 %v9916, 56
  %v9950 = vpop.permute.xlu0 %9949
  %9951 = vrot.lane.b32.xlu0 %v9919, 56
  %v9952 = vpop.permute.xlu0 %9951
  %9953 = vrot.lane.b32.xlu0 %v9922, 56
  %v9954 = vpop.permute.xlu0 %9953
  %9973 = vrot.lane.b32.xlu0 %v9032, 64
  %v9974 = vpop.permute.xlu0 %9973
  %9975 = vrot.lane.b32.xlu0 %v9036, 64
  %v9976 = vpop.permute.xlu0 %9975
  %9977 = vrot.lane.b32.xlu0 %v9040, 64
  %v9978 = vpop.permute.xlu0 %9977
  %9979 = vrot.lane.b32.xlu0 %v9044, 64
  %v9980 = vpop.permute.xlu0 %9979
  %9981 = vrot.lane.b32.xlu0 %v9048, 64
  %v9982 = vpop.permute.xlu0 %9981
  %9983 = vrot.lane.b32.xlu0 %v9052, 64
  %v9984 = vpop.permute.xlu0 %9983
  %9985 = vrot.lane.b32.xlu0 %v9056, 64
  %v9986 = vpop.permute.xlu0 %9985
  %9987 = vrot.lane.b32.xlu0 %v9060, 64
  %v9988 = vpop.permute.xlu0 %9987
  %9989 = vrot.lane.b32.xlu0 %v9068, 64
  %v9990 = vpop.permute.xlu0 %9989
  %9991 = vrot.lane.b32.xlu0 %v9072, 64
  %v9992 = vpop.permute.xlu0 %9991
  %9993 = vrot.lane.b32.xlu0 %v9076, 64
  %v9994 = vpop.permute.xlu0 %9993
  %9995 = vrot.lane.b32.xlu0 %v9080, 64
  %v9996 = vpop.permute.xlu0 %9995
  %9997 = vrot.lane.b32.xlu0 %v9084, 64
  %v9998 = vpop.permute.xlu0 %9997
  %9999 = vrot.lane.b32.xlu0 %v9088, 64
  %v10000 = vpop.permute.xlu0 %9999
  %10001 = vrot.lane.b32.xlu0 %v9092, 64
  %v10002 = vpop.permute.xlu0 %10001
  %10003 = vrot.lane.b32.xlu0 %v9096, 64
  %v10004 = vpop.permute.xlu0 %10003
  %10023 = vrot.lane.b32.xlu0 %v9104, 72
  %v10024 = vpop.permute.xlu0 %10023
  %10025 = vrot.lane.b32.xlu0 %v9108, 72
  %v10026 = vpop.permute.xlu0 %10025
  %10027 = vrot.lane.b32.xlu0 %v9112, 72
  %v10028 = vpop.permute.xlu0 %10027
  %10029 = vrot.lane.b32.xlu0 %v9116, 72
  %v10030 = vpop.permute.xlu0 %10029
  %10031 = vrot.lane.b32.xlu0 %v9120, 72
  %v10032 = vpop.permute.xlu0 %10031
  %10033 = vrot.lane.b32.xlu0 %v9124, 72
  %v10034 = vpop.permute.xlu0 %10033
  %10035 = vrot.lane.b32.xlu0 %v9128, 72
  %v10036 = vpop.permute.xlu0 %10035
  %10037 = vrot.lane.b32.xlu0 %v9132, 72
  %v10038 = vpop.permute.xlu0 %10037
  %10039 = vrot.lane.b32.xlu0 %v9140, 72
  %v10040 = vpop.permute.xlu0 %10039
  %10041 = vrot.lane.b32.xlu0 %v9144, 72
  %v10042 = vpop.permute.xlu0 %10041
  %10043 = vrot.lane.b32.xlu0 %v9148, 72
  %v10044 = vpop.permute.xlu0 %10043
  %10045 = vrot.lane.b32.xlu0 %v9152, 72
  %v10046 = vpop.permute.xlu0 %10045
  %10047 = vrot.lane.b32.xlu0 %v9156, 72
  %v10048 = vpop.permute.xlu0 %10047
  %10049 = vrot.lane.b32.xlu0 %v9160, 72
  %v10050 = vpop.permute.xlu0 %10049
  %10051 = vrot.lane.b32.xlu0 %v9164, 72
  %v10052 = vpop.permute.xlu0 %10051
  %10053 = vrot.lane.b32.xlu0 %v9168, 72
  %v10054 = vpop.permute.xlu0 %10053
  %v10073 = vrot.slane %v9060, 1
  %v10074 = vrot.slane %v9062, 1
  %v10075 = vsel %vm9410, %v10073, %v10074
  %v10076 = vrot.slane %v9096, 1
  %v10077 = vrot.slane %v9098, 1
  %v10078 = vsel %vm9410, %v10076, %v10077
  %10079 = vrot.lane.b32.xlu0 %v9416, 80
  %v10080 = vpop.permute.xlu0 %10079
  %10081 = vrot.lane.b32.xlu0 %v9419, 80
  %v10082 = vpop.permute.xlu0 %10081
  %10083 = vrot.lane.b32.xlu0 %v9422, 80
  %v10084 = vpop.permute.xlu0 %10083
  %10085 = vrot.lane.b32.xlu0 %v9425, 80
  %v10086 = vpop.permute.xlu0 %10085
  %10087 = vrot.lane.b32.xlu0 %v9428, 80
  %v10088 = vpop.permute.xlu0 %10087
  %10089 = vrot.lane.b32.xlu0 %v9431, 80
  %v10090 = vpop.permute.xlu0 %10089
  %10091 = vrot.lane.b32.xlu0 %v9434, 80
  %v10092 = vpop.permute.xlu0 %10091
  %10093 = vrot.lane.b32.xlu0 %v10075, 80
  %v10094 = vpop.permute.xlu0 %10093
  %10095 = vrot.lane.b32.xlu0 %v9440, 80
  %v10096 = vpop.permute.xlu0 %10095
  %10097 = vrot.lane.b32.xlu0 %v9443, 80
  %v10098 = vpop.permute.xlu0 %10097
  %10099 = vrot.lane.b32.xlu0 %v9446, 80
  %v10100 = vpop.permute.xlu0 %10099
  %10101 = vrot.lane.b32.xlu0 %v9449, 80
  %v10102 = vpop.permute.xlu0 %10101
  %10103 = vrot.lane.b32.xlu0 %v9452, 80
  %v10104 = vpop.permute.xlu0 %10103
  %10105 = vrot.lane.b32.xlu0 %v9455, 80
  %v10106 = vpop.permute.xlu0 %10105
  %10107 = vrot.lane.b32.xlu0 %v9458, 80
  %v10108 = vpop.permute.xlu0 %10107
  %10109 = vrot.lane.b32.xlu0 %v10078, 80
  %v10110 = vpop.permute.xlu0 %10109
  %v10129 = vrot.slane %v9132, 1
  %v10130 = vrot.slane %v9134, 1
  %v10131 = vsel %vm9410, %v10129, %v10130
  %v10132 = vrot.slane %v9168, 1
  %v10133 = vrot.slane %v9170, 1
  %v10134 = vsel %vm9410, %v10132, %v10133
  %10135 = vrot.lane.b32.xlu0 %v9528, 88
  %v10136 = vpop.permute.xlu0 %10135
  %10137 = vrot.lane.b32.xlu0 %v9531, 88
  %v10138 = vpop.permute.xlu0 %10137
  %10139 = vrot.lane.b32.xlu0 %v9534, 88
  %v10140 = vpop.permute.xlu0 %10139
  %10141 = vrot.lane.b32.xlu0 %v9537, 88
  %v10142 = vpop.permute.xlu0 %10141
  %10143 = vrot.lane.b32.xlu0 %v9540, 88
  %v10144 = vpop.permute.xlu0 %10143
  %10145 = vrot.lane.b32.xlu0 %v9543, 88
  %v10146 = vpop.permute.xlu0 %10145
  %10147 = vrot.lane.b32.xlu0 %v9546, 88
  %v10148 = vpop.permute.xlu0 %10147
  %10149 = vrot.lane.b32.xlu0 %v10131, 88
  %v10150 = vpop.permute.xlu0 %10149
  %10151 = vrot.lane.b32.xlu0 %v9552, 88
  %v10152 = vpop.permute.xlu0 %10151
  %10153 = vrot.lane.b32.xlu0 %v9555, 88
  %v10154 = vpop.permute.xlu0 %10153
  %10155 = vrot.lane.b32.xlu0 %v9558, 88
  %v10156 = vpop.permute.xlu0 %10155
  %10157 = vrot.lane.b32.xlu0 %v9561, 88
  %v10158 = vpop.permute.xlu0 %10157
  %10159 = vrot.lane.b32.xlu0 %v9564, 88
  %v10160 = vpop.permute.xlu0 %10159
  %10161 = vrot.lane.b32.xlu0 %v9567, 88
  %v10162 = vpop.permute.xlu0 %10161
  %10163 = vrot.lane.b32.xlu0 %v9570, 88
  %v10164 = vpop.permute.xlu0 %10163
  %10165 = vrot.lane.b32.xlu0 %v10134, 88
  %v10166 = vpop.permute.xlu0 %10165
  %10185 = vrot.lane.b32.xlu0 %v9175, 96
  %v10186 = vpop.permute.xlu0 %10185
  %10187 = vrot.lane.b32.xlu0 %v9179, 96
  %v10188 = vpop.permute.xlu0 %10187
  %10189 = vrot.lane.b32.xlu0 %v9183, 96
  %v10190 = vpop.permute.xlu0 %10189
  %10191 = vrot.lane.b32.xlu0 %v9187, 96
  %v10192 = vpop.permute.xlu0 %10191
  %10193 = vrot.lane.b32.xlu0 %v9191, 96
  %v10194 = vpop.permute.xlu0 %10193
  %10195 = vrot.lane.b32.xlu0 %v9195, 96
  %v10196 = vpop.permute.xlu0 %10195
  %10197 = vrot.lane.b32.xlu0 %v9199, 96
  %v10198 = vpop.permute.xlu0 %10197
  %10199 = vrot.lane.b32.xlu0 %v9203, 96
  %v10200 = vpop.permute.xlu0 %10199
  %10201 = vrot.lane.b32.xlu0 %v9211, 96
  %v10202 = vpop.permute.xlu0 %10201
  %10203 = vrot.lane.b32.xlu0 %v9215, 96
  %v10204 = vpop.permute.xlu0 %10203
  %10205 = vrot.lane.b32.xlu0 %v9219, 96
  %v10206 = vpop.permute.xlu0 %10205
  %10207 = vrot.lane.b32.xlu0 %v9223, 96
  %v10208 = vpop.permute.xlu0 %10207
  %10209 = vrot.lane.b32.xlu0 %v9227, 96
  %v10210 = vpop.permute.xlu0 %10209
  %10211 = vrot.lane.b32.xlu0 %v9231, 96
  %v10212 = vpop.permute.xlu0 %10211
  %10213 = vrot.lane.b32.xlu0 %v9235, 96
  %v10214 = vpop.permute.xlu0 %10213
  %10215 = vrot.lane.b32.xlu0 %v9239, 96
  %v10216 = vpop.permute.xlu0 %10215
  %10235 = vrot.lane.b32.xlu0 %v9247, 104
  %v10236 = vpop.permute.xlu0 %10235
  %10237 = vrot.lane.b32.xlu0 %v9251, 104
  %v10238 = vpop.permute.xlu0 %10237
  %10239 = vrot.lane.b32.xlu0 %v9255, 104
  %v10240 = vpop.permute.xlu0 %10239
  %10241 = vrot.lane.b32.xlu0 %v9259, 104
  %v10242 = vpop.permute.xlu0 %10241
  %10243 = vrot.lane.b32.xlu0 %v9263, 104
  %v10244 = vpop.permute.xlu0 %10243
  %10245 = vrot.lane.b32.xlu0 %v9267, 104
  %v10246 = vpop.permute.xlu0 %10245
  %10247 = vrot.lane.b32.xlu0 %v9271, 104
  %v10248 = vpop.permute.xlu0 %10247
  %10249 = vrot.lane.b32.xlu0 %v9275, 104
  %v10250 = vpop.permute.xlu0 %10249
  %10251 = vrot.lane.b32.xlu0 %v9283, 104
  %v10252 = vpop.permute.xlu0 %10251
  %10253 = vrot.lane.b32.xlu0 %v9287, 104
  %v10254 = vpop.permute.xlu0 %10253
  %10255 = vrot.lane.b32.xlu0 %v9291, 104
  %v10256 = vpop.permute.xlu0 %10255
  %10257 = vrot.lane.b32.xlu0 %v9295, 104
  %v10258 = vpop.permute.xlu0 %10257
  %10259 = vrot.lane.b32.xlu0 %v9299, 104
  %v10260 = vpop.permute.xlu0 %10259
  %10261 = vrot.lane.b32.xlu0 %v9303, 104
  %v10262 = vpop.permute.xlu0 %10261
  %10263 = vrot.lane.b32.xlu0 %v9307, 104
  %v10264 = vpop.permute.xlu0 %10263
  %10265 = vrot.lane.b32.xlu0 %v9311, 104
  %v10266 = vpop.permute.xlu0 %10265
  %v10285 = vrot.slane %v9203, 1
  %v10286 = vrot.slane %v9205, 1
  %v10287 = vsel %vm9410, %v10285, %v10286
  %v10288 = vrot.slane %v9239, 1
  %v10289 = vrot.slane %v9241, 1
  %v10290 = vsel %vm9410, %v10288, %v10289
  %10291 = vrot.lane.b32.xlu0 %v9768, 112
  %v10292 = vpop.permute.xlu0 %10291
  %10293 = vrot.lane.b32.xlu0 %v9771, 112
  %v10294 = vpop.permute.xlu0 %10293
  %10295 = vrot.lane.b32.xlu0 %v9774, 112
  %v10296 = vpop.permute.xlu0 %10295
  %10297 = vrot.lane.b32.xlu0 %v9777, 112
  %v10298 = vpop.permute.xlu0 %10297
  %10299 = vrot.lane.b32.xlu0 %v9780, 112
  %v10300 = vpop.permute.xlu0 %10299
  %10301 = vrot.lane.b32.xlu0 %v9783, 112
  %v10302 = vpop.permute.xlu0 %10301
  %10303 = vrot.lane.b32.xlu0 %v9786, 112
  %v10304 = vpop.permute.xlu0 %10303
  %10305 = vrot.lane.b32.xlu0 %v10287, 112
  %v10306 = vpop.permute.xlu0 %10305
  %10307 = vrot.lane.b32.xlu0 %v9792, 112
  %v10308 = vpop.permute.xlu0 %10307
  %10309 = vrot.lane.b32.xlu0 %v9795, 112
  %v10310 = vpop.permute.xlu0 %10309
  %10311 = vrot.lane.b32.xlu0 %v9798, 112
  %v10312 = vpop.permute.xlu0 %10311
  %10313 = vrot.lane.b32.xlu0 %v9801, 112
  %v10314 = vpop.permute.xlu0 %10313
  %10315 = vrot.lane.b32.xlu0 %v9804, 112
  %v10316 = vpop.permute.xlu0 %10315
  %10317 = vrot.lane.b32.xlu0 %v9807, 112
  %v10318 = vpop.permute.xlu0 %10317
  %10319 = vrot.lane.b32.xlu0 %v9810, 112
  %v10320 = vpop.permute.xlu0 %10319
  %10321 = vrot.lane.b32.xlu0 %v10290, 112
  %v10322 = vpop.permute.xlu0 %10321
  %v10341 = vrot.slane %v9275, 1
  %v10342 = vrot.slane %v9277, 1
  %v10343 = vsel %vm9410, %v10341, %v10342
  %v10344 = vrot.slane %v9311, 1
  %v10345 = vrot.slane %v9313, 1
  %v10346 = vsel %vm9410, %v10344, %v10345
  %10347 = vrot.lane.b32.xlu0 %v9880, 120
  %v10348 = vpop.permute.xlu0 %10347
  %10349 = vrot.lane.b32.xlu0 %v9883, 120
  %v10350 = vpop.permute.xlu0 %10349
  %10351 = vrot.lane.b32.xlu0 %v9886, 120
  %v10352 = vpop.permute.xlu0 %10351
  %10353 = vrot.lane.b32.xlu0 %v9889, 120
  %v10354 = vpop.permute.xlu0 %10353
  %10355 = vrot.lane.b32.xlu0 %v9892, 120
  %v10356 = vpop.permute.xlu0 %10355
  %10357 = vrot.lane.b32.xlu0 %v9895, 120
  %v10358 = vpop.permute.xlu0 %10357
  %10359 = vrot.lane.b32.xlu0 %v9898, 120
  %v10360 = vpop.permute.xlu0 %10359
  %10361 = vrot.lane.b32.xlu0 %v10343, 120
  %v10362 = vpop.permute.xlu0 %10361
  %10363 = vrot.lane.b32.xlu0 %v9904, 120
  %v10364 = vpop.permute.xlu0 %10363
  %10365 = vrot.lane.b32.xlu0 %v9907, 120
  %v10366 = vpop.permute.xlu0 %10365
  %10367 = vrot.lane.b32.xlu0 %v9910, 120
  %v10368 = vpop.permute.xlu0 %10367
  %10369 = vrot.lane.b32.xlu0 %v9913, 120
  %v10370 = vpop.permute.xlu0 %10369
  %10371 = vrot.lane.b32.xlu0 %v9916, 120
  %v10372 = vpop.permute.xlu0 %10371
  %10373 = vrot.lane.b32.xlu0 %v9919, 120
  %v10374 = vpop.permute.xlu0 %10373
  %10375 = vrot.lane.b32.xlu0 %v9922, 120
  %v10376 = vpop.permute.xlu0 %10375
  %10377 = vrot.lane.b32.xlu0 %v10346, 120
  %v10378 = vpop.permute.xlu0 %10377
  %v10395 = vsel %vm2738, %v9028, %v9331
  %v10396 = vsel %vm2738, %v9032, %v9333
  %v10397 = vsel %vm2738, %v9036, %v9335
  %v10398 = vsel %vm2738, %v9040, %v9337
  %v10399 = vsel %vm2738, %v9044, %v9339
  %v10400 = vsel %vm2738, %v9048, %v9341
  %v10401 = vsel %vm2738, %v9052, %v9343
  %v10402 = vsel %vm2738, %v9056, %v9345
  %v10403 = vsel %vm2738, %v9064, %v9347
  %v10404 = vsel %vm2738, %v9068, %v9349
  %v10405 = vsel %vm2738, %v9072, %v9351
  %v10406 = vsel %vm2738, %v9076, %v9353
  %v10407 = vsel %vm2738, %v9080, %v9355
  %v10408 = vsel %vm2738, %v9084, %v9357
  %v10409 = vsel %vm2738, %v9088, %v9359
  %v10410 = vsel %vm2738, %v9092, %v9361
  %v10411 = vsel %vm2868, %v10395, %v9460
  %v10412 = vsel %vm2868, %v10396, %v9462
  %v10413 = vsel %vm2868, %v10397, %v9464
  %v10414 = vsel %vm2868, %v10398, %v9466
  %v10415 = vsel %vm2868, %v10399, %v9468
  %v10416 = vsel %vm2868, %v10400, %v9470
  %v10417 = vsel %vm2868, %v10401, %v9472
  %v10418 = vsel %vm2868, %v10402, %v9474
  %v10419 = vsel %vm2868, %v10403, %v9476
  %v10420 = vsel %vm2868, %v10404, %v9478
  %v10421 = vsel %vm2868, %v10405, %v9480
  %v10422 = vsel %vm2868, %v10406, %v9482
  %v10423 = vsel %vm2868, %v10407, %v9484
  %v10424 = vsel %vm2868, %v10408, %v9486
  %v10425 = vsel %vm2868, %v10409, %v9488
  %v10426 = vsel %vm2868, %v10410, %v9490
  %v10427 = vsel %vm2998, %v10411, %v9572
  %v10428 = vsel %vm2998, %v10412, %v9574
  %v10429 = vsel %vm2998, %v10413, %v9576
  %v10430 = vsel %vm2998, %v10414, %v9578
  %v10431 = vsel %vm2998, %v10415, %v9580
  %v10432 = vsel %vm2998, %v10416, %v9582
  %v10433 = vsel %vm2998, %v10417, %v9584
  %v10434 = vsel %vm2998, %v10418, %v9586
  %v10435 = vsel %vm2998, %v10419, %v9588
  %v10436 = vsel %vm2998, %v10420, %v9590
  %v10437 = vsel %vm2998, %v10421, %v9592
  %v10438 = vsel %vm2998, %v10422, %v9594
  %v10439 = vsel %vm2998, %v10423, %v9596
  %v10440 = vsel %vm2998, %v10424, %v9598
  %v10441 = vsel %vm2998, %v10425, %v9600
  %v10442 = vsel %vm2998, %v10426, %v9602
  %v10443 = vsel %vm3128, %v10427, %v9636
  %v10444 = vsel %vm3128, %v10428, %v9638
  %v10445 = vsel %vm3128, %v10429, %v9640
  %v10446 = vsel %vm3128, %v10430, %v9642
  %v10447 = vsel %vm3128, %v10431, %v9644
  %v10448 = vsel %vm3128, %v10432, %v9646
  %v10449 = vsel %vm3128, %v10433, %v9648
  %v10450 = vsel %vm3128, %v10434, %v9650
  %v10451 = vsel %vm3128, %v10435, %v9652
  %v10452 = vsel %vm3128, %v10436, %v9654
  %v10453 = vsel %vm3128, %v10437, %v9656
  %v10454 = vsel %vm3128, %v10438, %v9658
  %v10455 = vsel %vm3128, %v10439, %v9660
  %v10456 = vsel %vm3128, %v10440, %v9662
  %v10457 = vsel %vm3128, %v10441, %v9664
  %v10458 = vsel %vm3128, %v10442, %v9666
  %v10459 = vsel %vm7567, %v10443, %v9700
  %v10460 = vsel %vm7567, %v10444, %v9702
  %v10461 = vsel %vm7567, %v10445, %v9704
  %v10462 = vsel %vm7567, %v10446, %v9706
  %v10463 = vsel %vm7567, %v10447, %v9708
  %v10464 = vsel %vm7567, %v10448, %v9710
  %v10465 = vsel %vm7567, %v10449, %v9712
  %v10466 = vsel %vm7567, %v10450, %v9714
  %v10467 = vsel %vm7567, %v10451, %v9716
  %v10468 = vsel %vm7567, %v10452, %v9718
  %v10469 = vsel %vm7567, %v10453, %v9720
  %v10470 = vsel %vm7567, %v10454, %v9722
  %v10471 = vsel %vm7567, %v10455, %v9724
  %v10472 = vsel %vm7567, %v10456, %v9726
  %v10473 = vsel %vm7567, %v10457, %v9728
  %v10474 = vsel %vm7567, %v10458, %v9730
  %v10475 = vsel %vm7632, %v10459, %v9812
  %v10476 = vsel %vm7632, %v10460, %v9814
  %v10477 = vsel %vm7632, %v10461, %v9816
  %v10478 = vsel %vm7632, %v10462, %v9818
  %v10479 = vsel %vm7632, %v10463, %v9820
  %v10480 = vsel %vm7632, %v10464, %v9822
  %v10481 = vsel %vm7632, %v10465, %v9824
  %v10482 = vsel %vm7632, %v10466, %v9826
  %v10483 = vsel %vm7632, %v10467, %v9828
  %v10484 = vsel %vm7632, %v10468, %v9830
  %v10485 = vsel %vm7632, %v10469, %v9832
  %v10486 = vsel %vm7632, %v10470, %v9834
  %v10487 = vsel %vm7632, %v10471, %v9836
  %v10488 = vsel %vm7632, %v10472, %v9838
  %v10489 = vsel %vm7632, %v10473, %v9840
  %v10490 = vsel %vm7632, %v10474, %v9842
  %v10491 = vsel %vm7697, %v10475, %v9924
  %v10492 = vsel %vm7697, %v10476, %v9926
  %v10493 = vsel %vm7697, %v10477, %v9928
  %v10494 = vsel %vm7697, %v10478, %v9930
  %v10495 = vsel %vm7697, %v10479, %v9932
  %v10496 = vsel %vm7697, %v10480, %v9934
  %v10497 = vsel %vm7697, %v10481, %v9936
  %v10498 = vsel %vm7697, %v10482, %v9938
  %v10499 = vsel %vm7697, %v10483, %v9940
  %v10500 = vsel %vm7697, %v10484, %v9942
  %v10501 = vsel %vm7697, %v10485, %v9944
  %v10502 = vsel %vm7697, %v10486, %v9946
  %v10503 = vsel %vm7697, %v10487, %v9948
  %v10504 = vsel %vm7697, %v10488, %v9950
  %v10505 = vsel %vm7697, %v10489, %v9952
  %v10506 = vsel %vm7697, %v10490, %v9954
  %v10507 = vsel %vm7762, %v10491, %v9974
  %v10508 = vsel %vm7762, %v10492, %v9976
  %v10509 = vsel %vm7762, %v10493, %v9978
  %v10510 = vsel %vm7762, %v10494, %v9980
  %v10511 = vsel %vm7762, %v10495, %v9982
  %v10512 = vsel %vm7762, %v10496, %v9984
  %v10513 = vsel %vm7762, %v10497, %v9986
  %v10514 = vsel %vm7762, %v10498, %v9988
  %v10515 = vsel %vm7762, %v10499, %v9990
  %v10516 = vsel %vm7762, %v10500, %v9992
  %v10517 = vsel %vm7762, %v10501, %v9994
  %v10518 = vsel %vm7762, %v10502, %v9996
  %v10519 = vsel %vm7762, %v10503, %v9998
  %v10520 = vsel %vm7762, %v10504, %v10000
  %v10521 = vsel %vm7762, %v10505, %v10002
  %v10522 = vsel %vm7762, %v10506, %v10004
  %v10523 = vsel %vm7843, %v10507, %v10024
  %v10524 = vsel %vm7843, %v10508, %v10026
  %v10525 = vsel %vm7843, %v10509, %v10028
  %v10526 = vsel %vm7843, %v10510, %v10030
  %v10527 = vsel %vm7843, %v10511, %v10032
  %v10528 = vsel %vm7843, %v10512, %v10034
  %v10529 = vsel %vm7843, %v10513, %v10036
  %v10530 = vsel %vm7843, %v10514, %v10038
  %v10531 = vsel %vm7843, %v10515, %v10040
  %v10532 = vsel %vm7843, %v10516, %v10042
  %v10533 = vsel %vm7843, %v10517, %v10044
  %v10534 = vsel %vm7843, %v10518, %v10046
  %v10535 = vsel %vm7843, %v10519, %v10048
  %v10536 = vsel %vm7843, %v10520, %v10050
  %v10537 = vsel %vm7843, %v10521, %v10052
  %v10538 = vsel %vm7843, %v10522, %v10054
  %vm10539 = vcmask 654336
  %v10540 = vsel %vm10539, %v10523, %v10080
  %v10541 = vsel %vm10539, %v10524, %v10082
  %v10542 = vsel %vm10539, %v10525, %v10084
  %v10543 = vsel %vm10539, %v10526, %v10086
  %v10544 = vsel %vm10539, %v10527, %v10088
  %v10545 = vsel %vm10539, %v10528, %v10090
  %v10546 = vsel %vm10539, %v10529, %v10092
  %v10547 = vsel %vm10539, %v10530, %v10094
  %v10548 = vsel %vm10539, %v10531, %v10096
  %v10549 = vsel %vm10539, %v10532, %v10098
  %v10550 = vsel %vm10539, %v10533, %v10100
  %v10551 = vsel %vm10539, %v10534, %v10102
  %v10552 = vsel %vm10539, %v10535, %v10104
  %v10553 = vsel %vm10539, %v10536, %v10106
  %v10554 = vsel %vm10539, %v10537, %v10108
  %v10555 = vsel %vm10539, %v10538, %v10110
  %vm10556 = vcmask 719872
  %v10557 = vsel %vm10556, %v10540, %v10136
  %v10558 = vsel %vm10556, %v10541, %v10138
  %v10559 = vsel %vm10556, %v10542, %v10140
  %v10560 = vsel %vm10556, %v10543, %v10142
  %v10561 = vsel %vm10556, %v10544, %v10144
  %v10562 = vsel %vm10556, %v10545, %v10146
  %v10563 = vsel %vm10556, %v10546, %v10148
  %v10564 = vsel %vm10556, %v10547, %v10150
  %v10565 = vsel %vm10556, %v10548, %v10152
  %v10566 = vsel %vm10556, %v10549, %v10154
  %v10567 = vsel %vm10556, %v10550, %v10156
  %v10568 = vsel %vm10556, %v10551, %v10158
  %v10569 = vsel %vm10556, %v10552, %v10160
  %v10570 = vsel %vm10556, %v10553, %v10162
  %v10571 = vsel %vm10556, %v10554, %v10164
  %v10572 = vsel %vm10556, %v10555, %v10166
  %vm10573 = vcmask 785408
  %v10574 = vsel %vm10573, %v10557, %v10186
  %v10575 = vsel %vm10573, %v10558, %v10188
  %v10576 = vsel %vm10573, %v10559, %v10190
  %v10577 = vsel %vm10573, %v10560, %v10192
  %v10578 = vsel %vm10573, %v10561, %v10194
  %v10579 = vsel %vm10573, %v10562, %v10196
  %v10580 = vsel %vm10573, %v10563, %v10198
  %v10581 = vsel %vm10573, %v10564, %v10200
  %v10582 = vsel %vm10573, %v10565, %v10202
  %v10583 = vsel %vm10573, %v10566, %v10204
  %v10584 = vsel %vm10573, %v10567, %v10206
  %v10585 = vsel %vm10573, %v10568, %v10208
  %v10586 = vsel %vm10573, %v10569, %v10210
  %v10587 = vsel %vm10573, %v10570, %v10212
  %v10588 = vsel %vm10573, %v10571, %v10214
  %v10589 = vsel %vm10573, %v10572, %v10216
  %vm10590 = vcmask 850944
  %v10591 = vsel %vm10590, %v10574, %v10236
  %v10592 = vsel %vm10590, %v10575, %v10238
  %v10593 = vsel %vm10590, %v10576, %v10240
  %v10594 = vsel %vm10590, %v10577, %v10242
  %v10595 = vsel %vm10590, %v10578, %v10244
  %v10596 = vsel %vm10590, %v10579, %v10246
  %v10597 = vsel %vm10590, %v10580, %v10248
  %v10598 = vsel %vm10590, %v10581, %v10250
  %v10599 = vsel %vm10590, %v10582, %v10252
  %v10600 = vsel %vm10590, %v10583, %v10254
  %v10601 = vsel %vm10590, %v10584, %v10256
  %v10602 = vsel %vm10590, %v10585, %v10258
  %v10603 = vsel %vm10590, %v10586, %v10260
  %v10604 = vsel %vm10590, %v10587, %v10262
  %v10605 = vsel %vm10590, %v10588, %v10264
  %v10606 = vsel %vm10590, %v10589, %v10266
  %vm10607 = vcmask 916480
  %v10608 = vsel %vm10607, %v10591, %v10292
  %v10609 = vsel %vm10607, %v10592, %v10294
  %v10610 = vsel %vm10607, %v10593, %v10296
  %v10611 = vsel %vm10607, %v10594, %v10298
  %v10612 = vsel %vm10607, %v10595, %v10300
  %v10613 = vsel %vm10607, %v10596, %v10302
  %v10614 = vsel %vm10607, %v10597, %v10304
  %v10615 = vsel %vm10607, %v10598, %v10306
  %v10616 = vsel %vm10607, %v10599, %v10308
  %v10617 = vsel %vm10607, %v10600, %v10310
  %v10618 = vsel %vm10607, %v10601, %v10312
  %v10619 = vsel %vm10607, %v10602, %v10314
  %v10620 = vsel %vm10607, %v10603, %v10316
  %v10621 = vsel %vm10607, %v10604, %v10318
  %v10622 = vsel %vm10607, %v10605, %v10320
  %v10623 = vsel %vm10607, %v10606, %v10322
  %vm10624 = vcmask 982016
  %v10625 = vsel %vm10624, %v10608, %v10348
  %v10626 = vsel %vm10624, %v10609, %v10350
  %v10627 = vsel %vm10624, %v10610, %v10352
  %v10628 = vsel %vm10624, %v10611, %v10354
  %v10629 = vsel %vm10624, %v10612, %v10356
  %v10630 = vsel %vm10624, %v10613, %v10358
  %v10631 = vsel %vm10624, %v10614, %v10360
  %v10632 = vsel %vm10624, %v10615, %v10362
  %v10633 = vsel %vm10624, %v10616, %v10364
  %v10634 = vsel %vm10624, %v10617, %v10366
  %v10635 = vsel %vm10624, %v10618, %v10368
  %v10636 = vsel %vm10624, %v10619, %v10370
  %v10637 = vsel %vm10624, %v10620, %v10372
  %v10638 = vsel %vm10624, %v10621, %v10374
  %v10639 = vsel %vm10624, %v10622, %v10376
  %v10640 = vsel %vm10624, %v10623, %v10378
  %v10641 = vld [vmem:[%s12] sm:$0xff]
  %v10642 = vld [vmem:[%s12 + $0x8] sm:$0xff]
  %v10643 = vld [vmem:[%s12 + $0x10] sm:$0xff]
  %v10644 = vld [vmem:[%s12 + $0x18] sm:$0xff]
  %v10645 = vld [vmem:[%s12 + $0x20] sm:$0xff]
  %v10646 = vld [vmem:[%s12 + $0x28] sm:$0xff]
  %v10647 = vld [vmem:[%s12 + $0x30] sm:$0xff]
  %v10648 = vld [vmem:[%s12 + $0x38] sm:$0xff]
  %v10649 = vld [vmem:[%s12 + $0x40] sm:$0xff]
  %v10650 = vld [vmem:[%s12 + $0x48] sm:$0xff]
  %v10651 = vld [vmem:[%s12 + $0x50] sm:$0xff]
  %v10652 = vld [vmem:[%s12 + $0x58] sm:$0xff]
  %v10653 = vld [vmem:[%s12 + $0x60] sm:$0xff]
  %v10654 = vld [vmem:[%s12 + $0x68] sm:$0xff]
  %v10655 = vld [vmem:[%s12 + $0x70] sm:$0xff]
  %v10656 = vld [vmem:[%s12 + $0x78] sm:$0xff]
  %v10657 = vld [vmem:[%s13] sm:$0x1]
  %v10659 = vlaneseq
  %v10660 = vshrl.u32 %v10659, 7
  %v10661 = vsub.s32 0, %v10660
  %v10662 = vrot.slane %v10657, %v10661
  %10664 = vmatprep.subr.mxu0 0.0
  %10665 = vmatpush1.msra.mxu0 %v10641
  %10666 = vmatprep.subr.mxu0 0.0
  %10667 = vmatpush1.msra.mxu0 %v10642
  %10668 = vmatprep.subr.mxu0 0.0
  %10669 = vmatpush1.msra.mxu0 %v10643
  %10670 = vmatprep.subr.mxu0 0.0
  %10671 = vmatpush1.msra.mxu0 %v10644
  %10672 = vmatprep.subr.mxu0 0.0
  %10673 = vmatpush1.msra.mxu0 %v10645
  %10674 = vmatprep.subr.mxu0 0.0
  %10675 = vmatpush1.msra.mxu0 %v10646
  %10676 = vmatprep.subr.mxu0 0.0
  %10677 = vmatpush1.msra.mxu0 %v10647
  %10678 = vmatprep.subr.mxu0 0.0
  %10679 = vmatpush1.msra.mxu0 %v10648
  %10680 = vmatprep.subr.mxu0 0.0
  %10681 = vmatpush1.msra.mxu0 %v10649
  %10682 = vmatprep.subr.mxu0 0.0
  %10683 = vmatpush1.msra.mxu0 %v10650
  %10684 = vmatprep.subr.mxu0 0.0
  %10685 = vmatpush1.msra.mxu0 %v10651
  %10686 = vmatprep.subr.mxu0 0.0
  %10687 = vmatpush1.msra.mxu0 %v10652
  %10688 = vmatprep.subr.mxu0 0.0
  %10689 = vmatpush1.msra.mxu0 %v10653
  %10690 = vmatprep.subr.mxu0 0.0
  %10691 = vmatpush1.msra.mxu0 %v10654
  %10692 = vmatprep.subr.mxu0 0.0
  %10693 = vmatpush1.msra.mxu0 %v10655
  %10694 = vmatprep.subr.mxu0 0.0
  %10695 = vmatpush1.msra.mxu0 %v10656
  %10696 = vmatprep.subr.mxu0 0.0
  %10697 = vmatpush1.msra.mxu0 0.0
  %10698 = vmatprep.subr.mxu0 0.0
  %10699 = vmatpush1.msra.mxu0 0.0
  %10700 = vmatprep.subr.mxu0 0.0
  %10701 = vmatpush1.msra.mxu0 0.0
  %10702 = vmatprep.subr.mxu0 0.0
  %10703 = vmatpush1.msra.mxu0 0.0
  %10704 = vmatprep.subr.mxu0 0.0
  %10705 = vmatpush1.msra.mxu0 0.0
  %10706 = vmatprep.subr.mxu0 0.0
  %10707 = vmatpush1.msra.mxu0 0.0
  %10708 = vmatprep.subr.mxu0 0.0
  %10709 = vmatpush1.msra.mxu0 0.0
  %10710 = vmatprep.subr.mxu0 0.0
  %10711 = vmatpush1.msra.mxu0 0.0
  %10712 = vmatprep.subr.mxu0 0.0
  %10713 = vmatpush1.msra.mxu0 0.0
  %10714 = vmatprep.subr.mxu0 0.0
  %10715 = vmatpush1.msra.mxu0 0.0
  %10716 = vmatprep.subr.mxu0 0.0
  %10717 = vmatpush1.msra.mxu0 0.0
  %10718 = vmatprep.subr.mxu0 0.0
  %10719 = vmatpush1.msra.mxu0 0.0
  %10720 = vmatprep.subr.mxu0 0.0
  %10721 = vmatpush1.msra.mxu0 0.0
  %10722 = vmatprep.subr.mxu0 0.0
  %10723 = vmatpush1.msra.mxu0 0.0
  %10724 = vmatprep.subr.mxu0 0.0
  %10725 = vmatpush1.msra.mxu0 0.0
  %10726 = vmatprep.subr.mxu0 0.0
  %10727 = vmatpush1.msra.mxu0 0.0
  %10728 = vmatprep.mubr.f32.mxu0 0.0
  %10729 = vmatmul.mubr.f32.gmra.mrb[0].mxu0 %v10625
  %v10730 = vpop.f32.mrb[0].mxu0
  %v10731 = vadd.f32 %v10662, %v10730
  %v10732 = vpop.f32.mrb[0].mxu0
  %10733 = vmatprep.mubr.f32.mxu0 0.0
  %10734 = vmatmul.mubr.f32.gmra.mrb[0].mxu0 %v10626
  %v10735 = vpop.f32.mrb[0].mxu0
  %v10736 = vadd.f32 %v10662, %v10735
  %v10737 = vpop.f32.mrb[0].mxu0
  %10738 = vmatprep.mubr.f32.mxu0 0.0
  %10739 = vmatmul.mubr.f32.gmra.mrb[0].mxu0 %v10627
  %v10740 = vpop.f32.mrb[0].mxu0
  %v10741 = vadd.f32 %v10662, %v10740
  %v10742 = vpop.f32.mrb[0].mxu0
  %10743 = vmatprep.mubr.f32.mxu0 0.0
  %10744 = vmatmul.mubr.f32.gmra.mrb[0].mxu0 %v10628
  %v10745 = vpop.f32.mrb[0].mxu0
  %v10746 = vadd.f32 %v10662, %v10745
  %v10747 = vpop.f32.mrb[0].mxu0
  %10748 = vmatprep.mubr.f32.mxu0 0.0
  %10749 = vmatmul.mubr.f32.gmra.mrb[0].mxu0 %v10629
  %v10750 = vpop.f32.mrb[0].mxu0
  %v10751 = vadd.f32 %v10662, %v10750
  %v10752 = vpop.f32.mrb[0].mxu0
  %10753 = vmatprep.mubr.f32.mxu0 0.0
  %10754 = vmatmul.mubr.f32.gmra.mrb[0].mxu0 %v10630
  %v10755 = vpop.f32.mrb[0].mxu0
  %v10756 = vadd.f32 %v10662, %v10755
  %v10757 = vpop.f32.mrb[0].mxu0
  %10758 = vmatprep.mubr.f32.mxu0 0.0
  %10759 = vmatmul.mubr.f32.gmra.mrb[0].mxu0 %v10631
  %v10760 = vpop.f32.mrb[0].mxu0
  %v10761 = vadd.f32 %v10662, %v10760
  %v10762 = vpop.f32.mrb[0].mxu0
  %10763 = vmatprep.mubr.f32.mxu0 0.0
  %10764 = vmatmul.mubr.f32.gmra.mrb[0].mxu0 %v10632
  %v10765 = vpop.f32.mrb[0].mxu0
  %v10766 = vadd.f32 %v10662, %v10765
  %v10767 = vpop.f32.mrb[0].mxu0
  %10768 = vmatprep.mubr.f32.mxu0 0.0
  %10769 = vmatmul.mubr.f32.gmra.mrb[0].mxu0 %v10633
  %v10770 = vpop.f32.mrb[0].mxu0
  %v10771 = vadd.f32 %v10662, %v10770
  %v10772 = vpop.f32.mrb[0].mxu0
  %10773 = vmatprep.mubr.f32.mxu0 0.0
  %10774 = vmatmul.mubr.f32.gmra.mrb[0].mxu0 %v10634
  %v10775 = vpop.f32.mrb[0].mxu0
  %v10776 = vadd.f32 %v10662, %v10775
  %v10777 = vpop.f32.mrb[0].mxu0
  %10778 = vmatprep.mubr.f32.mxu0 0.0
  %10779 = vmatmul.mubr.f32.gmra.mrb[0].mxu0 %v10635
  %v10780 = vpop.f32.mrb[0].mxu0
  %v10781 = vadd.f32 %v10662, %v10780
  %v10782 = vpop.f32.mrb[0].mxu0
  %10783 = vmatprep.mubr.f32.mxu0 0.0
  %10784 = vmatmul.mubr.f32.gmra.mrb[0].mxu0 %v10636
  %v10785 = vpop.f32.mrb[0].mxu0
  %v10786 = vadd.f32 %v10662, %v10785
  %v10787 = vpop.f32.mrb[0].mxu0
  %10788 = vmatprep.mubr.f32.mxu0 0.0
  %10789 = vmatmul.mubr.f32.gmra.mrb[0].mxu0 %v10637
  %v10790 = vpop.f32.mrb[0].mxu0
  %v10791 = vadd.f32 %v10662, %v10790
  %v10792 = vpop.f32.mrb[0].mxu0
  %10793 = vmatprep.mubr.f32.mxu0 0.0
  %10794 = vmatmul.mubr.f32.gmra.mrb[0].mxu0 %v10638
  %v10795 = vpop.f32.mrb[0].mxu0
  %v10796 = vadd.f32 %v10662, %v10795
  %v10797 = vpop.f32.mrb[0].mxu0
  %10798 = vmatprep.mubr.f32.mxu0 0.0
  %10799 = vmatmul.mubr.f32.gmra.mrb[0].mxu0 %v10639
  %v10800 = vpop.f32.mrb[0].mxu0
  %v10801 = vadd.f32 %v10662, %v10800
  %v10802 = vpop.f32.mrb[0].mxu0
  %10803 = vmatprep.mubr.f32.mxu0 0.0
  %10804 = vmatmul.mubr.f32.gmra.mrb[0].mxu0 %v10640
  %v10805 = vpop.f32.mrb[0].mxu0
  %v10806 = vadd.f32 %v10662, %v10805
  %v10807 = vpop.f32.mrb[0].mxu0
  %10808 = vdwg.mxu0
  %10809 = vst.msk [vmem:[%s14] sm:$0xff] %vm2738, %v10731
  %10810 = vst.msk [vmem:[%s14 + $0x8] sm:$0xff] %vm2738, %v10736
  %10811 = vst.msk [vmem:[%s14 + $0x10] sm:$0xff] %vm2738, %v10741
  %10812 = vst.msk [vmem:[%s14 + $0x18] sm:$0xff] %vm2738, %v10746
  %10813 = vst.msk [vmem:[%s14 + $0x20] sm:$0xff] %vm2738, %v10751
  %10814 = vst.msk [vmem:[%s14 + $0x28] sm:$0xff] %vm2738, %v10756
  %10815 = vst.msk [vmem:[%s14 + $0x30] sm:$0xff] %vm2738, %v10761
  %10816 = vst.msk [vmem:[%s14 + $0x38] sm:$0xff] %vm2738, %v10766
  %10817 = vst.msk [vmem:[%s14 + $0x40] sm:$0xff] %vm2738, %v10771
  %10818 = vst.msk [vmem:[%s14 + $0x48] sm:$0xff] %vm2738, %v10776
  %10819 = vst.msk [vmem:[%s14 + $0x50] sm:$0xff] %vm2738, %v10781
  %10820 = vst.msk [vmem:[%s14 + $0x58] sm:$0xff] %vm2738, %v10786
  %10821 = vst.msk [vmem:[%s14 + $0x60] sm:$0xff] %vm2738, %v10791
  %10822 = vst.msk [vmem:[%s14 + $0x68] sm:$0xff] %vm2738, %v10796
  %10823 = vst.msk [vmem:[%s14 + $0x70] sm:$0xff] %vm2738, %v10801
  %10824 = vst.msk [vmem:[%s14 + $0x78] sm:$0xff] %vm2738, %v10806
  // Predicated region
  $region58: #{block_forward.1} parent=0 // pred_check
    _
  $region59: #{block_forward.1} parent=0 // pred_check_branch
    %10826 = sbr.rel (0) target = $region61
  $region60: #{block_forward.1} parent=0 // pred_region
    _
  $region61: #{block_forward.1} parent=0 // pred_fallthru
    _
  // Predicated region
  $region62: #{block_forward.1} parent=0 // pred_check
    _
  $region63: #{block_forward.1} parent=0 // pred_check_branch
    %10828 = sbr.rel (0) target = $region65
  $region64: #{block_forward.1} parent=0 // pred_region
    _
  $region65: #{block_forward.1} parent=0 // pred_fallthru
    _

</llo_original>
